<compile_context>
chip_gen: v5e
topology: v5e:2x2
jax: 0.10.0
libtpu: 0.0.40
codegen_flags: <defaults>
</compile_context>

<pallas_src>
import functools

import jax
import jax.numpy as jnp
from jax import lax
from jax.experimental import pallas as pl
from jax.experimental.pallas import tpu as pltpu

NEGATIVE_SLOPE = 0.01
KH = KW = 3


def _conv_leaky_kernel(x_ref, w_ref, b_ref, o_ref, cbuf, lbuf, rbuf, *,
                       H, W, band_rows, off, chunk, use_bcast_load):
    # x_ref : (1, Cin, H*W)       one image, NCHW flattened per channel
    # w_ref : (Cout, Cin*9)       tap index t = ci*9 + (dh+1)*3 + (dw+1)
    # b_ref : (Cout, 1)
    # o_ref : (1, Cout, BAND)     one output row band, flattened NCHW layout
    # cbuf/lbuf/rbuf : (Cin+Cout, off + H*W + off) f32 scratch planes
    #   cbuf: zero-padded input plane (band-local fill)
    #   lbuf: same but image column W-1 zeroed  (serves every dw=-1 tap)
    #   rbuf: same but image column 0   zeroed  (serves every dw=+1 tap)
    #   (rows beyond Cin exist only so the stride-0 sublane-broadcast reads of
    #    Cout rows are trivially in-bounds; they are never read as data.)
    Cin = x_ref.shape[1]
    Cout = o_ref.shape[1]
    HW = H * W
    BAND = band_rows * W
    num_bands = H // band_rows
    pad_len = cbuf.shape[1]

    wmat = w_ref[...]                       # (Cout, 27) f32, single vreg tile
    bias = b_ref[...]                       # (Cout, 1)  f32

    def band_body(band):
        base = off + band * BAND
        # ---- band-local fill of the three padded scratch planes -----------
        r0 = max(band * band_rows - 1, 0)           # static python ints
        r1 = min((band + 1) * band_rows + 1, H)
        lo, hi = r0 * W, r1 * W
        win = hi - lo
        xwin = x_ref[0, :, lo:hi].astype(jnp.float32)            # (Cin, win)
        colw = lax.broadcasted_iota(jnp.int32, (Cin, win), 1) % W
        cbuf[0:Cin, off + lo:off + hi] = xwin
        lbuf[0:Cin, off + lo:off + hi] = jnp.where(colw == W - 1, 0.0, xwin)
        rbuf[0:Cin, off + lo:off + hi] = jnp.where(colw == 0, 0.0, xwin)
        if band == 0:                       # true top edge: zero halo rows
            z = jnp.zeros((Cin, off), jnp.float32)
            cbuf[0:Cin, 0:off] = z
            lbuf[0:Cin, 0:off] = z
            rbuf[0:Cin, 0:off] = z
        if band == num_bands - 1:           # true bottom edge
            zr = jnp.zeros((Cin, pad_len - off - HW), jnp.float32)
            cbuf[0:Cin, off + HW:pad_len] = zr
            lbuf[0:Cin, off + HW:pad_len] = zr
            rbuf[0:Cin, off + HW:pad_len] = zr
        # Interior-band boundary wrap positions (masked-to-zero by definition)
        # sit one element outside the fill window - zero them explicitly so
        # the masked buffers never expose stale data (v7x core-split safety).
        z1 = jnp.zeros((Cin, 1), jnp.float32)
        if r0 > 0:
            lbuf[0:Cin, off + lo - 1:off + lo] = z1
        if r1 < H:
            rbuf[0:Cin, off + hi:off + hi + 1] = z1

        # ---- 27 broadcast-FMA taps, lane-chunked to bound vreg pressure ---
        for c0 in range(0, BAND, chunk):
            cw = min(chunk, BAND - c0)
            acc = jnp.broadcast_to(bias, (Cout, cw))
            for dh in (-1, 0, 1):
                for dw in (-1, 0, 1):
                    src = lbuf if dw == -1 else (rbuf if dw == 1 else cbuf)
                    start = base + c0 + dh * W + dw          # static int
                    for ci in range(Cin):
                        t = ci * (KH * KW) + (dh + 1) * KW + (dw + 1)
                        if use_bcast_load:
                            # row ci replicated across Cout sublanes by the
                            # load itself (vld slot) - no XLU broadcast.
                            xs = src[pl.ds(ci, Cout, stride=0),
                                     pl.ds(start, cw)]        # (Cout, cw)
                        else:
                            xs = src[pl.ds(ci, 1), pl.ds(start, cw)]  # (1,cw)
                        acc = acc + wmat[:, t:t + 1] * xs
            out = jnp.where(acc >= 0, acc, acc * NEGATIVE_SLOPE)
            o_ref[0, :, c0:c0 + cw] = out.astype(o_ref.dtype)

    if num_bands == 1:
        band_body(0)
    else:
        band_id = pl.program_id(1)
        for band in range(num_bands):
            @pl.when(band_id == band)
            def _(band=band):
                band_body(band)


def _default_num_bands():
    # 2 TensorCores per chip on v7x -> shard the band axis across them;
    # v5e/v6e are single-TC, so extra bands only add grid-step overhead.
    try:
        kind = jax.devices()[0].device_kind.lower()
    except Exception:
        return 1
    return 2 if ("v7" in kind or "7x" in kind) else 1


def conv2d_leaky(x_nchw, w_oihw, bias, *, num_bands=None, chunk_lanes=2048):
    """x_nchw: (N, Cin, H, W) f32; w_oihw: (Cout, Cin, 3, 3); bias: (Cout,)."""
    N, Cin, H, W = x_nchw.shape
    Cout = w_oihw.shape[0]
    assert w_oihw.shape == (Cout, Cin, KH, KW)
    HW = H * W
    assert HW % 128 == 0, "flattened plane must be 128-lane dense"

    if num_bands is None:
        num_bands = _default_num_bands()
    # Bands must be whole rows and 128-lane dense, or the output store
    # degrades to masked vst.msk partial stores; otherwise fall back to 1.
    if H % num_bands != 0 or ((H // num_bands) * W) % 128 != 0:
        num_bands = 1
    band_rows = H // num_bands
    BAND = band_rows * W
    assert BAND % 128 == 0

    # Lane-chunk so the live accumulator stays small (chunk always divides BAND).
    chunk = BAND
    while chunk > chunk_lanes and chunk % 2 == 0 and (chunk // 2) % 128 == 0:
        chunk //= 2

    off = -(-(W + 1) // 128) * 128          # >= W+1 and 128-aligned
    pad_len = off + HW + off

    # Pure-metadata reshapes: no transposes, no pads -> no extra HBM traffic.
    x_flat = x_nchw.reshape(N, Cin, HW)
    w2 = w_oihw.reshape(Cout, Cin * KH * KW).astype(jnp.float32)
    b2 = bias.reshape(Cout, 1).astype(jnp.float32)

    def build(use_bcast_load):
        kernel = functools.partial(
            _conv_leaky_kernel, H=H, W=W, band_rows=band_rows, off=off,
            chunk=chunk, use_bcast_load=use_bcast_load)
        return pl.pallas_call(
            kernel,
            out_shape=jax.ShapeDtypeStruct((N, Cout, HW), x_nchw.dtype),
            grid_spec=pltpu.PrefetchScalarGridSpec(
                num_scalar_prefetch=0,
                grid=(N, num_bands),
                in_specs=[
                    pl.BlockSpec((1, Cin, HW), lambda n, b: (n, 0, 0)),
                    pl.BlockSpec((Cout, Cin * KH * KW), lambda n, b: (0, 0)),
                    pl.BlockSpec((Cout, 1), lambda n, b: (0, 0)),
                ],
                out_specs=pl.BlockSpec((1, Cout, BAND), lambda n, b: (n, 0, b)),
                scratch_shapes=[pltpu.VMEM((Cin + Cout, pad_len),
                                           jnp.float32)] * 3,
            ),
            compiler_params=pltpu.CompilerParams(
                dimension_semantics=("parallel", "parallel")),
        )

    try:
        out_flat = build(True)(x_flat, w2, b2)
    except Exception:
        # Stride-0 sublane-broadcast loads not supported by this Mosaic build:
        # fall back to the previously-validated implicit-broadcast multiply.
        out_flat = build(False)(x_flat, w2, b2)
    return out_flat.reshape(N, Cout, H, W)


def reference(x_nchw, w_oihw, bias):
    """Pure-JAX reference for correctness checking."""
    out = jax.lax.conv_general_dilated(
        x_nchw, w_oihw, window_strides=(1, 1), padding=((1, 1), (1, 1)),
        dimension_numbers=("NCHW", "OIHW", "NCHW"))
    out = out + bias.reshape(1, -1, 1, 1)
    return jnp.where(out >= 0, out, out * NEGATIVE_SLOPE)


if __name__ == "__main__":
    key = jax.random.PRNGKey(0)
    kx, kw, kb = jax.random.split(key, 3)

    N, Cin, H, W = 1, 3, 64, 64
    Cout = 8

    x = jax.random.normal(kx, (N, Cin, H, W), dtype=jnp.float32)
    # Deterministic Conv2d-style init (uniform in +/- 1/sqrt(fan_in)).
    fan_in = Cin * KH * KW
    bound = 1.0 / (fan_in ** 0.5)
    w = jax.random.uniform(kw, (Cout, Cin, KH, KW), jnp.float32, -bound, bound)
    b = jax.random.uniform(kb, (Cout,), jnp.float32, -bound, bound)

    out = conv2d_leaky(x, w, b)
    out = jax.block_until_ready(out)

    ref = reference(x, w, b)
    assert out.shape == (N, Cout, H, W), out.shape
    assert jnp.allclose(out, ref, atol=1e-4, rtol=1e-4), "mismatch vs reference"

    print("KERNEL_OK")
</pallas_src>

<mosaic_0001>
module attributes {stable_mosaic.version = 11 : i64} {
  func.func @_conv_leaky_kernel(%arg0: i32, %arg1: i32, %arg2: memref<1x3x4096xf32, #tpu.memory_space<vmem>>, %arg3: memref<8x27xf32, #tpu.memory_space<vmem>>, %arg4: memref<8x1xf32, #tpu.memory_space<vmem>>, %arg5: memref<1x8x4096xf32, #tpu.memory_space<vmem>>, %arg6: memref<11x4352xf32, #tpu.memory_space<vmem>>, %arg7: memref<11x4352xf32, #tpu.memory_space<vmem>>, %arg8: memref<11x4352xf32, #tpu.memory_space<vmem>>) attributes {dimension_semantics = [#tpu.dimension_semantics<parallel>, #tpu.dimension_semantics<parallel>], iteration_bounds = array<i64: 1, 1>, scalar_prefetch = 0 : i64, scratch_operands = 3 : i64, tpu.core_type = #tpu.core_type<tc>, window_params = [{transform_indices = @transform_0, window_bounds = array<i64: 1, 3, 4096>}, {pipeline_mode = #tpu.pipeline_mode<synchronous>, transform_indices = @transform_1, window_bounds = array<i64: 8, 27>}, {pipeline_mode = #tpu.pipeline_mode<synchronous>, transform_indices = @transform_2, window_bounds = array<i64: 8, 1>}, {transform_indices = @transform_3, window_bounds = array<i64: 1, 8, 4096>}]} {
    %c0 = arith.constant 0 : index
    %c0_0 = arith.constant 0 : index
    %0 = vector.load %arg3[%c0, %c0_0] : memref<8x27xf32, #tpu.memory_space<vmem>>, vector<8x27xf32>
    %c0_1 = arith.constant 0 : index
    %c0_2 = arith.constant 0 : index
    %1 = vector.load %arg4[%c0_1, %c0_2] : memref<8x1xf32, #tpu.memory_space<vmem>>, vector<8x1xf32>
    %c0_3 = arith.constant 0 : index
    %c0_4 = arith.constant 0 : index
    %c0_5 = arith.constant 0 : index
    %2 = vector.load %arg2[%c0_3, %c0_4, %c0_5] : memref<1x3x4096xf32, #tpu.memory_space<vmem>>, vector<1x3x4096xf32>
    %3 = vector.shape_cast %2 : vector<1x3x4096xf32> to vector<3x4096xf32>
    %4 = tpu.iota {dimensions = array<i32: 1>} : vector<3x4096xi32>
    %c64_i32 = arith.constant 64 : i32
    %c0_i32 = arith.constant 0 : i32
    %5 = arith.cmpi eq, %c64_i32, %c0_i32 : i32
    %c1_i32 = arith.constant 1 : i32
    %6 = arith.select %5, %c1_i32, %c64_i32 : i32
    %7 = vector.broadcast %6 : i32 to vector<3x4096xi32>
    %8 = arith.remsi %4, %7 : vector<3x4096xi32>
    %c0_i32_6 = arith.constant 0 : i32
    %9 = vector.broadcast %c0_i32_6 : i32 to vector<3x4096xi32>
    %10 = arith.cmpi ne, %8, %9 : vector<3x4096xi32>
    %c0_i32_7 = arith.constant 0 : i32
    %11 = vector.broadcast %c0_i32_7 : i32 to vector<3x4096xi32>
    %12 = arith.cmpi slt, %8, %11 : vector<3x4096xi32>
    %c0_i32_8 = arith.constant 0 : i32
    %13 = arith.cmpi slt, %6, %c0_i32_8 : i32
    %14 = vector.broadcast %13 : i1 to vector<3x4096xi1>
    %15 = vector.broadcast %14 : vector<3x4096xi1> to vector<3x4096xi1>
    %16 = arith.xori %12, %15 : vector<3x4096xi1>
    %17 = arith.andi %16, %10 : vector<3x4096xi1>
    %18 = vector.broadcast %6 : i32 to vector<3x4096xi32>
    %19 = arith.addi %8, %18 : vector<3x4096xi32>
    %20 = arith.select %17, %19, %8 : vector<3x4096xi1>, vector<3x4096xi32>
    %c0_9 = arith.constant 0 : index
    %c128 = arith.constant 128 : index
    %21 = vector.load %arg6[%c0_9, %c128] : memref<11x4352xf32, #tpu.memory_space<vmem>>, vector<3x4096xf32>
    tpu.vector_store %arg6[%c0_9, %c128], %3 {strides = array<i32>} : memref<11x4352xf32, #tpu.memory_space<vmem>>, vector<3x4096xf32>,
    %c63_i32 = arith.constant 63 : i32
    %22 = vector.broadcast %c63_i32 : i32 to vector<3x4096xi32>
    %23 = arith.cmpi eq, %20, %22 : vector<3x4096xi32>
    %cst = arith.constant 0.000000e+00 : f32
    %24 = vector.broadcast %cst : f32 to vector<3x4096xf32>
    %25 = arith.select %23, %24, %3 : vector<3x4096xi1>, vector<3x4096xf32>
    %c0_10 = arith.constant 0 : index
    %c128_11 = arith.constant 128 : index
    %26 = vector.load %arg7[%c0_10, %c128_11] : memref<11x4352xf32, #tpu.memory_space<vmem>>, vector<3x4096xf32>
    tpu.vector_store %arg7[%c0_10, %c128_11], %25 {strides = array<i32>} : memref<11x4352xf32, #tpu.memory_space<vmem>>, vector<3x4096xf32>,
    %c0_i32_12 = arith.constant 0 : i32
    %27 = vector.broadcast %c0_i32_12 : i32 to vector<3x4096xi32>
    %28 = arith.cmpi eq, %20, %27 : vector<3x4096xi32>
    %cst_13 = arith.constant 0.000000e+00 : f32
    %29 = vector.broadcast %cst_13 : f32 to vector<3x4096xf32>
    %30 = arith.select %28, %29, %3 : vector<3x4096xi1>, vector<3x4096xf32>
    %c0_14 = arith.constant 0 : index
    %c128_15 = arith.constant 128 : index
    %31 = vector.load %arg8[%c0_14, %c128_15] : memref<11x4352xf32, #tpu.memory_space<vmem>>, vector<3x4096xf32>
    tpu.vector_store %arg8[%c0_14, %c128_15], %30 {strides = array<i32>} : memref<11x4352xf32, #tpu.memory_space<vmem>>, vector<3x4096xf32>,
    %cst_16 = arith.constant 0.000000e+00 : f32
    %32 = vector.broadcast %cst_16 : f32 to vector<3x128xf32>
    %c0_17 = arith.constant 0 : index
    %c0_18 = arith.constant 0 : index
    %33 = vector.load %arg6[%c0_17, %c0_18] : memref<11x4352xf32, #tpu.memory_space<vmem>>, vector<3x128xf32>
    tpu.vector_store %arg6[%c0_17, %c0_18], %32 {strides = array<i32>} : memref<11x4352xf32, #tpu.memory_space<vmem>>, vector<3x128xf32>,
    %c0_19 = arith.constant 0 : index
    %c0_20 = arith.constant 0 : index
    %34 = vector.load %arg7[%c0_19, %c0_20] : memref<11x4352xf32, #tpu.memory_space<vmem>>, vector<3x128xf32>
    tpu.vector_store %arg7[%c0_19, %c0_20], %32 {strides = array<i32>} : memref<11x4352xf32, #tpu.memory_space<vmem>>, vector<3x128xf32>,
    %c0_21 = arith.constant 0 : index
    %c0_22 = arith.constant 0 : index
    %35 = vector.load %arg8[%c0_21, %c0_22] : memref<11x4352xf32, #tpu.memory_space<vmem>>, vector<3x128xf32>
    tpu.vector_store %arg8[%c0_21, %c0_22], %32 {strides = array<i32>} : memref<11x4352xf32, #tpu.memory_space<vmem>>, vector<3x128xf32>,
    %cst_23 = arith.constant 0.000000e+00 : f32
    %36 = vector.broadcast %cst_23 : f32 to vector<3x128xf32>
    %c0_24 = arith.constant 0 : index
    %c4224 = arith.constant 4224 : index
    %37 = vector.load %arg6[%c0_24, %c4224] : memref<11x4352xf32, #tpu.memory_space<vmem>>, vector<3x128xf32>
    tpu.vector_store %arg6[%c0_24, %c4224], %36 {strides = array<i32>} : memref<11x4352xf32, #tpu.memory_space<vmem>>, vector<3x128xf32>,
    %c0_25 = arith.constant 0 : index
    %c4224_26 = arith.constant 4224 : index
    %38 = vector.load %arg7[%c0_25, %c4224_26] : memref<11x4352xf32, #tpu.memory_space<vmem>>, vector<3x128xf32>
    tpu.vector_store %arg7[%c0_25, %c4224_26], %36 {strides = array<i32>} : memref<11x4352xf32, #tpu.memory_space<vmem>>, vector<3x128xf32>,
    %c0_27 = arith.constant 0 : index
    %c4224_28 = arith.constant 4224 : index
    %39 = vector.load %arg8[%c0_27, %c4224_28] : memref<11x4352xf32, #tpu.memory_space<vmem>>, vector<3x128xf32>
    tpu.vector_store %arg8[%c0_27, %c4224_28], %36 {strides = array<i32>} : memref<11x4352xf32, #tpu.memory_space<vmem>>, vector<3x128xf32>,
    %40 = vector.shape_cast %1 : vector<8x1xf32> to vector<8x1xf32>
    %41 = vector.broadcast %40 : vector<8x1xf32> to vector<8x2048xf32>
    %c0_29 = arith.constant 0 : index
    %c63 = arith.constant 63 : index
    %42 = tpu.strided_load %arg7[%c0_29, %c63] {strides = array<i32: 0, 1>} : memref<11x4352xf32, #tpu.memory_space<vmem>>, vector<8x2048xf32>
    %43 = vector.extract_strided_slice %0 {offsets = [0, 0], sizes = [8, 1], strides = [1, 1]} : vector<8x27xf32> to vector<8x1xf32>
    %44 = vector.broadcast %43 : vector<8x1xf32> to vector<8x2048xf32>
    %45 = arith.mulf %44, %42 : vector<8x2048xf32>
    %46 = arith.addf %41, %45 : vector<8x2048xf32>
    %c1 = arith.constant 1 : index
    %c63_30 = arith.constant 63 : index
    %47 = tpu.strided_load %arg7[%c1, %c63_30] {strides = array<i32: 0, 1>} : memref<11x4352xf32, #tpu.memory_space<vmem>>, vector<8x2048xf32>
    %48 = vector.extract_strided_slice %0 {offsets = [0, 9], sizes = [8, 1], strides = [1, 1]} : vector<8x27xf32> to vector<8x1xf32>
    %49 = vector.broadcast %48 : vector<8x1xf32> to vector<8x2048xf32>
    %50 = arith.mulf %49, %47 : vector<8x2048xf32>
    %51 = arith.addf %46, %50 : vector<8x2048xf32>
    %c2 = arith.constant 2 : index
    %c63_31 = arith.constant 63 : index
    %52 = tpu.strided_load %arg7[%c2, %c63_31] {strides = array<i32: 0, 1>} : memref<11x4352xf32, #tpu.memory_space<vmem>>, vector<8x2048xf32>
    %53 = vector.extract_strided_slice %0 {offsets = [0, 18], sizes = [8, 1], strides = [1, 1]} : vector<8x27xf32> to vector<8x1xf32>
    %54 = vector.broadcast %53 : vector<8x1xf32> to vector<8x2048xf32>
    %55 = arith.mulf %54, %52 : vector<8x2048xf32>
    %56 = arith.addf %51, %55 : vector<8x2048xf32>
    %c0_32 = arith.constant 0 : index
    %c64 = arith.constant 64 : index
    %57 = tpu.strided_load %arg6[%c0_32, %c64] {strides = array<i32: 0, 1>} : memref<11x4352xf32, #tpu.memory_space<vmem>>, vector<8x2048xf32>
    %58 = vector.extract_strided_slice %0 {offsets = [0, 1], sizes = [8, 1], strides = [1, 1]} : vector<8x27xf32> to vector<8x1xf32>
    %59 = vector.broadcast %58 : vector<8x1xf32> to vector<8x2048xf32>
    %60 = arith.mulf %59, %57 : vector<8x2048xf32>
    %61 = arith.addf %56, %60 : vector<8x2048xf32>
    %c1_33 = arith.constant 1 : index
    %c64_34 = arith.constant 64 : index
    %62 = tpu.strided_load %arg6[%c1_33, %c64_34] {strides = array<i32: 0, 1>} : memref<11x4352xf32, #tpu.memory_space<vmem>>, vector<8x2048xf32>
    %63 = vector.extract_strided_slice %0 {offsets = [0, 10], sizes = [8, 1], strides = [1, 1]} : vector<8x27xf32> to vector<8x1xf32>
    %64 = vector.broadcast %63 : vector<8x1xf32> to vector<8x2048xf32>
    %65 = arith.mulf %64, %62 : vector<8x2048xf32>
    %66 = arith.addf %61, %65 : vector<8x2048xf32>
    %c2_35 = arith.constant 2 : index
    %c64_36 = arith.constant 64 : index
    %67 = tpu.strided_load %arg6[%c2_35, %c64_36] {strides = array<i32: 0, 1>} : memref<11x4352xf32, #tpu.memory_space<vmem>>, vector<8x2048xf32>
    %68 = vector.extract_strided_slice %0 {offsets = [0, 19], sizes = [8, 1], strides = [1, 1]} : vector<8x27xf32> to vector<8x1xf32>
    %69 = vector.broadcast %68 : vector<8x1xf32> to vector<8x2048xf32>
    %70 = arith.mulf %69, %67 : vector<8x2048xf32>
    %71 = arith.addf %66, %70 : vector<8x2048xf32>
    %c0_37 = arith.constant 0 : index
    %c65 = arith.constant 65 : index
    %72 = tpu.strided_load %arg8[%c0_37, %c65] {strides = array<i32: 0, 1>} : memref<11x4352xf32, #tpu.memory_space<vmem>>, vector<8x2048xf32>
    %73 = vector.extract_strided_slice %0 {offsets = [0, 2], sizes = [8, 1], strides = [1, 1]} : vector<8x27xf32> to vector<8x1xf32>
    %74 = vector.broadcast %73 : vector<8x1xf32> to vector<8x2048xf32>
    %75 = arith.mulf %74, %72 : vector<8x2048xf32>
    %76 = arith.addf %71, %75 : vector<8x2048xf32>
    %c1_38 = arith.constant 1 : index
    %c65_39 = arith.constant 65 : index
    %77 = tpu.strided_load %arg8[%c1_38, %c65_39] {strides = array<i32: 0, 1>} : memref<11x4352xf32, #tpu.memory_space<vmem>>, vector<8x2048xf32>
    %78 = vector.extract_strided_slice %0 {offsets = [0, 11], sizes = [8, 1], strides = [1, 1]} : vector<8x27xf32> to vector<8x1xf32>
    %79 = vector.broadcast %78 : vector<8x1xf32> to vector<8x2048xf32>
    %80 = arith.mulf %79, %77 : vector<8x2048xf32>
    %81 = arith.addf %76, %80 : vector<8x2048xf32>
    %c2_40 = arith.constant 2 : index
    %c65_41 = arith.constant 65 : index
    %82 = tpu.strided_load %arg8[%c2_40, %c65_41] {strides = array<i32: 0, 1>} : memref<11x4352xf32, #tpu.memory_space<vmem>>, vector<8x2048xf32>
    %83 = vector.extract_strided_slice %0 {offsets = [0, 20], sizes = [8, 1], strides = [1, 1]} : vector<8x27xf32> to vector<8x1xf32>
    %84 = vector.broadcast %83 : vector<8x1xf32> to vector<8x2048xf32>
    %85 = arith.mulf %84, %82 : vector<8x2048xf32>
    %86 = arith.addf %81, %85 : vector<8x2048xf32>
    %c0_42 = arith.constant 0 : index
    %c127 = arith.constant 127 : index
    %87 = tpu.strided_load %arg7[%c0_42, %c127] {strides = array<i32: 0, 1>} : memref<11x4352xf32, #tpu.memory_space<vmem>>, vector<8x2048xf32>
    %88 = vector.extract_strided_slice %0 {offsets = [0, 3], sizes = [8, 1], strides = [1, 1]} : vector<8x27xf32> to vector<8x1xf32>
    %89 = vector.broadcast %88 : vector<8x1xf32> to vector<8x2048xf32>
    %90 = arith.mulf %89, %87 : vector<8x2048xf32>
    %91 = arith.addf %86, %90 : vector<8x2048xf32>
    %c1_43 = arith.constant 1 : index
    %c127_44 = arith.constant 127 : index
    %92 = tpu.strided_load %arg7[%c1_43, %c127_44] {strides = array<i32: 0, 1>} : memref<11x4352xf32, #tpu.memory_space<vmem>>, vector<8x2048xf32>
    %93 = vector.extract_strided_slice %0 {offsets = [0, 12], sizes = [8, 1], strides = [1, 1]} : vector<8x27xf32> to vector<8x1xf32>
    %94 = vector.broadcast %93 : vector<8x1xf32> to vector<8x2048xf32>
    %95 = arith.mulf %94, %92 : vector<8x2048xf32>
    %96 = arith.addf %91, %95 : vector<8x2048xf32>
    %c2_45 = arith.constant 2 : index
    %c127_46 = arith.constant 127 : index
    %97 = tpu.strided_load %arg7[%c2_45, %c127_46] {strides = array<i32: 0, 1>} : memref<11x4352xf32, #tpu.memory_space<vmem>>, vector<8x2048xf32>
    %98 = vector.extract_strided_slice %0 {offsets = [0, 21], sizes = [8, 1], strides = [1, 1]} : vector<8x27xf32> to vector<8x1xf32>
    %99 = vector.broadcast %98 : vector<8x1xf32> to vector<8x2048xf32>
    %100 = arith.mulf %99, %97 : vector<8x2048xf32>
    %101 = arith.addf %96, %100 : vector<8x2048xf32>
    %c0_47 = arith.constant 0 : index
    %c128_48 = arith.constant 128 : index
    %102 = tpu.strided_load %arg6[%c0_47, %c128_48] {strides = array<i32: 0, 1>} : memref<11x4352xf32, #tpu.memory_space<vmem>>, vector<8x2048xf32>
    %103 = vector.extract_strided_slice %0 {offsets = [0, 4], sizes = [8, 1], strides = [1, 1]} : vector<8x27xf32> to vector<8x1xf32>
    %104 = vector.broadcast %103 : vector<8x1xf32> to vector<8x2048xf32>
    %105 = arith.mulf %104, %102 : vector<8x2048xf32>
    %106 = arith.addf %101, %105 : vector<8x2048xf32>
    %c1_49 = arith.constant 1 : index
    %c128_50 = arith.constant 128 : index
    %107 = tpu.strided_load %arg6[%c1_49, %c128_50] {strides = array<i32: 0, 1>} : memref<11x4352xf32, #tpu.memory_space<vmem>>, vector<8x2048xf32>
    %108 = vector.extract_strided_slice %0 {offsets = [0, 13], sizes = [8, 1], strides = [1, 1]} : vector<8x27xf32> to vector<8x1xf32>
    %109 = vector.broadcast %108 : vector<8x1xf32> to vector<8x2048xf32>
    %110 = arith.mulf %109, %107 : vector<8x2048xf32>
    %111 = arith.addf %106, %110 : vector<8x2048xf32>
    %c2_51 = arith.constant 2 : index
    %c128_52 = arith.constant 128 : index
    %112 = tpu.strided_load %arg6[%c2_51, %c128_52] {strides = array<i32: 0, 1>} : memref<11x4352xf32, #tpu.memory_space<vmem>>, vector<8x2048xf32>
    %113 = vector.extract_strided_slice %0 {offsets = [0, 22], sizes = [8, 1], strides = [1, 1]} : vector<8x27xf32> to vector<8x1xf32>
    %114 = vector.broadcast %113 : vector<8x1xf32> to vector<8x2048xf32>
    %115 = arith.mulf %114, %112 : vector<8x2048xf32>
    %116 = arith.addf %111, %115 : vector<8x2048xf32>
    %c0_53 = arith.constant 0 : index
    %c129 = arith.constant 129 : index
    %117 = tpu.strided_load %arg8[%c0_53, %c129] {strides = array<i32: 0, 1>} : memref<11x4352xf32, #tpu.memory_space<vmem>>, vector<8x2048xf32>
    %118 = vector.extract_strided_slice %0 {offsets = [0, 5], sizes = [8, 1], strides = [1, 1]} : vector<8x27xf32> to vector<8x1xf32>
    %119 = vector.broadcast %118 : vector<8x1xf32> to vector<8x2048xf32>
    %120 = arith.mulf %119, %117 : vector<8x2048xf32>
    %121 = arith.addf %116, %120 : vector<8x2048xf32>
    %c1_54 = arith.constant 1 : index
    %c129_55 = arith.constant 129 : index
    %122 = tpu.strided_load %arg8[%c1_54, %c129_55] {strides = array<i32: 0, 1>} : memref<11x4352xf32, #tpu.memory_space<vmem>>, vector<8x2048xf32>
    %123 = vector.extract_strided_slice %0 {offsets = [0, 14], sizes = [8, 1], strides = [1, 1]} : vector<8x27xf32> to vector<8x1xf32>
    %124 = vector.broadcast %123 : vector<8x1xf32> to vector<8x2048xf32>
    %125 = arith.mulf %124, %122 : vector<8x2048xf32>
    %126 = arith.addf %121, %125 : vector<8x2048xf32>
    %c2_56 = arith.constant 2 : index
    %c129_57 = arith.constant 129 : index
    %127 = tpu.strided_load %arg8[%c2_56, %c129_57] {strides = array<i32: 0, 1>} : memref<11x4352xf32, #tpu.memory_space<vmem>>, vector<8x2048xf32>
    %128 = vector.extract_strided_slice %0 {offsets = [0, 23], sizes = [8, 1], strides = [1, 1]} : vector<8x27xf32> to vector<8x1xf32>
    %129 = vector.broadcast %128 : vector<8x1xf32> to vector<8x2048xf32>
    %130 = arith.mulf %129, %127 : vector<8x2048xf32>
    %131 = arith.addf %126, %130 : vector<8x2048xf32>
    %c0_58 = arith.constant 0 : index
    %c191 = arith.constant 191 : index
    %132 = tpu.strided_load %arg7[%c0_58, %c191] {strides = array<i32: 0, 1>} : memref<11x4352xf32, #tpu.memory_space<vmem>>, vector<8x2048xf32>
    %133 = vector.extract_strided_slice %0 {offsets = [0, 6], sizes = [8, 1], strides = [1, 1]} : vector<8x27xf32> to vector<8x1xf32>
    %134 = vector.broadcast %133 : vector<8x1xf32> to vector<8x2048xf32>
    %135 = arith.mulf %134, %132 : vector<8x2048xf32>
    %136 = arith.addf %131, %135 : vector<8x2048xf32>
    %c1_59 = arith.constant 1 : index
    %c191_60 = arith.constant 191 : index
    %137 = tpu.strided_load %arg7[%c1_59, %c191_60] {strides = array<i32: 0, 1>} : memref<11x4352xf32, #tpu.memory_space<vmem>>, vector<8x2048xf32>
    %138 = vector.extract_strided_slice %0 {offsets = [0, 15], sizes = [8, 1], strides = [1, 1]} : vector<8x27xf32> to vector<8x1xf32>
    %139 = vector.broadcast %138 : vector<8x1xf32> to vector<8x2048xf32>
    %140 = arith.mulf %139, %137 : vector<8x2048xf32>
    %141 = arith.addf %136, %140 : vector<8x2048xf32>
    %c2_61 = arith.constant 2 : index
    %c191_62 = arith.constant 191 : index
    %142 = tpu.strided_load %arg7[%c2_61, %c191_62] {strides = array<i32: 0, 1>} : memref<11x4352xf32, #tpu.memory_space<vmem>>, vector<8x2048xf32>
    %143 = vector.extract_strided_slice %0 {offsets = [0, 24], sizes = [8, 1], strides = [1, 1]} : vector<8x27xf32> to vector<8x1xf32>
    %144 = vector.broadcast %143 : vector<8x1xf32> to vector<8x2048xf32>
    %145 = arith.mulf %144, %142 : vector<8x2048xf32>
    %146 = arith.addf %141, %145 : vector<8x2048xf32>
    %c0_63 = arith.constant 0 : index
    %c192 = arith.constant 192 : index
    %147 = tpu.strided_load %arg6[%c0_63, %c192] {strides = array<i32: 0, 1>} : memref<11x4352xf32, #tpu.memory_space<vmem>>, vector<8x2048xf32>
    %148 = vector.extract_strided_slice %0 {offsets = [0, 7], sizes = [8, 1], strides = [1, 1]} : vector<8x27xf32> to vector<8x1xf32>
    %149 = vector.broadcast %148 : vector<8x1xf32> to vector<8x2048xf32>
    %150 = arith.mulf %149, %147 : vector<8x2048xf32>
    %151 = arith.addf %146, %150 : vector<8x2048xf32>
    %c1_64 = arith.constant 1 : index
    %c192_65 = arith.constant 192 : index
    %152 = tpu.strided_load %arg6[%c1_64, %c192_65] {strides = array<i32: 0, 1>} : memref<11x4352xf32, #tpu.memory_space<vmem>>, vector<8x2048xf32>
    %153 = vector.extract_strided_slice %0 {offsets = [0, 16], sizes = [8, 1], strides = [1, 1]} : vector<8x27xf32> to vector<8x1xf32>
    %154 = vector.broadcast %153 : vector<8x1xf32> to vector<8x2048xf32>
    %155 = arith.mulf %154, %152 : vector<8x2048xf32>
    %156 = arith.addf %151, %155 : vector<8x2048xf32>
    %c2_66 = arith.constant 2 : index
    %c192_67 = arith.constant 192 : index
    %157 = tpu.strided_load %arg6[%c2_66, %c192_67] {strides = array<i32: 0, 1>} : memref<11x4352xf32, #tpu.memory_space<vmem>>, vector<8x2048xf32>
    %158 = vector.extract_strided_slice %0 {offsets = [0, 25], sizes = [8, 1], strides = [1, 1]} : vector<8x27xf32> to vector<8x1xf32>
    %159 = vector.broadcast %158 : vector<8x1xf32> to vector<8x2048xf32>
    %160 = arith.mulf %159, %157 : vector<8x2048xf32>
    %161 = arith.addf %156, %160 : vector<8x2048xf32>
    %c0_68 = arith.constant 0 : index
    %c193 = arith.constant 193 : index
    %162 = tpu.strided_load %arg8[%c0_68, %c193] {strides = array<i32: 0, 1>} : memref<11x4352xf32, #tpu.memory_space<vmem>>, vector<8x2048xf32>
    %163 = vector.extract_strided_slice %0 {offsets = [0, 8], sizes = [8, 1], strides = [1, 1]} : vector<8x27xf32> to vector<8x1xf32>
    %164 = vector.broadcast %163 : vector<8x1xf32> to vector<8x2048xf32>
    %165 = arith.mulf %164, %162 : vector<8x2048xf32>
    %166 = arith.addf %161, %165 : vector<8x2048xf32>
    %c1_69 = arith.constant 1 : index
    %c193_70 = arith.constant 193 : index
    %167 = tpu.strided_load %arg8[%c1_69, %c193_70] {strides = array<i32: 0, 1>} : memref<11x4352xf32, #tpu.memory_space<vmem>>, vector<8x2048xf32>
    %168 = vector.extract_strided_slice %0 {offsets = [0, 17], sizes = [8, 1], strides = [1, 1]} : vector<8x27xf32> to vector<8x1xf32>
    %169 = vector.broadcast %168 : vector<8x1xf32> to vector<8x2048xf32>
    %170 = arith.mulf %169, %167 : vector<8x2048xf32>
    %171 = arith.addf %166, %170 : vector<8x2048xf32>
    %c2_71 = arith.constant 2 : index
    %c193_72 = arith.constant 193 : index
    %172 = tpu.strided_load %arg8[%c2_71, %c193_72] {strides = array<i32: 0, 1>} : memref<11x4352xf32, #tpu.memory_space<vmem>>, vector<8x2048xf32>
    %173 = vector.extract_strided_slice %0 {offsets = [0, 26], sizes = [8, 1], strides = [1, 1]} : vector<8x27xf32> to vector<8x1xf32>
    %174 = vector.broadcast %173 : vector<8x1xf32> to vector<8x2048xf32>
    %175 = arith.mulf %174, %172 : vector<8x2048xf32>
    %176 = arith.addf %171, %175 : vector<8x2048xf32>
    %cst_73 = arith.constant 0.000000e+00 : f32
    %177 = vector.broadcast %cst_73 : f32 to vector<8x2048xf32>
    %178 = arith.cmpf oge, %176, %177 : vector<8x2048xf32>
    %cst_74 = arith.constant 0.00999999977 : f32
    %179 = vector.broadcast %cst_74 : f32 to vector<8x2048xf32>
    %180 = arith.mulf %176, %179 : vector<8x2048xf32>
    %181 = arith.select %178, %176, %180 : vector<8x2048xi1>, vector<8x2048xf32>
    %c0_75 = arith.constant 0 : index
    %c0_76 = arith.constant 0 : index
    %c0_77 = arith.constant 0 : index
    %182 = vector.load %arg5[%c0_75, %c0_76, %c0_77] : memref<1x8x4096xf32, #tpu.memory_space<vmem>>, vector<1x8x2048xf32>
    %183 = vector.shape_cast %182 : vector<1x8x2048xf32> to vector<8x2048xf32>
    %184 = vector.shape_cast %181 : vector<8x2048xf32> to vector<1x8x2048xf32>
    tpu.vector_store %arg5[%c0_75, %c0_76, %c0_77], %184 {strides = array<i32>} : memref<1x8x4096xf32, #tpu.memory_space<vmem>>, vector<1x8x2048xf32>,
    %185 = vector.shape_cast %1 : vector<8x1xf32> to vector<8x1xf32>
    %186 = vector.broadcast %185 : vector<8x1xf32> to vector<8x2048xf32>
    %c0_78 = arith.constant 0 : index
    %c2111 = arith.constant 2111 : index
    %187 = tpu.strided_load %arg7[%c0_78, %c2111] {strides = array<i32: 0, 1>} : memref<11x4352xf32, #tpu.memory_space<vmem>>, vector<8x2048xf32>
    %188 = vector.extract_strided_slice %0 {offsets = [0, 0], sizes = [8, 1], strides = [1, 1]} : vector<8x27xf32> to vector<8x1xf32>
    %189 = vector.broadcast %188 : vector<8x1xf32> to vector<8x2048xf32>
    %190 = arith.mulf %189, %187 : vector<8x2048xf32>
    %191 = arith.addf %186, %190 : vector<8x2048xf32>
    %c1_79 = arith.constant 1 : index
    %c2111_80 = arith.constant 2111 : index
    %192 = tpu.strided_load %arg7[%c1_79, %c2111_80] {strides = array<i32: 0, 1>} : memref<11x4352xf32, #tpu.memory_space<vmem>>, vector<8x2048xf32>
    %193 = vector.extract_strided_slice %0 {offsets = [0, 9], sizes = [8, 1], strides = [1, 1]} : vector<8x27xf32> to vector<8x1xf32>
    %194 = vector.broadcast %193 : vector<8x1xf32> to vector<8x2048xf32>
    %195 = arith.mulf %194, %192 : vector<8x2048xf32>
    %196 = arith.addf %191, %195 : vector<8x2048xf32>
    %c2_81 = arith.constant 2 : index
    %c2111_82 = arith.constant 2111 : index
    %197 = tpu.strided_load %arg7[%c2_81, %c2111_82] {strides = array<i32: 0, 1>} : memref<11x4352xf32, #tpu.memory_space<vmem>>, vector<8x2048xf32>
    %198 = vector.extract_strided_slice %0 {offsets = [0, 18], sizes = [8, 1], strides = [1, 1]} : vector<8x27xf32> to vector<8x1xf32>
    %199 = vector.broadcast %198 : vector<8x1xf32> to vector<8x2048xf32>
    %200 = arith.mulf %199, %197 : vector<8x2048xf32>
    %201 = arith.addf %196, %200 : vector<8x2048xf32>
    %c0_83 = arith.constant 0 : index
    %c2112 = arith.constant 2112 : index
    %202 = tpu.strided_load %arg6[%c0_83, %c2112] {strides = array<i32: 0, 1>} : memref<11x4352xf32, #tpu.memory_space<vmem>>, vector<8x2048xf32>
    %203 = vector.extract_strided_slice %0 {offsets = [0, 1], sizes = [8, 1], strides = [1, 1]} : vector<8x27xf32> to vector<8x1xf32>
    %204 = vector.broadcast %203 : vector<8x1xf32> to vector<8x2048xf32>
    %205 = arith.mulf %204, %202 : vector<8x2048xf32>
    %206 = arith.addf %201, %205 : vector<8x2048xf32>
    %c1_84 = arith.constant 1 : index
    %c2112_85 = arith.constant 2112 : index
    %207 = tpu.strided_load %arg6[%c1_84, %c2112_85] {strides = array<i32: 0, 1>} : memref<11x4352xf32, #tpu.memory_space<vmem>>, vector<8x2048xf32>
    %208 = vector.extract_strided_slice %0 {offsets = [0, 10], sizes = [8, 1], strides = [1, 1]} : vector<8x27xf32> to vector<8x1xf32>
    %209 = vector.broadcast %208 : vector<8x1xf32> to vector<8x2048xf32>
    %210 = arith.mulf %209, %207 : vector<8x2048xf32>
    %211 = arith.addf %206, %210 : vector<8x2048xf32>
    %c2_86 = arith.constant 2 : index
    %c2112_87 = arith.constant 2112 : index
    %212 = tpu.strided_load %arg6[%c2_86, %c2112_87] {strides = array<i32: 0, 1>} : memref<11x4352xf32, #tpu.memory_space<vmem>>, vector<8x2048xf32>
    %213 = vector.extract_strided_slice %0 {offsets = [0, 19], sizes = [8, 1], strides = [1, 1]} : vector<8x27xf32> to vector<8x1xf32>
    %214 = vector.broadcast %213 : vector<8x1xf32> to vector<8x2048xf32>
    %215 = arith.mulf %214, %212 : vector<8x2048xf32>
    %216 = arith.addf %211, %215 : vector<8x2048xf32>
    %c0_88 = arith.constant 0 : index
    %c2113 = arith.constant 2113 : index
    %217 = tpu.strided_load %arg8[%c0_88, %c2113] {strides = array<i32: 0, 1>} : memref<11x4352xf32, #tpu.memory_space<vmem>>, vector<8x2048xf32>
    %218 = vector.extract_strided_slice %0 {offsets = [0, 2], sizes = [8, 1], strides = [1, 1]} : vector<8x27xf32> to vector<8x1xf32>
    %219 = vector.broadcast %218 : vector<8x1xf32> to vector<8x2048xf32>
    %220 = arith.mulf %219, %217 : vector<8x2048xf32>
    %221 = arith.addf %216, %220 : vector<8x2048xf32>
    %c1_89 = arith.constant 1 : index
    %c2113_90 = arith.constant 2113 : index
    %222 = tpu.strided_load %arg8[%c1_89, %c2113_90] {strides = array<i32: 0, 1>} : memref<11x4352xf32, #tpu.memory_space<vmem>>, vector<8x2048xf32>
    %223 = vector.extract_strided_slice %0 {offsets = [0, 11], sizes = [8, 1], strides = [1, 1]} : vector<8x27xf32> to vector<8x1xf32>
    %224 = vector.broadcast %223 : vector<8x1xf32> to vector<8x2048xf32>
    %225 = arith.mulf %224, %222 : vector<8x2048xf32>
    %226 = arith.addf %221, %225 : vector<8x2048xf32>
    %c2_91 = arith.constant 2 : index
    %c2113_92 = arith.constant 2113 : index
    %227 = tpu.strided_load %arg8[%c2_91, %c2113_92] {strides = array<i32: 0, 1>} : memref<11x4352xf32, #tpu.memory_space<vmem>>, vector<8x2048xf32>
    %228 = vector.extract_strided_slice %0 {offsets = [0, 20], sizes = [8, 1], strides = [1, 1]} : vector<8x27xf32> to vector<8x1xf32>
    %229 = vector.broadcast %228 : vector<8x1xf32> to vector<8x2048xf32>
    %230 = arith.mulf %229, %227 : vector<8x2048xf32>
    %231 = arith.addf %226, %230 : vector<8x2048xf32>
    %c0_93 = arith.constant 0 : index
    %c2175 = arith.constant 2175 : index
    %232 = tpu.strided_load %arg7[%c0_93, %c2175] {strides = array<i32: 0, 1>} : memref<11x4352xf32, #tpu.memory_space<vmem>>, vector<8x2048xf32>
    %233 = vector.extract_strided_slice %0 {offsets = [0, 3], sizes = [8, 1], strides = [1, 1]} : vector<8x27xf32> to vector<8x1xf32>
    %234 = vector.broadcast %233 : vector<8x1xf32> to vector<8x2048xf32>
    %235 = arith.mulf %234, %232 : vector<8x2048xf32>
    %236 = arith.addf %231, %235 : vector<8x2048xf32>
    %c1_94 = arith.constant 1 : index
    %c2175_95 = arith.constant 2175 : index
    %237 = tpu.strided_load %arg7[%c1_94, %c2175_95] {strides = array<i32: 0, 1>} : memref<11x4352xf32, #tpu.memory_space<vmem>>, vector<8x2048xf32>
    %238 = vector.extract_strided_slice %0 {offsets = [0, 12], sizes = [8, 1], strides = [1, 1]} : vector<8x27xf32> to vector<8x1xf32>
    %239 = vector.broadcast %238 : vector<8x1xf32> to vector<8x2048xf32>
    %240 = arith.mulf %239, %237 : vector<8x2048xf32>
    %241 = arith.addf %236, %240 : vector<8x2048xf32>
    %c2_96 = arith.constant 2 : index
    %c2175_97 = arith.constant 2175 : index
    %242 = tpu.strided_load %arg7[%c2_96, %c2175_97] {strides = array<i32: 0, 1>} : memref<11x4352xf32, #tpu.memory_space<vmem>>, vector<8x2048xf32>
    %243 = vector.extract_strided_slice %0 {offsets = [0, 21], sizes = [8, 1], strides = [1, 1]} : vector<8x27xf32> to vector<8x1xf32>
    %244 = vector.broadcast %243 : vector<8x1xf32> to vector<8x2048xf32>
    %245 = arith.mulf %244, %242 : vector<8x2048xf32>
    %246 = arith.addf %241, %245 : vector<8x2048xf32>
    %c0_98 = arith.constant 0 : index
    %c2176 = arith.constant 2176 : index
    %247 = tpu.strided_load %arg6[%c0_98, %c2176] {strides = array<i32: 0, 1>} : memref<11x4352xf32, #tpu.memory_space<vmem>>, vector<8x2048xf32>
    %248 = vector.extract_strided_slice %0 {offsets = [0, 4], sizes = [8, 1], strides = [1, 1]} : vector<8x27xf32> to vector<8x1xf32>
    %249 = vector.broadcast %248 : vector<8x1xf32> to vector<8x2048xf32>
    %250 = arith.mulf %249, %247 : vector<8x2048xf32>
    %251 = arith.addf %246, %250 : vector<8x2048xf32>
    %c1_99 = arith.constant 1 : index
    %c2176_100 = arith.constant 2176 : index
    %252 = tpu.strided_load %arg6[%c1_99, %c2176_100] {strides = array<i32: 0, 1>} : memref<11x4352xf32, #tpu.memory_space<vmem>>, vector<8x2048xf32>
    %253 = vector.extract_strided_slice %0 {offsets = [0, 13], sizes = [8, 1], strides = [1, 1]} : vector<8x27xf32> to vector<8x1xf32>
    %254 = vector.broadcast %253 : vector<8x1xf32> to vector<8x2048xf32>
    %255 = arith.mulf %254, %252 : vector<8x2048xf32>
    %256 = arith.addf %251, %255 : vector<8x2048xf32>
    %c2_101 = arith.constant 2 : index
    %c2176_102 = arith.constant 2176 : index
    %257 = tpu.strided_load %arg6[%c2_101, %c2176_102] {strides = array<i32: 0, 1>} : memref<11x4352xf32, #tpu.memory_space<vmem>>, vector<8x2048xf32>
    %258 = vector.extract_strided_slice %0 {offsets = [0, 22], sizes = [8, 1], strides = [1, 1]} : vector<8x27xf32> to vector<8x1xf32>
    %259 = vector.broadcast %258 : vector<8x1xf32> to vector<8x2048xf32>
    %260 = arith.mulf %259, %257 : vector<8x2048xf32>
    %261 = arith.addf %256, %260 : vector<8x2048xf32>
    %c0_103 = arith.constant 0 : index
    %c2177 = arith.constant 2177 : index
    %262 = tpu.strided_load %arg8[%c0_103, %c2177] {strides = array<i32: 0, 1>} : memref<11x4352xf32, #tpu.memory_space<vmem>>, vector<8x2048xf32>
    %263 = vector.extract_strided_slice %0 {offsets = [0, 5], sizes = [8, 1], strides = [1, 1]} : vector<8x27xf32> to vector<8x1xf32>
    %264 = vector.broadcast %263 : vector<8x1xf32> to vector<8x2048xf32>
    %265 = arith.mulf %264, %262 : vector<8x2048xf32>
    %266 = arith.addf %261, %265 : vector<8x2048xf32>
    %c1_104 = arith.constant 1 : index
    %c2177_105 = arith.constant 2177 : index
    %267 = tpu.strided_load %arg8[%c1_104, %c2177_105] {strides = array<i32: 0, 1>} : memref<11x4352xf32, #tpu.memory_space<vmem>>, vector<8x2048xf32>
    %268 = vector.extract_strided_slice %0 {offsets = [0, 14], sizes = [8, 1], strides = [1, 1]} : vector<8x27xf32> to vector<8x1xf32>
    %269 = vector.broadcast %268 : vector<8x1xf32> to vector<8x2048xf32>
    %270 = arith.mulf %269, %267 : vector<8x2048xf32>
    %271 = arith.addf %266, %270 : vector<8x2048xf32>
    %c2_106 = arith.constant 2 : index
    %c2177_107 = arith.constant 2177 : index
    %272 = tpu.strided_load %arg8[%c2_106, %c2177_107] {strides = array<i32: 0, 1>} : memref<11x4352xf32, #tpu.memory_space<vmem>>, vector<8x2048xf32>
    %273 = vector.extract_strided_slice %0 {offsets = [0, 23], sizes = [8, 1], strides = [1, 1]} : vector<8x27xf32> to vector<8x1xf32>
    %274 = vector.broadcast %273 : vector<8x1xf32> to vector<8x2048xf32>
    %275 = arith.mulf %274, %272 : vector<8x2048xf32>
    %276 = arith.addf %271, %275 : vector<8x2048xf32>
    %c0_108 = arith.constant 0 : index
    %c2239 = arith.constant 2239 : index
    %277 = tpu.strided_load %arg7[%c0_108, %c2239] {strides = array<i32: 0, 1>} : memref<11x4352xf32, #tpu.memory_space<vmem>>, vector<8x2048xf32>
    %278 = vector.extract_strided_slice %0 {offsets = [0, 6], sizes = [8, 1], strides = [1, 1]} : vector<8x27xf32> to vector<8x1xf32>
    %279 = vector.broadcast %278 : vector<8x1xf32> to vector<8x2048xf32>
    %280 = arith.mulf %279, %277 : vector<8x2048xf32>
    %281 = arith.addf %276, %280 : vector<8x2048xf32>
    %c1_109 = arith.constant 1 : index
    %c2239_110 = arith.constant 2239 : index
    %282 = tpu.strided_load %arg7[%c1_109, %c2239_110] {strides = array<i32: 0, 1>} : memref<11x4352xf32, #tpu.memory_space<vmem>>, vector<8x2048xf32>
    %283 = vector.extract_strided_slice %0 {offsets = [0, 15], sizes = [8, 1], strides = [1, 1]} : vector<8x27xf32> to vector<8x1xf32>
    %284 = vector.broadcast %283 : vector<8x1xf32> to vector<8x2048xf32>
    %285 = arith.mulf %284, %282 : vector<8x2048xf32>
    %286 = arith.addf %281, %285 : vector<8x2048xf32>
    %c2_111 = arith.constant 2 : index
    %c2239_112 = arith.constant 2239 : index
    %287 = tpu.strided_load %arg7[%c2_111, %c2239_112] {strides = array<i32: 0, 1>} : memref<11x4352xf32, #tpu.memory_space<vmem>>, vector<8x2048xf32>
    %288 = vector.extract_strided_slice %0 {offsets = [0, 24], sizes = [8, 1], strides = [1, 1]} : vector<8x27xf32> to vector<8x1xf32>
    %289 = vector.broadcast %288 : vector<8x1xf32> to vector<8x2048xf32>
    %290 = arith.mulf %289, %287 : vector<8x2048xf32>
    %291 = arith.addf %286, %290 : vector<8x2048xf32>
    %c0_113 = arith.constant 0 : index
    %c2240 = arith.constant 2240 : index
    %292 = tpu.strided_load %arg6[%c0_113, %c2240] {strides = array<i32: 0, 1>} : memref<11x4352xf32, #tpu.memory_space<vmem>>, vector<8x2048xf32>
    %293 = vector.extract_strided_slice %0 {offsets = [0, 7], sizes = [8, 1], strides = [1, 1]} : vector<8x27xf32> to vector<8x1xf32>
    %294 = vector.broadcast %293 : vector<8x1xf32> to vector<8x2048xf32>
    %295 = arith.mulf %294, %292 : vector<8x2048xf32>
    %296 = arith.addf %291, %295 : vector<8x2048xf32>
    %c1_114 = arith.constant 1 : index
    %c2240_115 = arith.constant 2240 : index
    %297 = tpu.strided_load %arg6[%c1_114, %c2240_115] {strides = array<i32: 0, 1>} : memref<11x4352xf32, #tpu.memory_space<vmem>>, vector<8x2048xf32>
    %298 = vector.extract_strided_slice %0 {offsets = [0, 16], sizes = [8, 1], strides = [1, 1]} : vector<8x27xf32> to vector<8x1xf32>
    %299 = vector.broadcast %298 : vector<8x1xf32> to vector<8x2048xf32>
    %300 = arith.mulf %299, %297 : vector<8x2048xf32>
    %301 = arith.addf %296, %300 : vector<8x2048xf32>
    %c2_116 = arith.constant 2 : index
    %c2240_117 = arith.constant 2240 : index
    %302 = tpu.strided_load %arg6[%c2_116, %c2240_117] {strides = array<i32: 0, 1>} : memref<11x4352xf32, #tpu.memory_space<vmem>>, vector<8x2048xf32>
    %303 = vector.extract_strided_slice %0 {offsets = [0, 25], sizes = [8, 1], strides = [1, 1]} : vector<8x27xf32> to vector<8x1xf32>
    %304 = vector.broadcast %303 : vector<8x1xf32> to vector<8x2048xf32>
    %305 = arith.mulf %304, %302 : vector<8x2048xf32>
    %306 = arith.addf %301, %305 : vector<8x2048xf32>
    %c0_118 = arith.constant 0 : index
    %c2241 = arith.constant 2241 : index
    %307 = tpu.strided_load %arg8[%c0_118, %c2241] {strides = array<i32: 0, 1>} : memref<11x4352xf32, #tpu.memory_space<vmem>>, vector<8x2048xf32>
    %308 = vector.extract_strided_slice %0 {offsets = [0, 8], sizes = [8, 1], strides = [1, 1]} : vector<8x27xf32> to vector<8x1xf32>
    %309 = vector.broadcast %308 : vector<8x1xf32> to vector<8x2048xf32>
    %310 = arith.mulf %309, %307 : vector<8x2048xf32>
    %311 = arith.addf %306, %310 : vector<8x2048xf32>
    %c1_119 = arith.constant 1 : index
    %c2241_120 = arith.constant 2241 : index
    %312 = tpu.strided_load %arg8[%c1_119, %c2241_120] {strides = array<i32: 0, 1>} : memref<11x4352xf32, #tpu.memory_space<vmem>>, vector<8x2048xf32>
    %313 = vector.extract_strided_slice %0 {offsets = [0, 17], sizes = [8, 1], strides = [1, 1]} : vector<8x27xf32> to vector<8x1xf32>
    %314 = vector.broadcast %313 : vector<8x1xf32> to vector<8x2048xf32>
    %315 = arith.mulf %314, %312 : vector<8x2048xf32>
    %316 = arith.addf %311, %315 : vector<8x2048xf32>
    %c2_121 = arith.constant 2 : index
    %c2241_122 = arith.constant 2241 : index
    %317 = tpu.strided_load %arg8[%c2_121, %c2241_122] {strides = array<i32: 0, 1>} : memref<11x4352xf32, #tpu.memory_space<vmem>>, vector<8x2048xf32>
    %318 = vector.extract_strided_slice %0 {offsets = [0, 26], sizes = [8, 1], strides = [1, 1]} : vector<8x27xf32> to vector<8x1xf32>
    %319 = vector.broadcast %318 : vector<8x1xf32> to vector<8x2048xf32>
    %320 = arith.mulf %319, %317 : vector<8x2048xf32>
    %321 = arith.addf %316, %320 : vector<8x2048xf32>
    %cst_123 = arith.constant 0.000000e+00 : f32
    %322 = vector.broadcast %cst_123 : f32 to vector<8x2048xf32>
    %323 = arith.cmpf oge, %321, %322 : vector<8x2048xf32>
    %cst_124 = arith.constant 0.00999999977 : f32
    %324 = vector.broadcast %cst_124 : f32 to vector<8x2048xf32>
    %325 = arith.mulf %321, %324 : vector<8x2048xf32>
    %326 = arith.select %323, %321, %325 : vector<8x2048xi1>, vector<8x2048xf32>
    %c0_125 = arith.constant 0 : index
    %c0_126 = arith.constant 0 : index
    %c2048 = arith.constant 2048 : index
    %327 = vector.load %arg5[%c0_125, %c0_126, %c2048] : memref<1x8x4096xf32, #tpu.memory_space<vmem>>, vector<1x8x2048xf32>
    %328 = vector.shape_cast %327 : vector<1x8x2048xf32> to vector<8x2048xf32>
    %329 = vector.shape_cast %326 : vector<8x2048xf32> to vector<1x8x2048xf32>
    tpu.vector_store %arg5[%c0_125, %c0_126, %c2048], %329 {strides = array<i32>} : memref<1x8x4096xf32, #tpu.memory_space<vmem>>, vector<1x8x2048xf32>,
    return
  }
  func.func @transform_0(%arg0: i32, %arg1: i32) -> (i32, i32, i32) {
    %c0_i32 = arith.constant 0 : i32
    %c0_i32_0 = arith.constant 0 : i32
    %c0_i32_1 = arith.constant 0 : i32
    return %arg0, %c0_i32, %c0_i32_0 : i32, i32, i32
  }
  func.func @transform_1(%arg0: i32, %arg1: i32) -> (i32, i32) {
    %c0_i32 = arith.constant 0 : i32
    %c0_i32_0 = arith.constant 0 : i32
    %c0_i32_1 = arith.constant 0 : i32
    return %c0_i32, %c0_i32_0 : i32, i32
  }
  func.func @transform_2(%arg0: i32, %arg1: i32) -> (i32, i32) {
    %c0_i32 = arith.constant 0 : i32
    %c0_i32_0 = arith.constant 0 : i32
    %c0_i32_1 = arith.constant 0 : i32
    return %c0_i32, %c0_i32_0 : i32, i32
  }
  func.func @transform_3(%arg0: i32, %arg1: i32) -> (i32, i32, i32) {
    %c0_i32 = arith.constant 0 : i32
    %c0_i32_0 = arith.constant 0 : i32
    return %arg0, %c0_i32, %arg1 : i32, i32, i32
  }
}

module attributes {stable_mosaic.version = 11 : i64} {
  func.func @_conv_leaky_kernel(%arg0: i32, %arg1: i32, %arg2: memref<1x3x4096xf32, #tpu.memory_space<vmem>>, %arg3: memref<8x27xf32, #tpu.memory_space<vmem>>, %arg4: memref<8x1xf32, #tpu.memory_space<vmem>>, %arg5: memref<1x8x4096xf32, #tpu.memory_space<vmem>>, %arg6: memref<11x4352xf32, #tpu.memory_space<vmem>>, %arg7: memref<11x4352xf32, #tpu.memory_space<vmem>>, %arg8: memref<11x4352xf32, #tpu.memory_space<vmem>>) attributes {dimension_semantics = [#tpu.dimension_semantics<parallel>, #tpu.dimension_semantics<parallel>], iteration_bounds = array<i64: 1, 1>, scalar_prefetch = 0 : i64, scratch_operands = 3 : i64, tpu.core_type = #tpu.core_type<tc>, window_params = [{transform_indices = @transform_0, window_bounds = array<i64: 1, 3, 4096>}, {pipeline_mode = #tpu.pipeline_mode<synchronous>, transform_indices = @transform_1, window_bounds = array<i64: 8, 27>}, {pipeline_mode = #tpu.pipeline_mode<synchronous>, transform_indices = @transform_2, window_bounds = array<i64: 8, 1>}, {transform_indices = @transform_3, window_bounds = array<i64: 1, 8, 4096>}]} {
    %c0 = arith.constant 0 : index
    %c0_0 = arith.constant 0 : index
    %0 = vector.load %arg3[%c0, %c0_0] : memref<8x27xf32, #tpu.memory_space<vmem>>, vector<8x27xf32>
    %c0_1 = arith.constant 0 : index
    %c0_2 = arith.constant 0 : index
    %1 = vector.load %arg4[%c0_1, %c0_2] : memref<8x1xf32, #tpu.memory_space<vmem>>, vector<8x1xf32>
    %c0_3 = arith.constant 0 : index
    %c0_4 = arith.constant 0 : index
    %c0_5 = arith.constant 0 : index
    %2 = vector.load %arg2[%c0_3, %c0_4, %c0_5] : memref<1x3x4096xf32, #tpu.memory_space<vmem>>, vector<1x3x4096xf32>
    %3 = vector.shape_cast %2 : vector<1x3x4096xf32> to vector<3x4096xf32>
    %4 = tpu.iota {dimensions = array<i32: 1>} : vector<3x4096xi32>
    %c64_i32 = arith.constant 64 : i32
    %c0_i32 = arith.constant 0 : i32
    %5 = arith.cmpi eq, %c64_i32, %c0_i32 : i32
    %c1_i32 = arith.constant 1 : i32
    %6 = arith.select %5, %c1_i32, %c64_i32 : i32
    %7 = vector.broadcast %6 : i32 to vector<3x4096xi32>
    %8 = arith.remsi %4, %7 : vector<3x4096xi32>
    %c0_i32_6 = arith.constant 0 : i32
    %9 = vector.broadcast %c0_i32_6 : i32 to vector<3x4096xi32>
    %10 = arith.cmpi ne, %8, %9 : vector<3x4096xi32>
    %c0_i32_7 = arith.constant 0 : i32
    %11 = vector.broadcast %c0_i32_7 : i32 to vector<3x4096xi32>
    %12 = arith.cmpi slt, %8, %11 : vector<3x4096xi32>
    %c0_i32_8 = arith.constant 0 : i32
    %13 = arith.cmpi slt, %6, %c0_i32_8 : i32
    %14 = vector.broadcast %13 : i1 to vector<3x4096xi1>
    %15 = vector.broadcast %14 : vector<3x4096xi1> to vector<3x4096xi1>
    %16 = arith.xori %12, %15 : vector<3x4096xi1>
    %17 = arith.andi %16, %10 : vector<3x4096xi1>
    %18 = vector.broadcast %6 : i32 to vector<3x4096xi32>
    %19 = arith.addi %8, %18 : vector<3x4096xi32>
    %20 = arith.select %17, %19, %8 : vector<3x4096xi1>, vector<3x4096xi32>
    %c0_9 = arith.constant 0 : index
    %c128 = arith.constant 128 : index
    %21 = vector.load %arg6[%c0_9, %c128] : memref<11x4352xf32, #tpu.memory_space<vmem>>, vector<3x4096xf32>
    tpu.vector_store %arg6[%c0_9, %c128], %3 {strides = array<i32>} : memref<11x4352xf32, #tpu.memory_space<vmem>>, vector<3x4096xf32>,
    %c63_i32 = arith.constant 63 : i32
    %22 = vector.broadcast %c63_i32 : i32 to vector<3x4096xi32>
    %23 = arith.cmpi eq, %20, %22 : vector<3x4096xi32>
    %cst = arith.constant 0.000000e+00 : f32
    %24 = vector.broadcast %cst : f32 to vector<3x4096xf32>
    %25 = arith.select %23, %24, %3 : vector<3x4096xi1>, vector<3x4096xf32>
    %c0_10 = arith.constant 0 : index
    %c128_11 = arith.constant 128 : index
    %26 = vector.load %arg7[%c0_10, %c128_11] : memref<11x4352xf32, #tpu.memory_space<vmem>>, vector<3x4096xf32>
    tpu.vector_store %arg7[%c0_10, %c128_11], %25 {strides = array<i32>} : memref<11x4352xf32, #tpu.memory_space<vmem>>, vector<3x4096xf32>,
    %c0_i32_12 = arith.constant 0 : i32
    %27 = vector.broadcast %c0_i32_12 : i32 to vector<3x4096xi32>
    %28 = arith.cmpi eq, %20, %27 : vector<3x4096xi32>
    %cst_13 = arith.constant 0.000000e+00 : f32
    %29 = vector.broadcast %cst_13 : f32 to vector<3x4096xf32>
    %30 = arith.select %28, %29, %3 : vector<3x4096xi1>, vector<3x4096xf32>
    %c0_14 = arith.constant 0 : index
    %c128_15 = arith.constant 128 : index
    %31 = vector.load %arg8[%c0_14, %c128_15] : memref<11x4352xf32, #tpu.memory_space<vmem>>, vector<3x4096xf32>
    tpu.vector_store %arg8[%c0_14, %c128_15], %30 {strides = array<i32>} : memref<11x4352xf32, #tpu.memory_space<vmem>>, vector<3x4096xf32>,
    %cst_16 = arith.constant 0.000000e+00 : f32
    %32 = vector.broadcast %cst_16 : f32 to vector<3x128xf32>
    %c0_17 = arith.constant 0 : index
    %c0_18 = arith.constant 0 : index
    %33 = vector.load %arg6[%c0_17, %c0_18] : memref<11x4352xf32, #tpu.memory_space<vmem>>, vector<3x128xf32>
    tpu.vector_store %arg6[%c0_17, %c0_18], %32 {strides = array<i32>} : memref<11x4352xf32, #tpu.memory_space<vmem>>, vector<3x128xf32>,
    %c0_19 = arith.constant 0 : index
    %c0_20 = arith.constant 0 : index
    %34 = vector.load %arg7[%c0_19, %c0_20] : memref<11x4352xf32, #tpu.memory_space<vmem>>, vector<3x128xf32>
    tpu.vector_store %arg7[%c0_19, %c0_20], %32 {strides = array<i32>} : memref<11x4352xf32, #tpu.memory_space<vmem>>, vector<3x128xf32>,
    %c0_21 = arith.constant 0 : index
    %c0_22 = arith.constant 0 : index
    %35 = vector.load %arg8[%c0_21, %c0_22] : memref<11x4352xf32, #tpu.memory_space<vmem>>, vector<3x128xf32>
    tpu.vector_store %arg8[%c0_21, %c0_22], %32 {strides = array<i32>} : memref<11x4352xf32, #tpu.memory_space<vmem>>, vector<3x128xf32>,
    %cst_23 = arith.constant 0.000000e+00 : f32
    %36 = vector.broadcast %cst_23 : f32 to vector<3x128xf32>
    %c0_24 = arith.constant 0 : index
    %c4224 = arith.constant 4224 : index
    %37 = vector.load %arg6[%c0_24, %c4224] : memref<11x4352xf32, #tpu.memory_space<vmem>>, vector<3x128xf32>
    tpu.vector_store %arg6[%c0_24, %c4224], %36 {strides = array<i32>} : memref<11x4352xf32, #tpu.memory_space<vmem>>, vector<3x128xf32>,
    %c0_25 = arith.constant 0 : index
    %c4224_26 = arith.constant 4224 : index
    %38 = vector.load %arg7[%c0_25, %c4224_26] : memref<11x4352xf32, #tpu.memory_space<vmem>>, vector<3x128xf32>
    tpu.vector_store %arg7[%c0_25, %c4224_26], %36 {strides = array<i32>} : memref<11x4352xf32, #tpu.memory_space<vmem>>, vector<3x128xf32>,
    %c0_27 = arith.constant 0 : index
    %c4224_28 = arith.constant 4224 : index
    %39 = vector.load %arg8[%c0_27, %c4224_28] : memref<11x4352xf32, #tpu.memory_space<vmem>>, vector<3x128xf32>
    tpu.vector_store %arg8[%c0_27, %c4224_28], %36 {strides = array<i32>} : memref<11x4352xf32, #tpu.memory_space<vmem>>, vector<3x128xf32>,
    %40 = vector.shape_cast %1 : vector<8x1xf32> to vector<8x1xf32>
    %41 = vector.broadcast %40 : vector<8x1xf32> to vector<8x2048xf32>
    %c0_29 = arith.constant 0 : index
    %c63 = arith.constant 63 : index
    %42 = vector.load %arg7[%c0_29, %c63] : memref<11x4352xf32, #tpu.memory_space<vmem>>, vector<1x2048xf32>
    %43 = vector.extract_strided_slice %0 {offsets = [0, 0], sizes = [8, 1], strides = [1, 1]} : vector<8x27xf32> to vector<8x1xf32>
    %44 = vector.broadcast %43 : vector<8x1xf32> to vector<8x2048xf32>
    %45 = vector.broadcast %42 : vector<1x2048xf32> to vector<8x2048xf32>
    %46 = arith.mulf %44, %45 : vector<8x2048xf32>
    %47 = arith.addf %41, %46 : vector<8x2048xf32>
    %c1 = arith.constant 1 : index
    %c63_30 = arith.constant 63 : index
    %48 = vector.load %arg7[%c1, %c63_30] : memref<11x4352xf32, #tpu.memory_space<vmem>>, vector<1x2048xf32>
    %49 = vector.extract_strided_slice %0 {offsets = [0, 9], sizes = [8, 1], strides = [1, 1]} : vector<8x27xf32> to vector<8x1xf32>
    %50 = vector.broadcast %49 : vector<8x1xf32> to vector<8x2048xf32>
    %51 = vector.broadcast %48 : vector<1x2048xf32> to vector<8x2048xf32>
    %52 = arith.mulf %50, %51 : vector<8x2048xf32>
    %53 = arith.addf %47, %52 : vector<8x2048xf32>
    %c2 = arith.constant 2 : index
    %c63_31 = arith.constant 63 : index
    %54 = vector.load %arg7[%c2, %c63_31] : memref<11x4352xf32, #tpu.memory_space<vmem>>, vector<1x2048xf32>
    %55 = vector.extract_strided_slice %0 {offsets = [0, 18], sizes = [8, 1], strides = [1, 1]} : vector<8x27xf32> to vector<8x1xf32>
    %56 = vector.broadcast %55 : vector<8x1xf32> to vector<8x2048xf32>
    %57 = vector.broadcast %54 : vector<1x2048xf32> to vector<8x2048xf32>
    %58 = arith.mulf %56, %57 : vector<8x2048xf32>
    %59 = arith.addf %53, %58 : vector<8x2048xf32>
    %c0_32 = arith.constant 0 : index
    %c64 = arith.constant 64 : index
    %60 = vector.load %arg6[%c0_32, %c64] : memref<11x4352xf32, #tpu.memory_space<vmem>>, vector<1x2048xf32>
    %61 = vector.extract_strided_slice %0 {offsets = [0, 1], sizes = [8, 1], strides = [1, 1]} : vector<8x27xf32> to vector<8x1xf32>
    %62 = vector.broadcast %61 : vector<8x1xf32> to vector<8x2048xf32>
    %63 = vector.broadcast %60 : vector<1x2048xf32> to vector<8x2048xf32>
    %64 = arith.mulf %62, %63 : vector<8x2048xf32>
    %65 = arith.addf %59, %64 : vector<8x2048xf32>
    %c1_33 = arith.constant 1 : index
    %c64_34 = arith.constant 64 : index
    %66 = vector.load %arg6[%c1_33, %c64_34] : memref<11x4352xf32, #tpu.memory_space<vmem>>, vector<1x2048xf32>
    %67 = vector.extract_strided_slice %0 {offsets = [0, 10], sizes = [8, 1], strides = [1, 1]} : vector<8x27xf32> to vector<8x1xf32>
    %68 = vector.broadcast %67 : vector<8x1xf32> to vector<8x2048xf32>
    %69 = vector.broadcast %66 : vector<1x2048xf32> to vector<8x2048xf32>
    %70 = arith.mulf %68, %69 : vector<8x2048xf32>
    %71 = arith.addf %65, %70 : vector<8x2048xf32>
    %c2_35 = arith.constant 2 : index
    %c64_36 = arith.constant 64 : index
    %72 = vector.load %arg6[%c2_35, %c64_36] : memref<11x4352xf32, #tpu.memory_space<vmem>>, vector<1x2048xf32>
    %73 = vector.extract_strided_slice %0 {offsets = [0, 19], sizes = [8, 1], strides = [1, 1]} : vector<8x27xf32> to vector<8x1xf32>
    %74 = vector.broadcast %73 : vector<8x1xf32> to vector<8x2048xf32>
    %75 = vector.broadcast %72 : vector<1x2048xf32> to vector<8x2048xf32>
    %76 = arith.mulf %74, %75 : vector<8x2048xf32>
    %77 = arith.addf %71, %76 : vector<8x2048xf32>
    %c0_37 = arith.constant 0 : index
    %c65 = arith.constant 65 : index
    %78 = vector.load %arg8[%c0_37, %c65] : memref<11x4352xf32, #tpu.memory_space<vmem>>, vector<1x2048xf32>
    %79 = vector.extract_strided_slice %0 {offsets = [0, 2], sizes = [8, 1], strides = [1, 1]} : vector<8x27xf32> to vector<8x1xf32>
    %80 = vector.broadcast %79 : vector<8x1xf32> to vector<8x2048xf32>
    %81 = vector.broadcast %78 : vector<1x2048xf32> to vector<8x2048xf32>
    %82 = arith.mulf %80, %81 : vector<8x2048xf32>
    %83 = arith.addf %77, %82 : vector<8x2048xf32>
    %c1_38 = arith.constant 1 : index
    %c65_39 = arith.constant 65 : index
    %84 = vector.load %arg8[%c1_38, %c65_39] : memref<11x4352xf32, #tpu.memory_space<vmem>>, vector<1x2048xf32>
    %85 = vector.extract_strided_slice %0 {offsets = [0, 11], sizes = [8, 1], strides = [1, 1]} : vector<8x27xf32> to vector<8x1xf32>
    %86 = vector.broadcast %85 : vector<8x1xf32> to vector<8x2048xf32>
    %87 = vector.broadcast %84 : vector<1x2048xf32> to vector<8x2048xf32>
    %88 = arith.mulf %86, %87 : vector<8x2048xf32>
    %89 = arith.addf %83, %88 : vector<8x2048xf32>
    %c2_40 = arith.constant 2 : index
    %c65_41 = arith.constant 65 : index
    %90 = vector.load %arg8[%c2_40, %c65_41] : memref<11x4352xf32, #tpu.memory_space<vmem>>, vector<1x2048xf32>
    %91 = vector.extract_strided_slice %0 {offsets = [0, 20], sizes = [8, 1], strides = [1, 1]} : vector<8x27xf32> to vector<8x1xf32>
    %92 = vector.broadcast %91 : vector<8x1xf32> to vector<8x2048xf32>
    %93 = vector.broadcast %90 : vector<1x2048xf32> to vector<8x2048xf32>
    %94 = arith.mulf %92, %93 : vector<8x2048xf32>
    %95 = arith.addf %89, %94 : vector<8x2048xf32>
    %c0_42 = arith.constant 0 : index
    %c127 = arith.constant 127 : index
    %96 = vector.load %arg7[%c0_42, %c127] : memref<11x4352xf32, #tpu.memory_space<vmem>>, vector<1x2048xf32>
    %97 = vector.extract_strided_slice %0 {offsets = [0, 3], sizes = [8, 1], strides = [1, 1]} : vector<8x27xf32> to vector<8x1xf32>
    %98 = vector.broadcast %97 : vector<8x1xf32> to vector<8x2048xf32>
    %99 = vector.broadcast %96 : vector<1x2048xf32> to vector<8x2048xf32>
    %100 = arith.mulf %98, %99 : vector<8x2048xf32>
    %101 = arith.addf %95, %100 : vector<8x2048xf32>
    %c1_43 = arith.constant 1 : index
    %c127_44 = arith.constant 127 : index
    %102 = vector.load %arg7[%c1_43, %c127_44] : memref<11x4352xf32, #tpu.memory_space<vmem>>, vector<1x2048xf32>
    %103 = vector.extract_strided_slice %0 {offsets = [0, 12], sizes = [8, 1], strides = [1, 1]} : vector<8x27xf32> to vector<8x1xf32>
    %104 = vector.broadcast %103 : vector<8x1xf32> to vector<8x2048xf32>
    %105 = vector.broadcast %102 : vector<1x2048xf32> to vector<8x2048xf32>
    %106 = arith.mulf %104, %105 : vector<8x2048xf32>
    %107 = arith.addf %101, %106 : vector<8x2048xf32>
    %c2_45 = arith.constant 2 : index
    %c127_46 = arith.constant 127 : index
    %108 = vector.load %arg7[%c2_45, %c127_46] : memref<11x4352xf32, #tpu.memory_space<vmem>>, vector<1x2048xf32>
    %109 = vector.extract_strided_slice %0 {offsets = [0, 21], sizes = [8, 1], strides = [1, 1]} : vector<8x27xf32> to vector<8x1xf32>
    %110 = vector.broadcast %109 : vector<8x1xf32> to vector<8x2048xf32>
    %111 = vector.broadcast %108 : vector<1x2048xf32> to vector<8x2048xf32>
    %112 = arith.mulf %110, %111 : vector<8x2048xf32>
    %113 = arith.addf %107, %112 : vector<8x2048xf32>
    %c0_47 = arith.constant 0 : index
    %c128_48 = arith.constant 128 : index
    %114 = vector.load %arg6[%c0_47, %c128_48] : memref<11x4352xf32, #tpu.memory_space<vmem>>, vector<1x2048xf32>
    %115 = vector.extract_strided_slice %0 {offsets = [0, 4], sizes = [8, 1], strides = [1, 1]} : vector<8x27xf32> to vector<8x1xf32>
    %116 = vector.broadcast %115 : vector<8x1xf32> to vector<8x2048xf32>
    %117 = vector.broadcast %114 : vector<1x2048xf32> to vector<8x2048xf32>
    %118 = arith.mulf %116, %117 : vector<8x2048xf32>
    %119 = arith.addf %113, %118 : vector<8x2048xf32>
    %c1_49 = arith.constant 1 : index
    %c128_50 = arith.constant 128 : index
    %120 = vector.load %arg6[%c1_49, %c128_50] : memref<11x4352xf32, #tpu.memory_space<vmem>>, vector<1x2048xf32>
    %121 = vector.extract_strided_slice %0 {offsets = [0, 13], sizes = [8, 1], strides = [1, 1]} : vector<8x27xf32> to vector<8x1xf32>
    %122 = vector.broadcast %121 : vector<8x1xf32> to vector<8x2048xf32>
    %123 = vector.broadcast %120 : vector<1x2048xf32> to vector<8x2048xf32>
    %124 = arith.mulf %122, %123 : vector<8x2048xf32>
    %125 = arith.addf %119, %124 : vector<8x2048xf32>
    %c2_51 = arith.constant 2 : index
    %c128_52 = arith.constant 128 : index
    %126 = vector.load %arg6[%c2_51, %c128_52] : memref<11x4352xf32, #tpu.memory_space<vmem>>, vector<1x2048xf32>
    %127 = vector.extract_strided_slice %0 {offsets = [0, 22], sizes = [8, 1], strides = [1, 1]} : vector<8x27xf32> to vector<8x1xf32>
    %128 = vector.broadcast %127 : vector<8x1xf32> to vector<8x2048xf32>
    %129 = vector.broadcast %126 : vector<1x2048xf32> to vector<8x2048xf32>
    %130 = arith.mulf %128, %129 : vector<8x2048xf32>
    %131 = arith.addf %125, %130 : vector<8x2048xf32>
    %c0_53 = arith.constant 0 : index
    %c129 = arith.constant 129 : index
    %132 = vector.load %arg8[%c0_53, %c129] : memref<11x4352xf32, #tpu.memory_space<vmem>>, vector<1x2048xf32>
    %133 = vector.extract_strided_slice %0 {offsets = [0, 5], sizes = [8, 1], strides = [1, 1]} : vector<8x27xf32> to vector<8x1xf32>
    %134 = vector.broadcast %133 : vector<8x1xf32> to vector<8x2048xf32>
    %135 = vector.broadcast %132 : vector<1x2048xf32> to vector<8x2048xf32>
    %136 = arith.mulf %134, %135 : vector<8x2048xf32>
    %137 = arith.addf %131, %136 : vector<8x2048xf32>
    %c1_54 = arith.constant 1 : index
    %c129_55 = arith.constant 129 : index
    %138 = vector.load %arg8[%c1_54, %c129_55] : memref<11x4352xf32, #tpu.memory_space<vmem>>, vector<1x2048xf32>
    %139 = vector.extract_strided_slice %0 {offsets = [0, 14], sizes = [8, 1], strides = [1, 1]} : vector<8x27xf32> to vector<8x1xf32>
    %140 = vector.broadcast %139 : vector<8x1xf32> to vector<8x2048xf32>
    %141 = vector.broadcast %138 : vector<1x2048xf32> to vector<8x2048xf32>
    %142 = arith.mulf %140, %141 : vector<8x2048xf32>
    %143 = arith.addf %137, %142 : vector<8x2048xf32>
    %c2_56 = arith.constant 2 : index
    %c129_57 = arith.constant 129 : index
    %144 = vector.load %arg8[%c2_56, %c129_57] : memref<11x4352xf32, #tpu.memory_space<vmem>>, vector<1x2048xf32>
    %145 = vector.extract_strided_slice %0 {offsets = [0, 23], sizes = [8, 1], strides = [1, 1]} : vector<8x27xf32> to vector<8x1xf32>
    %146 = vector.broadcast %145 : vector<8x1xf32> to vector<8x2048xf32>
    %147 = vector.broadcast %144 : vector<1x2048xf32> to vector<8x2048xf32>
    %148 = arith.mulf %146, %147 : vector<8x2048xf32>
    %149 = arith.addf %143, %148 : vector<8x2048xf32>
    %c0_58 = arith.constant 0 : index
    %c191 = arith.constant 191 : index
    %150 = vector.load %arg7[%c0_58, %c191] : memref<11x4352xf32, #tpu.memory_space<vmem>>, vector<1x2048xf32>
    %151 = vector.extract_strided_slice %0 {offsets = [0, 6], sizes = [8, 1], strides = [1, 1]} : vector<8x27xf32> to vector<8x1xf32>
    %152 = vector.broadcast %151 : vector<8x1xf32> to vector<8x2048xf32>
    %153 = vector.broadcast %150 : vector<1x2048xf32> to vector<8x2048xf32>
    %154 = arith.mulf %152, %153 : vector<8x2048xf32>
    %155 = arith.addf %149, %154 : vector<8x2048xf32>
    %c1_59 = arith.constant 1 : index
    %c191_60 = arith.constant 191 : index
    %156 = vector.load %arg7[%c1_59, %c191_60] : memref<11x4352xf32, #tpu.memory_space<vmem>>, vector<1x2048xf32>
    %157 = vector.extract_strided_slice %0 {offsets = [0, 15], sizes = [8, 1], strides = [1, 1]} : vector<8x27xf32> to vector<8x1xf32>
    %158 = vector.broadcast %157 : vector<8x1xf32> to vector<8x2048xf32>
    %159 = vector.broadcast %156 : vector<1x2048xf32> to vector<8x2048xf32>
    %160 = arith.mulf %158, %159 : vector<8x2048xf32>
    %161 = arith.addf %155, %160 : vector<8x2048xf32>
    %c2_61 = arith.constant 2 : index
    %c191_62 = arith.constant 191 : index
    %162 = vector.load %arg7[%c2_61, %c191_62] : memref<11x4352xf32, #tpu.memory_space<vmem>>, vector<1x2048xf32>
    %163 = vector.extract_strided_slice %0 {offsets = [0, 24], sizes = [8, 1], strides = [1, 1]} : vector<8x27xf32> to vector<8x1xf32>
    %164 = vector.broadcast %163 : vector<8x1xf32> to vector<8x2048xf32>
    %165 = vector.broadcast %162 : vector<1x2048xf32> to vector<8x2048xf32>
    %166 = arith.mulf %164, %165 : vector<8x2048xf32>
    %167 = arith.addf %161, %166 : vector<8x2048xf32>
    %c0_63 = arith.constant 0 : index
    %c192 = arith.constant 192 : index
    %168 = vector.load %arg6[%c0_63, %c192] : memref<11x4352xf32, #tpu.memory_space<vmem>>, vector<1x2048xf32>
    %169 = vector.extract_strided_slice %0 {offsets = [0, 7], sizes = [8, 1], strides = [1, 1]} : vector<8x27xf32> to vector<8x1xf32>
    %170 = vector.broadcast %169 : vector<8x1xf32> to vector<8x2048xf32>
    %171 = vector.broadcast %168 : vector<1x2048xf32> to vector<8x2048xf32>
    %172 = arith.mulf %170, %171 : vector<8x2048xf32>
    %173 = arith.addf %167, %172 : vector<8x2048xf32>
    %c1_64 = arith.constant 1 : index
    %c192_65 = arith.constant 192 : index
    %174 = vector.load %arg6[%c1_64, %c192_65] : memref<11x4352xf32, #tpu.memory_space<vmem>>, vector<1x2048xf32>
    %175 = vector.extract_strided_slice %0 {offsets = [0, 16], sizes = [8, 1], strides = [1, 1]} : vector<8x27xf32> to vector<8x1xf32>
    %176 = vector.broadcast %175 : vector<8x1xf32> to vector<8x2048xf32>
    %177 = vector.broadcast %174 : vector<1x2048xf32> to vector<8x2048xf32>
    %178 = arith.mulf %176, %177 : vector<8x2048xf32>
    %179 = arith.addf %173, %178 : vector<8x2048xf32>
    %c2_66 = arith.constant 2 : index
    %c192_67 = arith.constant 192 : index
    %180 = vector.load %arg6[%c2_66, %c192_67] : memref<11x4352xf32, #tpu.memory_space<vmem>>, vector<1x2048xf32>
    %181 = vector.extract_strided_slice %0 {offsets = [0, 25], sizes = [8, 1], strides = [1, 1]} : vector<8x27xf32> to vector<8x1xf32>
    %182 = vector.broadcast %181 : vector<8x1xf32> to vector<8x2048xf32>
    %183 = vector.broadcast %180 : vector<1x2048xf32> to vector<8x2048xf32>
    %184 = arith.mulf %182, %183 : vector<8x2048xf32>
    %185 = arith.addf %179, %184 : vector<8x2048xf32>
    %c0_68 = arith.constant 0 : index
    %c193 = arith.constant 193 : index
    %186 = vector.load %arg8[%c0_68, %c193] : memref<11x4352xf32, #tpu.memory_space<vmem>>, vector<1x2048xf32>
    %187 = vector.extract_strided_slice %0 {offsets = [0, 8], sizes = [8, 1], strides = [1, 1]} : vector<8x27xf32> to vector<8x1xf32>
    %188 = vector.broadcast %187 : vector<8x1xf32> to vector<8x2048xf32>
    %189 = vector.broadcast %186 : vector<1x2048xf32> to vector<8x2048xf32>
    %190 = arith.mulf %188, %189 : vector<8x2048xf32>
    %191 = arith.addf %185, %190 : vector<8x2048xf32>
    %c1_69 = arith.constant 1 : index
    %c193_70 = arith.constant 193 : index
    %192 = vector.load %arg8[%c1_69, %c193_70] : memref<11x4352xf32, #tpu.memory_space<vmem>>, vector<1x2048xf32>
    %193 = vector.extract_strided_slice %0 {offsets = [0, 17], sizes = [8, 1], strides = [1, 1]} : vector<8x27xf32> to vector<8x1xf32>
    %194 = vector.broadcast %193 : vector<8x1xf32> to vector<8x2048xf32>
    %195 = vector.broadcast %192 : vector<1x2048xf32> to vector<8x2048xf32>
    %196 = arith.mulf %194, %195 : vector<8x2048xf32>
    %197 = arith.addf %191, %196 : vector<8x2048xf32>
    %c2_71 = arith.constant 2 : index
    %c193_72 = arith.constant 193 : index
    %198 = vector.load %arg8[%c2_71, %c193_72] : memref<11x4352xf32, #tpu.memory_space<vmem>>, vector<1x2048xf32>
    %199 = vector.extract_strided_slice %0 {offsets = [0, 26], sizes = [8, 1], strides = [1, 1]} : vector<8x27xf32> to vector<8x1xf32>
    %200 = vector.broadcast %199 : vector<8x1xf32> to vector<8x2048xf32>
    %201 = vector.broadcast %198 : vector<1x2048xf32> to vector<8x2048xf32>
    %202 = arith.mulf %200, %201 : vector<8x2048xf32>
    %203 = arith.addf %197, %202 : vector<8x2048xf32>
    %cst_73 = arith.constant 0.000000e+00 : f32
    %204 = vector.broadcast %cst_73 : f32 to vector<8x2048xf32>
    %205 = arith.cmpf oge, %203, %204 : vector<8x2048xf32>
    %cst_74 = arith.constant 0.00999999977 : f32
    %206 = vector.broadcast %cst_74 : f32 to vector<8x2048xf32>
    %207 = arith.mulf %203, %206 : vector<8x2048xf32>
    %208 = arith.select %205, %203, %207 : vector<8x2048xi1>, vector<8x2048xf32>
    %c0_75 = arith.constant 0 : index
    %c0_76 = arith.constant 0 : index
    %c0_77 = arith.constant 0 : index
    %209 = vector.load %arg5[%c0_75, %c0_76, %c0_77] : memref<1x8x4096xf32, #tpu.memory_space<vmem>>, vector<1x8x2048xf32>
    %210 = vector.shape_cast %209 : vector<1x8x2048xf32> to vector<8x2048xf32>
    %211 = vector.shape_cast %208 : vector<8x2048xf32> to vector<1x8x2048xf32>
    tpu.vector_store %arg5[%c0_75, %c0_76, %c0_77], %211 {strides = array<i32>} : memref<1x8x4096xf32, #tpu.memory_space<vmem>>, vector<1x8x2048xf32>,
    %212 = vector.shape_cast %1 : vector<8x1xf32> to vector<8x1xf32>
    %213 = vector.broadcast %212 : vector<8x1xf32> to vector<8x2048xf32>
    %c0_78 = arith.constant 0 : index
    %c2111 = arith.constant 2111 : index
    %214 = vector.load %arg7[%c0_78, %c2111] : memref<11x4352xf32, #tpu.memory_space<vmem>>, vector<1x2048xf32>
    %215 = vector.extract_strided_slice %0 {offsets = [0, 0], sizes = [8, 1], strides = [1, 1]} : vector<8x27xf32> to vector<8x1xf32>
    %216 = vector.broadcast %215 : vector<8x1xf32> to vector<8x2048xf32>
    %217 = vector.broadcast %214 : vector<1x2048xf32> to vector<8x2048xf32>
    %218 = arith.mulf %216, %217 : vector<8x2048xf32>
    %219 = arith.addf %213, %218 : vector<8x2048xf32>
    %c1_79 = arith.constant 1 : index
    %c2111_80 = arith.constant 2111 : index
    %220 = vector.load %arg7[%c1_79, %c2111_80] : memref<11x4352xf32, #tpu.memory_space<vmem>>, vector<1x2048xf32>
    %221 = vector.extract_strided_slice %0 {offsets = [0, 9], sizes = [8, 1], strides = [1, 1]} : vector<8x27xf32> to vector<8x1xf32>
    %222 = vector.broadcast %221 : vector<8x1xf32> to vector<8x2048xf32>
    %223 = vector.broadcast %220 : vector<1x2048xf32> to vector<8x2048xf32>
    %224 = arith.mulf %222, %223 : vector<8x2048xf32>
    %225 = arith.addf %219, %224 : vector<8x2048xf32>
    %c2_81 = arith.constant 2 : index
    %c2111_82 = arith.constant 2111 : index
    %226 = vector.load %arg7[%c2_81, %c2111_82] : memref<11x4352xf32, #tpu.memory_space<vmem>>, vector<1x2048xf32>
    %227 = vector.extract_strided_slice %0 {offsets = [0, 18], sizes = [8, 1], strides = [1, 1]} : vector<8x27xf32> to vector<8x1xf32>
    %228 = vector.broadcast %227 : vector<8x1xf32> to vector<8x2048xf32>
    %229 = vector.broadcast %226 : vector<1x2048xf32> to vector<8x2048xf32>
    %230 = arith.mulf %228, %229 : vector<8x2048xf32>
    %231 = arith.addf %225, %230 : vector<8x2048xf32>
    %c0_83 = arith.constant 0 : index
    %c2112 = arith.constant 2112 : index
    %232 = vector.load %arg6[%c0_83, %c2112] : memref<11x4352xf32, #tpu.memory_space<vmem>>, vector<1x2048xf32>
    %233 = vector.extract_strided_slice %0 {offsets = [0, 1], sizes = [8, 1], strides = [1, 1]} : vector<8x27xf32> to vector<8x1xf32>
    %234 = vector.broadcast %233 : vector<8x1xf32> to vector<8x2048xf32>
    %235 = vector.broadcast %232 : vector<1x2048xf32> to vector<8x2048xf32>
    %236 = arith.mulf %234, %235 : vector<8x2048xf32>
    %237 = arith.addf %231, %236 : vector<8x2048xf32>
    %c1_84 = arith.constant 1 : index
    %c2112_85 = arith.constant 2112 : index
    %238 = vector.load %arg6[%c1_84, %c2112_85] : memref<11x4352xf32, #tpu.memory_space<vmem>>, vector<1x2048xf32>
    %239 = vector.extract_strided_slice %0 {offsets = [0, 10], sizes = [8, 1], strides = [1, 1]} : vector<8x27xf32> to vector<8x1xf32>
    %240 = vector.broadcast %239 : vector<8x1xf32> to vector<8x2048xf32>
    %241 = vector.broadcast %238 : vector<1x2048xf32> to vector<8x2048xf32>
    %242 = arith.mulf %240, %241 : vector<8x2048xf32>
    %243 = arith.addf %237, %242 : vector<8x2048xf32>
    %c2_86 = arith.constant 2 : index
    %c2112_87 = arith.constant 2112 : index
    %244 = vector.load %arg6[%c2_86, %c2112_87] : memref<11x4352xf32, #tpu.memory_space<vmem>>, vector<1x2048xf32>
    %245 = vector.extract_strided_slice %0 {offsets = [0, 19], sizes = [8, 1], strides = [1, 1]} : vector<8x27xf32> to vector<8x1xf32>
    %246 = vector.broadcast %245 : vector<8x1xf32> to vector<8x2048xf32>
    %247 = vector.broadcast %244 : vector<1x2048xf32> to vector<8x2048xf32>
    %248 = arith.mulf %246, %247 : vector<8x2048xf32>
    %249 = arith.addf %243, %248 : vector<8x2048xf32>
    %c0_88 = arith.constant 0 : index
    %c2113 = arith.constant 2113 : index
    %250 = vector.load %arg8[%c0_88, %c2113] : memref<11x4352xf32, #tpu.memory_space<vmem>>, vector<1x2048xf32>
    %251 = vector.extract_strided_slice %0 {offsets = [0, 2], sizes = [8, 1], strides = [1, 1]} : vector<8x27xf32> to vector<8x1xf32>
    %252 = vector.broadcast %251 : vector<8x1xf32> to vector<8x2048xf32>
    %253 = vector.broadcast %250 : vector<1x2048xf32> to vector<8x2048xf32>
    %254 = arith.mulf %252, %253 : vector<8x2048xf32>
    %255 = arith.addf %249, %254 : vector<8x2048xf32>
    %c1_89 = arith.constant 1 : index
    %c2113_90 = arith.constant 2113 : index
    %256 = vector.load %arg8[%c1_89, %c2113_90] : memref<11x4352xf32, #tpu.memory_space<vmem>>, vector<1x2048xf32>
    %257 = vector.extract_strided_slice %0 {offsets = [0, 11], sizes = [8, 1], strides = [1, 1]} : vector<8x27xf32> to vector<8x1xf32>
    %258 = vector.broadcast %257 : vector<8x1xf32> to vector<8x2048xf32>
    %259 = vector.broadcast %256 : vector<1x2048xf32> to vector<8x2048xf32>
    %260 = arith.mulf %258, %259 : vector<8x2048xf32>
    %261 = arith.addf %255, %260 : vector<8x2048xf32>
    %c2_91 = arith.constant 2 : index
    %c2113_92 = arith.constant 2113 : index
    %262 = vector.load %arg8[%c2_91, %c2113_92] : memref<11x4352xf32, #tpu.memory_space<vmem>>, vector<1x2048xf32>
    %263 = vector.extract_strided_slice %0 {offsets = [0, 20], sizes = [8, 1], strides = [1, 1]} : vector<8x27xf32> to vector<8x1xf32>
    %264 = vector.broadcast %263 : vector<8x1xf32> to vector<8x2048xf32>
    %265 = vector.broadcast %262 : vector<1x2048xf32> to vector<8x2048xf32>
    %266 = arith.mulf %264, %265 : vector<8x2048xf32>
    %267 = arith.addf %261, %266 : vector<8x2048xf32>
    %c0_93 = arith.constant 0 : index
    %c2175 = arith.constant 2175 : index
    %268 = vector.load %arg7[%c0_93, %c2175] : memref<11x4352xf32, #tpu.memory_space<vmem>>, vector<1x2048xf32>
    %269 = vector.extract_strided_slice %0 {offsets = [0, 3], sizes = [8, 1], strides = [1, 1]} : vector<8x27xf32> to vector<8x1xf32>
    %270 = vector.broadcast %269 : vector<8x1xf32> to vector<8x2048xf32>
    %271 = vector.broadcast %268 : vector<1x2048xf32> to vector<8x2048xf32>
    %272 = arith.mulf %270, %271 : vector<8x2048xf32>
    %273 = arith.addf %267, %272 : vector<8x2048xf32>
    %c1_94 = arith.constant 1 : index
    %c2175_95 = arith.constant 2175 : index
    %274 = vector.load %arg7[%c1_94, %c2175_95] : memref<11x4352xf32, #tpu.memory_space<vmem>>, vector<1x2048xf32>
    %275 = vector.extract_strided_slice %0 {offsets = [0, 12], sizes = [8, 1], strides = [1, 1]} : vector<8x27xf32> to vector<8x1xf32>
    %276 = vector.broadcast %275 : vector<8x1xf32> to vector<8x2048xf32>
    %277 = vector.broadcast %274 : vector<1x2048xf32> to vector<8x2048xf32>
    %278 = arith.mulf %276, %277 : vector<8x2048xf32>
    %279 = arith.addf %273, %278 : vector<8x2048xf32>
    %c2_96 = arith.constant 2 : index
    %c2175_97 = arith.constant 2175 : index
    %280 = vector.load %arg7[%c2_96, %c2175_97] : memref<11x4352xf32, #tpu.memory_space<vmem>>, vector<1x2048xf32>
    %281 = vector.extract_strided_slice %0 {offsets = [0, 21], sizes = [8, 1], strides = [1, 1]} : vector<8x27xf32> to vector<8x1xf32>
    %282 = vector.broadcast %281 : vector<8x1xf32> to vector<8x2048xf32>
    %283 = vector.broadcast %280 : vector<1x2048xf32> to vector<8x2048xf32>
    %284 = arith.mulf %282, %283 : vector<8x2048xf32>
    %285 = arith.addf %279, %284 : vector<8x2048xf32>
    %c0_98 = arith.constant 0 : index
    %c2176 = arith.constant 2176 : index
    %286 = vector.load %arg6[%c0_98, %c2176] : memref<11x4352xf32, #tpu.memory_space<vmem>>, vector<1x2048xf32>
    %287 = vector.extract_strided_slice %0 {offsets = [0, 4], sizes = [8, 1], strides = [1, 1]} : vector<8x27xf32> to vector<8x1xf32>
    %288 = vector.broadcast %287 : vector<8x1xf32> to vector<8x2048xf32>
    %289 = vector.broadcast %286 : vector<1x2048xf32> to vector<8x2048xf32>
    %290 = arith.mulf %288, %289 : vector<8x2048xf32>
    %291 = arith.addf %285, %290 : vector<8x2048xf32>
    %c1_99 = arith.constant 1 : index
    %c2176_100 = arith.constant 2176 : index
    %292 = vector.load %arg6[%c1_99, %c2176_100] : memref<11x4352xf32, #tpu.memory_space<vmem>>, vector<1x2048xf32>
    %293 = vector.extract_strided_slice %0 {offsets = [0, 13], sizes = [8, 1], strides = [1, 1]} : vector<8x27xf32> to vector<8x1xf32>
    %294 = vector.broadcast %293 : vector<8x1xf32> to vector<8x2048xf32>
    %295 = vector.broadcast %292 : vector<1x2048xf32> to vector<8x2048xf32>
    %296 = arith.mulf %294, %295 : vector<8x2048xf32>
    %297 = arith.addf %291, %296 : vector<8x2048xf32>
    %c2_101 = arith.constant 2 : index
    %c2176_102 = arith.constant 2176 : index
    %298 = vector.load %arg6[%c2_101, %c2176_102] : memref<11x4352xf32, #tpu.memory_space<vmem>>, vector<1x2048xf32>
    %299 = vector.extract_strided_slice %0 {offsets = [0, 22], sizes = [8, 1], strides = [1, 1]} : vector<8x27xf32> to vector<8x1xf32>
    %300 = vector.broadcast %299 : vector<8x1xf32> to vector<8x2048xf32>
    %301 = vector.broadcast %298 : vector<1x2048xf32> to vector<8x2048xf32>
    %302 = arith.mulf %300, %301 : vector<8x2048xf32>
    %303 = arith.addf %297, %302 : vector<8x2048xf32>
    %c0_103 = arith.constant 0 : index
    %c2177 = arith.constant 2177 : index
    %304 = vector.load %arg8[%c0_103, %c2177] : memref<11x4352xf32, #tpu.memory_space<vmem>>, vector<1x2048xf32>
    %305 = vector.extract_strided_slice %0 {offsets = [0, 5], sizes = [8, 1], strides = [1, 1]} : vector<8x27xf32> to vector<8x1xf32>
    %306 = vector.broadcast %305 : vector<8x1xf32> to vector<8x2048xf32>
    %307 = vector.broadcast %304 : vector<1x2048xf32> to vector<8x2048xf32>
    %308 = arith.mulf %306, %307 : vector<8x2048xf32>
    %309 = arith.addf %303, %308 : vector<8x2048xf32>
    %c1_104 = arith.constant 1 : index
    %c2177_105 = arith.constant 2177 : index
    %310 = vector.load %arg8[%c1_104, %c2177_105] : memref<11x4352xf32, #tpu.memory_space<vmem>>, vector<1x2048xf32>
    %311 = vector.extract_strided_slice %0 {offsets = [0, 14], sizes = [8, 1], strides = [1, 1]} : vector<8x27xf32> to vector<8x1xf32>
    %312 = vector.broadcast %311 : vector<8x1xf32> to vector<8x2048xf32>
    %313 = vector.broadcast %310 : vector<1x2048xf32> to vector<8x2048xf32>
    %314 = arith.mulf %312, %313 : vector<8x2048xf32>
    %315 = arith.addf %309, %314 : vector<8x2048xf32>
    %c2_106 = arith.constant 2 : index
    %c2177_107 = arith.constant 2177 : index
    %316 = vector.load %arg8[%c2_106, %c2177_107] : memref<11x4352xf32, #tpu.memory_space<vmem>>, vector<1x2048xf32>
    %317 = vector.extract_strided_slice %0 {offsets = [0, 23], sizes = [8, 1], strides = [1, 1]} : vector<8x27xf32> to vector<8x1xf32>
    %318 = vector.broadcast %317 : vector<8x1xf32> to vector<8x2048xf32>
    %319 = vector.broadcast %316 : vector<1x2048xf32> to vector<8x2048xf32>
    %320 = arith.mulf %318, %319 : vector<8x2048xf32>
    %321 = arith.addf %315, %320 : vector<8x2048xf32>
    %c0_108 = arith.constant 0 : index
    %c2239 = arith.constant 2239 : index
    %322 = vector.load %arg7[%c0_108, %c2239] : memref<11x4352xf32, #tpu.memory_space<vmem>>, vector<1x2048xf32>
    %323 = vector.extract_strided_slice %0 {offsets = [0, 6], sizes = [8, 1], strides = [1, 1]} : vector<8x27xf32> to vector<8x1xf32>
    %324 = vector.broadcast %323 : vector<8x1xf32> to vector<8x2048xf32>
    %325 = vector.broadcast %322 : vector<1x2048xf32> to vector<8x2048xf32>
    %326 = arith.mulf %324, %325 : vector<8x2048xf32>
    %327 = arith.addf %321, %326 : vector<8x2048xf32>
    %c1_109 = arith.constant 1 : index
    %c2239_110 = arith.constant 2239 : index
    %328 = vector.load %arg7[%c1_109, %c2239_110] : memref<11x4352xf32, #tpu.memory_space<vmem>>, vector<1x2048xf32>
    %329 = vector.extract_strided_slice %0 {offsets = [0, 15], sizes = [8, 1], strides = [1, 1]} : vector<8x27xf32> to vector<8x1xf32>
    %330 = vector.broadcast %329 : vector<8x1xf32> to vector<8x2048xf32>
    %331 = vector.broadcast %328 : vector<1x2048xf32> to vector<8x2048xf32>
    %332 = arith.mulf %330, %331 : vector<8x2048xf32>
    %333 = arith.addf %327, %332 : vector<8x2048xf32>
    %c2_111 = arith.constant 2 : index
    %c2239_112 = arith.constant 2239 : index
    %334 = vector.load %arg7[%c2_111, %c2239_112] : memref<11x4352xf32, #tpu.memory_space<vmem>>, vector<1x2048xf32>
    %335 = vector.extract_strided_slice %0 {offsets = [0, 24], sizes = [8, 1], strides = [1, 1]} : vector<8x27xf32> to vector<8x1xf32>
    %336 = vector.broadcast %335 : vector<8x1xf32> to vector<8x2048xf32>
    %337 = vector.broadcast %334 : vector<1x2048xf32> to vector<8x2048xf32>
    %338 = arith.mulf %336, %337 : vector<8x2048xf32>
    %339 = arith.addf %333, %338 : vector<8x2048xf32>
    %c0_113 = arith.constant 0 : index
    %c2240 = arith.constant 2240 : index
    %340 = vector.load %arg6[%c0_113, %c2240] : memref<11x4352xf32, #tpu.memory_space<vmem>>, vector<1x2048xf32>
    %341 = vector.extract_strided_slice %0 {offsets = [0, 7], sizes = [8, 1], strides = [1, 1]} : vector<8x27xf32> to vector<8x1xf32>
    %342 = vector.broadcast %341 : vector<8x1xf32> to vector<8x2048xf32>
    %343 = vector.broadcast %340 : vector<1x2048xf32> to vector<8x2048xf32>
    %344 = arith.mulf %342, %343 : vector<8x2048xf32>
    %345 = arith.addf %339, %344 : vector<8x2048xf32>
    %c1_114 = arith.constant 1 : index
    %c2240_115 = arith.constant 2240 : index
    %346 = vector.load %arg6[%c1_114, %c2240_115] : memref<11x4352xf32, #tpu.memory_space<vmem>>, vector<1x2048xf32>
    %347 = vector.extract_strided_slice %0 {offsets = [0, 16], sizes = [8, 1], strides = [1, 1]} : vector<8x27xf32> to vector<8x1xf32>
    %348 = vector.broadcast %347 : vector<8x1xf32> to vector<8x2048xf32>
    %349 = vector.broadcast %346 : vector<1x2048xf32> to vector<8x2048xf32>
    %350 = arith.mulf %348, %349 : vector<8x2048xf32>
    %351 = arith.addf %345, %350 : vector<8x2048xf32>
    %c2_116 = arith.constant 2 : index
    %c2240_117 = arith.constant 2240 : index
    %352 = vector.load %arg6[%c2_116, %c2240_117] : memref<11x4352xf32, #tpu.memory_space<vmem>>, vector<1x2048xf32>
    %353 = vector.extract_strided_slice %0 {offsets = [0, 25], sizes = [8, 1], strides = [1, 1]} : vector<8x27xf32> to vector<8x1xf32>
    %354 = vector.broadcast %353 : vector<8x1xf32> to vector<8x2048xf32>
    %355 = vector.broadcast %352 : vector<1x2048xf32> to vector<8x2048xf32>
    %356 = arith.mulf %354, %355 : vector<8x2048xf32>
    %357 = arith.addf %351, %356 : vector<8x2048xf32>
    %c0_118 = arith.constant 0 : index
    %c2241 = arith.constant 2241 : index
    %358 = vector.load %arg8[%c0_118, %c2241] : memref<11x4352xf32, #tpu.memory_space<vmem>>, vector<1x2048xf32>
    %359 = vector.extract_strided_slice %0 {offsets = [0, 8], sizes = [8, 1], strides = [1, 1]} : vector<8x27xf32> to vector<8x1xf32>
    %360 = vector.broadcast %359 : vector<8x1xf32> to vector<8x2048xf32>
    %361 = vector.broadcast %358 : vector<1x2048xf32> to vector<8x2048xf32>
    %362 = arith.mulf %360, %361 : vector<8x2048xf32>
    %363 = arith.addf %357, %362 : vector<8x2048xf32>
    %c1_119 = arith.constant 1 : index
    %c2241_120 = arith.constant 2241 : index
    %364 = vector.load %arg8[%c1_119, %c2241_120] : memref<11x4352xf32, #tpu.memory_space<vmem>>, vector<1x2048xf32>
    %365 = vector.extract_strided_slice %0 {offsets = [0, 17], sizes = [8, 1], strides = [1, 1]} : vector<8x27xf32> to vector<8x1xf32>
    %366 = vector.broadcast %365 : vector<8x1xf32> to vector<8x2048xf32>
    %367 = vector.broadcast %364 : vector<1x2048xf32> to vector<8x2048xf32>
    %368 = arith.mulf %366, %367 : vector<8x2048xf32>
    %369 = arith.addf %363, %368 : vector<8x2048xf32>
    %c2_121 = arith.constant 2 : index
    %c2241_122 = arith.constant 2241 : index
    %370 = vector.load %arg8[%c2_121, %c2241_122] : memref<11x4352xf32, #tpu.memory_space<vmem>>, vector<1x2048xf32>
    %371 = vector.extract_strided_slice %0 {offsets = [0, 26], sizes = [8, 1], strides = [1, 1]} : vector<8x27xf32> to vector<8x1xf32>
    %372 = vector.broadcast %371 : vector<8x1xf32> to vector<8x2048xf32>
    %373 = vector.broadcast %370 : vector<1x2048xf32> to vector<8x2048xf32>
    %374 = arith.mulf %372, %373 : vector<8x2048xf32>
    %375 = arith.addf %369, %374 : vector<8x2048xf32>
    %cst_123 = arith.constant 0.000000e+00 : f32
    %376 = vector.broadcast %cst_123 : f32 to vector<8x2048xf32>
    %377 = arith.cmpf oge, %375, %376 : vector<8x2048xf32>
    %cst_124 = arith.constant 0.00999999977 : f32
    %378 = vector.broadcast %cst_124 : f32 to vector<8x2048xf32>
    %379 = arith.mulf %375, %378 : vector<8x2048xf32>
    %380 = arith.select %377, %375, %379 : vector<8x2048xi1>, vector<8x2048xf32>
    %c0_125 = arith.constant 0 : index
    %c0_126 = arith.constant 0 : index
    %c2048 = arith.constant 2048 : index
    %381 = vector.load %arg5[%c0_125, %c0_126, %c2048] : memref<1x8x4096xf32, #tpu.memory_space<vmem>>, vector<1x8x2048xf32>
    %382 = vector.shape_cast %381 : vector<1x8x2048xf32> to vector<8x2048xf32>
    %383 = vector.shape_cast %380 : vector<8x2048xf32> to vector<1x8x2048xf32>
    tpu.vector_store %arg5[%c0_125, %c0_126, %c2048], %383 {strides = array<i32>} : memref<1x8x4096xf32, #tpu.memory_space<vmem>>, vector<1x8x2048xf32>,
    return
  }
  func.func @transform_0(%arg0: i32, %arg1: i32) -> (i32, i32, i32) {
    %c0_i32 = arith.constant 0 : i32
    %c0_i32_0 = arith.constant 0 : i32
    %c0_i32_1 = arith.constant 0 : i32
    return %arg0, %c0_i32, %c0_i32_0 : i32, i32, i32
  }
  func.func @transform_1(%arg0: i32, %arg1: i32) -> (i32, i32) {
    %c0_i32 = arith.constant 0 : i32
    %c0_i32_0 = arith.constant 0 : i32
    %c0_i32_1 = arith.constant 0 : i32
    return %c0_i32, %c0_i32_0 : i32, i32
  }
  func.func @transform_2(%arg0: i32, %arg1: i32) -> (i32, i32) {
    %c0_i32 = arith.constant 0 : i32
    %c0_i32_0 = arith.constant 0 : i32
    %c0_i32_1 = arith.constant 0 : i32
    return %c0_i32, %c0_i32_0 : i32, i32
  }
  func.func @transform_3(%arg0: i32, %arg1: i32) -> (i32, i32, i32) {
    %c0_i32 = arith.constant 0 : i32
    %c0_i32_0 = arith.constant 0 : i32
    return %arg0, %c0_i32, %arg1 : i32, i32, i32
  }
}

</mosaic_0001>

<llo_original>
// kernel: tpu_custom_call.1
$region0: #{tpu_custom_call.1}
  #allocation0 [shape = 'u32[]', space=smem, size = 0x4, offset = 0x4, fixed_abs, tag = 'smem constant byte address 0x4 - core index']
  #allocation1 [shape = 'u32[72,128]{1,0:T(1,128)}', space=vmem, size = 0x9000, scoped, tag = 'internal scratch']
  #allocation2 [shape = 'f32[11,4352]{1,0:T(8,128)}', space=vmem, size = 0x44000, scoped, tag = 'scratch operand']
  #allocation3 [shape = 'f32[11,4352]{1,0:T(8,128)}', space=vmem, size = 0x44000, scoped, tag = 'scratch operand']
  #allocation4 [shape = 'f32[11,4352]{1,0:T(8,128)}', space=vmem, size = 0x44000, scoped, tag = 'scratch operand']
  %s0 = inlined_call_operand.vmem [shape: f32[1,3,4096], index: 0, kind: input, shape index: {}]
  %s1 = inlined_call_operand.vmem [shape: f32[8,27], index: 1, kind: input, shape index: {}]
  %s2 = inlined_call_operand.vmem [shape: f32[8,1], index: 2, kind: input, shape index: {}]
  %s3 = inlined_call_operand.hbm [shape: f32[1,8,4096], index: 3, kind: output, shape index: {}]
  %s4 = sld [smem:[#allocation0]]
  $region22: #{tpu_custom_call.1} parent=0
    _
  %s6 = ssub.s32 1, %s4
  %s7 = scalar_select 0, %s6, %s4
  $region1: #{tpu_custom_call.1} parent=0
    #allocation5 [shape = 'u8[131072]{0}', space=vmem, size = 0x20000, scoped, tag = 'output window, operand 0, single buffered']
    #allocation6 [shape = 's32[1]{0}', space=sflag, size = 0x4, scoped, tag = 'scoped memory for tpu_custom_call.1']
    %8 = vsyncpa [#allocation6], 0
    // Predicated region
    $region2: #{tpu_custom_call.1} parent=1 // pred_check
      _
    $region3: #{tpu_custom_call.1} parent=1 // pred_check_branch
      %10 = sbr.rel (0) target = $region5
    $region4: #{tpu_custom_call.1} parent=1 // pred_region
      _
    $region5: #{tpu_custom_call.1} parent=1 // pred_fallthru
      _
    // Predicated region
    $region6: #{tpu_custom_call.1} parent=1 // pred_check
      _
    $region7: #{tpu_custom_call.1} parent=1 // pred_check_branch
      %12 = sbr.rel (0) target = $region9
    $region8: #{tpu_custom_call.1} parent=1 // pred_region
      _
    $region9: #{tpu_custom_call.1} parent=1 // pred_fallthru
      _
    // Predicated region
    $region10: #{tpu_custom_call.1} parent=1 // pred_check
      _
    $region11: #{tpu_custom_call.1} parent=1 // pred_check_branch
      %14 = sbr.rel (0) target = $region13
    $region12: #{tpu_custom_call.1} parent=1 // pred_region
      _
    $region13: #{tpu_custom_call.1} parent=1 // pred_fallthru
      _
    %v15 = vld [vmem:[%s1] sm:$0xff]
    %v16 = vld [vmem:[%s2] sm:$0xff]
    %v17 = vld [vmem:[%s0] sm:$0x77]
    %v18 = vld [vmem:[%s0 + $0x8] sm:$0x77]
    %v19 = vld [vmem:[%s0 + $0x10] sm:$0x77]
    %v20 = vld [vmem:[%s0 + $0x18] sm:$0x77]
    %v21 = vld [vmem:[%s0 + $0x20] sm:$0x77]
    %v22 = vld [vmem:[%s0 + $0x28] sm:$0x77]
    %v23 = vld [vmem:[%s0 + $0x30] sm:$0x77]
    %v24 = vld [vmem:[%s0 + $0x38] sm:$0x77]
    %v25 = vld [vmem:[%s0 + $0x40] sm:$0x77]
    %v26 = vld [vmem:[%s0 + $0x48] sm:$0x77]
    %v27 = vld [vmem:[%s0 + $0x50] sm:$0x77]
    %v28 = vld [vmem:[%s0 + $0x58] sm:$0x77]
    %v29 = vld [vmem:[%s0 + $0x60] sm:$0x77]
    %v30 = vld [vmem:[%s0 + $0x68] sm:$0x77]
    %v31 = vld [vmem:[%s0 + $0x70] sm:$0x77]
    %v32 = vld [vmem:[%s0 + $0x78] sm:$0x77]
    %v33 = vlaneseq
    %v34 = vand.u32 %v33, 127
    %v35 = vadd.s32 %v34, 128
    %v36 = vadd.s32 %v34, 256
    %v37 = vadd.s32 %v34, 384
    %v38 = vadd.s32 %v34, 512
    %v39 = vadd.s32 %v34, 640
    %v40 = vadd.s32 %v34, 768
    %v41 = vadd.s32 %v34, 896
    %v42 = vadd.s32 %v34, 1024
    %v43 = vadd.s32 %v34, 1152
    %v44 = vadd.s32 %v34, 1280
    %v45 = vadd.s32 %v34, 1408
    %v46 = vadd.s32 %v34, 1536
    %v47 = vadd.s32 %v34, 1664
    %v48 = vadd.s32 %v34, 1792
    %v49 = vadd.s32 %v34, 1920
    %v50 = vadd.s32 %v34, 2048
    %v51 = vadd.s32 %v34, 2176
    %v52 = vadd.s32 %v34, 2304
    %v53 = vadd.s32 %v34, 2432
    %v54 = vadd.s32 %v34, 2560
    %v55 = vadd.s32 %v34, 2688
    %v56 = vadd.s32 %v34, 2816
    %v57 = vadd.s32 %v34, 2944
    %v58 = vadd.s32 %v34, 3072
    %v59 = vadd.s32 %v34, 3200
    %v60 = vadd.s32 %v34, 3328
    %v61 = vadd.s32 %v34, 3456
    %v62 = vadd.s32 %v34, 3584
    %v63 = vadd.s32 %v34, 3712
    %v64 = vadd.s32 %v34, 3840
    %v65 = vadd.s32 %v34, 3968
    %vm66 = vcmp.lt.s32.totalorder %v34, 0
    %v67 = vsub.s32 0, %v34
    %v68 = vsel %vm66, %v67, %v34
    %v69 = vshrl.u32 %v68, 6
    %v70 = vand.u32 %v68, 63
    %v71 = vsub.s32 0, %v70
    %v72 = vsel %vm66, %v71, %v70
    %vm73 = vcmp.lt.s32.totalorder %v35, 0
    %v74 = vsub.s32 0, %v35
    %v75 = vsel %vm73, %v74, %v35
    %v76 = vshrl.u32 %v75, 6
    %v77 = vand.u32 %v75, 63
    %v78 = vsub.s32 0, %v77
    %v79 = vsel %vm73, %v78, %v77
    %vm80 = vcmp.lt.s32.totalorder %v36, 0
    %v81 = vsub.s32 0, %v36
    %v82 = vsel %vm80, %v81, %v36
    %v83 = vshrl.u32 %v82, 6
    %v84 = vand.u32 %v82, 63
    %v85 = vsub.s32 0, %v84
    %v86 = vsel %vm80, %v85, %v84
    %vm87 = vcmp.lt.s32.totalorder %v37, 0
    %v88 = vsub.s32 0, %v37
    %v89 = vsel %vm87, %v88, %v37
    %v90 = vshrl.u32 %v89, 6
    %v91 = vand.u32 %v89, 63
    %v92 = vsub.s32 0, %v91
    %v93 = vsel %vm87, %v92, %v91
    %vm94 = vcmp.lt.s32.totalorder %v38, 0
    %v95 = vsub.s32 0, %v38
    %v96 = vsel %vm94, %v95, %v38
    %v97 = vshrl.u32 %v96, 6
    %v98 = vand.u32 %v96, 63
    %v99 = vsub.s32 0, %v98
    %v100 = vsel %vm94, %v99, %v98
    %vm101 = vcmp.lt.s32.totalorder %v39, 0
    %v102 = vsub.s32 0, %v39
    %v103 = vsel %vm101, %v102, %v39
    %v104 = vshrl.u32 %v103, 6
    %v105 = vand.u32 %v103, 63
    %v106 = vsub.s32 0, %v105
    %v107 = vsel %vm101, %v106, %v105
    %vm108 = vcmp.lt.s32.totalorder %v40, 0
    %v109 = vsub.s32 0, %v40
    %v110 = vsel %vm108, %v109, %v40
    %v111 = vshrl.u32 %v110, 6
    %v112 = vand.u32 %v110, 63
    %v113 = vsub.s32 0, %v112
    %v114 = vsel %vm108, %v113, %v112
    %vm115 = vcmp.lt.s32.totalorder %v41, 0
    %v116 = vsub.s32 0, %v41
    %v117 = vsel %vm115, %v116, %v41
    %v118 = vshrl.u32 %v117, 6
    %v119 = vand.u32 %v117, 63
    %v120 = vsub.s32 0, %v119
    %v121 = vsel %vm115, %v120, %v119
    %vm122 = vcmp.lt.s32.totalorder %v42, 0
    %v123 = vsub.s32 0, %v42
    %v124 = vsel %vm122, %v123, %v42
    %v125 = vshrl.u32 %v124, 6
    %v126 = vand.u32 %v124, 63
    %v127 = vsub.s32 0, %v126
    %v128 = vsel %vm122, %v127, %v126
    %vm129 = vcmp.lt.s32.totalorder %v43, 0
    %v130 = vsub.s32 0, %v43
    %v131 = vsel %vm129, %v130, %v43
    %v132 = vshrl.u32 %v131, 6
    %v133 = vand.u32 %v131, 63
    %v134 = vsub.s32 0, %v133
    %v135 = vsel %vm129, %v134, %v133
    %vm136 = vcmp.lt.s32.totalorder %v44, 0
    %v137 = vsub.s32 0, %v44
    %v138 = vsel %vm136, %v137, %v44
    %v139 = vshrl.u32 %v138, 6
    %v140 = vand.u32 %v138, 63
    %v141 = vsub.s32 0, %v140
    %v142 = vsel %vm136, %v141, %v140
    %vm143 = vcmp.lt.s32.totalorder %v45, 0
    %v144 = vsub.s32 0, %v45
    %v145 = vsel %vm143, %v144, %v45
    %v146 = vshrl.u32 %v145, 6
    %v147 = vand.u32 %v145, 63
    %v148 = vsub.s32 0, %v147
    %v149 = vsel %vm143, %v148, %v147
    %vm150 = vcmp.lt.s32.totalorder %v46, 0
    %v151 = vsub.s32 0, %v46
    %v152 = vsel %vm150, %v151, %v46
    %v153 = vshrl.u32 %v152, 6
    %v154 = vand.u32 %v152, 63
    %v155 = vsub.s32 0, %v154
    %v156 = vsel %vm150, %v155, %v154
    %vm157 = vcmp.lt.s32.totalorder %v47, 0
    %v158 = vsub.s32 0, %v47
    %v159 = vsel %vm157, %v158, %v47
    %v160 = vshrl.u32 %v159, 6
    %v161 = vand.u32 %v159, 63
    %v162 = vsub.s32 0, %v161
    %v163 = vsel %vm157, %v162, %v161
    %vm164 = vcmp.lt.s32.totalorder %v48, 0
    %v165 = vsub.s32 0, %v48
    %v166 = vsel %vm164, %v165, %v48
    %v167 = vshrl.u32 %v166, 6
    %v168 = vand.u32 %v166, 63
    %v169 = vsub.s32 0, %v168
    %v170 = vsel %vm164, %v169, %v168
    %vm171 = vcmp.lt.s32.totalorder %v49, 0
    %v172 = vsub.s32 0, %v49
    %v173 = vsel %vm171, %v172, %v49
    %v174 = vshrl.u32 %v173, 6
    %v175 = vand.u32 %v173, 63
    %v176 = vsub.s32 0, %v175
    %v177 = vsel %vm171, %v176, %v175
    %vm178 = vcmp.lt.s32.totalorder %v50, 0
    %v179 = vsub.s32 0, %v50
    %v180 = vsel %vm178, %v179, %v50
    %v181 = vshrl.u32 %v180, 6
    %v182 = vand.u32 %v180, 63
    %v183 = vsub.s32 0, %v182
    %v184 = vsel %vm178, %v183, %v182
    %vm185 = vcmp.lt.s32.totalorder %v51, 0
    %v186 = vsub.s32 0, %v51
    %v187 = vsel %vm185, %v186, %v51
    %v188 = vshrl.u32 %v187, 6
    %v189 = vand.u32 %v187, 63
    %v190 = vsub.s32 0, %v189
    %v191 = vsel %vm185, %v190, %v189
    %vm192 = vcmp.lt.s32.totalorder %v52, 0
    %v193 = vsub.s32 0, %v52
    %v194 = vsel %vm192, %v193, %v52
    %v195 = vshrl.u32 %v194, 6
    %v196 = vand.u32 %v194, 63
    %v197 = vsub.s32 0, %v196
    %v198 = vsel %vm192, %v197, %v196
    %vm199 = vcmp.lt.s32.totalorder %v53, 0
    %v200 = vsub.s32 0, %v53
    %v201 = vsel %vm199, %v200, %v53
    %v202 = vshrl.u32 %v201, 6
    %v203 = vand.u32 %v201, 63
    %v204 = vsub.s32 0, %v203
    %v205 = vsel %vm199, %v204, %v203
    %vm206 = vcmp.lt.s32.totalorder %v54, 0
    %v207 = vsub.s32 0, %v54
    %v208 = vsel %vm206, %v207, %v54
    %v209 = vshrl.u32 %v208, 6
    %v210 = vand.u32 %v208, 63
    %v211 = vsub.s32 0, %v210
    %v212 = vsel %vm206, %v211, %v210
    %vm213 = vcmp.lt.s32.totalorder %v55, 0
    %v214 = vsub.s32 0, %v55
    %v215 = vsel %vm213, %v214, %v55
    %v216 = vshrl.u32 %v215, 6
    %v217 = vand.u32 %v215, 63
    %v218 = vsub.s32 0, %v217
    %v219 = vsel %vm213, %v218, %v217
    %vm220 = vcmp.lt.s32.totalorder %v56, 0
    %v221 = vsub.s32 0, %v56
    %v222 = vsel %vm220, %v221, %v56
    %v223 = vshrl.u32 %v222, 6
    %v224 = vand.u32 %v222, 63
    %v225 = vsub.s32 0, %v224
    %v226 = vsel %vm220, %v225, %v224
    %vm227 = vcmp.lt.s32.totalorder %v57, 0
    %v228 = vsub.s32 0, %v57
    %v229 = vsel %vm227, %v228, %v57
    %v230 = vshrl.u32 %v229, 6
    %v231 = vand.u32 %v229, 63
    %v232 = vsub.s32 0, %v231
    %v233 = vsel %vm227, %v232, %v231
    %vm234 = vcmp.lt.s32.totalorder %v58, 0
    %v235 = vsub.s32 0, %v58
    %v236 = vsel %vm234, %v235, %v58
    %v237 = vshrl.u32 %v236, 6
    %v238 = vand.u32 %v236, 63
    %v239 = vsub.s32 0, %v238
    %v240 = vsel %vm234, %v239, %v238
    %vm241 = vcmp.lt.s32.totalorder %v59, 0
    %v242 = vsub.s32 0, %v59
    %v243 = vsel %vm241, %v242, %v59
    %v244 = vshrl.u32 %v243, 6
    %v245 = vand.u32 %v243, 63
    %v246 = vsub.s32 0, %v245
    %v247 = vsel %vm241, %v246, %v245
    %vm248 = vcmp.lt.s32.totalorder %v60, 0
    %v249 = vsub.s32 0, %v60
    %v250 = vsel %vm248, %v249, %v60
    %v251 = vshrl.u32 %v250, 6
    %v252 = vand.u32 %v250, 63
    %v253 = vsub.s32 0, %v252
    %v254 = vsel %vm248, %v253, %v252
    %vm255 = vcmp.lt.s32.totalorder %v61, 0
    %v256 = vsub.s32 0, %v61
    %v257 = vsel %vm255, %v256, %v61
    %v258 = vshrl.u32 %v257, 6
    %v259 = vand.u32 %v257, 63
    %v260 = vsub.s32 0, %v259
    %v261 = vsel %vm255, %v260, %v259
    %vm262 = vcmp.lt.s32.totalorder %v62, 0
    %v263 = vsub.s32 0, %v62
    %v264 = vsel %vm262, %v263, %v62
    %v265 = vshrl.u32 %v264, 6
    %v266 = vand.u32 %v264, 63
    %v267 = vsub.s32 0, %v266
    %v268 = vsel %vm262, %v267, %v266
    %vm269 = vcmp.lt.s32.totalorder %v63, 0
    %v270 = vsub.s32 0, %v63
    %v271 = vsel %vm269, %v270, %v63
    %v272 = vshrl.u32 %v271, 6
    %v273 = vand.u32 %v271, 63
    %v274 = vsub.s32 0, %v273
    %v275 = vsel %vm269, %v274, %v273
    %vm276 = vcmp.lt.s32.totalorder %v64, 0
    %v277 = vsub.s32 0, %v64
    %v278 = vsel %vm276, %v277, %v64
    %v279 = vshrl.u32 %v278, 6
    %v280 = vand.u32 %v278, 63
    %v281 = vsub.s32 0, %v280
    %v282 = vsel %vm276, %v281, %v280
    %vm283 = vcmp.lt.s32.totalorder %v65, 0
    %v284 = vsub.s32 0, %v65
    %v285 = vsel %vm283, %v284, %v65
    %v286 = vshrl.u32 %v285, 6
    %v287 = vand.u32 %v285, 63
    %v288 = vsub.s32 0, %v287
    %v289 = vsel %vm283, %v288, %v287
    %vm290 = vcmp.ne.s32.totalorder %v72, 0
    %vm291 = vcmp.ne.s32.totalorder %v79, 0
    %vm292 = vcmp.ne.s32.totalorder %v86, 0
    %vm293 = vcmp.ne.s32.totalorder %v93, 0
    %vm294 = vcmp.ne.s32.totalorder %v100, 0
    %vm295 = vcmp.ne.s32.totalorder %v107, 0
    %vm296 = vcmp.ne.s32.totalorder %v114, 0
    %vm297 = vcmp.ne.s32.totalorder %v121, 0
    %vm298 = vcmp.ne.s32.totalorder %v128, 0
    %vm299 = vcmp.ne.s32.totalorder %v135, 0
    %vm300 = vcmp.ne.s32.totalorder %v142, 0
    %vm301 = vcmp.ne.s32.totalorder %v149, 0
    %vm302 = vcmp.ne.s32.totalorder %v156, 0
    %vm303 = vcmp.ne.s32.totalorder %v163, 0
    %vm304 = vcmp.ne.s32.totalorder %v170, 0
    %vm305 = vcmp.ne.s32.totalorder %v177, 0
    %vm306 = vcmp.ne.s32.totalorder %v184, 0
    %vm307 = vcmp.ne.s32.totalorder %v191, 0
    %vm308 = vcmp.ne.s32.totalorder %v198, 0
    %vm309 = vcmp.ne.s32.totalorder %v205, 0
    %vm310 = vcmp.ne.s32.totalorder %v212, 0
    %vm311 = vcmp.ne.s32.totalorder %v219, 0
    %vm312 = vcmp.ne.s32.totalorder %v226, 0
    %vm313 = vcmp.ne.s32.totalorder %v233, 0
    %vm314 = vcmp.ne.s32.totalorder %v240, 0
    %vm315 = vcmp.ne.s32.totalorder %v247, 0
    %vm316 = vcmp.ne.s32.totalorder %v254, 0
    %vm317 = vcmp.ne.s32.totalorder %v261, 0
    %vm318 = vcmp.ne.s32.totalorder %v268, 0
    %vm319 = vcmp.ne.s32.totalorder %v275, 0
    %vm320 = vcmp.ne.s32.totalorder %v282, 0
    %vm321 = vcmp.ne.s32.totalorder %v289, 0
    %vm322 = vcmp.lt.s32.totalorder %v72, 0
    %vm323 = vcmp.lt.s32.totalorder %v79, 0
    %vm324 = vcmp.lt.s32.totalorder %v86, 0
    %vm325 = vcmp.lt.s32.totalorder %v93, 0
    %vm326 = vcmp.lt.s32.totalorder %v100, 0
    %vm327 = vcmp.lt.s32.totalorder %v107, 0
    %vm328 = vcmp.lt.s32.totalorder %v114, 0
    %vm329 = vcmp.lt.s32.totalorder %v121, 0
    %vm330 = vcmp.lt.s32.totalorder %v128, 0
    %vm331 = vcmp.lt.s32.totalorder %v135, 0
    %vm332 = vcmp.lt.s32.totalorder %v142, 0
    %vm333 = vcmp.lt.s32.totalorder %v149, 0
    %vm334 = vcmp.lt.s32.totalorder %v156, 0
    %vm335 = vcmp.lt.s32.totalorder %v163, 0
    %vm336 = vcmp.lt.s32.totalorder %v170, 0
    %vm337 = vcmp.lt.s32.totalorder %v177, 0
    %vm338 = vcmp.lt.s32.totalorder %v184, 0
    %vm339 = vcmp.lt.s32.totalorder %v191, 0
    %vm340 = vcmp.lt.s32.totalorder %v198, 0
    %vm341 = vcmp.lt.s32.totalorder %v205, 0
    %vm342 = vcmp.lt.s32.totalorder %v212, 0
    %vm343 = vcmp.lt.s32.totalorder %v219, 0
    %vm344 = vcmp.lt.s32.totalorder %v226, 0
    %vm345 = vcmp.lt.s32.totalorder %v233, 0
    %vm346 = vcmp.lt.s32.totalorder %v240, 0
    %vm347 = vcmp.lt.s32.totalorder %v247, 0
    %vm348 = vcmp.lt.s32.totalorder %v254, 0
    %vm349 = vcmp.lt.s32.totalorder %v261, 0
    %vm350 = vcmp.lt.s32.totalorder %v268, 0
    %vm351 = vcmp.lt.s32.totalorder %v275, 0
    %vm352 = vcmp.lt.s32.totalorder %v282, 0
    %vm353 = vcmp.lt.s32.totalorder %v289, 0
    %vm354 = vmand %vm322, %vm290
    %vm355 = vmand %vm323, %vm291
    %vm356 = vmand %vm324, %vm292
    %vm357 = vmand %vm325, %vm293
    %vm358 = vmand %vm326, %vm294
    %vm359 = vmand %vm327, %vm295
    %vm360 = vmand %vm328, %vm296
    %vm361 = vmand %vm329, %vm297
    %vm362 = vmand %vm330, %vm298
    %vm363 = vmand %vm331, %vm299
    %vm364 = vmand %vm332, %vm300
    %vm365 = vmand %vm333, %vm301
    %vm366 = vmand %vm334, %vm302
    %vm367 = vmand %vm335, %vm303
    %vm368 = vmand %vm336, %vm304
    %vm369 = vmand %vm337, %vm305
    %vm370 = vmand %vm338, %vm306
    %vm371 = vmand %vm339, %vm307
    %vm372 = vmand %vm340, %vm308
    %vm373 = vmand %vm341, %vm309
    %vm374 = vmand %vm342, %vm310
    %vm375 = vmand %vm343, %vm311
    %vm376 = vmand %vm344, %vm312
    %vm377 = vmand %vm345, %vm313
    %vm378 = vmand %vm346, %vm314
    %vm379 = vmand %vm347, %vm315
    %vm380 = vmand %vm348, %vm316
    %vm381 = vmand %vm349, %vm317
    %vm382 = vmand %vm350, %vm318
    %vm383 = vmand %vm351, %vm319
    %vm384 = vmand %vm352, %vm320
    %vm385 = vmand %vm353, %vm321
    %v386 = vadd.s32 %v72, 64
    %v387 = vadd.s32 %v79, 64
    %v388 = vadd.s32 %v86, 64
    %v389 = vadd.s32 %v93, 64
    %v390 = vadd.s32 %v100, 64
    %v391 = vadd.s32 %v107, 64
    %v392 = vadd.s32 %v114, 64
    %v393 = vadd.s32 %v121, 64
    %v394 = vadd.s32 %v128, 64
    %v395 = vadd.s32 %v135, 64
    %v396 = vadd.s32 %v142, 64
    %v397 = vadd.s32 %v149, 64
    %v398 = vadd.s32 %v156, 64
    %v399 = vadd.s32 %v163, 64
    %v400 = vadd.s32 %v170, 64
    %v401 = vadd.s32 %v177, 64
    %v402 = vadd.s32 %v184, 64
    %v403 = vadd.s32 %v191, 64
    %v404 = vadd.s32 %v198, 64
    %v405 = vadd.s32 %v205, 64
    %v406 = vadd.s32 %v212, 64
    %v407 = vadd.s32 %v219, 64
    %v408 = vadd.s32 %v226, 64
    %v409 = vadd.s32 %v233, 64
    %v410 = vadd.s32 %v240, 64
    %v411 = vadd.s32 %v247, 64
    %v412 = vadd.s32 %v254, 64
    %v413 = vadd.s32 %v261, 64
    %v414 = vadd.s32 %v268, 64
    %v415 = vadd.s32 %v275, 64
    %v416 = vadd.s32 %v282, 64
    %v417 = vadd.s32 %v289, 64
    %v418 = vsel %vm354, %v386, %v72
    %v419 = vsel %vm355, %v387, %v79
    %v420 = vsel %vm356, %v388, %v86
    %v421 = vsel %vm357, %v389, %v93
    %v422 = vsel %vm358, %v390, %v100
    %v423 = vsel %vm359, %v391, %v107
    %v424 = vsel %vm360, %v392, %v114
    %v425 = vsel %vm361, %v393, %v121
    %v426 = vsel %vm362, %v394, %v128
    %v427 = vsel %vm363, %v395, %v135
    %v428 = vsel %vm364, %v396, %v142
    %v429 = vsel %vm365, %v397, %v149
    %v430 = vsel %vm366, %v398, %v156
    %v431 = vsel %vm367, %v399, %v163
    %v432 = vsel %vm368, %v400, %v170
    %v433 = vsel %vm369, %v401, %v177
    %v434 = vsel %vm370, %v402, %v184
    %v435 = vsel %vm371, %v403, %v191
    %v436 = vsel %vm372, %v404, %v198
    %v437 = vsel %vm373, %v405, %v205
    %v438 = vsel %vm374, %v406, %v212
    %v439 = vsel %vm375, %v407, %v219
    %v440 = vsel %vm376, %v408, %v226
    %v441 = vsel %vm377, %v409, %v233
    %v442 = vsel %vm378, %v410, %v240
    %v443 = vsel %vm379, %v411, %v247
    %v444 = vsel %vm380, %v412, %v254
    %v445 = vsel %vm381, %v413, %v261
    %v446 = vsel %vm382, %v414, %v268
    %v447 = vsel %vm383, %v415, %v275
    %v448 = vsel %vm384, %v416, %v282
    %v449 = vsel %vm385, %v417, %v289
    %466 = vst [vmem:[#allocation1] ss:$2 sm:$0xff] %v17
    %s467 = scalar_lea.vmem [#allocation1], 16
    %468 = vst [vmem:[%s467] ss:$2 sm:$0xff] %v18
    %s469 = scalar_lea.vmem [#allocation1], 32
    %470 = vst [vmem:[%s469] ss:$2 sm:$0xff] %v19
    %s471 = scalar_lea.vmem [#allocation1], 48
    %472 = vst [vmem:[%s471] ss:$2 sm:$0xff] %v20
    %v473 = vld.sshfl [vmem:[#allocation1] sm:$0xff pattern:$0x75316420]
    %v474 = vld.sshfl [vmem:[#allocation1 + $0x8] sm:$0xff pattern:$0x75316420]
    %v475 = vld.sshfl [vmem:[#allocation1 + $0x10] sm:$0xff pattern:$0x75316420]
    %v476 = vld.sshfl [vmem:[#allocation1 + $0x18] sm:$0xff pattern:$0x75316420]
    %v477 = vld.sshfl [vmem:[#allocation1 + $0x20] sm:$0xff pattern:$0x75316420]
    %v478 = vld.sshfl [vmem:[#allocation1 + $0x28] sm:$0xff pattern:$0x75316420]
    %v479 = vld.sshfl [vmem:[#allocation1 + $0x30] sm:$0xff pattern:$0x75316420]
    %v480 = vld.sshfl [vmem:[#allocation1 + $0x38] sm:$0xff pattern:$0x75316420]
    %481 = vst [vmem:[#allocation1] ss:$2 sm:$0xff] %v21
    %482 = vst [vmem:[%s467] ss:$2 sm:$0xff] %v22
    %483 = vst [vmem:[%s469] ss:$2 sm:$0xff] %v23
    %484 = vst [vmem:[%s471] ss:$2 sm:$0xff] %v24
    %v485 = vld.sshfl [vmem:[#allocation1] sm:$0xff pattern:$0x75316420]
    %v486 = vld.sshfl [vmem:[#allocation1 + $0x8] sm:$0xff pattern:$0x75316420]
    %v487 = vld.sshfl [vmem:[#allocation1 + $0x10] sm:$0xff pattern:$0x75316420]
    %v488 = vld.sshfl [vmem:[#allocation1 + $0x18] sm:$0xff pattern:$0x75316420]
    %v489 = vld.sshfl [vmem:[#allocation1 + $0x20] sm:$0xff pattern:$0x75316420]
    %v490 = vld.sshfl [vmem:[#allocation1 + $0x28] sm:$0xff pattern:$0x75316420]
    %v491 = vld.sshfl [vmem:[#allocation1 + $0x30] sm:$0xff pattern:$0x75316420]
    %v492 = vld.sshfl [vmem:[#allocation1 + $0x38] sm:$0xff pattern:$0x75316420]
    %493 = vst [vmem:[#allocation1] ss:$2 sm:$0xff] %v25
    %494 = vst [vmem:[%s467] ss:$2 sm:$0xff] %v26
    %495 = vst [vmem:[%s469] ss:$2 sm:$0xff] %v27
    %496 = vst [vmem:[%s471] ss:$2 sm:$0xff] %v28
    %v497 = vld.sshfl [vmem:[#allocation1] sm:$0xff pattern:$0x75316420]
    %v498 = vld.sshfl [vmem:[#allocation1 + $0x8] sm:$0xff pattern:$0x75316420]
    %v499 = vld.sshfl [vmem:[#allocation1 + $0x10] sm:$0xff pattern:$0x75316420]
    %v500 = vld.sshfl [vmem:[#allocation1 + $0x18] sm:$0xff pattern:$0x75316420]
    %v501 = vld.sshfl [vmem:[#allocation1 + $0x20] sm:$0xff pattern:$0x75316420]
    %v502 = vld.sshfl [vmem:[#allocation1 + $0x28] sm:$0xff pattern:$0x75316420]
    %v503 = vld.sshfl [vmem:[#allocation1 + $0x30] sm:$0xff pattern:$0x75316420]
    %v504 = vld.sshfl [vmem:[#allocation1 + $0x38] sm:$0xff pattern:$0x75316420]
    %505 = vst [vmem:[#allocation1] ss:$2 sm:$0xff] %v29
    %506 = vst [vmem:[%s467] ss:$2 sm:$0xff] %v30
    %507 = vst [vmem:[%s469] ss:$2 sm:$0xff] %v31
    %508 = vst [vmem:[%s471] ss:$2 sm:$0xff] %v32
    %v509 = vld.sshfl [vmem:[#allocation1] sm:$0xff pattern:$0x75316420]
    %v510 = vld.sshfl [vmem:[#allocation1 + $0x8] sm:$0xff pattern:$0x75316420]
    %v511 = vld.sshfl [vmem:[#allocation1 + $0x10] sm:$0xff pattern:$0x75316420]
    %v512 = vld.sshfl [vmem:[#allocation1 + $0x18] sm:$0xff pattern:$0x75316420]
    %v513 = vld.sshfl [vmem:[#allocation1 + $0x20] sm:$0xff pattern:$0x75316420]
    %v514 = vld.sshfl [vmem:[#allocation1 + $0x28] sm:$0xff pattern:$0x75316420]
    %v515 = vld.sshfl [vmem:[#allocation1 + $0x30] sm:$0xff pattern:$0x75316420]
    %v516 = vld.sshfl [vmem:[#allocation1 + $0x38] sm:$0xff pattern:$0x75316420]
    %549 = vst [vmem:[#allocation2 + $0x8] sm:$0x7] %v473
    %550 = vst [vmem:[#allocation2 + $0x10] sm:$0x7] %v474
    %551 = vst [vmem:[#allocation2 + $0x18] sm:$0x7] %v475
    %552 = vst [vmem:[#allocation2 + $0x20] sm:$0x7] %v476
    %553 = vst [vmem:[#allocation2 + $0x28] sm:$0x7] %v477
    %554 = vst [vmem:[#allocation2 + $0x30] sm:$0x7] %v478
    %555 = vst [vmem:[#allocation2 + $0x38] sm:$0x7] %v479
    %556 = vst [vmem:[#allocation2 + $0x40] sm:$0x7] %v480
    %557 = vst [vmem:[#allocation2 + $0x48] sm:$0x7] %v485
    %558 = vst [vmem:[#allocation2 + $0x50] sm:$0x7] %v486
    %559 = vst [vmem:[#allocation2 + $0x58] sm:$0x7] %v487
    %560 = vst [vmem:[#allocation2 + $0x60] sm:$0x7] %v488
    %561 = vst [vmem:[#allocation2 + $0x68] sm:$0x7] %v489
    %562 = vst [vmem:[#allocation2 + $0x70] sm:$0x7] %v490
    %563 = vst [vmem:[#allocation2 + $0x78] sm:$0x7] %v491
    %564 = vst [vmem:[#allocation2 + $0x80] sm:$0x7] %v492
    %565 = vst [vmem:[#allocation2 + $0x88] sm:$0x7] %v497
    %566 = vst [vmem:[#allocation2 + $0x90] sm:$0x7] %v498
    %567 = vst [vmem:[#allocation2 + $0x98] sm:$0x7] %v499
    %568 = vst [vmem:[#allocation2 + $0xa0] sm:$0x7] %v500
    %569 = vst [vmem:[#allocation2 + $0xa8] sm:$0x7] %v501
    %570 = vst [vmem:[#allocation2 + $0xb0] sm:$0x7] %v502
    %571 = vst [vmem:[#allocation2 + $0xb8] sm:$0x7] %v503
    %572 = vst [vmem:[#allocation2 + $0xc0] sm:$0x7] %v504
    %573 = vst [vmem:[#allocation2 + $0xc8] sm:$0x7] %v509
    %574 = vst [vmem:[#allocation2 + $0xd0] sm:$0x7] %v510
    %575 = vst [vmem:[#allocation2 + $0xd8] sm:$0x7] %v511
    %576 = vst [vmem:[#allocation2 + $0xe0] sm:$0x7] %v512
    %577 = vst [vmem:[#allocation2 + $0xe8] sm:$0x7] %v513
    %578 = vst [vmem:[#allocation2 + $0xf0] sm:$0x7] %v514
    %579 = vst [vmem:[#allocation2 + $0xf8] sm:$0x7] %v515
    %580 = vst [vmem:[#allocation2 + $0x100] sm:$0x7] %v516
    %vm581 = vcmp.eq.s32.totalorder %v418, 63
    %vm582 = vcmp.eq.s32.totalorder %v419, 63
    %vm583 = vcmp.eq.s32.totalorder %v420, 63
    %vm584 = vcmp.eq.s32.totalorder %v421, 63
    %vm585 = vcmp.eq.s32.totalorder %v422, 63
    %vm586 = vcmp.eq.s32.totalorder %v423, 63
    %vm587 = vcmp.eq.s32.totalorder %v424, 63
    %vm588 = vcmp.eq.s32.totalorder %v425, 63
    %vm589 = vcmp.eq.s32.totalorder %v426, 63
    %vm590 = vcmp.eq.s32.totalorder %v427, 63
    %vm591 = vcmp.eq.s32.totalorder %v428, 63
    %vm592 = vcmp.eq.s32.totalorder %v429, 63
    %vm593 = vcmp.eq.s32.totalorder %v430, 63
    %vm594 = vcmp.eq.s32.totalorder %v431, 63
    %vm595 = vcmp.eq.s32.totalorder %v432, 63
    %vm596 = vcmp.eq.s32.totalorder %v433, 63
    %vm597 = vcmp.eq.s32.totalorder %v434, 63
    %vm598 = vcmp.eq.s32.totalorder %v435, 63
    %vm599 = vcmp.eq.s32.totalorder %v436, 63
    %vm600 = vcmp.eq.s32.totalorder %v437, 63
    %vm601 = vcmp.eq.s32.totalorder %v438, 63
    %vm602 = vcmp.eq.s32.totalorder %v439, 63
    %vm603 = vcmp.eq.s32.totalorder %v440, 63
    %vm604 = vcmp.eq.s32.totalorder %v441, 63
    %vm605 = vcmp.eq.s32.totalorder %v442, 63
    %vm606 = vcmp.eq.s32.totalorder %v443, 63
    %vm607 = vcmp.eq.s32.totalorder %v444, 63
    %vm608 = vcmp.eq.s32.totalorder %v445, 63
    %vm609 = vcmp.eq.s32.totalorder %v446, 63
    %vm610 = vcmp.eq.s32.totalorder %v447, 63
    %vm611 = vcmp.eq.s32.totalorder %v448, 63
    %vm612 = vcmp.eq.s32.totalorder %v449, 63
    %613 = vst [vmem:[#allocation1] ss:$2 sm:$0xff] %v17
    %s614 = scalar_lea.vmem [#allocation1], 16
    %615 = vst [vmem:[%s614] ss:$2 sm:$0xff] %v18
    %s616 = scalar_lea.vmem [#allocation1], 32
    %617 = vst [vmem:[%s616] ss:$2 sm:$0xff] %v19
    %s618 = scalar_lea.vmem [#allocation1], 48
    %619 = vst [vmem:[%s618] ss:$2 sm:$0xff] %v20
    %v620 = vld.sshfl [vmem:[#allocation1] sm:$0xff pattern:$0x75316420]
    %v621 = vld.sshfl [vmem:[#allocation1 + $0x8] sm:$0xff pattern:$0x75316420]
    %v622 = vld.sshfl [vmem:[#allocation1 + $0x10] sm:$0xff pattern:$0x75316420]
    %v623 = vld.sshfl [vmem:[#allocation1 + $0x18] sm:$0xff pattern:$0x75316420]
    %v624 = vld.sshfl [vmem:[#allocation1 + $0x20] sm:$0xff pattern:$0x75316420]
    %v625 = vld.sshfl [vmem:[#allocation1 + $0x28] sm:$0xff pattern:$0x75316420]
    %v626 = vld.sshfl [vmem:[#allocation1 + $0x30] sm:$0xff pattern:$0x75316420]
    %v627 = vld.sshfl [vmem:[#allocation1 + $0x38] sm:$0xff pattern:$0x75316420]
    %628 = vst [vmem:[#allocation1] ss:$2 sm:$0xff] %v21
    %629 = vst [vmem:[%s614] ss:$2 sm:$0xff] %v22
    %630 = vst [vmem:[%s616] ss:$2 sm:$0xff] %v23
    %631 = vst [vmem:[%s618] ss:$2 sm:$0xff] %v24
    %v632 = vld.sshfl [vmem:[#allocation1] sm:$0xff pattern:$0x75316420]
    %v633 = vld.sshfl [vmem:[#allocation1 + $0x8] sm:$0xff pattern:$0x75316420]
    %v634 = vld.sshfl [vmem:[#allocation1 + $0x10] sm:$0xff pattern:$0x75316420]
    %v635 = vld.sshfl [vmem:[#allocation1 + $0x18] sm:$0xff pattern:$0x75316420]
    %v636 = vld.sshfl [vmem:[#allocation1 + $0x20] sm:$0xff pattern:$0x75316420]
    %v637 = vld.sshfl [vmem:[#allocation1 + $0x28] sm:$0xff pattern:$0x75316420]
    %v638 = vld.sshfl [vmem:[#allocation1 + $0x30] sm:$0xff pattern:$0x75316420]
    %v639 = vld.sshfl [vmem:[#allocation1 + $0x38] sm:$0xff pattern:$0x75316420]
    %640 = vst [vmem:[#allocation1] ss:$2 sm:$0xff] %v25
    %641 = vst [vmem:[%s614] ss:$2 sm:$0xff] %v26
    %642 = vst [vmem:[%s616] ss:$2 sm:$0xff] %v27
    %643 = vst [vmem:[%s618] ss:$2 sm:$0xff] %v28
    %v644 = vld.sshfl [vmem:[#allocation1] sm:$0xff pattern:$0x75316420]
    %v645 = vld.sshfl [vmem:[#allocation1 + $0x8] sm:$0xff pattern:$0x75316420]
    %v646 = vld.sshfl [vmem:[#allocation1 + $0x10] sm:$0xff pattern:$0x75316420]
    %v647 = vld.sshfl [vmem:[#allocation1 + $0x18] sm:$0xff pattern:$0x75316420]
    %v648 = vld.sshfl [vmem:[#allocation1 + $0x20] sm:$0xff pattern:$0x75316420]
    %v649 = vld.sshfl [vmem:[#allocation1 + $0x28] sm:$0xff pattern:$0x75316420]
    %v650 = vld.sshfl [vmem:[#allocation1 + $0x30] sm:$0xff pattern:$0x75316420]
    %v651 = vld.sshfl [vmem:[#allocation1 + $0x38] sm:$0xff pattern:$0x75316420]
    %652 = vst [vmem:[#allocation1] ss:$2 sm:$0xff] %v29
    %653 = vst [vmem:[%s614] ss:$2 sm:$0xff] %v30
    %654 = vst [vmem:[%s616] ss:$2 sm:$0xff] %v31
    %655 = vst [vmem:[%s618] ss:$2 sm:$0xff] %v32
    %v656 = vld.sshfl [vmem:[#allocation1] sm:$0xff pattern:$0x75316420]
    %v657 = vld.sshfl [vmem:[#allocation1 + $0x8] sm:$0xff pattern:$0x75316420]
    %v658 = vld.sshfl [vmem:[#allocation1 + $0x10] sm:$0xff pattern:$0x75316420]
    %v659 = vld.sshfl [vmem:[#allocation1 + $0x18] sm:$0xff pattern:$0x75316420]
    %v660 = vld.sshfl [vmem:[#allocation1 + $0x20] sm:$0xff pattern:$0x75316420]
    %v661 = vld.sshfl [vmem:[#allocation1 + $0x28] sm:$0xff pattern:$0x75316420]
    %v662 = vld.sshfl [vmem:[#allocation1 + $0x30] sm:$0xff pattern:$0x75316420]
    %v663 = vld.sshfl [vmem:[#allocation1 + $0x38] sm:$0xff pattern:$0x75316420]
    %v696 = vsel %vm581, 0.0, %v620
    %v697 = vsel %vm582, 0.0, %v621
    %v698 = vsel %vm583, 0.0, %v622
    %v699 = vsel %vm584, 0.0, %v623
    %v700 = vsel %vm585, 0.0, %v624
    %v701 = vsel %vm586, 0.0, %v625
    %v702 = vsel %vm587, 0.0, %v626
    %v703 = vsel %vm588, 0.0, %v627
    %v704 = vsel %vm589, 0.0, %v632
    %v705 = vsel %vm590, 0.0, %v633
    %v706 = vsel %vm591, 0.0, %v634
    %v707 = vsel %vm592, 0.0, %v635
    %v708 = vsel %vm593, 0.0, %v636
    %v709 = vsel %vm594, 0.0, %v637
    %v710 = vsel %vm595, 0.0, %v638
    %v711 = vsel %vm596, 0.0, %v639
    %v712 = vsel %vm597, 0.0, %v644
    %v713 = vsel %vm598, 0.0, %v645
    %v714 = vsel %vm599, 0.0, %v646
    %v715 = vsel %vm600, 0.0, %v647
    %v716 = vsel %vm601, 0.0, %v648
    %v717 = vsel %vm602, 0.0, %v649
    %v718 = vsel %vm603, 0.0, %v650
    %v719 = vsel %vm604, 0.0, %v651
    %v720 = vsel %vm605, 0.0, %v656
    %v721 = vsel %vm606, 0.0, %v657
    %v722 = vsel %vm607, 0.0, %v658
    %v723 = vsel %vm608, 0.0, %v659
    %v724 = vsel %vm609, 0.0, %v660
    %v725 = vsel %vm610, 0.0, %v661
    %v726 = vsel %vm611, 0.0, %v662
    %v727 = vsel %vm612, 0.0, %v663
    %728 = vst [vmem:[#allocation3 + $0x8] sm:$0x7] %v696
    %729 = vst [vmem:[#allocation3 + $0x10] sm:$0x7] %v697
    %730 = vst [vmem:[#allocation3 + $0x18] sm:$0x7] %v698
    %731 = vst [vmem:[#allocation3 + $0x20] sm:$0x7] %v699
    %732 = vst [vmem:[#allocation3 + $0x28] sm:$0x7] %v700
    %733 = vst [vmem:[#allocation3 + $0x30] sm:$0x7] %v701
    %734 = vst [vmem:[#allocation3 + $0x38] sm:$0x7] %v702
    %735 = vst [vmem:[#allocation3 + $0x40] sm:$0x7] %v703
    %736 = vst [vmem:[#allocation3 + $0x48] sm:$0x7] %v704
    %737 = vst [vmem:[#allocation3 + $0x50] sm:$0x7] %v705
    %738 = vst [vmem:[#allocation3 + $0x58] sm:$0x7] %v706
    %739 = vst [vmem:[#allocation3 + $0x60] sm:$0x7] %v707
    %740 = vst [vmem:[#allocation3 + $0x68] sm:$0x7] %v708
    %741 = vst [vmem:[#allocation3 + $0x70] sm:$0x7] %v709
    %742 = vst [vmem:[#allocation3 + $0x78] sm:$0x7] %v710
    %743 = vst [vmem:[#allocation3 + $0x80] sm:$0x7] %v711
    %744 = vst [vmem:[#allocation3 + $0x88] sm:$0x7] %v712
    %745 = vst [vmem:[#allocation3 + $0x90] sm:$0x7] %v713
    %746 = vst [vmem:[#allocation3 + $0x98] sm:$0x7] %v714
    %747 = vst [vmem:[#allocation3 + $0xa0] sm:$0x7] %v715
    %748 = vst [vmem:[#allocation3 + $0xa8] sm:$0x7] %v716
    %749 = vst [vmem:[#allocation3 + $0xb0] sm:$0x7] %v717
    %750 = vst [vmem:[#allocation3 + $0xb8] sm:$0x7] %v718
    %751 = vst [vmem:[#allocation3 + $0xc0] sm:$0x7] %v719
    %752 = vst [vmem:[#allocation3 + $0xc8] sm:$0x7] %v720
    %753 = vst [vmem:[#allocation3 + $0xd0] sm:$0x7] %v721
    %754 = vst [vmem:[#allocation3 + $0xd8] sm:$0x7] %v722
    %755 = vst [vmem:[#allocation3 + $0xe0] sm:$0x7] %v723
    %756 = vst [vmem:[#allocation3 + $0xe8] sm:$0x7] %v724
    %757 = vst [vmem:[#allocation3 + $0xf0] sm:$0x7] %v725
    %758 = vst [vmem:[#allocation3 + $0xf8] sm:$0x7] %v726
    %759 = vst [vmem:[#allocation3 + $0x100] sm:$0x7] %v727
    %vm760 = vcmp.eq.s32.totalorder %v418, 0
    %vm761 = vcmp.eq.s32.totalorder %v419, 0
    %vm762 = vcmp.eq.s32.totalorder %v420, 0
    %vm763 = vcmp.eq.s32.totalorder %v421, 0
    %vm764 = vcmp.eq.s32.totalorder %v422, 0
    %vm765 = vcmp.eq.s32.totalorder %v423, 0
    %vm766 = vcmp.eq.s32.totalorder %v424, 0
    %vm767 = vcmp.eq.s32.totalorder %v425, 0
    %vm768 = vcmp.eq.s32.totalorder %v426, 0
    %vm769 = vcmp.eq.s32.totalorder %v427, 0
    %vm770 = vcmp.eq.s32.totalorder %v428, 0
    %vm771 = vcmp.eq.s32.totalorder %v429, 0
    %vm772 = vcmp.eq.s32.totalorder %v430, 0
    %vm773 = vcmp.eq.s32.totalorder %v431, 0
    %vm774 = vcmp.eq.s32.totalorder %v432, 0
    %vm775 = vcmp.eq.s32.totalorder %v433, 0
    %vm776 = vcmp.eq.s32.totalorder %v434, 0
    %vm777 = vcmp.eq.s32.totalorder %v435, 0
    %vm778 = vcmp.eq.s32.totalorder %v436, 0
    %vm779 = vcmp.eq.s32.totalorder %v437, 0
    %vm780 = vcmp.eq.s32.totalorder %v438, 0
    %vm781 = vcmp.eq.s32.totalorder %v439, 0
    %vm782 = vcmp.eq.s32.totalorder %v440, 0
    %vm783 = vcmp.eq.s32.totalorder %v441, 0
    %vm784 = vcmp.eq.s32.totalorder %v442, 0
    %vm785 = vcmp.eq.s32.totalorder %v443, 0
    %vm786 = vcmp.eq.s32.totalorder %v444, 0
    %vm787 = vcmp.eq.s32.totalorder %v445, 0
    %vm788 = vcmp.eq.s32.totalorder %v446, 0
    %vm789 = vcmp.eq.s32.totalorder %v447, 0
    %vm790 = vcmp.eq.s32.totalorder %v448, 0
    %vm791 = vcmp.eq.s32.totalorder %v449, 0
    %792 = vst [vmem:[#allocation1] ss:$2 sm:$0xff] %v17
    %s793 = scalar_lea.vmem [#allocation1], 16
    %794 = vst [vmem:[%s793] ss:$2 sm:$0xff] %v18
    %s795 = scalar_lea.vmem [#allocation1], 32
    %796 = vst [vmem:[%s795] ss:$2 sm:$0xff] %v19
    %s797 = scalar_lea.vmem [#allocation1], 48
    %798 = vst [vmem:[%s797] ss:$2 sm:$0xff] %v20
    %v799 = vld.sshfl [vmem:[#allocation1] sm:$0xff pattern:$0x75316420]
    %v800 = vld.sshfl [vmem:[#allocation1 + $0x8] sm:$0xff pattern:$0x75316420]
    %v801 = vld.sshfl [vmem:[#allocation1 + $0x10] sm:$0xff pattern:$0x75316420]
    %v802 = vld.sshfl [vmem:[#allocation1 + $0x18] sm:$0xff pattern:$0x75316420]
    %v803 = vld.sshfl [vmem:[#allocation1 + $0x20] sm:$0xff pattern:$0x75316420]
    %v804 = vld.sshfl [vmem:[#allocation1 + $0x28] sm:$0xff pattern:$0x75316420]
    %v805 = vld.sshfl [vmem:[#allocation1 + $0x30] sm:$0xff pattern:$0x75316420]
    %v806 = vld.sshfl [vmem:[#allocation1 + $0x38] sm:$0xff pattern:$0x75316420]
    %807 = vst [vmem:[#allocation1] ss:$2 sm:$0xff] %v21
    %808 = vst [vmem:[%s793] ss:$2 sm:$0xff] %v22
    %809 = vst [vmem:[%s795] ss:$2 sm:$0xff] %v23
    %810 = vst [vmem:[%s797] ss:$2 sm:$0xff] %v24
    %v811 = vld.sshfl [vmem:[#allocation1] sm:$0xff pattern:$0x75316420]
    %v812 = vld.sshfl [vmem:[#allocation1 + $0x8] sm:$0xff pattern:$0x75316420]
    %v813 = vld.sshfl [vmem:[#allocation1 + $0x10] sm:$0xff pattern:$0x75316420]
    %v814 = vld.sshfl [vmem:[#allocation1 + $0x18] sm:$0xff pattern:$0x75316420]
    %v815 = vld.sshfl [vmem:[#allocation1 + $0x20] sm:$0xff pattern:$0x75316420]
    %v816 = vld.sshfl [vmem:[#allocation1 + $0x28] sm:$0xff pattern:$0x75316420]
    %v817 = vld.sshfl [vmem:[#allocation1 + $0x30] sm:$0xff pattern:$0x75316420]
    %v818 = vld.sshfl [vmem:[#allocation1 + $0x38] sm:$0xff pattern:$0x75316420]
    %819 = vst [vmem:[#allocation1] ss:$2 sm:$0xff] %v25
    %820 = vst [vmem:[%s793] ss:$2 sm:$0xff] %v26
    %821 = vst [vmem:[%s795] ss:$2 sm:$0xff] %v27
    %822 = vst [vmem:[%s797] ss:$2 sm:$0xff] %v28
    %v823 = vld.sshfl [vmem:[#allocation1] sm:$0xff pattern:$0x75316420]
    %v824 = vld.sshfl [vmem:[#allocation1 + $0x8] sm:$0xff pattern:$0x75316420]
    %v825 = vld.sshfl [vmem:[#allocation1 + $0x10] sm:$0xff pattern:$0x75316420]
    %v826 = vld.sshfl [vmem:[#allocation1 + $0x18] sm:$0xff pattern:$0x75316420]
    %v827 = vld.sshfl [vmem:[#allocation1 + $0x20] sm:$0xff pattern:$0x75316420]
    %v828 = vld.sshfl [vmem:[#allocation1 + $0x28] sm:$0xff pattern:$0x75316420]
    %v829 = vld.sshfl [vmem:[#allocation1 + $0x30] sm:$0xff pattern:$0x75316420]
    %v830 = vld.sshfl [vmem:[#allocation1 + $0x38] sm:$0xff pattern:$0x75316420]
    %831 = vst [vmem:[#allocation1] ss:$2 sm:$0xff] %v29
    %832 = vst [vmem:[%s793] ss:$2 sm:$0xff] %v30
    %833 = vst [vmem:[%s795] ss:$2 sm:$0xff] %v31
    %834 = vst [vmem:[%s797] ss:$2 sm:$0xff] %v32
    %v835 = vld.sshfl [vmem:[#allocation1] sm:$0xff pattern:$0x75316420]
    %v836 = vld.sshfl [vmem:[#allocation1 + $0x8] sm:$0xff pattern:$0x75316420]
    %v837 = vld.sshfl [vmem:[#allocation1 + $0x10] sm:$0xff pattern:$0x75316420]
    %v838 = vld.sshfl [vmem:[#allocation1 + $0x18] sm:$0xff pattern:$0x75316420]
    %v839 = vld.sshfl [vmem:[#allocation1 + $0x20] sm:$0xff pattern:$0x75316420]
    %v840 = vld.sshfl [vmem:[#allocation1 + $0x28] sm:$0xff pattern:$0x75316420]
    %v841 = vld.sshfl [vmem:[#allocation1 + $0x30] sm:$0xff pattern:$0x75316420]
    %v842 = vld.sshfl [vmem:[#allocation1 + $0x38] sm:$0xff pattern:$0x75316420]
    %v875 = vsel %vm760, 0.0, %v799
    %v876 = vsel %vm761, 0.0, %v800
    %v877 = vsel %vm762, 0.0, %v801
    %v878 = vsel %vm763, 0.0, %v802
    %v879 = vsel %vm764, 0.0, %v803
    %v880 = vsel %vm765, 0.0, %v804
    %v881 = vsel %vm766, 0.0, %v805
    %v882 = vsel %vm767, 0.0, %v806
    %v883 = vsel %vm768, 0.0, %v811
    %v884 = vsel %vm769, 0.0, %v812
    %v885 = vsel %vm770, 0.0, %v813
    %v886 = vsel %vm771, 0.0, %v814
    %v887 = vsel %vm772, 0.0, %v815
    %v888 = vsel %vm773, 0.0, %v816
    %v889 = vsel %vm774, 0.0, %v817
    %v890 = vsel %vm775, 0.0, %v818
    %v891 = vsel %vm776, 0.0, %v823
    %v892 = vsel %vm777, 0.0, %v824
    %v893 = vsel %vm778, 0.0, %v825
    %v894 = vsel %vm779, 0.0, %v826
    %v895 = vsel %vm780, 0.0, %v827
    %v896 = vsel %vm781, 0.0, %v828
    %v897 = vsel %vm782, 0.0, %v829
    %v898 = vsel %vm783, 0.0, %v830
    %v899 = vsel %vm784, 0.0, %v835
    %v900 = vsel %vm785, 0.0, %v836
    %v901 = vsel %vm786, 0.0, %v837
    %v902 = vsel %vm787, 0.0, %v838
    %v903 = vsel %vm788, 0.0, %v839
    %v904 = vsel %vm789, 0.0, %v840
    %v905 = vsel %vm790, 0.0, %v841
    %v906 = vsel %vm791, 0.0, %v842
    %907 = vst [vmem:[#allocation4 + $0x8] sm:$0x7] %v875
    %908 = vst [vmem:[#allocation4 + $0x10] sm:$0x7] %v876
    %909 = vst [vmem:[#allocation4 + $0x18] sm:$0x7] %v877
    %910 = vst [vmem:[#allocation4 + $0x20] sm:$0x7] %v878
    %911 = vst [vmem:[#allocation4 + $0x28] sm:$0x7] %v879
    %912 = vst [vmem:[#allocation4 + $0x30] sm:$0x7] %v880
    %913 = vst [vmem:[#allocation4 + $0x38] sm:$0x7] %v881
    %914 = vst [vmem:[#allocation4 + $0x40] sm:$0x7] %v882
    %915 = vst [vmem:[#allocation4 + $0x48] sm:$0x7] %v883
    %916 = vst [vmem:[#allocation4 + $0x50] sm:$0x7] %v884
    %917 = vst [vmem:[#allocation4 + $0x58] sm:$0x7] %v885
    %918 = vst [vmem:[#allocation4 + $0x60] sm:$0x7] %v886
    %919 = vst [vmem:[#allocation4 + $0x68] sm:$0x7] %v887
    %920 = vst [vmem:[#allocation4 + $0x70] sm:$0x7] %v888
    %921 = vst [vmem:[#allocation4 + $0x78] sm:$0x7] %v889
    %922 = vst [vmem:[#allocation4 + $0x80] sm:$0x7] %v890
    %923 = vst [vmem:[#allocation4 + $0x88] sm:$0x7] %v891
    %924 = vst [vmem:[#allocation4 + $0x90] sm:$0x7] %v892
    %925 = vst [vmem:[#allocation4 + $0x98] sm:$0x7] %v893
    %926 = vst [vmem:[#allocation4 + $0xa0] sm:$0x7] %v894
    %927 = vst [vmem:[#allocation4 + $0xa8] sm:$0x7] %v895
    %928 = vst [vmem:[#allocation4 + $0xb0] sm:$0x7] %v896
    %929 = vst [vmem:[#allocation4 + $0xb8] sm:$0x7] %v897
    %930 = vst [vmem:[#allocation4 + $0xc0] sm:$0x7] %v898
    %931 = vst [vmem:[#allocation4 + $0xc8] sm:$0x7] %v899
    %932 = vst [vmem:[#allocation4 + $0xd0] sm:$0x7] %v900
    %933 = vst [vmem:[#allocation4 + $0xd8] sm:$0x7] %v901
    %934 = vst [vmem:[#allocation4 + $0xe0] sm:$0x7] %v902
    %935 = vst [vmem:[#allocation4 + $0xe8] sm:$0x7] %v903
    %936 = vst [vmem:[#allocation4 + $0xf0] sm:$0x7] %v904
    %937 = vst [vmem:[#allocation4 + $0xf8] sm:$0x7] %v905
    %938 = vst [vmem:[#allocation4 + $0x100] sm:$0x7] %v906
    %939 = vst [vmem:[#allocation2] sm:$0x7] 0.0
    %940 = vst [vmem:[#allocation3] sm:$0x7] 0.0
    %941 = vst [vmem:[#allocation4] sm:$0x7] 0.0
    %942 = vst [vmem:[#allocation2 + $0x108] sm:$0x7] 0.0
    %943 = vst [vmem:[#allocation3 + $0x108] sm:$0x7] 0.0
    %944 = vst [vmem:[#allocation4 + $0x108] sm:$0x7] 0.0
    %946 = vset.pattern.permute.xlu0 0
    %947 = vperm.xlu0 %946, %v16
    %v948 = vpop.permute.xlu0 %947
    %v950 = vld [vmem:[#allocation3] ss:$8 sm:$0xf]
    %v951 = vld [vmem:[#allocation3] ss:$8 sm:$0xf0]
    %v952 = vor.u32 %v950, %v951
    %s953 = scalar_lea.vmem [#allocation3], 64
    %v954 = vld [vmem:[%s953] ss:$8 sm:$0xf]
    %v955 = vld [vmem:[%s953] ss:$8 sm:$0xf0]
    %v956 = vor.u32 %v954, %v955
    %s957 = scalar_lea.vmem [#allocation3], 128
    %v958 = vld [vmem:[%s957] ss:$8 sm:$0x1]
    %960 = vset.pattern.permute.xlu0 0
    %961 = vperm.xlu0 %960, %v15
    %v962 = vpop.permute.xlu0 %961
    %v967 = vperm.slane %v952, 0
    %v968 = vperm.slane %v952, 1
    %v969 = vperm.slane %v952, 2
    %v970 = vperm.slane %v952, 3
    %v971 = vperm.slane %v952, 4
    %v972 = vperm.slane %v952, 5
    %v973 = vperm.slane %v952, 6
    %v974 = vperm.slane %v952, 7
    %v975 = vperm.slane %v956, 0
    %v976 = vperm.slane %v956, 1
    %v977 = vperm.slane %v956, 2
    %v978 = vperm.slane %v956, 3
    %v979 = vperm.slane %v956, 4
    %v980 = vperm.slane %v956, 5
    %v981 = vperm.slane %v956, 6
    %v982 = vperm.slane %v956, 7
    %v983 = vperm.slane %v958, 0
    %v1001 = vmul.f32 %v962, %v967
    %v1002 = vmul.f32 %v962, %v968
    %v1003 = vmul.f32 %v962, %v969
    %v1004 = vmul.f32 %v962, %v970
    %v1005 = vmul.f32 %v962, %v971
    %v1006 = vmul.f32 %v962, %v972
    %v1007 = vmul.f32 %v962, %v973
    %v1008 = vmul.f32 %v962, %v974
    %v1009 = vmul.f32 %v962, %v975
    %v1010 = vmul.f32 %v962, %v976
    %v1011 = vmul.f32 %v962, %v977
    %v1012 = vmul.f32 %v962, %v978
    %v1013 = vmul.f32 %v962, %v979
    %v1014 = vmul.f32 %v962, %v980
    %v1015 = vmul.f32 %v962, %v981
    %v1016 = vmul.f32 %v962, %v982
    %v1017 = vmul.f32 %v962, %v983
    %v1018 = vadd.f32 %v948, %v1001
    %v1019 = vadd.f32 %v948, %v1002
    %v1020 = vadd.f32 %v948, %v1003
    %v1021 = vadd.f32 %v948, %v1004
    %v1022 = vadd.f32 %v948, %v1005
    %v1023 = vadd.f32 %v948, %v1006
    %v1024 = vadd.f32 %v948, %v1007
    %v1025 = vadd.f32 %v948, %v1008
    %v1026 = vadd.f32 %v948, %v1009
    %v1027 = vadd.f32 %v948, %v1010
    %v1028 = vadd.f32 %v948, %v1011
    %v1029 = vadd.f32 %v948, %v1012
    %v1030 = vadd.f32 %v948, %v1013
    %v1031 = vadd.f32 %v948, %v1014
    %v1032 = vadd.f32 %v948, %v1015
    %v1033 = vadd.f32 %v948, %v1016
    %v1034 = vadd.f32 %v948, %v1017
    %s1035 = scalar_lea.vmem [#allocation3], 1
    %v1036 = vld [vmem:[%s1035] ss:$8 sm:$0xf]
    %v1037 = vld [vmem:[%s1035] ss:$8 sm:$0xf0]
    %v1038 = vor.u32 %v1036, %v1037
    %s1039 = scalar_lea.vmem [#allocation3], 65
    %v1040 = vld [vmem:[%s1039] ss:$8 sm:$0xf]
    %v1041 = vld [vmem:[%s1039] ss:$8 sm:$0xf0]
    %v1042 = vor.u32 %v1040, %v1041
    %s1043 = scalar_lea.vmem [#allocation3], 129
    %v1044 = vld [vmem:[%s1043] ss:$8 sm:$0x1]
    %1045 = vset.pattern.permute.xlu0 9
    %1046 = vperm.xlu0 %1045, %v15
    %v1047 = vpop.permute.xlu0 %1046
    %v1052 = vperm.slane %v1038, 0
    %v1053 = vperm.slane %v1038, 1
    %v1054 = vperm.slane %v1038, 2
    %v1055 = vperm.slane %v1038, 3
    %v1056 = vperm.slane %v1038, 4
    %v1057 = vperm.slane %v1038, 5
    %v1058 = vperm.slane %v1038, 6
    %v1059 = vperm.slane %v1038, 7
    %v1060 = vperm.slane %v1042, 0
    %v1061 = vperm.slane %v1042, 1
    %v1062 = vperm.slane %v1042, 2
    %v1063 = vperm.slane %v1042, 3
    %v1064 = vperm.slane %v1042, 4
    %v1065 = vperm.slane %v1042, 5
    %v1066 = vperm.slane %v1042, 6
    %v1067 = vperm.slane %v1042, 7
    %v1068 = vperm.slane %v1044, 0
    %v1086 = vmul.f32 %v1047, %v1052
    %v1087 = vmul.f32 %v1047, %v1053
    %v1088 = vmul.f32 %v1047, %v1054
    %v1089 = vmul.f32 %v1047, %v1055
    %v1090 = vmul.f32 %v1047, %v1056
    %v1091 = vmul.f32 %v1047, %v1057
    %v1092 = vmul.f32 %v1047, %v1058
    %v1093 = vmul.f32 %v1047, %v1059
    %v1094 = vmul.f32 %v1047, %v1060
    %v1095 = vmul.f32 %v1047, %v1061
    %v1096 = vmul.f32 %v1047, %v1062
    %v1097 = vmul.f32 %v1047, %v1063
    %v1098 = vmul.f32 %v1047, %v1064
    %v1099 = vmul.f32 %v1047, %v1065
    %v1100 = vmul.f32 %v1047, %v1066
    %v1101 = vmul.f32 %v1047, %v1067
    %v1102 = vmul.f32 %v1047, %v1068
    %v1103 = vadd.f32 %v1018, %v1086
    %v1104 = vadd.f32 %v1019, %v1087
    %v1105 = vadd.f32 %v1020, %v1088
    %v1106 = vadd.f32 %v1021, %v1089
    %v1107 = vadd.f32 %v1022, %v1090
    %v1108 = vadd.f32 %v1023, %v1091
    %v1109 = vadd.f32 %v1024, %v1092
    %v1110 = vadd.f32 %v1025, %v1093
    %v1111 = vadd.f32 %v1026, %v1094
    %v1112 = vadd.f32 %v1027, %v1095
    %v1113 = vadd.f32 %v1028, %v1096
    %v1114 = vadd.f32 %v1029, %v1097
    %v1115 = vadd.f32 %v1030, %v1098
    %v1116 = vadd.f32 %v1031, %v1099
    %v1117 = vadd.f32 %v1032, %v1100
    %v1118 = vadd.f32 %v1033, %v1101
    %v1119 = vadd.f32 %v1034, %v1102
    %s1120 = scalar_lea.vmem [#allocation3], 2
    %v1121 = vld [vmem:[%s1120] ss:$8 sm:$0xf]
    %v1122 = vld [vmem:[%s1120] ss:$8 sm:$0xf0]
    %v1123 = vor.u32 %v1121, %v1122
    %s1124 = scalar_lea.vmem [#allocation3], 66
    %v1125 = vld [vmem:[%s1124] ss:$8 sm:$0xf]
    %v1126 = vld [vmem:[%s1124] ss:$8 sm:$0xf0]
    %v1127 = vor.u32 %v1125, %v1126
    %s1128 = scalar_lea.vmem [#allocation3], 130
    %v1129 = vld [vmem:[%s1128] ss:$8 sm:$0x1]
    %1130 = vset.pattern.permute.xlu0 18
    %1131 = vperm.xlu0 %1130, %v15
    %v1132 = vpop.permute.xlu0 %1131
    %v1137 = vperm.slane %v1123, 0
    %v1138 = vperm.slane %v1123, 1
    %v1139 = vperm.slane %v1123, 2
    %v1140 = vperm.slane %v1123, 3
    %v1141 = vperm.slane %v1123, 4
    %v1142 = vperm.slane %v1123, 5
    %v1143 = vperm.slane %v1123, 6
    %v1144 = vperm.slane %v1123, 7
    %v1145 = vperm.slane %v1127, 0
    %v1146 = vperm.slane %v1127, 1
    %v1147 = vperm.slane %v1127, 2
    %v1148 = vperm.slane %v1127, 3
    %v1149 = vperm.slane %v1127, 4
    %v1150 = vperm.slane %v1127, 5
    %v1151 = vperm.slane %v1127, 6
    %v1152 = vperm.slane %v1127, 7
    %v1153 = vperm.slane %v1129, 0
    %v1171 = vmul.f32 %v1132, %v1137
    %v1172 = vmul.f32 %v1132, %v1138
    %v1173 = vmul.f32 %v1132, %v1139
    %v1174 = vmul.f32 %v1132, %v1140
    %v1175 = vmul.f32 %v1132, %v1141
    %v1176 = vmul.f32 %v1132, %v1142
    %v1177 = vmul.f32 %v1132, %v1143
    %v1178 = vmul.f32 %v1132, %v1144
    %v1179 = vmul.f32 %v1132, %v1145
    %v1180 = vmul.f32 %v1132, %v1146
    %v1181 = vmul.f32 %v1132, %v1147
    %v1182 = vmul.f32 %v1132, %v1148
    %v1183 = vmul.f32 %v1132, %v1149
    %v1184 = vmul.f32 %v1132, %v1150
    %v1185 = vmul.f32 %v1132, %v1151
    %v1186 = vmul.f32 %v1132, %v1152
    %v1187 = vmul.f32 %v1132, %v1153
    %v1188 = vadd.f32 %v1103, %v1171
    %v1189 = vadd.f32 %v1104, %v1172
    %v1190 = vadd.f32 %v1105, %v1173
    %v1191 = vadd.f32 %v1106, %v1174
    %v1192 = vadd.f32 %v1107, %v1175
    %v1193 = vadd.f32 %v1108, %v1176
    %v1194 = vadd.f32 %v1109, %v1177
    %v1195 = vadd.f32 %v1110, %v1178
    %v1196 = vadd.f32 %v1111, %v1179
    %v1197 = vadd.f32 %v1112, %v1180
    %v1198 = vadd.f32 %v1113, %v1181
    %v1199 = vadd.f32 %v1114, %v1182
    %v1200 = vadd.f32 %v1115, %v1183
    %v1201 = vadd.f32 %v1116, %v1184
    %v1202 = vadd.f32 %v1117, %v1185
    %v1203 = vadd.f32 %v1118, %v1186
    %v1204 = vadd.f32 %v1119, %v1187
    %v1205 = vld [vmem:[#allocation2] ss:$8 sm:$0xf]
    %v1206 = vld [vmem:[#allocation2] ss:$8 sm:$0xf0]
    %v1207 = vor.u32 %v1205, %v1206
    %s1208 = scalar_lea.vmem [#allocation2], 64
    %v1209 = vld [vmem:[%s1208] ss:$8 sm:$0xf]
    %v1210 = vld [vmem:[%s1208] ss:$8 sm:$0xf0]
    %v1211 = vor.u32 %v1209, %v1210
    %s1212 = scalar_lea.vmem [#allocation2], 128
    %v1213 = vld [vmem:[%s1212] ss:$8 sm:$0x1]
    %1214 = vset.pattern.permute.xlu0 1
    %1215 = vperm.xlu0 %1214, %v15
    %v1216 = vpop.permute.xlu0 %1215
    %v1221 = vperm.slane %v1207, 0
    %v1222 = vperm.slane %v1207, 1
    %v1223 = vperm.slane %v1207, 2
    %v1224 = vperm.slane %v1207, 3
    %v1225 = vperm.slane %v1207, 4
    %v1226 = vperm.slane %v1207, 5
    %v1227 = vperm.slane %v1207, 6
    %v1228 = vperm.slane %v1207, 7
    %v1229 = vperm.slane %v1211, 0
    %v1230 = vperm.slane %v1211, 1
    %v1231 = vperm.slane %v1211, 2
    %v1232 = vperm.slane %v1211, 3
    %v1233 = vperm.slane %v1211, 4
    %v1234 = vperm.slane %v1211, 5
    %v1235 = vperm.slane %v1211, 6
    %v1236 = vperm.slane %v1211, 7
    %v1237 = vperm.slane %v1213, 0
    %v1255 = vmul.f32 %v1216, %v1221
    %v1256 = vmul.f32 %v1216, %v1222
    %v1257 = vmul.f32 %v1216, %v1223
    %v1258 = vmul.f32 %v1216, %v1224
    %v1259 = vmul.f32 %v1216, %v1225
    %v1260 = vmul.f32 %v1216, %v1226
    %v1261 = vmul.f32 %v1216, %v1227
    %v1262 = vmul.f32 %v1216, %v1228
    %v1263 = vmul.f32 %v1216, %v1229
    %v1264 = vmul.f32 %v1216, %v1230
    %v1265 = vmul.f32 %v1216, %v1231
    %v1266 = vmul.f32 %v1216, %v1232
    %v1267 = vmul.f32 %v1216, %v1233
    %v1268 = vmul.f32 %v1216, %v1234
    %v1269 = vmul.f32 %v1216, %v1235
    %v1270 = vmul.f32 %v1216, %v1236
    %v1271 = vmul.f32 %v1216, %v1237
    %1289 = vrot.lane.b32.xlu0 %v1255, 127
    %v1290 = vpop.permute.xlu0 %1289
    %1291 = vrot.lane.b32.xlu0 %v1256, 127
    %v1292 = vpop.permute.xlu0 %1291
    %1293 = vrot.lane.b32.xlu0 %v1257, 127
    %v1294 = vpop.permute.xlu0 %1293
    %1295 = vrot.lane.b32.xlu0 %v1258, 127
    %v1296 = vpop.permute.xlu0 %1295
    %1297 = vrot.lane.b32.xlu0 %v1259, 127
    %v1298 = vpop.permute.xlu0 %1297
    %1299 = vrot.lane.b32.xlu0 %v1260, 127
    %v1300 = vpop.permute.xlu0 %1299
    %1301 = vrot.lane.b32.xlu0 %v1261, 127
    %v1302 = vpop.permute.xlu0 %1301
    %1303 = vrot.lane.b32.xlu0 %v1262, 127
    %v1304 = vpop.permute.xlu0 %1303
    %1305 = vrot.lane.b32.xlu0 %v1263, 127
    %v1306 = vpop.permute.xlu0 %1305
    %1307 = vrot.lane.b32.xlu0 %v1264, 127
    %v1308 = vpop.permute.xlu0 %1307
    %1309 = vrot.lane.b32.xlu0 %v1265, 127
    %v1310 = vpop.permute.xlu0 %1309
    %1311 = vrot.lane.b32.xlu0 %v1266, 127
    %v1312 = vpop.permute.xlu0 %1311
    %1313 = vrot.lane.b32.xlu0 %v1267, 127
    %v1314 = vpop.permute.xlu0 %1313
    %1315 = vrot.lane.b32.xlu0 %v1268, 127
    %v1316 = vpop.permute.xlu0 %1315
    %1317 = vrot.lane.b32.xlu0 %v1269, 127
    %v1318 = vpop.permute.xlu0 %1317
    %1319 = vrot.lane.b32.xlu0 %v1270, 127
    %v1320 = vpop.permute.xlu0 %1319
    %1321 = vrot.lane.b32.xlu0 %v1271, 127
    %v1322 = vpop.permute.xlu0 %1321
    %vm1323 = vcmask 1039360
    %v1324 = vsel %vm1323, %v1290, %v1292
    %v1325 = vsel %vm1323, %v1292, %v1294
    %v1326 = vsel %vm1323, %v1294, %v1296
    %v1327 = vsel %vm1323, %v1296, %v1298
    %v1328 = vsel %vm1323, %v1298, %v1300
    %v1329 = vsel %vm1323, %v1300, %v1302
    %v1330 = vsel %vm1323, %v1302, %v1304
    %v1331 = vsel %vm1323, %v1304, %v1306
    %v1332 = vsel %vm1323, %v1306, %v1308
    %v1333 = vsel %vm1323, %v1308, %v1310
    %v1334 = vsel %vm1323, %v1310, %v1312
    %v1335 = vsel %vm1323, %v1312, %v1314
    %v1336 = vsel %vm1323, %v1314, %v1316
    %v1337 = vsel %vm1323, %v1316, %v1318
    %v1338 = vsel %vm1323, %v1318, %v1320
    %v1339 = vsel %vm1323, %v1320, %v1322
    %v1357 = vadd.f32 %v1188, %v1324
    %v1358 = vadd.f32 %v1189, %v1325
    %v1359 = vadd.f32 %v1190, %v1326
    %v1360 = vadd.f32 %v1191, %v1327
    %v1361 = vadd.f32 %v1192, %v1328
    %v1362 = vadd.f32 %v1193, %v1329
    %v1363 = vadd.f32 %v1194, %v1330
    %v1364 = vadd.f32 %v1195, %v1331
    %v1365 = vadd.f32 %v1196, %v1332
    %v1366 = vadd.f32 %v1197, %v1333
    %v1367 = vadd.f32 %v1198, %v1334
    %v1368 = vadd.f32 %v1199, %v1335
    %v1369 = vadd.f32 %v1200, %v1336
    %v1370 = vadd.f32 %v1201, %v1337
    %v1371 = vadd.f32 %v1202, %v1338
    %v1372 = vadd.f32 %v1203, %v1339
    %v1373 = vadd.f32 %v1204, %v1322
    %s1374 = scalar_lea.vmem [#allocation2], 1
    %v1375 = vld [vmem:[%s1374] ss:$8 sm:$0xf]
    %v1376 = vld [vmem:[%s1374] ss:$8 sm:$0xf0]
    %v1377 = vor.u32 %v1375, %v1376
    %s1378 = scalar_lea.vmem [#allocation2], 65
    %v1379 = vld [vmem:[%s1378] ss:$8 sm:$0xf]
    %v1380 = vld [vmem:[%s1378] ss:$8 sm:$0xf0]
    %v1381 = vor.u32 %v1379, %v1380
    %s1382 = scalar_lea.vmem [#allocation2], 129
    %v1383 = vld [vmem:[%s1382] ss:$8 sm:$0x1]
    %1384 = vset.pattern.permute.xlu0 10
    %1385 = vperm.xlu0 %1384, %v15
    %v1386 = vpop.permute.xlu0 %1385
    %v1391 = vperm.slane %v1377, 0
    %v1392 = vperm.slane %v1377, 1
    %v1393 = vperm.slane %v1377, 2
    %v1394 = vperm.slane %v1377, 3
    %v1395 = vperm.slane %v1377, 4
    %v1396 = vperm.slane %v1377, 5
    %v1397 = vperm.slane %v1377, 6
    %v1398 = vperm.slane %v1377, 7
    %v1399 = vperm.slane %v1381, 0
    %v1400 = vperm.slane %v1381, 1
    %v1401 = vperm.slane %v1381, 2
    %v1402 = vperm.slane %v1381, 3
    %v1403 = vperm.slane %v1381, 4
    %v1404 = vperm.slane %v1381, 5
    %v1405 = vperm.slane %v1381, 6
    %v1406 = vperm.slane %v1381, 7
    %v1407 = vperm.slane %v1383, 0
    %v1425 = vmul.f32 %v1386, %v1391
    %v1426 = vmul.f32 %v1386, %v1392
    %v1427 = vmul.f32 %v1386, %v1393
    %v1428 = vmul.f32 %v1386, %v1394
    %v1429 = vmul.f32 %v1386, %v1395
    %v1430 = vmul.f32 %v1386, %v1396
    %v1431 = vmul.f32 %v1386, %v1397
    %v1432 = vmul.f32 %v1386, %v1398
    %v1433 = vmul.f32 %v1386, %v1399
    %v1434 = vmul.f32 %v1386, %v1400
    %v1435 = vmul.f32 %v1386, %v1401
    %v1436 = vmul.f32 %v1386, %v1402
    %v1437 = vmul.f32 %v1386, %v1403
    %v1438 = vmul.f32 %v1386, %v1404
    %v1439 = vmul.f32 %v1386, %v1405
    %v1440 = vmul.f32 %v1386, %v1406
    %v1441 = vmul.f32 %v1386, %v1407
    %1459 = vrot.lane.b32.xlu0 %v1425, 127
    %v1460 = vpop.permute.xlu0 %1459
    %1461 = vrot.lane.b32.xlu0 %v1426, 127
    %v1462 = vpop.permute.xlu0 %1461
    %1463 = vrot.lane.b32.xlu0 %v1427, 127
    %v1464 = vpop.permute.xlu0 %1463
    %1465 = vrot.lane.b32.xlu0 %v1428, 127
    %v1466 = vpop.permute.xlu0 %1465
    %1467 = vrot.lane.b32.xlu0 %v1429, 127
    %v1468 = vpop.permute.xlu0 %1467
    %1469 = vrot.lane.b32.xlu0 %v1430, 127
    %v1470 = vpop.permute.xlu0 %1469
    %1471 = vrot.lane.b32.xlu0 %v1431, 127
    %v1472 = vpop.permute.xlu0 %1471
    %1473 = vrot.lane.b32.xlu0 %v1432, 127
    %v1474 = vpop.permute.xlu0 %1473
    %1475 = vrot.lane.b32.xlu0 %v1433, 127
    %v1476 = vpop.permute.xlu0 %1475
    %1477 = vrot.lane.b32.xlu0 %v1434, 127
    %v1478 = vpop.permute.xlu0 %1477
    %1479 = vrot.lane.b32.xlu0 %v1435, 127
    %v1480 = vpop.permute.xlu0 %1479
    %1481 = vrot.lane.b32.xlu0 %v1436, 127
    %v1482 = vpop.permute.xlu0 %1481
    %1483 = vrot.lane.b32.xlu0 %v1437, 127
    %v1484 = vpop.permute.xlu0 %1483
    %1485 = vrot.lane.b32.xlu0 %v1438, 127
    %v1486 = vpop.permute.xlu0 %1485
    %1487 = vrot.lane.b32.xlu0 %v1439, 127
    %v1488 = vpop.permute.xlu0 %1487
    %1489 = vrot.lane.b32.xlu0 %v1440, 127
    %v1490 = vpop.permute.xlu0 %1489
    %1491 = vrot.lane.b32.xlu0 %v1441, 127
    %v1492 = vpop.permute.xlu0 %1491
    %v1493 = vsel %vm1323, %v1460, %v1462
    %v1494 = vsel %vm1323, %v1462, %v1464
    %v1495 = vsel %vm1323, %v1464, %v1466
    %v1496 = vsel %vm1323, %v1466, %v1468
    %v1497 = vsel %vm1323, %v1468, %v1470
    %v1498 = vsel %vm1323, %v1470, %v1472
    %v1499 = vsel %vm1323, %v1472, %v1474
    %v1500 = vsel %vm1323, %v1474, %v1476
    %v1501 = vsel %vm1323, %v1476, %v1478
    %v1502 = vsel %vm1323, %v1478, %v1480
    %v1503 = vsel %vm1323, %v1480, %v1482
    %v1504 = vsel %vm1323, %v1482, %v1484
    %v1505 = vsel %vm1323, %v1484, %v1486
    %v1506 = vsel %vm1323, %v1486, %v1488
    %v1507 = vsel %vm1323, %v1488, %v1490
    %v1508 = vsel %vm1323, %v1490, %v1492
    %v1526 = vadd.f32 %v1357, %v1493
    %v1527 = vadd.f32 %v1358, %v1494
    %v1528 = vadd.f32 %v1359, %v1495
    %v1529 = vadd.f32 %v1360, %v1496
    %v1530 = vadd.f32 %v1361, %v1497
    %v1531 = vadd.f32 %v1362, %v1498
    %v1532 = vadd.f32 %v1363, %v1499
    %v1533 = vadd.f32 %v1364, %v1500
    %v1534 = vadd.f32 %v1365, %v1501
    %v1535 = vadd.f32 %v1366, %v1502
    %v1536 = vadd.f32 %v1367, %v1503
    %v1537 = vadd.f32 %v1368, %v1504
    %v1538 = vadd.f32 %v1369, %v1505
    %v1539 = vadd.f32 %v1370, %v1506
    %v1540 = vadd.f32 %v1371, %v1507
    %v1541 = vadd.f32 %v1372, %v1508
    %v1542 = vadd.f32 %v1373, %v1492
    %s1543 = scalar_lea.vmem [#allocation2], 2
    %v1544 = vld [vmem:[%s1543] ss:$8 sm:$0xf]
    %v1545 = vld [vmem:[%s1543] ss:$8 sm:$0xf0]
    %v1546 = vor.u32 %v1544, %v1545
    %s1547 = scalar_lea.vmem [#allocation2], 66
    %v1548 = vld [vmem:[%s1547] ss:$8 sm:$0xf]
    %v1549 = vld [vmem:[%s1547] ss:$8 sm:$0xf0]
    %v1550 = vor.u32 %v1548, %v1549
    %s1551 = scalar_lea.vmem [#allocation2], 130
    %v1552 = vld [vmem:[%s1551] ss:$8 sm:$0x1]
    %1553 = vset.pattern.permute.xlu0 19
    %1554 = vperm.xlu0 %1553, %v15
    %v1555 = vpop.permute.xlu0 %1554
    %v1560 = vperm.slane %v1546, 0
    %v1561 = vperm.slane %v1546, 1
    %v1562 = vperm.slane %v1546, 2
    %v1563 = vperm.slane %v1546, 3
    %v1564 = vperm.slane %v1546, 4
    %v1565 = vperm.slane %v1546, 5
    %v1566 = vperm.slane %v1546, 6
    %v1567 = vperm.slane %v1546, 7
    %v1568 = vperm.slane %v1550, 0
    %v1569 = vperm.slane %v1550, 1
    %v1570 = vperm.slane %v1550, 2
    %v1571 = vperm.slane %v1550, 3
    %v1572 = vperm.slane %v1550, 4
    %v1573 = vperm.slane %v1550, 5
    %v1574 = vperm.slane %v1550, 6
    %v1575 = vperm.slane %v1550, 7
    %v1576 = vperm.slane %v1552, 0
    %v1594 = vmul.f32 %v1555, %v1560
    %v1595 = vmul.f32 %v1555, %v1561
    %v1596 = vmul.f32 %v1555, %v1562
    %v1597 = vmul.f32 %v1555, %v1563
    %v1598 = vmul.f32 %v1555, %v1564
    %v1599 = vmul.f32 %v1555, %v1565
    %v1600 = vmul.f32 %v1555, %v1566
    %v1601 = vmul.f32 %v1555, %v1567
    %v1602 = vmul.f32 %v1555, %v1568
    %v1603 = vmul.f32 %v1555, %v1569
    %v1604 = vmul.f32 %v1555, %v1570
    %v1605 = vmul.f32 %v1555, %v1571
    %v1606 = vmul.f32 %v1555, %v1572
    %v1607 = vmul.f32 %v1555, %v1573
    %v1608 = vmul.f32 %v1555, %v1574
    %v1609 = vmul.f32 %v1555, %v1575
    %v1610 = vmul.f32 %v1555, %v1576
    %1628 = vrot.lane.b32.xlu0 %v1594, 127
    %v1629 = vpop.permute.xlu0 %1628
    %1630 = vrot.lane.b32.xlu0 %v1595, 127
    %v1631 = vpop.permute.xlu0 %1630
    %1632 = vrot.lane.b32.xlu0 %v1596, 127
    %v1633 = vpop.permute.xlu0 %1632
    %1634 = vrot.lane.b32.xlu0 %v1597, 127
    %v1635 = vpop.permute.xlu0 %1634
    %1636 = vrot.lane.b32.xlu0 %v1598, 127
    %v1637 = vpop.permute.xlu0 %1636
    %1638 = vrot.lane.b32.xlu0 %v1599, 127
    %v1639 = vpop.permute.xlu0 %1638
    %1640 = vrot.lane.b32.xlu0 %v1600, 127
    %v1641 = vpop.permute.xlu0 %1640
    %1642 = vrot.lane.b32.xlu0 %v1601, 127
    %v1643 = vpop.permute.xlu0 %1642
    %1644 = vrot.lane.b32.xlu0 %v1602, 127
    %v1645 = vpop.permute.xlu0 %1644
    %1646 = vrot.lane.b32.xlu0 %v1603, 127
    %v1647 = vpop.permute.xlu0 %1646
    %1648 = vrot.lane.b32.xlu0 %v1604, 127
    %v1649 = vpop.permute.xlu0 %1648
    %1650 = vrot.lane.b32.xlu0 %v1605, 127
    %v1651 = vpop.permute.xlu0 %1650
    %1652 = vrot.lane.b32.xlu0 %v1606, 127
    %v1653 = vpop.permute.xlu0 %1652
    %1654 = vrot.lane.b32.xlu0 %v1607, 127
    %v1655 = vpop.permute.xlu0 %1654
    %1656 = vrot.lane.b32.xlu0 %v1608, 127
    %v1657 = vpop.permute.xlu0 %1656
    %1658 = vrot.lane.b32.xlu0 %v1609, 127
    %v1659 = vpop.permute.xlu0 %1658
    %1660 = vrot.lane.b32.xlu0 %v1610, 127
    %v1661 = vpop.permute.xlu0 %1660
    %v1662 = vsel %vm1323, %v1629, %v1631
    %v1663 = vsel %vm1323, %v1631, %v1633
    %v1664 = vsel %vm1323, %v1633, %v1635
    %v1665 = vsel %vm1323, %v1635, %v1637
    %v1666 = vsel %vm1323, %v1637, %v1639
    %v1667 = vsel %vm1323, %v1639, %v1641
    %v1668 = vsel %vm1323, %v1641, %v1643
    %v1669 = vsel %vm1323, %v1643, %v1645
    %v1670 = vsel %vm1323, %v1645, %v1647
    %v1671 = vsel %vm1323, %v1647, %v1649
    %v1672 = vsel %vm1323, %v1649, %v1651
    %v1673 = vsel %vm1323, %v1651, %v1653
    %v1674 = vsel %vm1323, %v1653, %v1655
    %v1675 = vsel %vm1323, %v1655, %v1657
    %v1676 = vsel %vm1323, %v1657, %v1659
    %v1677 = vsel %vm1323, %v1659, %v1661
    %v1695 = vadd.f32 %v1526, %v1662
    %v1696 = vadd.f32 %v1527, %v1663
    %v1697 = vadd.f32 %v1528, %v1664
    %v1698 = vadd.f32 %v1529, %v1665
    %v1699 = vadd.f32 %v1530, %v1666
    %v1700 = vadd.f32 %v1531, %v1667
    %v1701 = vadd.f32 %v1532, %v1668
    %v1702 = vadd.f32 %v1533, %v1669
    %v1703 = vadd.f32 %v1534, %v1670
    %v1704 = vadd.f32 %v1535, %v1671
    %v1705 = vadd.f32 %v1536, %v1672
    %v1706 = vadd.f32 %v1537, %v1673
    %v1707 = vadd.f32 %v1538, %v1674
    %v1708 = vadd.f32 %v1539, %v1675
    %v1709 = vadd.f32 %v1540, %v1676
    %v1710 = vadd.f32 %v1541, %v1677
    %v1711 = vadd.f32 %v1542, %v1661
    %v1712 = vld [vmem:[#allocation4] ss:$8 sm:$0xf]
    %v1713 = vld [vmem:[#allocation4] ss:$8 sm:$0xf0]
    %v1714 = vor.u32 %v1712, %v1713
    %s1715 = scalar_lea.vmem [#allocation4], 64
    %v1716 = vld [vmem:[%s1715] ss:$8 sm:$0xf]
    %v1717 = vld [vmem:[%s1715] ss:$8 sm:$0xf0]
    %v1718 = vor.u32 %v1716, %v1717
    %s1719 = scalar_lea.vmem [#allocation4], 128
    %v1720 = vld [vmem:[%s1719] ss:$8 sm:$0x1]
    %1721 = vset.pattern.permute.xlu0 2
    %1722 = vperm.xlu0 %1721, %v15
    %v1723 = vpop.permute.xlu0 %1722
    %v1728 = vperm.slane %v1714, 0
    %v1729 = vperm.slane %v1714, 1
    %v1730 = vperm.slane %v1714, 2
    %v1731 = vperm.slane %v1714, 3
    %v1732 = vperm.slane %v1714, 4
    %v1733 = vperm.slane %v1714, 5
    %v1734 = vperm.slane %v1714, 6
    %v1735 = vperm.slane %v1714, 7
    %v1736 = vperm.slane %v1718, 0
    %v1737 = vperm.slane %v1718, 1
    %v1738 = vperm.slane %v1718, 2
    %v1739 = vperm.slane %v1718, 3
    %v1740 = vperm.slane %v1718, 4
    %v1741 = vperm.slane %v1718, 5
    %v1742 = vperm.slane %v1718, 6
    %v1743 = vperm.slane %v1718, 7
    %v1744 = vperm.slane %v1720, 0
    %v1762 = vmul.f32 %v1723, %v1728
    %v1763 = vmul.f32 %v1723, %v1729
    %v1764 = vmul.f32 %v1723, %v1730
    %v1765 = vmul.f32 %v1723, %v1731
    %v1766 = vmul.f32 %v1723, %v1732
    %v1767 = vmul.f32 %v1723, %v1733
    %v1768 = vmul.f32 %v1723, %v1734
    %v1769 = vmul.f32 %v1723, %v1735
    %v1770 = vmul.f32 %v1723, %v1736
    %v1771 = vmul.f32 %v1723, %v1737
    %v1772 = vmul.f32 %v1723, %v1738
    %v1773 = vmul.f32 %v1723, %v1739
    %v1774 = vmul.f32 %v1723, %v1740
    %v1775 = vmul.f32 %v1723, %v1741
    %v1776 = vmul.f32 %v1723, %v1742
    %v1777 = vmul.f32 %v1723, %v1743
    %v1778 = vmul.f32 %v1723, %v1744
    %1796 = vrot.lane.b32.xlu0 %v1762, 126
    %v1797 = vpop.permute.xlu0 %1796
    %1798 = vrot.lane.b32.xlu0 %v1763, 126
    %v1799 = vpop.permute.xlu0 %1798
    %1800 = vrot.lane.b32.xlu0 %v1764, 126
    %v1801 = vpop.permute.xlu0 %1800
    %1802 = vrot.lane.b32.xlu0 %v1765, 126
    %v1803 = vpop.permute.xlu0 %1802
    %1804 = vrot.lane.b32.xlu0 %v1766, 126
    %v1805 = vpop.permute.xlu0 %1804
    %1806 = vrot.lane.b32.xlu0 %v1767, 126
    %v1807 = vpop.permute.xlu0 %1806
    %1808 = vrot.lane.b32.xlu0 %v1768, 126
    %v1809 = vpop.permute.xlu0 %1808
    %1810 = vrot.lane.b32.xlu0 %v1769, 126
    %v1811 = vpop.permute.xlu0 %1810
    %1812 = vrot.lane.b32.xlu0 %v1770, 126
    %v1813 = vpop.permute.xlu0 %1812
    %1814 = vrot.lane.b32.xlu0 %v1771, 126
    %v1815 = vpop.permute.xlu0 %1814
    %1816 = vrot.lane.b32.xlu0 %v1772, 126
    %v1817 = vpop.permute.xlu0 %1816
    %1818 = vrot.lane.b32.xlu0 %v1773, 126
    %v1819 = vpop.permute.xlu0 %1818
    %1820 = vrot.lane.b32.xlu0 %v1774, 126
    %v1821 = vpop.permute.xlu0 %1820
    %1822 = vrot.lane.b32.xlu0 %v1775, 126
    %v1823 = vpop.permute.xlu0 %1822
    %1824 = vrot.lane.b32.xlu0 %v1776, 126
    %v1825 = vpop.permute.xlu0 %1824
    %1826 = vrot.lane.b32.xlu0 %v1777, 126
    %v1827 = vpop.permute.xlu0 %1826
    %1828 = vrot.lane.b32.xlu0 %v1778, 126
    %v1829 = vpop.permute.xlu0 %1828
    %vm1830 = vcmask 1031168
    %v1831 = vsel %vm1830, %v1797, %v1799
    %v1832 = vsel %vm1830, %v1799, %v1801
    %v1833 = vsel %vm1830, %v1801, %v1803
    %v1834 = vsel %vm1830, %v1803, %v1805
    %v1835 = vsel %vm1830, %v1805, %v1807
    %v1836 = vsel %vm1830, %v1807, %v1809
    %v1837 = vsel %vm1830, %v1809, %v1811
    %v1838 = vsel %vm1830, %v1811, %v1813
    %v1839 = vsel %vm1830, %v1813, %v1815
    %v1840 = vsel %vm1830, %v1815, %v1817
    %v1841 = vsel %vm1830, %v1817, %v1819
    %v1842 = vsel %vm1830, %v1819, %v1821
    %v1843 = vsel %vm1830, %v1821, %v1823
    %v1844 = vsel %vm1830, %v1823, %v1825
    %v1845 = vsel %vm1830, %v1825, %v1827
    %v1846 = vsel %vm1830, %v1827, %v1829
    %v1864 = vadd.f32 %v1695, %v1831
    %v1865 = vadd.f32 %v1696, %v1832
    %v1866 = vadd.f32 %v1697, %v1833
    %v1867 = vadd.f32 %v1698, %v1834
    %v1868 = vadd.f32 %v1699, %v1835
    %v1869 = vadd.f32 %v1700, %v1836
    %v1870 = vadd.f32 %v1701, %v1837
    %v1871 = vadd.f32 %v1702, %v1838
    %v1872 = vadd.f32 %v1703, %v1839
    %v1873 = vadd.f32 %v1704, %v1840
    %v1874 = vadd.f32 %v1705, %v1841
    %v1875 = vadd.f32 %v1706, %v1842
    %v1876 = vadd.f32 %v1707, %v1843
    %v1877 = vadd.f32 %v1708, %v1844
    %v1878 = vadd.f32 %v1709, %v1845
    %v1879 = vadd.f32 %v1710, %v1846
    %v1880 = vadd.f32 %v1711, %v1829
    %s1881 = scalar_lea.vmem [#allocation4], 1
    %v1882 = vld [vmem:[%s1881] ss:$8 sm:$0xf]
    %v1883 = vld [vmem:[%s1881] ss:$8 sm:$0xf0]
    %v1884 = vor.u32 %v1882, %v1883
    %s1885 = scalar_lea.vmem [#allocation4], 65
    %v1886 = vld [vmem:[%s1885] ss:$8 sm:$0xf]
    %v1887 = vld [vmem:[%s1885] ss:$8 sm:$0xf0]
    %v1888 = vor.u32 %v1886, %v1887
    %s1889 = scalar_lea.vmem [#allocation4], 129
    %v1890 = vld [vmem:[%s1889] ss:$8 sm:$0x1]
    %1891 = vset.pattern.permute.xlu0 11
    %1892 = vperm.xlu0 %1891, %v15
    %v1893 = vpop.permute.xlu0 %1892
    %v1898 = vperm.slane %v1884, 0
    %v1899 = vperm.slane %v1884, 1
    %v1900 = vperm.slane %v1884, 2
    %v1901 = vperm.slane %v1884, 3
    %v1902 = vperm.slane %v1884, 4
    %v1903 = vperm.slane %v1884, 5
    %v1904 = vperm.slane %v1884, 6
    %v1905 = vperm.slane %v1884, 7
    %v1906 = vperm.slane %v1888, 0
    %v1907 = vperm.slane %v1888, 1
    %v1908 = vperm.slane %v1888, 2
    %v1909 = vperm.slane %v1888, 3
    %v1910 = vperm.slane %v1888, 4
    %v1911 = vperm.slane %v1888, 5
    %v1912 = vperm.slane %v1888, 6
    %v1913 = vperm.slane %v1888, 7
    %v1914 = vperm.slane %v1890, 0
    %v1932 = vmul.f32 %v1893, %v1898
    %v1933 = vmul.f32 %v1893, %v1899
    %v1934 = vmul.f32 %v1893, %v1900
    %v1935 = vmul.f32 %v1893, %v1901
    %v1936 = vmul.f32 %v1893, %v1902
    %v1937 = vmul.f32 %v1893, %v1903
    %v1938 = vmul.f32 %v1893, %v1904
    %v1939 = vmul.f32 %v1893, %v1905
    %v1940 = vmul.f32 %v1893, %v1906
    %v1941 = vmul.f32 %v1893, %v1907
    %v1942 = vmul.f32 %v1893, %v1908
    %v1943 = vmul.f32 %v1893, %v1909
    %v1944 = vmul.f32 %v1893, %v1910
    %v1945 = vmul.f32 %v1893, %v1911
    %v1946 = vmul.f32 %v1893, %v1912
    %v1947 = vmul.f32 %v1893, %v1913
    %v1948 = vmul.f32 %v1893, %v1914
    %1966 = vrot.lane.b32.xlu0 %v1932, 126
    %v1967 = vpop.permute.xlu0 %1966
    %1968 = vrot.lane.b32.xlu0 %v1933, 126
    %v1969 = vpop.permute.xlu0 %1968
    %1970 = vrot.lane.b32.xlu0 %v1934, 126
    %v1971 = vpop.permute.xlu0 %1970
    %1972 = vrot.lane.b32.xlu0 %v1935, 126
    %v1973 = vpop.permute.xlu0 %1972
    %1974 = vrot.lane.b32.xlu0 %v1936, 126
    %v1975 = vpop.permute.xlu0 %1974
    %1976 = vrot.lane.b32.xlu0 %v1937, 126
    %v1977 = vpop.permute.xlu0 %1976
    %1978 = vrot.lane.b32.xlu0 %v1938, 126
    %v1979 = vpop.permute.xlu0 %1978
    %1980 = vrot.lane.b32.xlu0 %v1939, 126
    %v1981 = vpop.permute.xlu0 %1980
    %1982 = vrot.lane.b32.xlu0 %v1940, 126
    %v1983 = vpop.permute.xlu0 %1982
    %1984 = vrot.lane.b32.xlu0 %v1941, 126
    %v1985 = vpop.permute.xlu0 %1984
    %1986 = vrot.lane.b32.xlu0 %v1942, 126
    %v1987 = vpop.permute.xlu0 %1986
    %1988 = vrot.lane.b32.xlu0 %v1943, 126
    %v1989 = vpop.permute.xlu0 %1988
    %1990 = vrot.lane.b32.xlu0 %v1944, 126
    %v1991 = vpop.permute.xlu0 %1990
    %1992 = vrot.lane.b32.xlu0 %v1945, 126
    %v1993 = vpop.permute.xlu0 %1992
    %1994 = vrot.lane.b32.xlu0 %v1946, 126
    %v1995 = vpop.permute.xlu0 %1994
    %1996 = vrot.lane.b32.xlu0 %v1947, 126
    %v1997 = vpop.permute.xlu0 %1996
    %1998 = vrot.lane.b32.xlu0 %v1948, 126
    %v1999 = vpop.permute.xlu0 %1998
    %v2000 = vsel %vm1830, %v1967, %v1969
    %v2001 = vsel %vm1830, %v1969, %v1971
    %v2002 = vsel %vm1830, %v1971, %v1973
    %v2003 = vsel %vm1830, %v1973, %v1975
    %v2004 = vsel %vm1830, %v1975, %v1977
    %v2005 = vsel %vm1830, %v1977, %v1979
    %v2006 = vsel %vm1830, %v1979, %v1981
    %v2007 = vsel %vm1830, %v1981, %v1983
    %v2008 = vsel %vm1830, %v1983, %v1985
    %v2009 = vsel %vm1830, %v1985, %v1987
    %v2010 = vsel %vm1830, %v1987, %v1989
    %v2011 = vsel %vm1830, %v1989, %v1991
    %v2012 = vsel %vm1830, %v1991, %v1993
    %v2013 = vsel %vm1830, %v1993, %v1995
    %v2014 = vsel %vm1830, %v1995, %v1997
    %v2015 = vsel %vm1830, %v1997, %v1999
    %v2033 = vadd.f32 %v1864, %v2000
    %v2034 = vadd.f32 %v1865, %v2001
    %v2035 = vadd.f32 %v1866, %v2002
    %v2036 = vadd.f32 %v1867, %v2003
    %v2037 = vadd.f32 %v1868, %v2004
    %v2038 = vadd.f32 %v1869, %v2005
    %v2039 = vadd.f32 %v1870, %v2006
    %v2040 = vadd.f32 %v1871, %v2007
    %v2041 = vadd.f32 %v1872, %v2008
    %v2042 = vadd.f32 %v1873, %v2009
    %v2043 = vadd.f32 %v1874, %v2010
    %v2044 = vadd.f32 %v1875, %v2011
    %v2045 = vadd.f32 %v1876, %v2012
    %v2046 = vadd.f32 %v1877, %v2013
    %v2047 = vadd.f32 %v1878, %v2014
    %v2048 = vadd.f32 %v1879, %v2015
    %v2049 = vadd.f32 %v1880, %v1999
    %s2050 = scalar_lea.vmem [#allocation4], 2
    %v2051 = vld [vmem:[%s2050] ss:$8 sm:$0xf]
    %v2052 = vld [vmem:[%s2050] ss:$8 sm:$0xf0]
    %v2053 = vor.u32 %v2051, %v2052
    %s2054 = scalar_lea.vmem [#allocation4], 66
    %v2055 = vld [vmem:[%s2054] ss:$8 sm:$0xf]
    %v2056 = vld [vmem:[%s2054] ss:$8 sm:$0xf0]
    %v2057 = vor.u32 %v2055, %v2056
    %s2058 = scalar_lea.vmem [#allocation4], 130
    %v2059 = vld [vmem:[%s2058] ss:$8 sm:$0x1]
    %2060 = vset.pattern.permute.xlu0 20
    %2061 = vperm.xlu0 %2060, %v15
    %v2062 = vpop.permute.xlu0 %2061
    %v2067 = vperm.slane %v2053, 0
    %v2068 = vperm.slane %v2053, 1
    %v2069 = vperm.slane %v2053, 2
    %v2070 = vperm.slane %v2053, 3
    %v2071 = vperm.slane %v2053, 4
    %v2072 = vperm.slane %v2053, 5
    %v2073 = vperm.slane %v2053, 6
    %v2074 = vperm.slane %v2053, 7
    %v2075 = vperm.slane %v2057, 0
    %v2076 = vperm.slane %v2057, 1
    %v2077 = vperm.slane %v2057, 2
    %v2078 = vperm.slane %v2057, 3
    %v2079 = vperm.slane %v2057, 4
    %v2080 = vperm.slane %v2057, 5
    %v2081 = vperm.slane %v2057, 6
    %v2082 = vperm.slane %v2057, 7
    %v2083 = vperm.slane %v2059, 0
    %v2101 = vmul.f32 %v2062, %v2067
    %v2102 = vmul.f32 %v2062, %v2068
    %v2103 = vmul.f32 %v2062, %v2069
    %v2104 = vmul.f32 %v2062, %v2070
    %v2105 = vmul.f32 %v2062, %v2071
    %v2106 = vmul.f32 %v2062, %v2072
    %v2107 = vmul.f32 %v2062, %v2073
    %v2108 = vmul.f32 %v2062, %v2074
    %v2109 = vmul.f32 %v2062, %v2075
    %v2110 = vmul.f32 %v2062, %v2076
    %v2111 = vmul.f32 %v2062, %v2077
    %v2112 = vmul.f32 %v2062, %v2078
    %v2113 = vmul.f32 %v2062, %v2079
    %v2114 = vmul.f32 %v2062, %v2080
    %v2115 = vmul.f32 %v2062, %v2081
    %v2116 = vmul.f32 %v2062, %v2082
    %v2117 = vmul.f32 %v2062, %v2083
    %2135 = vrot.lane.b32.xlu0 %v2101, 126
    %v2136 = vpop.permute.xlu0 %2135
    %2137 = vrot.lane.b32.xlu0 %v2102, 126
    %v2138 = vpop.permute.xlu0 %2137
    %2139 = vrot.lane.b32.xlu0 %v2103, 126
    %v2140 = vpop.permute.xlu0 %2139
    %2141 = vrot.lane.b32.xlu0 %v2104, 126
    %v2142 = vpop.permute.xlu0 %2141
    %2143 = vrot.lane.b32.xlu0 %v2105, 126
    %v2144 = vpop.permute.xlu0 %2143
    %2145 = vrot.lane.b32.xlu0 %v2106, 126
    %v2146 = vpop.permute.xlu0 %2145
    %2147 = vrot.lane.b32.xlu0 %v2107, 126
    %v2148 = vpop.permute.xlu0 %2147
    %2149 = vrot.lane.b32.xlu0 %v2108, 126
    %v2150 = vpop.permute.xlu0 %2149
    %2151 = vrot.lane.b32.xlu0 %v2109, 126
    %v2152 = vpop.permute.xlu0 %2151
    %2153 = vrot.lane.b32.xlu0 %v2110, 126
    %v2154 = vpop.permute.xlu0 %2153
    %2155 = vrot.lane.b32.xlu0 %v2111, 126
    %v2156 = vpop.permute.xlu0 %2155
    %2157 = vrot.lane.b32.xlu0 %v2112, 126
    %v2158 = vpop.permute.xlu0 %2157
    %2159 = vrot.lane.b32.xlu0 %v2113, 126
    %v2160 = vpop.permute.xlu0 %2159
    %2161 = vrot.lane.b32.xlu0 %v2114, 126
    %v2162 = vpop.permute.xlu0 %2161
    %2163 = vrot.lane.b32.xlu0 %v2115, 126
    %v2164 = vpop.permute.xlu0 %2163
    %2165 = vrot.lane.b32.xlu0 %v2116, 126
    %v2166 = vpop.permute.xlu0 %2165
    %2167 = vrot.lane.b32.xlu0 %v2117, 126
    %v2168 = vpop.permute.xlu0 %2167
    %v2169 = vsel %vm1830, %v2136, %v2138
    %v2170 = vsel %vm1830, %v2138, %v2140
    %v2171 = vsel %vm1830, %v2140, %v2142
    %v2172 = vsel %vm1830, %v2142, %v2144
    %v2173 = vsel %vm1830, %v2144, %v2146
    %v2174 = vsel %vm1830, %v2146, %v2148
    %v2175 = vsel %vm1830, %v2148, %v2150
    %v2176 = vsel %vm1830, %v2150, %v2152
    %v2177 = vsel %vm1830, %v2152, %v2154
    %v2178 = vsel %vm1830, %v2154, %v2156
    %v2179 = vsel %vm1830, %v2156, %v2158
    %v2180 = vsel %vm1830, %v2158, %v2160
    %v2181 = vsel %vm1830, %v2160, %v2162
    %v2182 = vsel %vm1830, %v2162, %v2164
    %v2183 = vsel %vm1830, %v2164, %v2166
    %v2184 = vsel %vm1830, %v2166, %v2168
    %v2202 = vadd.f32 %v2033, %v2169
    %v2203 = vadd.f32 %v2034, %v2170
    %v2204 = vadd.f32 %v2035, %v2171
    %v2205 = vadd.f32 %v2036, %v2172
    %v2206 = vadd.f32 %v2037, %v2173
    %v2207 = vadd.f32 %v2038, %v2174
    %v2208 = vadd.f32 %v2039, %v2175
    %v2209 = vadd.f32 %v2040, %v2176
    %v2210 = vadd.f32 %v2041, %v2177
    %v2211 = vadd.f32 %v2042, %v2178
    %v2212 = vadd.f32 %v2043, %v2179
    %v2213 = vadd.f32 %v2044, %v2180
    %v2214 = vadd.f32 %v2045, %v2181
    %v2215 = vadd.f32 %v2046, %v2182
    %v2216 = vadd.f32 %v2047, %v2183
    %v2217 = vadd.f32 %v2048, %v2184
    %v2218 = vadd.f32 %v2049, %v2168
    %2219 = vset.pattern.permute.xlu0 3
    %2220 = vperm.xlu0 %2219, %v15
    %v2221 = vpop.permute.xlu0 %2220
    %v2223 = vmul.f32 %v2221, %v967
    %v2224 = vmul.f32 %v2221, %v968
    %v2225 = vmul.f32 %v2221, %v969
    %v2226 = vmul.f32 %v2221, %v970
    %v2227 = vmul.f32 %v2221, %v971
    %v2228 = vmul.f32 %v2221, %v972
    %v2229 = vmul.f32 %v2221, %v973
    %v2230 = vmul.f32 %v2221, %v974
    %v2231 = vmul.f32 %v2221, %v975
    %v2232 = vmul.f32 %v2221, %v976
    %v2233 = vmul.f32 %v2221, %v977
    %v2234 = vmul.f32 %v2221, %v978
    %v2235 = vmul.f32 %v2221, %v979
    %v2236 = vmul.f32 %v2221, %v980
    %v2237 = vmul.f32 %v2221, %v981
    %v2238 = vmul.f32 %v2221, %v982
    %v2239 = vmul.f32 %v2221, %v983
    %2257 = vrot.lane.b32.xlu0 %v2223, 64
    %v2258 = vpop.permute.xlu0 %2257
    %2259 = vrot.lane.b32.xlu0 %v2224, 64
    %v2260 = vpop.permute.xlu0 %2259
    %2261 = vrot.lane.b32.xlu0 %v2225, 64
    %v2262 = vpop.permute.xlu0 %2261
    %2263 = vrot.lane.b32.xlu0 %v2226, 64
    %v2264 = vpop.permute.xlu0 %2263
    %2265 = vrot.lane.b32.xlu0 %v2227, 64
    %v2266 = vpop.permute.xlu0 %2265
    %2267 = vrot.lane.b32.xlu0 %v2228, 64
    %v2268 = vpop.permute.xlu0 %2267
    %2269 = vrot.lane.b32.xlu0 %v2229, 64
    %v2270 = vpop.permute.xlu0 %2269
    %2271 = vrot.lane.b32.xlu0 %v2230, 64
    %v2272 = vpop.permute.xlu0 %2271
    %2273 = vrot.lane.b32.xlu0 %v2231, 64
    %v2274 = vpop.permute.xlu0 %2273
    %2275 = vrot.lane.b32.xlu0 %v2232, 64
    %v2276 = vpop.permute.xlu0 %2275
    %2277 = vrot.lane.b32.xlu0 %v2233, 64
    %v2278 = vpop.permute.xlu0 %2277
    %2279 = vrot.lane.b32.xlu0 %v2234, 64
    %v2280 = vpop.permute.xlu0 %2279
    %2281 = vrot.lane.b32.xlu0 %v2235, 64
    %v2282 = vpop.permute.xlu0 %2281
    %2283 = vrot.lane.b32.xlu0 %v2236, 64
    %v2284 = vpop.permute.xlu0 %2283
    %2285 = vrot.lane.b32.xlu0 %v2237, 64
    %v2286 = vpop.permute.xlu0 %2285
    %2287 = vrot.lane.b32.xlu0 %v2238, 64
    %v2288 = vpop.permute.xlu0 %2287
    %2289 = vrot.lane.b32.xlu0 %v2239, 64
    %v2290 = vpop.permute.xlu0 %2289
    %vm2291 = vcmask 523264
    %v2292 = vsel %vm2291, %v2258, %v2260
    %v2293 = vsel %vm2291, %v2260, %v2262
    %v2294 = vsel %vm2291, %v2262, %v2264
    %v2295 = vsel %vm2291, %v2264, %v2266
    %v2296 = vsel %vm2291, %v2266, %v2268
    %v2297 = vsel %vm2291, %v2268, %v2270
    %v2298 = vsel %vm2291, %v2270, %v2272
    %v2299 = vsel %vm2291, %v2272, %v2274
    %v2300 = vsel %vm2291, %v2274, %v2276
    %v2301 = vsel %vm2291, %v2276, %v2278
    %v2302 = vsel %vm2291, %v2278, %v2280
    %v2303 = vsel %vm2291, %v2280, %v2282
    %v2304 = vsel %vm2291, %v2282, %v2284
    %v2305 = vsel %vm2291, %v2284, %v2286
    %v2306 = vsel %vm2291, %v2286, %v2288
    %v2307 = vsel %vm2291, %v2288, %v2290
    %v2325 = vadd.f32 %v2202, %v2292
    %v2326 = vadd.f32 %v2203, %v2293
    %v2327 = vadd.f32 %v2204, %v2294
    %v2328 = vadd.f32 %v2205, %v2295
    %v2329 = vadd.f32 %v2206, %v2296
    %v2330 = vadd.f32 %v2207, %v2297
    %v2331 = vadd.f32 %v2208, %v2298
    %v2332 = vadd.f32 %v2209, %v2299
    %v2333 = vadd.f32 %v2210, %v2300
    %v2334 = vadd.f32 %v2211, %v2301
    %v2335 = vadd.f32 %v2212, %v2302
    %v2336 = vadd.f32 %v2213, %v2303
    %v2337 = vadd.f32 %v2214, %v2304
    %v2338 = vadd.f32 %v2215, %v2305
    %v2339 = vadd.f32 %v2216, %v2306
    %v2340 = vadd.f32 %v2217, %v2307
    %v2341 = vadd.f32 %v2218, %v2290
    %2342 = vset.pattern.permute.xlu0 12
    %2343 = vperm.xlu0 %2342, %v15
    %v2344 = vpop.permute.xlu0 %2343
    %v2346 = vmul.f32 %v2344, %v1052
    %v2347 = vmul.f32 %v2344, %v1053
    %v2348 = vmul.f32 %v2344, %v1054
    %v2349 = vmul.f32 %v2344, %v1055
    %v2350 = vmul.f32 %v2344, %v1056
    %v2351 = vmul.f32 %v2344, %v1057
    %v2352 = vmul.f32 %v2344, %v1058
    %v2353 = vmul.f32 %v2344, %v1059
    %v2354 = vmul.f32 %v2344, %v1060
    %v2355 = vmul.f32 %v2344, %v1061
    %v2356 = vmul.f32 %v2344, %v1062
    %v2357 = vmul.f32 %v2344, %v1063
    %v2358 = vmul.f32 %v2344, %v1064
    %v2359 = vmul.f32 %v2344, %v1065
    %v2360 = vmul.f32 %v2344, %v1066
    %v2361 = vmul.f32 %v2344, %v1067
    %v2362 = vmul.f32 %v2344, %v1068
    %2380 = vrot.lane.b32.xlu0 %v2346, 64
    %v2381 = vpop.permute.xlu0 %2380
    %2382 = vrot.lane.b32.xlu0 %v2347, 64
    %v2383 = vpop.permute.xlu0 %2382
    %2384 = vrot.lane.b32.xlu0 %v2348, 64
    %v2385 = vpop.permute.xlu0 %2384
    %2386 = vrot.lane.b32.xlu0 %v2349, 64
    %v2387 = vpop.permute.xlu0 %2386
    %2388 = vrot.lane.b32.xlu0 %v2350, 64
    %v2389 = vpop.permute.xlu0 %2388
    %2390 = vrot.lane.b32.xlu0 %v2351, 64
    %v2391 = vpop.permute.xlu0 %2390
    %2392 = vrot.lane.b32.xlu0 %v2352, 64
    %v2393 = vpop.permute.xlu0 %2392
    %2394 = vrot.lane.b32.xlu0 %v2353, 64
    %v2395 = vpop.permute.xlu0 %2394
    %2396 = vrot.lane.b32.xlu0 %v2354, 64
    %v2397 = vpop.permute.xlu0 %2396
    %2398 = vrot.lane.b32.xlu0 %v2355, 64
    %v2399 = vpop.permute.xlu0 %2398
    %2400 = vrot.lane.b32.xlu0 %v2356, 64
    %v2401 = vpop.permute.xlu0 %2400
    %2402 = vrot.lane.b32.xlu0 %v2357, 64
    %v2403 = vpop.permute.xlu0 %2402
    %2404 = vrot.lane.b32.xlu0 %v2358, 64
    %v2405 = vpop.permute.xlu0 %2404
    %2406 = vrot.lane.b32.xlu0 %v2359, 64
    %v2407 = vpop.permute.xlu0 %2406
    %2408 = vrot.lane.b32.xlu0 %v2360, 64
    %v2409 = vpop.permute.xlu0 %2408
    %2410 = vrot.lane.b32.xlu0 %v2361, 64
    %v2411 = vpop.permute.xlu0 %2410
    %2412 = vrot.lane.b32.xlu0 %v2362, 64
    %v2413 = vpop.permute.xlu0 %2412
    %v2414 = vsel %vm2291, %v2381, %v2383
    %v2415 = vsel %vm2291, %v2383, %v2385
    %v2416 = vsel %vm2291, %v2385, %v2387
    %v2417 = vsel %vm2291, %v2387, %v2389
    %v2418 = vsel %vm2291, %v2389, %v2391
    %v2419 = vsel %vm2291, %v2391, %v2393
    %v2420 = vsel %vm2291, %v2393, %v2395
    %v2421 = vsel %vm2291, %v2395, %v2397
    %v2422 = vsel %vm2291, %v2397, %v2399
    %v2423 = vsel %vm2291, %v2399, %v2401
    %v2424 = vsel %vm2291, %v2401, %v2403
    %v2425 = vsel %vm2291, %v2403, %v2405
    %v2426 = vsel %vm2291, %v2405, %v2407
    %v2427 = vsel %vm2291, %v2407, %v2409
    %v2428 = vsel %vm2291, %v2409, %v2411
    %v2429 = vsel %vm2291, %v2411, %v2413
    %v2447 = vadd.f32 %v2325, %v2414
    %v2448 = vadd.f32 %v2326, %v2415
    %v2449 = vadd.f32 %v2327, %v2416
    %v2450 = vadd.f32 %v2328, %v2417
    %v2451 = vadd.f32 %v2329, %v2418
    %v2452 = vadd.f32 %v2330, %v2419
    %v2453 = vadd.f32 %v2331, %v2420
    %v2454 = vadd.f32 %v2332, %v2421
    %v2455 = vadd.f32 %v2333, %v2422
    %v2456 = vadd.f32 %v2334, %v2423
    %v2457 = vadd.f32 %v2335, %v2424
    %v2458 = vadd.f32 %v2336, %v2425
    %v2459 = vadd.f32 %v2337, %v2426
    %v2460 = vadd.f32 %v2338, %v2427
    %v2461 = vadd.f32 %v2339, %v2428
    %v2462 = vadd.f32 %v2340, %v2429
    %v2463 = vadd.f32 %v2341, %v2413
    %2464 = vset.pattern.permute.xlu0 21
    %2465 = vperm.xlu0 %2464, %v15
    %v2466 = vpop.permute.xlu0 %2465
    %v2468 = vmul.f32 %v2466, %v1137
    %v2469 = vmul.f32 %v2466, %v1138
    %v2470 = vmul.f32 %v2466, %v1139
    %v2471 = vmul.f32 %v2466, %v1140
    %v2472 = vmul.f32 %v2466, %v1141
    %v2473 = vmul.f32 %v2466, %v1142
    %v2474 = vmul.f32 %v2466, %v1143
    %v2475 = vmul.f32 %v2466, %v1144
    %v2476 = vmul.f32 %v2466, %v1145
    %v2477 = vmul.f32 %v2466, %v1146
    %v2478 = vmul.f32 %v2466, %v1147
    %v2479 = vmul.f32 %v2466, %v1148
    %v2480 = vmul.f32 %v2466, %v1149
    %v2481 = vmul.f32 %v2466, %v1150
    %v2482 = vmul.f32 %v2466, %v1151
    %v2483 = vmul.f32 %v2466, %v1152
    %v2484 = vmul.f32 %v2466, %v1153
    %2502 = vrot.lane.b32.xlu0 %v2468, 64
    %v2503 = vpop.permute.xlu0 %2502
    %2504 = vrot.lane.b32.xlu0 %v2469, 64
    %v2505 = vpop.permute.xlu0 %2504
    %2506 = vrot.lane.b32.xlu0 %v2470, 64
    %v2507 = vpop.permute.xlu0 %2506
    %2508 = vrot.lane.b32.xlu0 %v2471, 64
    %v2509 = vpop.permute.xlu0 %2508
    %2510 = vrot.lane.b32.xlu0 %v2472, 64
    %v2511 = vpop.permute.xlu0 %2510
    %2512 = vrot.lane.b32.xlu0 %v2473, 64
    %v2513 = vpop.permute.xlu0 %2512
    %2514 = vrot.lane.b32.xlu0 %v2474, 64
    %v2515 = vpop.permute.xlu0 %2514
    %2516 = vrot.lane.b32.xlu0 %v2475, 64
    %v2517 = vpop.permute.xlu0 %2516
    %2518 = vrot.lane.b32.xlu0 %v2476, 64
    %v2519 = vpop.permute.xlu0 %2518
    %2520 = vrot.lane.b32.xlu0 %v2477, 64
    %v2521 = vpop.permute.xlu0 %2520
    %2522 = vrot.lane.b32.xlu0 %v2478, 64
    %v2523 = vpop.permute.xlu0 %2522
    %2524 = vrot.lane.b32.xlu0 %v2479, 64
    %v2525 = vpop.permute.xlu0 %2524
    %2526 = vrot.lane.b32.xlu0 %v2480, 64
    %v2527 = vpop.permute.xlu0 %2526
    %2528 = vrot.lane.b32.xlu0 %v2481, 64
    %v2529 = vpop.permute.xlu0 %2528
    %2530 = vrot.lane.b32.xlu0 %v2482, 64
    %v2531 = vpop.permute.xlu0 %2530
    %2532 = vrot.lane.b32.xlu0 %v2483, 64
    %v2533 = vpop.permute.xlu0 %2532
    %2534 = vrot.lane.b32.xlu0 %v2484, 64
    %v2535 = vpop.permute.xlu0 %2534
    %v2536 = vsel %vm2291, %v2503, %v2505
    %v2537 = vsel %vm2291, %v2505, %v2507
    %v2538 = vsel %vm2291, %v2507, %v2509
    %v2539 = vsel %vm2291, %v2509, %v2511
    %v2540 = vsel %vm2291, %v2511, %v2513
    %v2541 = vsel %vm2291, %v2513, %v2515
    %v2542 = vsel %vm2291, %v2515, %v2517
    %v2543 = vsel %vm2291, %v2517, %v2519
    %v2544 = vsel %vm2291, %v2519, %v2521
    %v2545 = vsel %vm2291, %v2521, %v2523
    %v2546 = vsel %vm2291, %v2523, %v2525
    %v2547 = vsel %vm2291, %v2525, %v2527
    %v2548 = vsel %vm2291, %v2527, %v2529
    %v2549 = vsel %vm2291, %v2529, %v2531
    %v2550 = vsel %vm2291, %v2531, %v2533
    %v2551 = vsel %vm2291, %v2533, %v2535
    %v2569 = vadd.f32 %v2447, %v2536
    %v2570 = vadd.f32 %v2448, %v2537
    %v2571 = vadd.f32 %v2449, %v2538
    %v2572 = vadd.f32 %v2450, %v2539
    %v2573 = vadd.f32 %v2451, %v2540
    %v2574 = vadd.f32 %v2452, %v2541
    %v2575 = vadd.f32 %v2453, %v2542
    %v2576 = vadd.f32 %v2454, %v2543
    %v2577 = vadd.f32 %v2455, %v2544
    %v2578 = vadd.f32 %v2456, %v2545
    %v2579 = vadd.f32 %v2457, %v2546
    %v2580 = vadd.f32 %v2458, %v2547
    %v2581 = vadd.f32 %v2459, %v2548
    %v2582 = vadd.f32 %v2460, %v2549
    %v2583 = vadd.f32 %v2461, %v2550
    %v2584 = vadd.f32 %v2462, %v2551
    %v2585 = vadd.f32 %v2463, %v2535
    %s2586 = scalar_lea.vmem [#allocation2], 8
    %v2587 = vld [vmem:[%s2586] ss:$8 sm:$0xf]
    %v2588 = vld [vmem:[%s2586] ss:$8 sm:$0xf0]
    %v2589 = vor.u32 %v2587, %v2588
    %s2590 = scalar_lea.vmem [#allocation2], 72
    %v2591 = vld [vmem:[%s2590] ss:$8 sm:$0xf]
    %v2592 = vld [vmem:[%s2590] ss:$8 sm:$0xf0]
    %v2593 = vor.u32 %v2591, %v2592
    %2594 = vset.pattern.permute.xlu0 4
    %2595 = vperm.xlu0 %2594, %v15
    %v2596 = vpop.permute.xlu0 %2595
    %v2600 = vperm.slane %v2589, 0
    %v2601 = vperm.slane %v2589, 1
    %v2602 = vperm.slane %v2589, 2
    %v2603 = vperm.slane %v2589, 3
    %v2604 = vperm.slane %v2589, 4
    %v2605 = vperm.slane %v2589, 5
    %v2606 = vperm.slane %v2589, 6
    %v2607 = vperm.slane %v2589, 7
    %v2608 = vperm.slane %v2593, 0
    %v2609 = vperm.slane %v2593, 1
    %v2610 = vperm.slane %v2593, 2
    %v2611 = vperm.slane %v2593, 3
    %v2612 = vperm.slane %v2593, 4
    %v2613 = vperm.slane %v2593, 5
    %v2614 = vperm.slane %v2593, 6
    %v2615 = vperm.slane %v2593, 7
    %v2632 = vmul.f32 %v2596, %v2600
    %v2633 = vmul.f32 %v2596, %v2601
    %v2634 = vmul.f32 %v2596, %v2602
    %v2635 = vmul.f32 %v2596, %v2603
    %v2636 = vmul.f32 %v2596, %v2604
    %v2637 = vmul.f32 %v2596, %v2605
    %v2638 = vmul.f32 %v2596, %v2606
    %v2639 = vmul.f32 %v2596, %v2607
    %v2640 = vmul.f32 %v2596, %v2608
    %v2641 = vmul.f32 %v2596, %v2609
    %v2642 = vmul.f32 %v2596, %v2610
    %v2643 = vmul.f32 %v2596, %v2611
    %v2644 = vmul.f32 %v2596, %v2612
    %v2645 = vmul.f32 %v2596, %v2613
    %v2646 = vmul.f32 %v2596, %v2614
    %v2647 = vmul.f32 %v2596, %v2615
    %2664 = vrot.lane.b32.xlu0 %v2632, 63
    %v2665 = vpop.permute.xlu0 %2664
    %2666 = vrot.lane.b32.xlu0 %v2633, 63
    %v2667 = vpop.permute.xlu0 %2666
    %2668 = vrot.lane.b32.xlu0 %v2634, 63
    %v2669 = vpop.permute.xlu0 %2668
    %2670 = vrot.lane.b32.xlu0 %v2635, 63
    %v2671 = vpop.permute.xlu0 %2670
    %2672 = vrot.lane.b32.xlu0 %v2636, 63
    %v2673 = vpop.permute.xlu0 %2672
    %2674 = vrot.lane.b32.xlu0 %v2637, 63
    %v2675 = vpop.permute.xlu0 %2674
    %2676 = vrot.lane.b32.xlu0 %v2638, 63
    %v2677 = vpop.permute.xlu0 %2676
    %2678 = vrot.lane.b32.xlu0 %v2639, 63
    %v2679 = vpop.permute.xlu0 %2678
    %2680 = vrot.lane.b32.xlu0 %v2640, 63
    %v2681 = vpop.permute.xlu0 %2680
    %2682 = vrot.lane.b32.xlu0 %v2641, 63
    %v2683 = vpop.permute.xlu0 %2682
    %2684 = vrot.lane.b32.xlu0 %v2642, 63
    %v2685 = vpop.permute.xlu0 %2684
    %2686 = vrot.lane.b32.xlu0 %v2643, 63
    %v2687 = vpop.permute.xlu0 %2686
    %2688 = vrot.lane.b32.xlu0 %v2644, 63
    %v2689 = vpop.permute.xlu0 %2688
    %2690 = vrot.lane.b32.xlu0 %v2645, 63
    %v2691 = vpop.permute.xlu0 %2690
    %2692 = vrot.lane.b32.xlu0 %v2646, 63
    %v2693 = vpop.permute.xlu0 %2692
    %2694 = vrot.lane.b32.xlu0 %v2647, 63
    %v2695 = vpop.permute.xlu0 %2694
    %vm2696 = vcmask 515072
    %v2697 = vsel %vm2696, %v2665, %v2667
    %v2698 = vsel %vm2696, %v2667, %v2669
    %v2699 = vsel %vm2696, %v2669, %v2671
    %v2700 = vsel %vm2696, %v2671, %v2673
    %v2701 = vsel %vm2696, %v2673, %v2675
    %v2702 = vsel %vm2696, %v2675, %v2677
    %v2703 = vsel %vm2696, %v2677, %v2679
    %v2704 = vsel %vm2696, %v2679, %v2681
    %v2705 = vsel %vm2696, %v2681, %v2683
    %v2706 = vsel %vm2696, %v2683, %v2685
    %v2707 = vsel %vm2696, %v2685, %v2687
    %v2708 = vsel %vm2696, %v2687, %v2689
    %v2709 = vsel %vm2696, %v2689, %v2691
    %v2710 = vsel %vm2696, %v2691, %v2693
    %v2711 = vsel %vm2696, %v2693, %v2695
    %v2729 = vadd.f32 %v2569, %v2665
    %v2730 = vadd.f32 %v2570, %v2697
    %v2731 = vadd.f32 %v2571, %v2698
    %v2732 = vadd.f32 %v2572, %v2699
    %v2733 = vadd.f32 %v2573, %v2700
    %v2734 = vadd.f32 %v2574, %v2701
    %v2735 = vadd.f32 %v2575, %v2702
    %v2736 = vadd.f32 %v2576, %v2703
    %v2737 = vadd.f32 %v2577, %v2704
    %v2738 = vadd.f32 %v2578, %v2705
    %v2739 = vadd.f32 %v2579, %v2706
    %v2740 = vadd.f32 %v2580, %v2707
    %v2741 = vadd.f32 %v2581, %v2708
    %v2742 = vadd.f32 %v2582, %v2709
    %v2743 = vadd.f32 %v2583, %v2710
    %v2744 = vadd.f32 %v2584, %v2711
    %v2745 = vadd.f32 %v2585, %v2695
    %s2746 = scalar_lea.vmem [#allocation2], 9
    %v2747 = vld [vmem:[%s2746] ss:$8 sm:$0xf]
    %v2748 = vld [vmem:[%s2746] ss:$8 sm:$0xf0]
    %v2749 = vor.u32 %v2747, %v2748
    %s2750 = scalar_lea.vmem [#allocation2], 73
    %v2751 = vld [vmem:[%s2750] ss:$8 sm:$0xf]
    %v2752 = vld [vmem:[%s2750] ss:$8 sm:$0xf0]
    %v2753 = vor.u32 %v2751, %v2752
    %2754 = vset.pattern.permute.xlu0 13
    %2755 = vperm.xlu0 %2754, %v15
    %v2756 = vpop.permute.xlu0 %2755
    %v2760 = vperm.slane %v2749, 0
    %v2761 = vperm.slane %v2749, 1
    %v2762 = vperm.slane %v2749, 2
    %v2763 = vperm.slane %v2749, 3
    %v2764 = vperm.slane %v2749, 4
    %v2765 = vperm.slane %v2749, 5
    %v2766 = vperm.slane %v2749, 6
    %v2767 = vperm.slane %v2749, 7
    %v2768 = vperm.slane %v2753, 0
    %v2769 = vperm.slane %v2753, 1
    %v2770 = vperm.slane %v2753, 2
    %v2771 = vperm.slane %v2753, 3
    %v2772 = vperm.slane %v2753, 4
    %v2773 = vperm.slane %v2753, 5
    %v2774 = vperm.slane %v2753, 6
    %v2775 = vperm.slane %v2753, 7
    %v2792 = vmul.f32 %v2756, %v2760
    %v2793 = vmul.f32 %v2756, %v2761
    %v2794 = vmul.f32 %v2756, %v2762
    %v2795 = vmul.f32 %v2756, %v2763
    %v2796 = vmul.f32 %v2756, %v2764
    %v2797 = vmul.f32 %v2756, %v2765
    %v2798 = vmul.f32 %v2756, %v2766
    %v2799 = vmul.f32 %v2756, %v2767
    %v2800 = vmul.f32 %v2756, %v2768
    %v2801 = vmul.f32 %v2756, %v2769
    %v2802 = vmul.f32 %v2756, %v2770
    %v2803 = vmul.f32 %v2756, %v2771
    %v2804 = vmul.f32 %v2756, %v2772
    %v2805 = vmul.f32 %v2756, %v2773
    %v2806 = vmul.f32 %v2756, %v2774
    %v2807 = vmul.f32 %v2756, %v2775
    %2824 = vrot.lane.b32.xlu0 %v2792, 63
    %v2825 = vpop.permute.xlu0 %2824
    %2826 = vrot.lane.b32.xlu0 %v2793, 63
    %v2827 = vpop.permute.xlu0 %2826
    %2828 = vrot.lane.b32.xlu0 %v2794, 63
    %v2829 = vpop.permute.xlu0 %2828
    %2830 = vrot.lane.b32.xlu0 %v2795, 63
    %v2831 = vpop.permute.xlu0 %2830
    %2832 = vrot.lane.b32.xlu0 %v2796, 63
    %v2833 = vpop.permute.xlu0 %2832
    %2834 = vrot.lane.b32.xlu0 %v2797, 63
    %v2835 = vpop.permute.xlu0 %2834
    %2836 = vrot.lane.b32.xlu0 %v2798, 63
    %v2837 = vpop.permute.xlu0 %2836
    %2838 = vrot.lane.b32.xlu0 %v2799, 63
    %v2839 = vpop.permute.xlu0 %2838
    %2840 = vrot.lane.b32.xlu0 %v2800, 63
    %v2841 = vpop.permute.xlu0 %2840
    %2842 = vrot.lane.b32.xlu0 %v2801, 63
    %v2843 = vpop.permute.xlu0 %2842
    %2844 = vrot.lane.b32.xlu0 %v2802, 63
    %v2845 = vpop.permute.xlu0 %2844
    %2846 = vrot.lane.b32.xlu0 %v2803, 63
    %v2847 = vpop.permute.xlu0 %2846
    %2848 = vrot.lane.b32.xlu0 %v2804, 63
    %v2849 = vpop.permute.xlu0 %2848
    %2850 = vrot.lane.b32.xlu0 %v2805, 63
    %v2851 = vpop.permute.xlu0 %2850
    %2852 = vrot.lane.b32.xlu0 %v2806, 63
    %v2853 = vpop.permute.xlu0 %2852
    %2854 = vrot.lane.b32.xlu0 %v2807, 63
    %v2855 = vpop.permute.xlu0 %2854
    %v2856 = vsel %vm2696, %v2825, %v2827
    %v2857 = vsel %vm2696, %v2827, %v2829
    %v2858 = vsel %vm2696, %v2829, %v2831
    %v2859 = vsel %vm2696, %v2831, %v2833
    %v2860 = vsel %vm2696, %v2833, %v2835
    %v2861 = vsel %vm2696, %v2835, %v2837
    %v2862 = vsel %vm2696, %v2837, %v2839
    %v2863 = vsel %vm2696, %v2839, %v2841
    %v2864 = vsel %vm2696, %v2841, %v2843
    %v2865 = vsel %vm2696, %v2843, %v2845
    %v2866 = vsel %vm2696, %v2845, %v2847
    %v2867 = vsel %vm2696, %v2847, %v2849
    %v2868 = vsel %vm2696, %v2849, %v2851
    %v2869 = vsel %vm2696, %v2851, %v2853
    %v2870 = vsel %vm2696, %v2853, %v2855
    %v2888 = vadd.f32 %v2729, %v2825
    %v2889 = vadd.f32 %v2730, %v2856
    %v2890 = vadd.f32 %v2731, %v2857
    %v2891 = vadd.f32 %v2732, %v2858
    %v2892 = vadd.f32 %v2733, %v2859
    %v2893 = vadd.f32 %v2734, %v2860
    %v2894 = vadd.f32 %v2735, %v2861
    %v2895 = vadd.f32 %v2736, %v2862
    %v2896 = vadd.f32 %v2737, %v2863
    %v2897 = vadd.f32 %v2738, %v2864
    %v2898 = vadd.f32 %v2739, %v2865
    %v2899 = vadd.f32 %v2740, %v2866
    %v2900 = vadd.f32 %v2741, %v2867
    %v2901 = vadd.f32 %v2742, %v2868
    %v2902 = vadd.f32 %v2743, %v2869
    %v2903 = vadd.f32 %v2744, %v2870
    %v2904 = vadd.f32 %v2745, %v2855
    %s2905 = scalar_lea.vmem [#allocation2], 10
    %v2906 = vld [vmem:[%s2905] ss:$8 sm:$0xf]
    %v2907 = vld [vmem:[%s2905] ss:$8 sm:$0xf0]
    %v2908 = vor.u32 %v2906, %v2907
    %s2909 = scalar_lea.vmem [#allocation2], 74
    %v2910 = vld [vmem:[%s2909] ss:$8 sm:$0xf]
    %v2911 = vld [vmem:[%s2909] ss:$8 sm:$0xf0]
    %v2912 = vor.u32 %v2910, %v2911
    %2913 = vset.pattern.permute.xlu0 22
    %2914 = vperm.xlu0 %2913, %v15
    %v2915 = vpop.permute.xlu0 %2914
    %v2919 = vperm.slane %v2908, 0
    %v2920 = vperm.slane %v2908, 1
    %v2921 = vperm.slane %v2908, 2
    %v2922 = vperm.slane %v2908, 3
    %v2923 = vperm.slane %v2908, 4
    %v2924 = vperm.slane %v2908, 5
    %v2925 = vperm.slane %v2908, 6
    %v2926 = vperm.slane %v2908, 7
    %v2927 = vperm.slane %v2912, 0
    %v2928 = vperm.slane %v2912, 1
    %v2929 = vperm.slane %v2912, 2
    %v2930 = vperm.slane %v2912, 3
    %v2931 = vperm.slane %v2912, 4
    %v2932 = vperm.slane %v2912, 5
    %v2933 = vperm.slane %v2912, 6
    %v2934 = vperm.slane %v2912, 7
    %v2951 = vmul.f32 %v2915, %v2919
    %v2952 = vmul.f32 %v2915, %v2920
    %v2953 = vmul.f32 %v2915, %v2921
    %v2954 = vmul.f32 %v2915, %v2922
    %v2955 = vmul.f32 %v2915, %v2923
    %v2956 = vmul.f32 %v2915, %v2924
    %v2957 = vmul.f32 %v2915, %v2925
    %v2958 = vmul.f32 %v2915, %v2926
    %v2959 = vmul.f32 %v2915, %v2927
    %v2960 = vmul.f32 %v2915, %v2928
    %v2961 = vmul.f32 %v2915, %v2929
    %v2962 = vmul.f32 %v2915, %v2930
    %v2963 = vmul.f32 %v2915, %v2931
    %v2964 = vmul.f32 %v2915, %v2932
    %v2965 = vmul.f32 %v2915, %v2933
    %v2966 = vmul.f32 %v2915, %v2934
    %2983 = vrot.lane.b32.xlu0 %v2951, 63
    %v2984 = vpop.permute.xlu0 %2983
    %2985 = vrot.lane.b32.xlu0 %v2952, 63
    %v2986 = vpop.permute.xlu0 %2985
    %2987 = vrot.lane.b32.xlu0 %v2953, 63
    %v2988 = vpop.permute.xlu0 %2987
    %2989 = vrot.lane.b32.xlu0 %v2954, 63
    %v2990 = vpop.permute.xlu0 %2989
    %2991 = vrot.lane.b32.xlu0 %v2955, 63
    %v2992 = vpop.permute.xlu0 %2991
    %2993 = vrot.lane.b32.xlu0 %v2956, 63
    %v2994 = vpop.permute.xlu0 %2993
    %2995 = vrot.lane.b32.xlu0 %v2957, 63
    %v2996 = vpop.permute.xlu0 %2995
    %2997 = vrot.lane.b32.xlu0 %v2958, 63
    %v2998 = vpop.permute.xlu0 %2997
    %2999 = vrot.lane.b32.xlu0 %v2959, 63
    %v3000 = vpop.permute.xlu0 %2999
    %3001 = vrot.lane.b32.xlu0 %v2960, 63
    %v3002 = vpop.permute.xlu0 %3001
    %3003 = vrot.lane.b32.xlu0 %v2961, 63
    %v3004 = vpop.permute.xlu0 %3003
    %3005 = vrot.lane.b32.xlu0 %v2962, 63
    %v3006 = vpop.permute.xlu0 %3005
    %3007 = vrot.lane.b32.xlu0 %v2963, 63
    %v3008 = vpop.permute.xlu0 %3007
    %3009 = vrot.lane.b32.xlu0 %v2964, 63
    %v3010 = vpop.permute.xlu0 %3009
    %3011 = vrot.lane.b32.xlu0 %v2965, 63
    %v3012 = vpop.permute.xlu0 %3011
    %3013 = vrot.lane.b32.xlu0 %v2966, 63
    %v3014 = vpop.permute.xlu0 %3013
    %v3015 = vsel %vm2696, %v2984, %v2986
    %v3016 = vsel %vm2696, %v2986, %v2988
    %v3017 = vsel %vm2696, %v2988, %v2990
    %v3018 = vsel %vm2696, %v2990, %v2992
    %v3019 = vsel %vm2696, %v2992, %v2994
    %v3020 = vsel %vm2696, %v2994, %v2996
    %v3021 = vsel %vm2696, %v2996, %v2998
    %v3022 = vsel %vm2696, %v2998, %v3000
    %v3023 = vsel %vm2696, %v3000, %v3002
    %v3024 = vsel %vm2696, %v3002, %v3004
    %v3025 = vsel %vm2696, %v3004, %v3006
    %v3026 = vsel %vm2696, %v3006, %v3008
    %v3027 = vsel %vm2696, %v3008, %v3010
    %v3028 = vsel %vm2696, %v3010, %v3012
    %v3029 = vsel %vm2696, %v3012, %v3014
    %v3047 = vadd.f32 %v2888, %v2984
    %v3048 = vadd.f32 %v2889, %v3015
    %v3049 = vadd.f32 %v2890, %v3016
    %v3050 = vadd.f32 %v2891, %v3017
    %v3051 = vadd.f32 %v2892, %v3018
    %v3052 = vadd.f32 %v2893, %v3019
    %v3053 = vadd.f32 %v2894, %v3020
    %v3054 = vadd.f32 %v2895, %v3021
    %v3055 = vadd.f32 %v2896, %v3022
    %v3056 = vadd.f32 %v2897, %v3023
    %v3057 = vadd.f32 %v2898, %v3024
    %v3058 = vadd.f32 %v2899, %v3025
    %v3059 = vadd.f32 %v2900, %v3026
    %v3060 = vadd.f32 %v2901, %v3027
    %v3061 = vadd.f32 %v2902, %v3028
    %v3062 = vadd.f32 %v2903, %v3029
    %v3063 = vadd.f32 %v2904, %v3014
    %s3064 = scalar_lea.vmem [#allocation4], 8
    %v3065 = vld [vmem:[%s3064] ss:$8 sm:$0xf]
    %v3066 = vld [vmem:[%s3064] ss:$8 sm:$0xf0]
    %v3067 = vor.u32 %v3065, %v3066
    %s3068 = scalar_lea.vmem [#allocation4], 72
    %v3069 = vld [vmem:[%s3068] ss:$8 sm:$0xf]
    %v3070 = vld [vmem:[%s3068] ss:$8 sm:$0xf0]
    %v3071 = vor.u32 %v3069, %v3070
    %s3072 = scalar_lea.vmem [#allocation4], 136
    %v3073 = vld [vmem:[%s3072] ss:$8 sm:$0x1]
    %3074 = vset.pattern.permute.xlu0 5
    %3075 = vperm.xlu0 %3074, %v15
    %v3076 = vpop.permute.xlu0 %3075
    %v3081 = vperm.slane %v3067, 0
    %v3082 = vperm.slane %v3067, 1
    %v3083 = vperm.slane %v3067, 2
    %v3084 = vperm.slane %v3067, 3
    %v3085 = vperm.slane %v3067, 4
    %v3086 = vperm.slane %v3067, 5
    %v3087 = vperm.slane %v3067, 6
    %v3088 = vperm.slane %v3067, 7
    %v3089 = vperm.slane %v3071, 0
    %v3090 = vperm.slane %v3071, 1
    %v3091 = vperm.slane %v3071, 2
    %v3092 = vperm.slane %v3071, 3
    %v3093 = vperm.slane %v3071, 4
    %v3094 = vperm.slane %v3071, 5
    %v3095 = vperm.slane %v3071, 6
    %v3096 = vperm.slane %v3071, 7
    %v3097 = vperm.slane %v3073, 0
    %v3115 = vmul.f32 %v3076, %v3081
    %v3116 = vmul.f32 %v3076, %v3082
    %v3117 = vmul.f32 %v3076, %v3083
    %v3118 = vmul.f32 %v3076, %v3084
    %v3119 = vmul.f32 %v3076, %v3085
    %v3120 = vmul.f32 %v3076, %v3086
    %v3121 = vmul.f32 %v3076, %v3087
    %v3122 = vmul.f32 %v3076, %v3088
    %v3123 = vmul.f32 %v3076, %v3089
    %v3124 = vmul.f32 %v3076, %v3090
    %v3125 = vmul.f32 %v3076, %v3091
    %v3126 = vmul.f32 %v3076, %v3092
    %v3127 = vmul.f32 %v3076, %v3093
    %v3128 = vmul.f32 %v3076, %v3094
    %v3129 = vmul.f32 %v3076, %v3095
    %v3130 = vmul.f32 %v3076, %v3096
    %v3131 = vmul.f32 %v3076, %v3097
    %3149 = vrot.lane.b32.xlu0 %v3115, 62
    %v3150 = vpop.permute.xlu0 %3149
    %3151 = vrot.lane.b32.xlu0 %v3116, 62
    %v3152 = vpop.permute.xlu0 %3151
    %3153 = vrot.lane.b32.xlu0 %v3117, 62
    %v3154 = vpop.permute.xlu0 %3153
    %3155 = vrot.lane.b32.xlu0 %v3118, 62
    %v3156 = vpop.permute.xlu0 %3155
    %3157 = vrot.lane.b32.xlu0 %v3119, 62
    %v3158 = vpop.permute.xlu0 %3157
    %3159 = vrot.lane.b32.xlu0 %v3120, 62
    %v3160 = vpop.permute.xlu0 %3159
    %3161 = vrot.lane.b32.xlu0 %v3121, 62
    %v3162 = vpop.permute.xlu0 %3161
    %3163 = vrot.lane.b32.xlu0 %v3122, 62
    %v3164 = vpop.permute.xlu0 %3163
    %3165 = vrot.lane.b32.xlu0 %v3123, 62
    %v3166 = vpop.permute.xlu0 %3165
    %3167 = vrot.lane.b32.xlu0 %v3124, 62
    %v3168 = vpop.permute.xlu0 %3167
    %3169 = vrot.lane.b32.xlu0 %v3125, 62
    %v3170 = vpop.permute.xlu0 %3169
    %3171 = vrot.lane.b32.xlu0 %v3126, 62
    %v3172 = vpop.permute.xlu0 %3171
    %3173 = vrot.lane.b32.xlu0 %v3127, 62
    %v3174 = vpop.permute.xlu0 %3173
    %3175 = vrot.lane.b32.xlu0 %v3128, 62
    %v3176 = vpop.permute.xlu0 %3175
    %3177 = vrot.lane.b32.xlu0 %v3129, 62
    %v3178 = vpop.permute.xlu0 %3177
    %3179 = vrot.lane.b32.xlu0 %v3130, 62
    %v3180 = vpop.permute.xlu0 %3179
    %3181 = vrot.lane.b32.xlu0 %v3131, 62
    %v3182 = vpop.permute.xlu0 %3181
    %vm3183 = vcmask 506880
    %v3184 = vsel %vm3183, %v3150, %v3152
    %v3185 = vsel %vm3183, %v3152, %v3154
    %v3186 = vsel %vm3183, %v3154, %v3156
    %v3187 = vsel %vm3183, %v3156, %v3158
    %v3188 = vsel %vm3183, %v3158, %v3160
    %v3189 = vsel %vm3183, %v3160, %v3162
    %v3190 = vsel %vm3183, %v3162, %v3164
    %v3191 = vsel %vm3183, %v3164, %v3166
    %v3192 = vsel %vm3183, %v3166, %v3168
    %v3193 = vsel %vm3183, %v3168, %v3170
    %v3194 = vsel %vm3183, %v3170, %v3172
    %v3195 = vsel %vm3183, %v3172, %v3174
    %v3196 = vsel %vm3183, %v3174, %v3176
    %v3197 = vsel %vm3183, %v3176, %v3178
    %v3198 = vsel %vm3183, %v3178, %v3180
    %v3199 = vsel %vm3183, %v3180, %v3182
    %v3217 = vadd.f32 %v3047, %v3150
    %v3218 = vadd.f32 %v3048, %v3184
    %v3219 = vadd.f32 %v3049, %v3185
    %v3220 = vadd.f32 %v3050, %v3186
    %v3221 = vadd.f32 %v3051, %v3187
    %v3222 = vadd.f32 %v3052, %v3188
    %v3223 = vadd.f32 %v3053, %v3189
    %v3224 = vadd.f32 %v3054, %v3190
    %v3225 = vadd.f32 %v3055, %v3191
    %v3226 = vadd.f32 %v3056, %v3192
    %v3227 = vadd.f32 %v3057, %v3193
    %v3228 = vadd.f32 %v3058, %v3194
    %v3229 = vadd.f32 %v3059, %v3195
    %v3230 = vadd.f32 %v3060, %v3196
    %v3231 = vadd.f32 %v3061, %v3197
    %v3232 = vadd.f32 %v3062, %v3198
    %v3233 = vadd.f32 %v3063, %v3199
    %s3234 = scalar_lea.vmem [#allocation4], 9
    %v3235 = vld [vmem:[%s3234] ss:$8 sm:$0xf]
    %v3236 = vld [vmem:[%s3234] ss:$8 sm:$0xf0]
    %v3237 = vor.u32 %v3235, %v3236
    %s3238 = scalar_lea.vmem [#allocation4], 73
    %v3239 = vld [vmem:[%s3238] ss:$8 sm:$0xf]
    %v3240 = vld [vmem:[%s3238] ss:$8 sm:$0xf0]
    %v3241 = vor.u32 %v3239, %v3240
    %s3242 = scalar_lea.vmem [#allocation4], 137
    %v3243 = vld [vmem:[%s3242] ss:$8 sm:$0x1]
    %3244 = vset.pattern.permute.xlu0 14
    %3245 = vperm.xlu0 %3244, %v15
    %v3246 = vpop.permute.xlu0 %3245
    %v3251 = vperm.slane %v3237, 0
    %v3252 = vperm.slane %v3237, 1
    %v3253 = vperm.slane %v3237, 2
    %v3254 = vperm.slane %v3237, 3
    %v3255 = vperm.slane %v3237, 4
    %v3256 = vperm.slane %v3237, 5
    %v3257 = vperm.slane %v3237, 6
    %v3258 = vperm.slane %v3237, 7
    %v3259 = vperm.slane %v3241, 0
    %v3260 = vperm.slane %v3241, 1
    %v3261 = vperm.slane %v3241, 2
    %v3262 = vperm.slane %v3241, 3
    %v3263 = vperm.slane %v3241, 4
    %v3264 = vperm.slane %v3241, 5
    %v3265 = vperm.slane %v3241, 6
    %v3266 = vperm.slane %v3241, 7
    %v3267 = vperm.slane %v3243, 0
    %v3285 = vmul.f32 %v3246, %v3251
    %v3286 = vmul.f32 %v3246, %v3252
    %v3287 = vmul.f32 %v3246, %v3253
    %v3288 = vmul.f32 %v3246, %v3254
    %v3289 = vmul.f32 %v3246, %v3255
    %v3290 = vmul.f32 %v3246, %v3256
    %v3291 = vmul.f32 %v3246, %v3257
    %v3292 = vmul.f32 %v3246, %v3258
    %v3293 = vmul.f32 %v3246, %v3259
    %v3294 = vmul.f32 %v3246, %v3260
    %v3295 = vmul.f32 %v3246, %v3261
    %v3296 = vmul.f32 %v3246, %v3262
    %v3297 = vmul.f32 %v3246, %v3263
    %v3298 = vmul.f32 %v3246, %v3264
    %v3299 = vmul.f32 %v3246, %v3265
    %v3300 = vmul.f32 %v3246, %v3266
    %v3301 = vmul.f32 %v3246, %v3267
    %3319 = vrot.lane.b32.xlu0 %v3285, 62
    %v3320 = vpop.permute.xlu0 %3319
    %3321 = vrot.lane.b32.xlu0 %v3286, 62
    %v3322 = vpop.permute.xlu0 %3321
    %3323 = vrot.lane.b32.xlu0 %v3287, 62
    %v3324 = vpop.permute.xlu0 %3323
    %3325 = vrot.lane.b32.xlu0 %v3288, 62
    %v3326 = vpop.permute.xlu0 %3325
    %3327 = vrot.lane.b32.xlu0 %v3289, 62
    %v3328 = vpop.permute.xlu0 %3327
    %3329 = vrot.lane.b32.xlu0 %v3290, 62
    %v3330 = vpop.permute.xlu0 %3329
    %3331 = vrot.lane.b32.xlu0 %v3291, 62
    %v3332 = vpop.permute.xlu0 %3331
    %3333 = vrot.lane.b32.xlu0 %v3292, 62
    %v3334 = vpop.permute.xlu0 %3333
    %3335 = vrot.lane.b32.xlu0 %v3293, 62
    %v3336 = vpop.permute.xlu0 %3335
    %3337 = vrot.lane.b32.xlu0 %v3294, 62
    %v3338 = vpop.permute.xlu0 %3337
    %3339 = vrot.lane.b32.xlu0 %v3295, 62
    %v3340 = vpop.permute.xlu0 %3339
    %3341 = vrot.lane.b32.xlu0 %v3296, 62
    %v3342 = vpop.permute.xlu0 %3341
    %3343 = vrot.lane.b32.xlu0 %v3297, 62
    %v3344 = vpop.permute.xlu0 %3343
    %3345 = vrot.lane.b32.xlu0 %v3298, 62
    %v3346 = vpop.permute.xlu0 %3345
    %3347 = vrot.lane.b32.xlu0 %v3299, 62
    %v3348 = vpop.permute.xlu0 %3347
    %3349 = vrot.lane.b32.xlu0 %v3300, 62
    %v3350 = vpop.permute.xlu0 %3349
    %3351 = vrot.lane.b32.xlu0 %v3301, 62
    %v3352 = vpop.permute.xlu0 %3351
    %v3353 = vsel %vm3183, %v3320, %v3322
    %v3354 = vsel %vm3183, %v3322, %v3324
    %v3355 = vsel %vm3183, %v3324, %v3326
    %v3356 = vsel %vm3183, %v3326, %v3328
    %v3357 = vsel %vm3183, %v3328, %v3330
    %v3358 = vsel %vm3183, %v3330, %v3332
    %v3359 = vsel %vm3183, %v3332, %v3334
    %v3360 = vsel %vm3183, %v3334, %v3336
    %v3361 = vsel %vm3183, %v3336, %v3338
    %v3362 = vsel %vm3183, %v3338, %v3340
    %v3363 = vsel %vm3183, %v3340, %v3342
    %v3364 = vsel %vm3183, %v3342, %v3344
    %v3365 = vsel %vm3183, %v3344, %v3346
    %v3366 = vsel %vm3183, %v3346, %v3348
    %v3367 = vsel %vm3183, %v3348, %v3350
    %v3368 = vsel %vm3183, %v3350, %v3352
    %v3386 = vadd.f32 %v3217, %v3320
    %v3387 = vadd.f32 %v3218, %v3353
    %v3388 = vadd.f32 %v3219, %v3354
    %v3389 = vadd.f32 %v3220, %v3355
    %v3390 = vadd.f32 %v3221, %v3356
    %v3391 = vadd.f32 %v3222, %v3357
    %v3392 = vadd.f32 %v3223, %v3358
    %v3393 = vadd.f32 %v3224, %v3359
    %v3394 = vadd.f32 %v3225, %v3360
    %v3395 = vadd.f32 %v3226, %v3361
    %v3396 = vadd.f32 %v3227, %v3362
    %v3397 = vadd.f32 %v3228, %v3363
    %v3398 = vadd.f32 %v3229, %v3364
    %v3399 = vadd.f32 %v3230, %v3365
    %v3400 = vadd.f32 %v3231, %v3366
    %v3401 = vadd.f32 %v3232, %v3367
    %v3402 = vadd.f32 %v3233, %v3368
    %s3403 = scalar_lea.vmem [#allocation4], 10
    %v3404 = vld [vmem:[%s3403] ss:$8 sm:$0xf]
    %v3405 = vld [vmem:[%s3403] ss:$8 sm:$0xf0]
    %v3406 = vor.u32 %v3404, %v3405
    %s3407 = scalar_lea.vmem [#allocation4], 74
    %v3408 = vld [vmem:[%s3407] ss:$8 sm:$0xf]
    %v3409 = vld [vmem:[%s3407] ss:$8 sm:$0xf0]
    %v3410 = vor.u32 %v3408, %v3409
    %s3411 = scalar_lea.vmem [#allocation4], 138
    %v3412 = vld [vmem:[%s3411] ss:$8 sm:$0x1]
    %3413 = vset.pattern.permute.xlu0 23
    %3414 = vperm.xlu0 %3413, %v15
    %v3415 = vpop.permute.xlu0 %3414
    %v3420 = vperm.slane %v3406, 0
    %v3421 = vperm.slane %v3406, 1
    %v3422 = vperm.slane %v3406, 2
    %v3423 = vperm.slane %v3406, 3
    %v3424 = vperm.slane %v3406, 4
    %v3425 = vperm.slane %v3406, 5
    %v3426 = vperm.slane %v3406, 6
    %v3427 = vperm.slane %v3406, 7
    %v3428 = vperm.slane %v3410, 0
    %v3429 = vperm.slane %v3410, 1
    %v3430 = vperm.slane %v3410, 2
    %v3431 = vperm.slane %v3410, 3
    %v3432 = vperm.slane %v3410, 4
    %v3433 = vperm.slane %v3410, 5
    %v3434 = vperm.slane %v3410, 6
    %v3435 = vperm.slane %v3410, 7
    %v3436 = vperm.slane %v3412, 0
    %v3454 = vmul.f32 %v3415, %v3420
    %v3455 = vmul.f32 %v3415, %v3421
    %v3456 = vmul.f32 %v3415, %v3422
    %v3457 = vmul.f32 %v3415, %v3423
    %v3458 = vmul.f32 %v3415, %v3424
    %v3459 = vmul.f32 %v3415, %v3425
    %v3460 = vmul.f32 %v3415, %v3426
    %v3461 = vmul.f32 %v3415, %v3427
    %v3462 = vmul.f32 %v3415, %v3428
    %v3463 = vmul.f32 %v3415, %v3429
    %v3464 = vmul.f32 %v3415, %v3430
    %v3465 = vmul.f32 %v3415, %v3431
    %v3466 = vmul.f32 %v3415, %v3432
    %v3467 = vmul.f32 %v3415, %v3433
    %v3468 = vmul.f32 %v3415, %v3434
    %v3469 = vmul.f32 %v3415, %v3435
    %v3470 = vmul.f32 %v3415, %v3436
    %3488 = vrot.lane.b32.xlu0 %v3454, 62
    %v3489 = vpop.permute.xlu0 %3488
    %3490 = vrot.lane.b32.xlu0 %v3455, 62
    %v3491 = vpop.permute.xlu0 %3490
    %3492 = vrot.lane.b32.xlu0 %v3456, 62
    %v3493 = vpop.permute.xlu0 %3492
    %3494 = vrot.lane.b32.xlu0 %v3457, 62
    %v3495 = vpop.permute.xlu0 %3494
    %3496 = vrot.lane.b32.xlu0 %v3458, 62
    %v3497 = vpop.permute.xlu0 %3496
    %3498 = vrot.lane.b32.xlu0 %v3459, 62
    %v3499 = vpop.permute.xlu0 %3498
    %3500 = vrot.lane.b32.xlu0 %v3460, 62
    %v3501 = vpop.permute.xlu0 %3500
    %3502 = vrot.lane.b32.xlu0 %v3461, 62
    %v3503 = vpop.permute.xlu0 %3502
    %3504 = vrot.lane.b32.xlu0 %v3462, 62
    %v3505 = vpop.permute.xlu0 %3504
    %3506 = vrot.lane.b32.xlu0 %v3463, 62
    %v3507 = vpop.permute.xlu0 %3506
    %3508 = vrot.lane.b32.xlu0 %v3464, 62
    %v3509 = vpop.permute.xlu0 %3508
    %3510 = vrot.lane.b32.xlu0 %v3465, 62
    %v3511 = vpop.permute.xlu0 %3510
    %3512 = vrot.lane.b32.xlu0 %v3466, 62
    %v3513 = vpop.permute.xlu0 %3512
    %3514 = vrot.lane.b32.xlu0 %v3467, 62
    %v3515 = vpop.permute.xlu0 %3514
    %3516 = vrot.lane.b32.xlu0 %v3468, 62
    %v3517 = vpop.permute.xlu0 %3516
    %3518 = vrot.lane.b32.xlu0 %v3469, 62
    %v3519 = vpop.permute.xlu0 %3518
    %3520 = vrot.lane.b32.xlu0 %v3470, 62
    %v3521 = vpop.permute.xlu0 %3520
    %v3522 = vsel %vm3183, %v3489, %v3491
    %v3523 = vsel %vm3183, %v3491, %v3493
    %v3524 = vsel %vm3183, %v3493, %v3495
    %v3525 = vsel %vm3183, %v3495, %v3497
    %v3526 = vsel %vm3183, %v3497, %v3499
    %v3527 = vsel %vm3183, %v3499, %v3501
    %v3528 = vsel %vm3183, %v3501, %v3503
    %v3529 = vsel %vm3183, %v3503, %v3505
    %v3530 = vsel %vm3183, %v3505, %v3507
    %v3531 = vsel %vm3183, %v3507, %v3509
    %v3532 = vsel %vm3183, %v3509, %v3511
    %v3533 = vsel %vm3183, %v3511, %v3513
    %v3534 = vsel %vm3183, %v3513, %v3515
    %v3535 = vsel %vm3183, %v3515, %v3517
    %v3536 = vsel %vm3183, %v3517, %v3519
    %v3537 = vsel %vm3183, %v3519, %v3521
    %v3555 = vadd.f32 %v3386, %v3489
    %v3556 = vadd.f32 %v3387, %v3522
    %v3557 = vadd.f32 %v3388, %v3523
    %v3558 = vadd.f32 %v3389, %v3524
    %v3559 = vadd.f32 %v3390, %v3525
    %v3560 = vadd.f32 %v3391, %v3526
    %v3561 = vadd.f32 %v3392, %v3527
    %v3562 = vadd.f32 %v3393, %v3528
    %v3563 = vadd.f32 %v3394, %v3529
    %v3564 = vadd.f32 %v3395, %v3530
    %v3565 = vadd.f32 %v3396, %v3531
    %v3566 = vadd.f32 %v3397, %v3532
    %v3567 = vadd.f32 %v3398, %v3533
    %v3568 = vadd.f32 %v3399, %v3534
    %v3569 = vadd.f32 %v3400, %v3535
    %v3570 = vadd.f32 %v3401, %v3536
    %v3571 = vadd.f32 %v3402, %v3537
    %s3572 = scalar_lea.vmem [#allocation3], 8
    %v3573 = vld [vmem:[%s3572] ss:$8 sm:$0xf]
    %v3574 = vld [vmem:[%s3572] ss:$8 sm:$0xf0]
    %v3575 = vor.u32 %v3573, %v3574
    %s3576 = scalar_lea.vmem [#allocation3], 72
    %v3577 = vld [vmem:[%s3576] ss:$8 sm:$0xf]
    %v3578 = vld [vmem:[%s3576] ss:$8 sm:$0xf0]
    %v3579 = vor.u32 %v3577, %v3578
    %s3580 = scalar_lea.vmem [#allocation3], 136
    %v3581 = vld [vmem:[%s3580] ss:$8 sm:$0x1]
    %3582 = vset.pattern.permute.xlu0 6
    %3583 = vperm.xlu0 %3582, %v15
    %v3584 = vpop.permute.xlu0 %3583
    %v3589 = vperm.slane %v3575, 0
    %v3590 = vperm.slane %v3575, 1
    %v3591 = vperm.slane %v3575, 2
    %v3592 = vperm.slane %v3575, 3
    %v3593 = vperm.slane %v3575, 4
    %v3594 = vperm.slane %v3575, 5
    %v3595 = vperm.slane %v3575, 6
    %v3596 = vperm.slane %v3575, 7
    %v3597 = vperm.slane %v3579, 0
    %v3598 = vperm.slane %v3579, 1
    %v3599 = vperm.slane %v3579, 2
    %v3600 = vperm.slane %v3579, 3
    %v3601 = vperm.slane %v3579, 4
    %v3602 = vperm.slane %v3579, 5
    %v3603 = vperm.slane %v3579, 6
    %v3604 = vperm.slane %v3579, 7
    %v3605 = vperm.slane %v3581, 0
    %v3623 = vmul.f32 %v3584, %v3589
    %v3624 = vmul.f32 %v3584, %v3590
    %v3625 = vmul.f32 %v3584, %v3591
    %v3626 = vmul.f32 %v3584, %v3592
    %v3627 = vmul.f32 %v3584, %v3593
    %v3628 = vmul.f32 %v3584, %v3594
    %v3629 = vmul.f32 %v3584, %v3595
    %v3630 = vmul.f32 %v3584, %v3596
    %v3631 = vmul.f32 %v3584, %v3597
    %v3632 = vmul.f32 %v3584, %v3598
    %v3633 = vmul.f32 %v3584, %v3599
    %v3634 = vmul.f32 %v3584, %v3600
    %v3635 = vmul.f32 %v3584, %v3601
    %v3636 = vmul.f32 %v3584, %v3602
    %v3637 = vmul.f32 %v3584, %v3603
    %v3638 = vmul.f32 %v3584, %v3604
    %v3639 = vmul.f32 %v3584, %v3605
    %v3640 = vadd.f32 %v3555, %v3623
    %v3641 = vadd.f32 %v3556, %v3624
    %v3642 = vadd.f32 %v3557, %v3625
    %v3643 = vadd.f32 %v3558, %v3626
    %v3644 = vadd.f32 %v3559, %v3627
    %v3645 = vadd.f32 %v3560, %v3628
    %v3646 = vadd.f32 %v3561, %v3629
    %v3647 = vadd.f32 %v3562, %v3630
    %v3648 = vadd.f32 %v3563, %v3631
    %v3649 = vadd.f32 %v3564, %v3632
    %v3650 = vadd.f32 %v3565, %v3633
    %v3651 = vadd.f32 %v3566, %v3634
    %v3652 = vadd.f32 %v3567, %v3635
    %v3653 = vadd.f32 %v3568, %v3636
    %v3654 = vadd.f32 %v3569, %v3637
    %v3655 = vadd.f32 %v3570, %v3638
    %v3656 = vadd.f32 %v3571, %v3639
    %s3657 = scalar_lea.vmem [#allocation3], 9
    %v3658 = vld [vmem:[%s3657] ss:$8 sm:$0xf]
    %v3659 = vld [vmem:[%s3657] ss:$8 sm:$0xf0]
    %v3660 = vor.u32 %v3658, %v3659
    %s3661 = scalar_lea.vmem [#allocation3], 73
    %v3662 = vld [vmem:[%s3661] ss:$8 sm:$0xf]
    %v3663 = vld [vmem:[%s3661] ss:$8 sm:$0xf0]
    %v3664 = vor.u32 %v3662, %v3663
    %s3665 = scalar_lea.vmem [#allocation3], 137
    %v3666 = vld [vmem:[%s3665] ss:$8 sm:$0x1]
    %3667 = vset.pattern.permute.xlu0 15
    %3668 = vperm.xlu0 %3667, %v15
    %v3669 = vpop.permute.xlu0 %3668
    %v3674 = vperm.slane %v3660, 0
    %v3675 = vperm.slane %v3660, 1
    %v3676 = vperm.slane %v3660, 2
    %v3677 = vperm.slane %v3660, 3
    %v3678 = vperm.slane %v3660, 4
    %v3679 = vperm.slane %v3660, 5
    %v3680 = vperm.slane %v3660, 6
    %v3681 = vperm.slane %v3660, 7
    %v3682 = vperm.slane %v3664, 0
    %v3683 = vperm.slane %v3664, 1
    %v3684 = vperm.slane %v3664, 2
    %v3685 = vperm.slane %v3664, 3
    %v3686 = vperm.slane %v3664, 4
    %v3687 = vperm.slane %v3664, 5
    %v3688 = vperm.slane %v3664, 6
    %v3689 = vperm.slane %v3664, 7
    %v3690 = vperm.slane %v3666, 0
    %v3708 = vmul.f32 %v3669, %v3674
    %v3709 = vmul.f32 %v3669, %v3675
    %v3710 = vmul.f32 %v3669, %v3676
    %v3711 = vmul.f32 %v3669, %v3677
    %v3712 = vmul.f32 %v3669, %v3678
    %v3713 = vmul.f32 %v3669, %v3679
    %v3714 = vmul.f32 %v3669, %v3680
    %v3715 = vmul.f32 %v3669, %v3681
    %v3716 = vmul.f32 %v3669, %v3682
    %v3717 = vmul.f32 %v3669, %v3683
    %v3718 = vmul.f32 %v3669, %v3684
    %v3719 = vmul.f32 %v3669, %v3685
    %v3720 = vmul.f32 %v3669, %v3686
    %v3721 = vmul.f32 %v3669, %v3687
    %v3722 = vmul.f32 %v3669, %v3688
    %v3723 = vmul.f32 %v3669, %v3689
    %v3724 = vmul.f32 %v3669, %v3690
    %v3725 = vadd.f32 %v3640, %v3708
    %v3726 = vadd.f32 %v3641, %v3709
    %v3727 = vadd.f32 %v3642, %v3710
    %v3728 = vadd.f32 %v3643, %v3711
    %v3729 = vadd.f32 %v3644, %v3712
    %v3730 = vadd.f32 %v3645, %v3713
    %v3731 = vadd.f32 %v3646, %v3714
    %v3732 = vadd.f32 %v3647, %v3715
    %v3733 = vadd.f32 %v3648, %v3716
    %v3734 = vadd.f32 %v3649, %v3717
    %v3735 = vadd.f32 %v3650, %v3718
    %v3736 = vadd.f32 %v3651, %v3719
    %v3737 = vadd.f32 %v3652, %v3720
    %v3738 = vadd.f32 %v3653, %v3721
    %v3739 = vadd.f32 %v3654, %v3722
    %v3740 = vadd.f32 %v3655, %v3723
    %v3741 = vadd.f32 %v3656, %v3724
    %s3742 = scalar_lea.vmem [#allocation3], 10
    %v3743 = vld [vmem:[%s3742] ss:$8 sm:$0xf]
    %v3744 = vld [vmem:[%s3742] ss:$8 sm:$0xf0]
    %v3745 = vor.u32 %v3743, %v3744
    %s3746 = scalar_lea.vmem [#allocation3], 74
    %v3747 = vld [vmem:[%s3746] ss:$8 sm:$0xf]
    %v3748 = vld [vmem:[%s3746] ss:$8 sm:$0xf0]
    %v3749 = vor.u32 %v3747, %v3748
    %s3750 = scalar_lea.vmem [#allocation3], 138
    %v3751 = vld [vmem:[%s3750] ss:$8 sm:$0x1]
    %3752 = vset.pattern.permute.xlu0 24
    %3753 = vperm.xlu0 %3752, %v15
    %v3754 = vpop.permute.xlu0 %3753
    %v3759 = vperm.slane %v3745, 0
    %v3760 = vperm.slane %v3745, 1
    %v3761 = vperm.slane %v3745, 2
    %v3762 = vperm.slane %v3745, 3
    %v3763 = vperm.slane %v3745, 4
    %v3764 = vperm.slane %v3745, 5
    %v3765 = vperm.slane %v3745, 6
    %v3766 = vperm.slane %v3745, 7
    %v3767 = vperm.slane %v3749, 0
    %v3768 = vperm.slane %v3749, 1
    %v3769 = vperm.slane %v3749, 2
    %v3770 = vperm.slane %v3749, 3
    %v3771 = vperm.slane %v3749, 4
    %v3772 = vperm.slane %v3749, 5
    %v3773 = vperm.slane %v3749, 6
    %v3774 = vperm.slane %v3749, 7
    %v3775 = vperm.slane %v3751, 0
    %v3793 = vmul.f32 %v3754, %v3759
    %v3794 = vmul.f32 %v3754, %v3760
    %v3795 = vmul.f32 %v3754, %v3761
    %v3796 = vmul.f32 %v3754, %v3762
    %v3797 = vmul.f32 %v3754, %v3763
    %v3798 = vmul.f32 %v3754, %v3764
    %v3799 = vmul.f32 %v3754, %v3765
    %v3800 = vmul.f32 %v3754, %v3766
    %v3801 = vmul.f32 %v3754, %v3767
    %v3802 = vmul.f32 %v3754, %v3768
    %v3803 = vmul.f32 %v3754, %v3769
    %v3804 = vmul.f32 %v3754, %v3770
    %v3805 = vmul.f32 %v3754, %v3771
    %v3806 = vmul.f32 %v3754, %v3772
    %v3807 = vmul.f32 %v3754, %v3773
    %v3808 = vmul.f32 %v3754, %v3774
    %v3809 = vmul.f32 %v3754, %v3775
    %v3810 = vadd.f32 %v3725, %v3793
    %v3811 = vadd.f32 %v3726, %v3794
    %v3812 = vadd.f32 %v3727, %v3795
    %v3813 = vadd.f32 %v3728, %v3796
    %v3814 = vadd.f32 %v3729, %v3797
    %v3815 = vadd.f32 %v3730, %v3798
    %v3816 = vadd.f32 %v3731, %v3799
    %v3817 = vadd.f32 %v3732, %v3800
    %v3818 = vadd.f32 %v3733, %v3801
    %v3819 = vadd.f32 %v3734, %v3802
    %v3820 = vadd.f32 %v3735, %v3803
    %v3821 = vadd.f32 %v3736, %v3804
    %v3822 = vadd.f32 %v3737, %v3805
    %v3823 = vadd.f32 %v3738, %v3806
    %v3824 = vadd.f32 %v3739, %v3807
    %v3825 = vadd.f32 %v3740, %v3808
    %v3826 = vadd.f32 %v3741, %v3809
    %v3827 = vld [vmem:[%s2586] ss:$8 sm:$0xf]
    %v3828 = vld [vmem:[%s2586] ss:$8 sm:$0xf0]
    %v3829 = vor.u32 %v3827, %v3828
    %v3830 = vld [vmem:[%s2590] ss:$8 sm:$0xf]
    %v3831 = vld [vmem:[%s2590] ss:$8 sm:$0xf0]
    %v3832 = vor.u32 %v3830, %v3831
    %s3833 = scalar_lea.vmem [#allocation2], 136
    %v3834 = vld [vmem:[%s3833] ss:$8 sm:$0x1]
    %3835 = vset.pattern.permute.xlu0 7
    %3836 = vperm.xlu0 %3835, %v15
    %v3837 = vpop.permute.xlu0 %3836
    %v3842 = vperm.slane %v3829, 0
    %v3843 = vperm.slane %v3829, 1
    %v3844 = vperm.slane %v3829, 2
    %v3845 = vperm.slane %v3829, 3
    %v3846 = vperm.slane %v3829, 4
    %v3847 = vperm.slane %v3829, 5
    %v3848 = vperm.slane %v3829, 6
    %v3849 = vperm.slane %v3829, 7
    %v3850 = vperm.slane %v3832, 0
    %v3851 = vperm.slane %v3832, 1
    %v3852 = vperm.slane %v3832, 2
    %v3853 = vperm.slane %v3832, 3
    %v3854 = vperm.slane %v3832, 4
    %v3855 = vperm.slane %v3832, 5
    %v3856 = vperm.slane %v3832, 6
    %v3857 = vperm.slane %v3832, 7
    %v3858 = vperm.slane %v3834, 0
    %v3876 = vmul.f32 %v3837, %v3842
    %v3877 = vmul.f32 %v3837, %v3843
    %v3878 = vmul.f32 %v3837, %v3844
    %v3879 = vmul.f32 %v3837, %v3845
    %v3880 = vmul.f32 %v3837, %v3846
    %v3881 = vmul.f32 %v3837, %v3847
    %v3882 = vmul.f32 %v3837, %v3848
    %v3883 = vmul.f32 %v3837, %v3849
    %v3884 = vmul.f32 %v3837, %v3850
    %v3885 = vmul.f32 %v3837, %v3851
    %v3886 = vmul.f32 %v3837, %v3852
    %v3887 = vmul.f32 %v3837, %v3853
    %v3888 = vmul.f32 %v3837, %v3854
    %v3889 = vmul.f32 %v3837, %v3855
    %v3890 = vmul.f32 %v3837, %v3856
    %v3891 = vmul.f32 %v3837, %v3857
    %v3892 = vmul.f32 %v3837, %v3858
    %3910 = vrot.lane.b32.xlu0 %v3876, 127
    %v3911 = vpop.permute.xlu0 %3910
    %3912 = vrot.lane.b32.xlu0 %v3877, 127
    %v3913 = vpop.permute.xlu0 %3912
    %3914 = vrot.lane.b32.xlu0 %v3878, 127
    %v3915 = vpop.permute.xlu0 %3914
    %3916 = vrot.lane.b32.xlu0 %v3879, 127
    %v3917 = vpop.permute.xlu0 %3916
    %3918 = vrot.lane.b32.xlu0 %v3880, 127
    %v3919 = vpop.permute.xlu0 %3918
    %3920 = vrot.lane.b32.xlu0 %v3881, 127
    %v3921 = vpop.permute.xlu0 %3920
    %3922 = vrot.lane.b32.xlu0 %v3882, 127
    %v3923 = vpop.permute.xlu0 %3922
    %3924 = vrot.lane.b32.xlu0 %v3883, 127
    %v3925 = vpop.permute.xlu0 %3924
    %3926 = vrot.lane.b32.xlu0 %v3884, 127
    %v3927 = vpop.permute.xlu0 %3926
    %3928 = vrot.lane.b32.xlu0 %v3885, 127
    %v3929 = vpop.permute.xlu0 %3928
    %3930 = vrot.lane.b32.xlu0 %v3886, 127
    %v3931 = vpop.permute.xlu0 %3930
    %3932 = vrot.lane.b32.xlu0 %v3887, 127
    %v3933 = vpop.permute.xlu0 %3932
    %3934 = vrot.lane.b32.xlu0 %v3888, 127
    %v3935 = vpop.permute.xlu0 %3934
    %3936 = vrot.lane.b32.xlu0 %v3889, 127
    %v3937 = vpop.permute.xlu0 %3936
    %3938 = vrot.lane.b32.xlu0 %v3890, 127
    %v3939 = vpop.permute.xlu0 %3938
    %3940 = vrot.lane.b32.xlu0 %v3891, 127
    %v3941 = vpop.permute.xlu0 %3940
    %3942 = vrot.lane.b32.xlu0 %v3892, 127
    %v3943 = vpop.permute.xlu0 %3942
    %v3944 = vsel %vm1323, %v3911, %v3913
    %v3945 = vsel %vm1323, %v3913, %v3915
    %v3946 = vsel %vm1323, %v3915, %v3917
    %v3947 = vsel %vm1323, %v3917, %v3919
    %v3948 = vsel %vm1323, %v3919, %v3921
    %v3949 = vsel %vm1323, %v3921, %v3923
    %v3950 = vsel %vm1323, %v3923, %v3925
    %v3951 = vsel %vm1323, %v3925, %v3927
    %v3952 = vsel %vm1323, %v3927, %v3929
    %v3953 = vsel %vm1323, %v3929, %v3931
    %v3954 = vsel %vm1323, %v3931, %v3933
    %v3955 = vsel %vm1323, %v3933, %v3935
    %v3956 = vsel %vm1323, %v3935, %v3937
    %v3957 = vsel %vm1323, %v3937, %v3939
    %v3958 = vsel %vm1323, %v3939, %v3941
    %v3959 = vsel %vm1323, %v3941, %v3943
    %v3977 = vadd.f32 %v3810, %v3944
    %v3978 = vadd.f32 %v3811, %v3945
    %v3979 = vadd.f32 %v3812, %v3946
    %v3980 = vadd.f32 %v3813, %v3947
    %v3981 = vadd.f32 %v3814, %v3948
    %v3982 = vadd.f32 %v3815, %v3949
    %v3983 = vadd.f32 %v3816, %v3950
    %v3984 = vadd.f32 %v3817, %v3951
    %v3985 = vadd.f32 %v3818, %v3952
    %v3986 = vadd.f32 %v3819, %v3953
    %v3987 = vadd.f32 %v3820, %v3954
    %v3988 = vadd.f32 %v3821, %v3955
    %v3989 = vadd.f32 %v3822, %v3956
    %v3990 = vadd.f32 %v3823, %v3957
    %v3991 = vadd.f32 %v3824, %v3958
    %v3992 = vadd.f32 %v3825, %v3959
    %v3993 = vadd.f32 %v3826, %v3943
    %v3994 = vld [vmem:[%s2746] ss:$8 sm:$0xf]
    %v3995 = vld [vmem:[%s2746] ss:$8 sm:$0xf0]
    %v3996 = vor.u32 %v3994, %v3995
    %v3997 = vld [vmem:[%s2750] ss:$8 sm:$0xf]
    %v3998 = vld [vmem:[%s2750] ss:$8 sm:$0xf0]
    %v3999 = vor.u32 %v3997, %v3998
    %s4000 = scalar_lea.vmem [#allocation2], 137
    %v4001 = vld [vmem:[%s4000] ss:$8 sm:$0x1]
    %4002 = vset.pattern.permute.xlu0 16
    %4003 = vperm.xlu0 %4002, %v15
    %v4004 = vpop.permute.xlu0 %4003
    %v4009 = vperm.slane %v3996, 0
    %v4010 = vperm.slane %v3996, 1
    %v4011 = vperm.slane %v3996, 2
    %v4012 = vperm.slane %v3996, 3
    %v4013 = vperm.slane %v3996, 4
    %v4014 = vperm.slane %v3996, 5
    %v4015 = vperm.slane %v3996, 6
    %v4016 = vperm.slane %v3996, 7
    %v4017 = vperm.slane %v3999, 0
    %v4018 = vperm.slane %v3999, 1
    %v4019 = vperm.slane %v3999, 2
    %v4020 = vperm.slane %v3999, 3
    %v4021 = vperm.slane %v3999, 4
    %v4022 = vperm.slane %v3999, 5
    %v4023 = vperm.slane %v3999, 6
    %v4024 = vperm.slane %v3999, 7
    %v4025 = vperm.slane %v4001, 0
    %v4043 = vmul.f32 %v4004, %v4009
    %v4044 = vmul.f32 %v4004, %v4010
    %v4045 = vmul.f32 %v4004, %v4011
    %v4046 = vmul.f32 %v4004, %v4012
    %v4047 = vmul.f32 %v4004, %v4013
    %v4048 = vmul.f32 %v4004, %v4014
    %v4049 = vmul.f32 %v4004, %v4015
    %v4050 = vmul.f32 %v4004, %v4016
    %v4051 = vmul.f32 %v4004, %v4017
    %v4052 = vmul.f32 %v4004, %v4018
    %v4053 = vmul.f32 %v4004, %v4019
    %v4054 = vmul.f32 %v4004, %v4020
    %v4055 = vmul.f32 %v4004, %v4021
    %v4056 = vmul.f32 %v4004, %v4022
    %v4057 = vmul.f32 %v4004, %v4023
    %v4058 = vmul.f32 %v4004, %v4024
    %v4059 = vmul.f32 %v4004, %v4025
    %4077 = vrot.lane.b32.xlu0 %v4043, 127
    %v4078 = vpop.permute.xlu0 %4077
    %4079 = vrot.lane.b32.xlu0 %v4044, 127
    %v4080 = vpop.permute.xlu0 %4079
    %4081 = vrot.lane.b32.xlu0 %v4045, 127
    %v4082 = vpop.permute.xlu0 %4081
    %4083 = vrot.lane.b32.xlu0 %v4046, 127
    %v4084 = vpop.permute.xlu0 %4083
    %4085 = vrot.lane.b32.xlu0 %v4047, 127
    %v4086 = vpop.permute.xlu0 %4085
    %4087 = vrot.lane.b32.xlu0 %v4048, 127
    %v4088 = vpop.permute.xlu0 %4087
    %4089 = vrot.lane.b32.xlu0 %v4049, 127
    %v4090 = vpop.permute.xlu0 %4089
    %4091 = vrot.lane.b32.xlu0 %v4050, 127
    %v4092 = vpop.permute.xlu0 %4091
    %4093 = vrot.lane.b32.xlu0 %v4051, 127
    %v4094 = vpop.permute.xlu0 %4093
    %4095 = vrot.lane.b32.xlu0 %v4052, 127
    %v4096 = vpop.permute.xlu0 %4095
    %4097 = vrot.lane.b32.xlu0 %v4053, 127
    %v4098 = vpop.permute.xlu0 %4097
    %4099 = vrot.lane.b32.xlu0 %v4054, 127
    %v4100 = vpop.permute.xlu0 %4099
    %4101 = vrot.lane.b32.xlu0 %v4055, 127
    %v4102 = vpop.permute.xlu0 %4101
    %4103 = vrot.lane.b32.xlu0 %v4056, 127
    %v4104 = vpop.permute.xlu0 %4103
    %4105 = vrot.lane.b32.xlu0 %v4057, 127
    %v4106 = vpop.permute.xlu0 %4105
    %4107 = vrot.lane.b32.xlu0 %v4058, 127
    %v4108 = vpop.permute.xlu0 %4107
    %4109 = vrot.lane.b32.xlu0 %v4059, 127
    %v4110 = vpop.permute.xlu0 %4109
    %v4111 = vsel %vm1323, %v4078, %v4080
    %v4112 = vsel %vm1323, %v4080, %v4082
    %v4113 = vsel %vm1323, %v4082, %v4084
    %v4114 = vsel %vm1323, %v4084, %v4086
    %v4115 = vsel %vm1323, %v4086, %v4088
    %v4116 = vsel %vm1323, %v4088, %v4090
    %v4117 = vsel %vm1323, %v4090, %v4092
    %v4118 = vsel %vm1323, %v4092, %v4094
    %v4119 = vsel %vm1323, %v4094, %v4096
    %v4120 = vsel %vm1323, %v4096, %v4098
    %v4121 = vsel %vm1323, %v4098, %v4100
    %v4122 = vsel %vm1323, %v4100, %v4102
    %v4123 = vsel %vm1323, %v4102, %v4104
    %v4124 = vsel %vm1323, %v4104, %v4106
    %v4125 = vsel %vm1323, %v4106, %v4108
    %v4126 = vsel %vm1323, %v4108, %v4110
    %v4144 = vadd.f32 %v3977, %v4111
    %v4145 = vadd.f32 %v3978, %v4112
    %v4146 = vadd.f32 %v3979, %v4113
    %v4147 = vadd.f32 %v3980, %v4114
    %v4148 = vadd.f32 %v3981, %v4115
    %v4149 = vadd.f32 %v3982, %v4116
    %v4150 = vadd.f32 %v3983, %v4117
    %v4151 = vadd.f32 %v3984, %v4118
    %v4152 = vadd.f32 %v3985, %v4119
    %v4153 = vadd.f32 %v3986, %v4120
    %v4154 = vadd.f32 %v3987, %v4121
    %v4155 = vadd.f32 %v3988, %v4122
    %v4156 = vadd.f32 %v3989, %v4123
    %v4157 = vadd.f32 %v3990, %v4124
    %v4158 = vadd.f32 %v3991, %v4125
    %v4159 = vadd.f32 %v3992, %v4126
    %v4160 = vadd.f32 %v3993, %v4110
    %v4161 = vld [vmem:[%s2905] ss:$8 sm:$0xf]
    %v4162 = vld [vmem:[%s2905] ss:$8 sm:$0xf0]
    %v4163 = vor.u32 %v4161, %v4162
    %v4164 = vld [vmem:[%s2909] ss:$8 sm:$0xf]
    %v4165 = vld [vmem:[%s2909] ss:$8 sm:$0xf0]
    %v4166 = vor.u32 %v4164, %v4165
    %s4167 = scalar_lea.vmem [#allocation2], 138
    %v4168 = vld [vmem:[%s4167] ss:$8 sm:$0x1]
    %4169 = vset.pattern.permute.xlu0 25
    %4170 = vperm.xlu0 %4169, %v15
    %v4171 = vpop.permute.xlu0 %4170
    %v4176 = vperm.slane %v4163, 0
    %v4177 = vperm.slane %v4163, 1
    %v4178 = vperm.slane %v4163, 2
    %v4179 = vperm.slane %v4163, 3
    %v4180 = vperm.slane %v4163, 4
    %v4181 = vperm.slane %v4163, 5
    %v4182 = vperm.slane %v4163, 6
    %v4183 = vperm.slane %v4163, 7
    %v4184 = vperm.slane %v4166, 0
    %v4185 = vperm.slane %v4166, 1
    %v4186 = vperm.slane %v4166, 2
    %v4187 = vperm.slane %v4166, 3
    %v4188 = vperm.slane %v4166, 4
    %v4189 = vperm.slane %v4166, 5
    %v4190 = vperm.slane %v4166, 6
    %v4191 = vperm.slane %v4166, 7
    %v4192 = vperm.slane %v4168, 0
    %v4210 = vmul.f32 %v4171, %v4176
    %v4211 = vmul.f32 %v4171, %v4177
    %v4212 = vmul.f32 %v4171, %v4178
    %v4213 = vmul.f32 %v4171, %v4179
    %v4214 = vmul.f32 %v4171, %v4180
    %v4215 = vmul.f32 %v4171, %v4181
    %v4216 = vmul.f32 %v4171, %v4182
    %v4217 = vmul.f32 %v4171, %v4183
    %v4218 = vmul.f32 %v4171, %v4184
    %v4219 = vmul.f32 %v4171, %v4185
    %v4220 = vmul.f32 %v4171, %v4186
    %v4221 = vmul.f32 %v4171, %v4187
    %v4222 = vmul.f32 %v4171, %v4188
    %v4223 = vmul.f32 %v4171, %v4189
    %v4224 = vmul.f32 %v4171, %v4190
    %v4225 = vmul.f32 %v4171, %v4191
    %v4226 = vmul.f32 %v4171, %v4192
    %4244 = vrot.lane.b32.xlu0 %v4210, 127
    %v4245 = vpop.permute.xlu0 %4244
    %4246 = vrot.lane.b32.xlu0 %v4211, 127
    %v4247 = vpop.permute.xlu0 %4246
    %4248 = vrot.lane.b32.xlu0 %v4212, 127
    %v4249 = vpop.permute.xlu0 %4248
    %4250 = vrot.lane.b32.xlu0 %v4213, 127
    %v4251 = vpop.permute.xlu0 %4250
    %4252 = vrot.lane.b32.xlu0 %v4214, 127
    %v4253 = vpop.permute.xlu0 %4252
    %4254 = vrot.lane.b32.xlu0 %v4215, 127
    %v4255 = vpop.permute.xlu0 %4254
    %4256 = vrot.lane.b32.xlu0 %v4216, 127
    %v4257 = vpop.permute.xlu0 %4256
    %4258 = vrot.lane.b32.xlu0 %v4217, 127
    %v4259 = vpop.permute.xlu0 %4258
    %4260 = vrot.lane.b32.xlu0 %v4218, 127
    %v4261 = vpop.permute.xlu0 %4260
    %4262 = vrot.lane.b32.xlu0 %v4219, 127
    %v4263 = vpop.permute.xlu0 %4262
    %4264 = vrot.lane.b32.xlu0 %v4220, 127
    %v4265 = vpop.permute.xlu0 %4264
    %4266 = vrot.lane.b32.xlu0 %v4221, 127
    %v4267 = vpop.permute.xlu0 %4266
    %4268 = vrot.lane.b32.xlu0 %v4222, 127
    %v4269 = vpop.permute.xlu0 %4268
    %4270 = vrot.lane.b32.xlu0 %v4223, 127
    %v4271 = vpop.permute.xlu0 %4270
    %4272 = vrot.lane.b32.xlu0 %v4224, 127
    %v4273 = vpop.permute.xlu0 %4272
    %4274 = vrot.lane.b32.xlu0 %v4225, 127
    %v4275 = vpop.permute.xlu0 %4274
    %4276 = vrot.lane.b32.xlu0 %v4226, 127
    %v4277 = vpop.permute.xlu0 %4276
    %v4278 = vsel %vm1323, %v4245, %v4247
    %v4279 = vsel %vm1323, %v4247, %v4249
    %v4280 = vsel %vm1323, %v4249, %v4251
    %v4281 = vsel %vm1323, %v4251, %v4253
    %v4282 = vsel %vm1323, %v4253, %v4255
    %v4283 = vsel %vm1323, %v4255, %v4257
    %v4284 = vsel %vm1323, %v4257, %v4259
    %v4285 = vsel %vm1323, %v4259, %v4261
    %v4286 = vsel %vm1323, %v4261, %v4263
    %v4287 = vsel %vm1323, %v4263, %v4265
    %v4288 = vsel %vm1323, %v4265, %v4267
    %v4289 = vsel %vm1323, %v4267, %v4269
    %v4290 = vsel %vm1323, %v4269, %v4271
    %v4291 = vsel %vm1323, %v4271, %v4273
    %v4292 = vsel %vm1323, %v4273, %v4275
    %v4293 = vsel %vm1323, %v4275, %v4277
    %v4311 = vadd.f32 %v4144, %v4278
    %v4312 = vadd.f32 %v4145, %v4279
    %v4313 = vadd.f32 %v4146, %v4280
    %v4314 = vadd.f32 %v4147, %v4281
    %v4315 = vadd.f32 %v4148, %v4282
    %v4316 = vadd.f32 %v4149, %v4283
    %v4317 = vadd.f32 %v4150, %v4284
    %v4318 = vadd.f32 %v4151, %v4285
    %v4319 = vadd.f32 %v4152, %v4286
    %v4320 = vadd.f32 %v4153, %v4287
    %v4321 = vadd.f32 %v4154, %v4288
    %v4322 = vadd.f32 %v4155, %v4289
    %v4323 = vadd.f32 %v4156, %v4290
    %v4324 = vadd.f32 %v4157, %v4291
    %v4325 = vadd.f32 %v4158, %v4292
    %v4326 = vadd.f32 %v4159, %v4293
    %v4327 = vadd.f32 %v4160, %v4277
    %4328 = vset.pattern.permute.xlu0 8
    %4329 = vperm.xlu0 %4328, %v15
    %v4330 = vpop.permute.xlu0 %4329
    %v4332 = vmul.f32 %v4330, %v3081
    %v4333 = vmul.f32 %v4330, %v3082
    %v4334 = vmul.f32 %v4330, %v3083
    %v4335 = vmul.f32 %v4330, %v3084
    %v4336 = vmul.f32 %v4330, %v3085
    %v4337 = vmul.f32 %v4330, %v3086
    %v4338 = vmul.f32 %v4330, %v3087
    %v4339 = vmul.f32 %v4330, %v3088
    %v4340 = vmul.f32 %v4330, %v3089
    %v4341 = vmul.f32 %v4330, %v3090
    %v4342 = vmul.f32 %v4330, %v3091
    %v4343 = vmul.f32 %v4330, %v3092
    %v4344 = vmul.f32 %v4330, %v3093
    %v4345 = vmul.f32 %v4330, %v3094
    %v4346 = vmul.f32 %v4330, %v3095
    %v4347 = vmul.f32 %v4330, %v3096
    %v4348 = vmul.f32 %v4330, %v3097
    %4366 = vrot.lane.b32.xlu0 %v4332, 126
    %v4367 = vpop.permute.xlu0 %4366
    %4368 = vrot.lane.b32.xlu0 %v4333, 126
    %v4369 = vpop.permute.xlu0 %4368
    %4370 = vrot.lane.b32.xlu0 %v4334, 126
    %v4371 = vpop.permute.xlu0 %4370
    %4372 = vrot.lane.b32.xlu0 %v4335, 126
    %v4373 = vpop.permute.xlu0 %4372
    %4374 = vrot.lane.b32.xlu0 %v4336, 126
    %v4375 = vpop.permute.xlu0 %4374
    %4376 = vrot.lane.b32.xlu0 %v4337, 126
    %v4377 = vpop.permute.xlu0 %4376
    %4378 = vrot.lane.b32.xlu0 %v4338, 126
    %v4379 = vpop.permute.xlu0 %4378
    %4380 = vrot.lane.b32.xlu0 %v4339, 126
    %v4381 = vpop.permute.xlu0 %4380
    %4382 = vrot.lane.b32.xlu0 %v4340, 126
    %v4383 = vpop.permute.xlu0 %4382
    %4384 = vrot.lane.b32.xlu0 %v4341, 126
    %v4385 = vpop.permute.xlu0 %4384
    %4386 = vrot.lane.b32.xlu0 %v4342, 126
    %v4387 = vpop.permute.xlu0 %4386
    %4388 = vrot.lane.b32.xlu0 %v4343, 126
    %v4389 = vpop.permute.xlu0 %4388
    %4390 = vrot.lane.b32.xlu0 %v4344, 126
    %v4391 = vpop.permute.xlu0 %4390
    %4392 = vrot.lane.b32.xlu0 %v4345, 126
    %v4393 = vpop.permute.xlu0 %4392
    %4394 = vrot.lane.b32.xlu0 %v4346, 126
    %v4395 = vpop.permute.xlu0 %4394
    %4396 = vrot.lane.b32.xlu0 %v4347, 126
    %v4397 = vpop.permute.xlu0 %4396
    %4398 = vrot.lane.b32.xlu0 %v4348, 126
    %v4399 = vpop.permute.xlu0 %4398
    %v4400 = vsel %vm1830, %v4367, %v4369
    %v4401 = vsel %vm1830, %v4369, %v4371
    %v4402 = vsel %vm1830, %v4371, %v4373
    %v4403 = vsel %vm1830, %v4373, %v4375
    %v4404 = vsel %vm1830, %v4375, %v4377
    %v4405 = vsel %vm1830, %v4377, %v4379
    %v4406 = vsel %vm1830, %v4379, %v4381
    %v4407 = vsel %vm1830, %v4381, %v4383
    %v4408 = vsel %vm1830, %v4383, %v4385
    %v4409 = vsel %vm1830, %v4385, %v4387
    %v4410 = vsel %vm1830, %v4387, %v4389
    %v4411 = vsel %vm1830, %v4389, %v4391
    %v4412 = vsel %vm1830, %v4391, %v4393
    %v4413 = vsel %vm1830, %v4393, %v4395
    %v4414 = vsel %vm1830, %v4395, %v4397
    %v4415 = vsel %vm1830, %v4397, %v4399
    %v4433 = vadd.f32 %v4311, %v4400
    %v4434 = vadd.f32 %v4312, %v4401
    %v4435 = vadd.f32 %v4313, %v4402
    %v4436 = vadd.f32 %v4314, %v4403
    %v4437 = vadd.f32 %v4315, %v4404
    %v4438 = vadd.f32 %v4316, %v4405
    %v4439 = vadd.f32 %v4317, %v4406
    %v4440 = vadd.f32 %v4318, %v4407
    %v4441 = vadd.f32 %v4319, %v4408
    %v4442 = vadd.f32 %v4320, %v4409
    %v4443 = vadd.f32 %v4321, %v4410
    %v4444 = vadd.f32 %v4322, %v4411
    %v4445 = vadd.f32 %v4323, %v4412
    %v4446 = vadd.f32 %v4324, %v4413
    %v4447 = vadd.f32 %v4325, %v4414
    %v4448 = vadd.f32 %v4326, %v4415
    %v4449 = vadd.f32 %v4327, %v4399
    %4450 = vset.pattern.permute.xlu0 17
    %4451 = vperm.xlu0 %4450, %v15
    %v4452 = vpop.permute.xlu0 %4451
    %v4454 = vmul.f32 %v4452, %v3251
    %v4455 = vmul.f32 %v4452, %v3252
    %v4456 = vmul.f32 %v4452, %v3253
    %v4457 = vmul.f32 %v4452, %v3254
    %v4458 = vmul.f32 %v4452, %v3255
    %v4459 = vmul.f32 %v4452, %v3256
    %v4460 = vmul.f32 %v4452, %v3257
    %v4461 = vmul.f32 %v4452, %v3258
    %v4462 = vmul.f32 %v4452, %v3259
    %v4463 = vmul.f32 %v4452, %v3260
    %v4464 = vmul.f32 %v4452, %v3261
    %v4465 = vmul.f32 %v4452, %v3262
    %v4466 = vmul.f32 %v4452, %v3263
    %v4467 = vmul.f32 %v4452, %v3264
    %v4468 = vmul.f32 %v4452, %v3265
    %v4469 = vmul.f32 %v4452, %v3266
    %v4470 = vmul.f32 %v4452, %v3267
    %4488 = vrot.lane.b32.xlu0 %v4454, 126
    %v4489 = vpop.permute.xlu0 %4488
    %4490 = vrot.lane.b32.xlu0 %v4455, 126
    %v4491 = vpop.permute.xlu0 %4490
    %4492 = vrot.lane.b32.xlu0 %v4456, 126
    %v4493 = vpop.permute.xlu0 %4492
    %4494 = vrot.lane.b32.xlu0 %v4457, 126
    %v4495 = vpop.permute.xlu0 %4494
    %4496 = vrot.lane.b32.xlu0 %v4458, 126
    %v4497 = vpop.permute.xlu0 %4496
    %4498 = vrot.lane.b32.xlu0 %v4459, 126
    %v4499 = vpop.permute.xlu0 %4498
    %4500 = vrot.lane.b32.xlu0 %v4460, 126
    %v4501 = vpop.permute.xlu0 %4500
    %4502 = vrot.lane.b32.xlu0 %v4461, 126
    %v4503 = vpop.permute.xlu0 %4502
    %4504 = vrot.lane.b32.xlu0 %v4462, 126
    %v4505 = vpop.permute.xlu0 %4504
    %4506 = vrot.lane.b32.xlu0 %v4463, 126
    %v4507 = vpop.permute.xlu0 %4506
    %4508 = vrot.lane.b32.xlu0 %v4464, 126
    %v4509 = vpop.permute.xlu0 %4508
    %4510 = vrot.lane.b32.xlu0 %v4465, 126
    %v4511 = vpop.permute.xlu0 %4510
    %4512 = vrot.lane.b32.xlu0 %v4466, 126
    %v4513 = vpop.permute.xlu0 %4512
    %4514 = vrot.lane.b32.xlu0 %v4467, 126
    %v4515 = vpop.permute.xlu0 %4514
    %4516 = vrot.lane.b32.xlu0 %v4468, 126
    %v4517 = vpop.permute.xlu0 %4516
    %4518 = vrot.lane.b32.xlu0 %v4469, 126
    %v4519 = vpop.permute.xlu0 %4518
    %4520 = vrot.lane.b32.xlu0 %v4470, 126
    %v4521 = vpop.permute.xlu0 %4520
    %v4522 = vsel %vm1830, %v4489, %v4491
    %v4523 = vsel %vm1830, %v4491, %v4493
    %v4524 = vsel %vm1830, %v4493, %v4495
    %v4525 = vsel %vm1830, %v4495, %v4497
    %v4526 = vsel %vm1830, %v4497, %v4499
    %v4527 = vsel %vm1830, %v4499, %v4501
    %v4528 = vsel %vm1830, %v4501, %v4503
    %v4529 = vsel %vm1830, %v4503, %v4505
    %v4530 = vsel %vm1830, %v4505, %v4507
    %v4531 = vsel %vm1830, %v4507, %v4509
    %v4532 = vsel %vm1830, %v4509, %v4511
    %v4533 = vsel %vm1830, %v4511, %v4513
    %v4534 = vsel %vm1830, %v4513, %v4515
    %v4535 = vsel %vm1830, %v4515, %v4517
    %v4536 = vsel %vm1830, %v4517, %v4519
    %v4537 = vsel %vm1830, %v4519, %v4521
    %v4555 = vadd.f32 %v4433, %v4522
    %v4556 = vadd.f32 %v4434, %v4523
    %v4557 = vadd.f32 %v4435, %v4524
    %v4558 = vadd.f32 %v4436, %v4525
    %v4559 = vadd.f32 %v4437, %v4526
    %v4560 = vadd.f32 %v4438, %v4527
    %v4561 = vadd.f32 %v4439, %v4528
    %v4562 = vadd.f32 %v4440, %v4529
    %v4563 = vadd.f32 %v4441, %v4530
    %v4564 = vadd.f32 %v4442, %v4531
    %v4565 = vadd.f32 %v4443, %v4532
    %v4566 = vadd.f32 %v4444, %v4533
    %v4567 = vadd.f32 %v4445, %v4534
    %v4568 = vadd.f32 %v4446, %v4535
    %v4569 = vadd.f32 %v4447, %v4536
    %v4570 = vadd.f32 %v4448, %v4537
    %v4571 = vadd.f32 %v4449, %v4521
    %4572 = vset.pattern.permute.xlu0 26
    %4573 = vperm.xlu0 %4572, %v15
    %v4574 = vpop.permute.xlu0 %4573
    %v4576 = vmul.f32 %v4574, %v3420
    %v4577 = vmul.f32 %v4574, %v3421
    %v4578 = vmul.f32 %v4574, %v3422
    %v4579 = vmul.f32 %v4574, %v3423
    %v4580 = vmul.f32 %v4574, %v3424
    %v4581 = vmul.f32 %v4574, %v3425
    %v4582 = vmul.f32 %v4574, %v3426
    %v4583 = vmul.f32 %v4574, %v3427
    %v4584 = vmul.f32 %v4574, %v3428
    %v4585 = vmul.f32 %v4574, %v3429
    %v4586 = vmul.f32 %v4574, %v3430
    %v4587 = vmul.f32 %v4574, %v3431
    %v4588 = vmul.f32 %v4574, %v3432
    %v4589 = vmul.f32 %v4574, %v3433
    %v4590 = vmul.f32 %v4574, %v3434
    %v4591 = vmul.f32 %v4574, %v3435
    %v4592 = vmul.f32 %v4574, %v3436
    %4610 = vrot.lane.b32.xlu0 %v4576, 126
    %v4611 = vpop.permute.xlu0 %4610
    %4612 = vrot.lane.b32.xlu0 %v4577, 126
    %v4613 = vpop.permute.xlu0 %4612
    %4614 = vrot.lane.b32.xlu0 %v4578, 126
    %v4615 = vpop.permute.xlu0 %4614
    %4616 = vrot.lane.b32.xlu0 %v4579, 126
    %v4617 = vpop.permute.xlu0 %4616
    %4618 = vrot.lane.b32.xlu0 %v4580, 126
    %v4619 = vpop.permute.xlu0 %4618
    %4620 = vrot.lane.b32.xlu0 %v4581, 126
    %v4621 = vpop.permute.xlu0 %4620
    %4622 = vrot.lane.b32.xlu0 %v4582, 126
    %v4623 = vpop.permute.xlu0 %4622
    %4624 = vrot.lane.b32.xlu0 %v4583, 126
    %v4625 = vpop.permute.xlu0 %4624
    %4626 = vrot.lane.b32.xlu0 %v4584, 126
    %v4627 = vpop.permute.xlu0 %4626
    %4628 = vrot.lane.b32.xlu0 %v4585, 126
    %v4629 = vpop.permute.xlu0 %4628
    %4630 = vrot.lane.b32.xlu0 %v4586, 126
    %v4631 = vpop.permute.xlu0 %4630
    %4632 = vrot.lane.b32.xlu0 %v4587, 126
    %v4633 = vpop.permute.xlu0 %4632
    %4634 = vrot.lane.b32.xlu0 %v4588, 126
    %v4635 = vpop.permute.xlu0 %4634
    %4636 = vrot.lane.b32.xlu0 %v4589, 126
    %v4637 = vpop.permute.xlu0 %4636
    %4638 = vrot.lane.b32.xlu0 %v4590, 126
    %v4639 = vpop.permute.xlu0 %4638
    %4640 = vrot.lane.b32.xlu0 %v4591, 126
    %v4641 = vpop.permute.xlu0 %4640
    %4642 = vrot.lane.b32.xlu0 %v4592, 126
    %v4643 = vpop.permute.xlu0 %4642
    %v4644 = vsel %vm1830, %v4611, %v4613
    %v4645 = vsel %vm1830, %v4613, %v4615
    %v4646 = vsel %vm1830, %v4615, %v4617
    %v4647 = vsel %vm1830, %v4617, %v4619
    %v4648 = vsel %vm1830, %v4619, %v4621
    %v4649 = vsel %vm1830, %v4621, %v4623
    %v4650 = vsel %vm1830, %v4623, %v4625
    %v4651 = vsel %vm1830, %v4625, %v4627
    %v4652 = vsel %vm1830, %v4627, %v4629
    %v4653 = vsel %vm1830, %v4629, %v4631
    %v4654 = vsel %vm1830, %v4631, %v4633
    %v4655 = vsel %vm1830, %v4633, %v4635
    %v4656 = vsel %vm1830, %v4635, %v4637
    %v4657 = vsel %vm1830, %v4637, %v4639
    %v4658 = vsel %vm1830, %v4639, %v4641
    %v4659 = vsel %vm1830, %v4641, %v4643
    %v4677 = vadd.f32 %v4555, %v4644
    %v4678 = vadd.f32 %v4556, %v4645
    %v4679 = vadd.f32 %v4557, %v4646
    %v4680 = vadd.f32 %v4558, %v4647
    %v4681 = vadd.f32 %v4559, %v4648
    %v4682 = vadd.f32 %v4560, %v4649
    %v4683 = vadd.f32 %v4561, %v4650
    %v4684 = vadd.f32 %v4562, %v4651
    %v4685 = vadd.f32 %v4563, %v4652
    %v4686 = vadd.f32 %v4564, %v4653
    %v4687 = vadd.f32 %v4565, %v4654
    %v4688 = vadd.f32 %v4566, %v4655
    %v4689 = vadd.f32 %v4567, %v4656
    %v4690 = vadd.f32 %v4568, %v4657
    %v4691 = vadd.f32 %v4569, %v4658
    %v4692 = vadd.f32 %v4570, %v4659
    %v4693 = vadd.f32 %v4571, %v4643
    %vm4694 = vcmp.ge.f32.partialorder %v4677, 0.0
    %vm4695 = vcmp.ge.f32.partialorder %v4678, 0.0
    %vm4696 = vcmp.ge.f32.partialorder %v4679, 0.0
    %vm4697 = vcmp.ge.f32.partialorder %v4680, 0.0
    %vm4698 = vcmp.ge.f32.partialorder %v4681, 0.0
    %vm4699 = vcmp.ge.f32.partialorder %v4682, 0.0
    %vm4700 = vcmp.ge.f32.partialorder %v4683, 0.0
    %vm4701 = vcmp.ge.f32.partialorder %v4684, 0.0
    %vm4702 = vcmp.ge.f32.partialorder %v4685, 0.0
    %vm4703 = vcmp.ge.f32.partialorder %v4686, 0.0
    %vm4704 = vcmp.ge.f32.partialorder %v4687, 0.0
    %vm4705 = vcmp.ge.f32.partialorder %v4688, 0.0
    %vm4706 = vcmp.ge.f32.partialorder %v4689, 0.0
    %vm4707 = vcmp.ge.f32.partialorder %v4690, 0.0
    %vm4708 = vcmp.ge.f32.partialorder %v4691, 0.0
    %vm4709 = vcmp.ge.f32.partialorder %v4692, 0.0
    %vm4710 = vcmp.ge.f32.partialorder %v4693, 0.0
    %v4711 = vmul.f32 %v4677, 0.01
    %v4712 = vmul.f32 %v4678, 0.01
    %v4713 = vmul.f32 %v4679, 0.01
    %v4714 = vmul.f32 %v4680, 0.01
    %v4715 = vmul.f32 %v4681, 0.01
    %v4716 = vmul.f32 %v4682, 0.01
    %v4717 = vmul.f32 %v4683, 0.01
    %v4718 = vmul.f32 %v4684, 0.01
    %v4719 = vmul.f32 %v4685, 0.01
    %v4720 = vmul.f32 %v4686, 0.01
    %v4721 = vmul.f32 %v4687, 0.01
    %v4722 = vmul.f32 %v4688, 0.01
    %v4723 = vmul.f32 %v4689, 0.01
    %v4724 = vmul.f32 %v4690, 0.01
    %v4725 = vmul.f32 %v4691, 0.01
    %v4726 = vmul.f32 %v4692, 0.01
    %v4727 = vmul.f32 %v4693, 0.01
    %v4728 = vsel %vm4694, %v4677, %v4711
    %v4729 = vsel %vm4695, %v4678, %v4712
    %v4730 = vsel %vm4696, %v4679, %v4713
    %v4731 = vsel %vm4697, %v4680, %v4714
    %v4732 = vsel %vm4698, %v4681, %v4715
    %v4733 = vsel %vm4699, %v4682, %v4716
    %v4734 = vsel %vm4700, %v4683, %v4717
    %v4735 = vsel %vm4701, %v4684, %v4718
    %v4736 = vsel %vm4702, %v4685, %v4719
    %v4737 = vsel %vm4703, %v4686, %v4720
    %v4738 = vsel %vm4704, %v4687, %v4721
    %v4739 = vsel %vm4705, %v4688, %v4722
    %v4740 = vsel %vm4706, %v4689, %v4723
    %v4741 = vsel %vm4707, %v4690, %v4724
    %v4742 = vsel %vm4708, %v4691, %v4725
    %v4743 = vsel %vm4709, %v4692, %v4726
    %v4744 = vsel %vm4710, %v4693, %v4727
    %4762 = vrot.lane.b32.xlu0 %v4728, 65
    %v4763 = vpop.permute.xlu0 %4762
    %4764 = vrot.lane.b32.xlu0 %v4729, 65
    %v4765 = vpop.permute.xlu0 %4764
    %4766 = vrot.lane.b32.xlu0 %v4730, 65
    %v4767 = vpop.permute.xlu0 %4766
    %4768 = vrot.lane.b32.xlu0 %v4731, 65
    %v4769 = vpop.permute.xlu0 %4768
    %4770 = vrot.lane.b32.xlu0 %v4732, 65
    %v4771 = vpop.permute.xlu0 %4770
    %4772 = vrot.lane.b32.xlu0 %v4733, 65
    %v4773 = vpop.permute.xlu0 %4772
    %4774 = vrot.lane.b32.xlu0 %v4734, 65
    %v4775 = vpop.permute.xlu0 %4774
    %4776 = vrot.lane.b32.xlu0 %v4735, 65
    %v4777 = vpop.permute.xlu0 %4776
    %4778 = vrot.lane.b32.xlu0 %v4736, 65
    %v4779 = vpop.permute.xlu0 %4778
    %4780 = vrot.lane.b32.xlu0 %v4737, 65
    %v4781 = vpop.permute.xlu0 %4780
    %4782 = vrot.lane.b32.xlu0 %v4738, 65
    %v4783 = vpop.permute.xlu0 %4782
    %4784 = vrot.lane.b32.xlu0 %v4739, 65
    %v4785 = vpop.permute.xlu0 %4784
    %4786 = vrot.lane.b32.xlu0 %v4740, 65
    %v4787 = vpop.permute.xlu0 %4786
    %4788 = vrot.lane.b32.xlu0 %v4741, 65
    %v4789 = vpop.permute.xlu0 %4788
    %4790 = vrot.lane.b32.xlu0 %v4742, 65
    %v4791 = vpop.permute.xlu0 %4790
    %4792 = vrot.lane.b32.xlu0 %v4743, 65
    %v4793 = vpop.permute.xlu0 %4792
    %4794 = vrot.lane.b32.xlu0 %v4744, 65
    %v4795 = vpop.permute.xlu0 %4794
    %vm4796 = vcmask 531456
    %v4797 = vsel %vm4796, %v4763, %v4765
    %v4798 = vsel %vm4796, %v4765, %v4767
    %v4799 = vsel %vm4796, %v4767, %v4769
    %v4800 = vsel %vm4796, %v4769, %v4771
    %v4801 = vsel %vm4796, %v4771, %v4773
    %v4802 = vsel %vm4796, %v4773, %v4775
    %v4803 = vsel %vm4796, %v4775, %v4777
    %v4804 = vsel %vm4796, %v4777, %v4779
    %v4805 = vsel %vm4796, %v4779, %v4781
    %v4806 = vsel %vm4796, %v4781, %v4783
    %v4807 = vsel %vm4796, %v4783, %v4785
    %v4808 = vsel %vm4796, %v4785, %v4787
    %v4809 = vsel %vm4796, %v4787, %v4789
    %v4810 = vsel %vm4796, %v4789, %v4791
    %v4811 = vsel %vm4796, %v4791, %v4793
    %v4812 = vsel %vm4796, %v4793, %v4795
    %4829 = vst [vmem:[#allocation5] sm:$0xff] %v4797
    %4830 = vst [vmem:[#allocation5 + $0x8] sm:$0xff] %v4798
    %4831 = vst [vmem:[#allocation5 + $0x10] sm:$0xff] %v4799
    %4832 = vst [vmem:[#allocation5 + $0x18] sm:$0xff] %v4800
    %4833 = vst [vmem:[#allocation5 + $0x20] sm:$0xff] %v4801
    %4834 = vst [vmem:[#allocation5 + $0x28] sm:$0xff] %v4802
    %4835 = vst [vmem:[#allocation5 + $0x30] sm:$0xff] %v4803
    %4836 = vst [vmem:[#allocation5 + $0x38] sm:$0xff] %v4804
    %4837 = vst [vmem:[#allocation5 + $0x40] sm:$0xff] %v4805
    %4838 = vst [vmem:[#allocation5 + $0x48] sm:$0xff] %v4806
    %4839 = vst [vmem:[#allocation5 + $0x50] sm:$0xff] %v4807
    %4840 = vst [vmem:[#allocation5 + $0x58] sm:$0xff] %v4808
    %4841 = vst [vmem:[#allocation5 + $0x60] sm:$0xff] %v4809
    %4842 = vst [vmem:[#allocation5 + $0x68] sm:$0xff] %v4810
    %4843 = vst [vmem:[#allocation5 + $0x70] sm:$0xff] %v4811
    %4844 = vst [vmem:[#allocation5 + $0x78] sm:$0xff] %v4812
    %v4845 = vld [vmem:[%s957] ss:$8 sm:$0xf]
    %v4846 = vld [vmem:[%s957] ss:$8 sm:$0xf0]
    %v4847 = vor.u32 %v4845, %v4846
    %s4848 = scalar_lea.vmem [#allocation3], 192
    %v4849 = vld [vmem:[%s4848] ss:$8 sm:$0xf]
    %v4850 = vld [vmem:[%s4848] ss:$8 sm:$0xf0]
    %v4851 = vor.u32 %v4849, %v4850
    %s4852 = scalar_lea.vmem [#allocation3], 256
    %v4853 = vld [vmem:[%s4852] ss:$8 sm:$0x1]
    %v4857 = vperm.slane %v4847, 0
    %v4858 = vperm.slane %v4847, 1
    %v4859 = vperm.slane %v4847, 2
    %v4860 = vperm.slane %v4847, 3
    %v4861 = vperm.slane %v4847, 4
    %v4862 = vperm.slane %v4847, 5
    %v4863 = vperm.slane %v4847, 6
    %v4864 = vperm.slane %v4847, 7
    %v4865 = vperm.slane %v4851, 0
    %v4866 = vperm.slane %v4851, 1
    %v4867 = vperm.slane %v4851, 2
    %v4868 = vperm.slane %v4851, 3
    %v4869 = vperm.slane %v4851, 4
    %v4870 = vperm.slane %v4851, 5
    %v4871 = vperm.slane %v4851, 6
    %v4872 = vperm.slane %v4851, 7
    %v4873 = vperm.slane %v4853, 0
    %v4891 = vmul.f32 %v962, %v4857
    %v4892 = vmul.f32 %v962, %v4858
    %v4893 = vmul.f32 %v962, %v4859
    %v4894 = vmul.f32 %v962, %v4860
    %v4895 = vmul.f32 %v962, %v4861
    %v4896 = vmul.f32 %v962, %v4862
    %v4897 = vmul.f32 %v962, %v4863
    %v4898 = vmul.f32 %v962, %v4864
    %v4899 = vmul.f32 %v962, %v4865
    %v4900 = vmul.f32 %v962, %v4866
    %v4901 = vmul.f32 %v962, %v4867
    %v4902 = vmul.f32 %v962, %v4868
    %v4903 = vmul.f32 %v962, %v4869
    %v4904 = vmul.f32 %v962, %v4870
    %v4905 = vmul.f32 %v962, %v4871
    %v4906 = vmul.f32 %v962, %v4872
    %v4907 = vmul.f32 %v962, %v4873
    %v4908 = vadd.f32 %v948, %v4891
    %v4909 = vadd.f32 %v948, %v4892
    %v4910 = vadd.f32 %v948, %v4893
    %v4911 = vadd.f32 %v948, %v4894
    %v4912 = vadd.f32 %v948, %v4895
    %v4913 = vadd.f32 %v948, %v4896
    %v4914 = vadd.f32 %v948, %v4897
    %v4915 = vadd.f32 %v948, %v4898
    %v4916 = vadd.f32 %v948, %v4899
    %v4917 = vadd.f32 %v948, %v4900
    %v4918 = vadd.f32 %v948, %v4901
    %v4919 = vadd.f32 %v948, %v4902
    %v4920 = vadd.f32 %v948, %v4903
    %v4921 = vadd.f32 %v948, %v4904
    %v4922 = vadd.f32 %v948, %v4905
    %v4923 = vadd.f32 %v948, %v4906
    %v4924 = vadd.f32 %v948, %v4907
    %v4925 = vld [vmem:[%s1043] ss:$8 sm:$0xf]
    %v4926 = vld [vmem:[%s1043] ss:$8 sm:$0xf0]
    %v4927 = vor.u32 %v4925, %v4926
    %s4928 = scalar_lea.vmem [#allocation3], 193
    %v4929 = vld [vmem:[%s4928] ss:$8 sm:$0xf]
    %v4930 = vld [vmem:[%s4928] ss:$8 sm:$0xf0]
    %v4931 = vor.u32 %v4929, %v4930
    %s4932 = scalar_lea.vmem [#allocation3], 257
    %v4933 = vld [vmem:[%s4932] ss:$8 sm:$0x1]
    %v4937 = vperm.slane %v4927, 0
    %v4938 = vperm.slane %v4927, 1
    %v4939 = vperm.slane %v4927, 2
    %v4940 = vperm.slane %v4927, 3
    %v4941 = vperm.slane %v4927, 4
    %v4942 = vperm.slane %v4927, 5
    %v4943 = vperm.slane %v4927, 6
    %v4944 = vperm.slane %v4927, 7
    %v4945 = vperm.slane %v4931, 0
    %v4946 = vperm.slane %v4931, 1
    %v4947 = vperm.slane %v4931, 2
    %v4948 = vperm.slane %v4931, 3
    %v4949 = vperm.slane %v4931, 4
    %v4950 = vperm.slane %v4931, 5
    %v4951 = vperm.slane %v4931, 6
    %v4952 = vperm.slane %v4931, 7
    %v4953 = vperm.slane %v4933, 0
    %v4971 = vmul.f32 %v1047, %v4937
    %v4972 = vmul.f32 %v1047, %v4938
    %v4973 = vmul.f32 %v1047, %v4939
    %v4974 = vmul.f32 %v1047, %v4940
    %v4975 = vmul.f32 %v1047, %v4941
    %v4976 = vmul.f32 %v1047, %v4942
    %v4977 = vmul.f32 %v1047, %v4943
    %v4978 = vmul.f32 %v1047, %v4944
    %v4979 = vmul.f32 %v1047, %v4945
    %v4980 = vmul.f32 %v1047, %v4946
    %v4981 = vmul.f32 %v1047, %v4947
    %v4982 = vmul.f32 %v1047, %v4948
    %v4983 = vmul.f32 %v1047, %v4949
    %v4984 = vmul.f32 %v1047, %v4950
    %v4985 = vmul.f32 %v1047, %v4951
    %v4986 = vmul.f32 %v1047, %v4952
    %v4987 = vmul.f32 %v1047, %v4953
    %v4988 = vadd.f32 %v4908, %v4971
    %v4989 = vadd.f32 %v4909, %v4972
    %v4990 = vadd.f32 %v4910, %v4973
    %v4991 = vadd.f32 %v4911, %v4974
    %v4992 = vadd.f32 %v4912, %v4975
    %v4993 = vadd.f32 %v4913, %v4976
    %v4994 = vadd.f32 %v4914, %v4977
    %v4995 = vadd.f32 %v4915, %v4978
    %v4996 = vadd.f32 %v4916, %v4979
    %v4997 = vadd.f32 %v4917, %v4980
    %v4998 = vadd.f32 %v4918, %v4981
    %v4999 = vadd.f32 %v4919, %v4982
    %v5000 = vadd.f32 %v4920, %v4983
    %v5001 = vadd.f32 %v4921, %v4984
    %v5002 = vadd.f32 %v4922, %v4985
    %v5003 = vadd.f32 %v4923, %v4986
    %v5004 = vadd.f32 %v4924, %v4987
    %v5005 = vld [vmem:[%s1128] ss:$8 sm:$0xf]
    %v5006 = vld [vmem:[%s1128] ss:$8 sm:$0xf0]
    %v5007 = vor.u32 %v5005, %v5006
    %s5008 = scalar_lea.vmem [#allocation3], 194
    %v5009 = vld [vmem:[%s5008] ss:$8 sm:$0xf]
    %v5010 = vld [vmem:[%s5008] ss:$8 sm:$0xf0]
    %v5011 = vor.u32 %v5009, %v5010
    %s5012 = scalar_lea.vmem [#allocation3], 258
    %v5013 = vld [vmem:[%s5012] ss:$8 sm:$0x1]
    %v5017 = vperm.slane %v5007, 0
    %v5018 = vperm.slane %v5007, 1
    %v5019 = vperm.slane %v5007, 2
    %v5020 = vperm.slane %v5007, 3
    %v5021 = vperm.slane %v5007, 4
    %v5022 = vperm.slane %v5007, 5
    %v5023 = vperm.slane %v5007, 6
    %v5024 = vperm.slane %v5007, 7
    %v5025 = vperm.slane %v5011, 0
    %v5026 = vperm.slane %v5011, 1
    %v5027 = vperm.slane %v5011, 2
    %v5028 = vperm.slane %v5011, 3
    %v5029 = vperm.slane %v5011, 4
    %v5030 = vperm.slane %v5011, 5
    %v5031 = vperm.slane %v5011, 6
    %v5032 = vperm.slane %v5011, 7
    %v5033 = vperm.slane %v5013, 0
    %v5051 = vmul.f32 %v1132, %v5017
    %v5052 = vmul.f32 %v1132, %v5018
    %v5053 = vmul.f32 %v1132, %v5019
    %v5054 = vmul.f32 %v1132, %v5020
    %v5055 = vmul.f32 %v1132, %v5021
    %v5056 = vmul.f32 %v1132, %v5022
    %v5057 = vmul.f32 %v1132, %v5023
    %v5058 = vmul.f32 %v1132, %v5024
    %v5059 = vmul.f32 %v1132, %v5025
    %v5060 = vmul.f32 %v1132, %v5026
    %v5061 = vmul.f32 %v1132, %v5027
    %v5062 = vmul.f32 %v1132, %v5028
    %v5063 = vmul.f32 %v1132, %v5029
    %v5064 = vmul.f32 %v1132, %v5030
    %v5065 = vmul.f32 %v1132, %v5031
    %v5066 = vmul.f32 %v1132, %v5032
    %v5067 = vmul.f32 %v1132, %v5033
    %v5068 = vadd.f32 %v4988, %v5051
    %v5069 = vadd.f32 %v4989, %v5052
    %v5070 = vadd.f32 %v4990, %v5053
    %v5071 = vadd.f32 %v4991, %v5054
    %v5072 = vadd.f32 %v4992, %v5055
    %v5073 = vadd.f32 %v4993, %v5056
    %v5074 = vadd.f32 %v4994, %v5057
    %v5075 = vadd.f32 %v4995, %v5058
    %v5076 = vadd.f32 %v4996, %v5059
    %v5077 = vadd.f32 %v4997, %v5060
    %v5078 = vadd.f32 %v4998, %v5061
    %v5079 = vadd.f32 %v4999, %v5062
    %v5080 = vadd.f32 %v5000, %v5063
    %v5081 = vadd.f32 %v5001, %v5064
    %v5082 = vadd.f32 %v5002, %v5065
    %v5083 = vadd.f32 %v5003, %v5066
    %v5084 = vadd.f32 %v5004, %v5067
    %v5085 = vld [vmem:[%s1212] ss:$8 sm:$0xf]
    %v5086 = vld [vmem:[%s1212] ss:$8 sm:$0xf0]
    %v5087 = vor.u32 %v5085, %v5086
    %s5088 = scalar_lea.vmem [#allocation2], 192
    %v5089 = vld [vmem:[%s5088] ss:$8 sm:$0xf]
    %v5090 = vld [vmem:[%s5088] ss:$8 sm:$0xf0]
    %v5091 = vor.u32 %v5089, %v5090
    %s5092 = scalar_lea.vmem [#allocation2], 256
    %v5093 = vld [vmem:[%s5092] ss:$8 sm:$0x1]
    %v5097 = vperm.slane %v5087, 0
    %v5098 = vperm.slane %v5087, 1
    %v5099 = vperm.slane %v5087, 2
    %v5100 = vperm.slane %v5087, 3
    %v5101 = vperm.slane %v5087, 4
    %v5102 = vperm.slane %v5087, 5
    %v5103 = vperm.slane %v5087, 6
    %v5104 = vperm.slane %v5087, 7
    %v5105 = vperm.slane %v5091, 0
    %v5106 = vperm.slane %v5091, 1
    %v5107 = vperm.slane %v5091, 2
    %v5108 = vperm.slane %v5091, 3
    %v5109 = vperm.slane %v5091, 4
    %v5110 = vperm.slane %v5091, 5
    %v5111 = vperm.slane %v5091, 6
    %v5112 = vperm.slane %v5091, 7
    %v5113 = vperm.slane %v5093, 0
    %v5131 = vmul.f32 %v1216, %v5097
    %v5132 = vmul.f32 %v1216, %v5098
    %v5133 = vmul.f32 %v1216, %v5099
    %v5134 = vmul.f32 %v1216, %v5100
    %v5135 = vmul.f32 %v1216, %v5101
    %v5136 = vmul.f32 %v1216, %v5102
    %v5137 = vmul.f32 %v1216, %v5103
    %v5138 = vmul.f32 %v1216, %v5104
    %v5139 = vmul.f32 %v1216, %v5105
    %v5140 = vmul.f32 %v1216, %v5106
    %v5141 = vmul.f32 %v1216, %v5107
    %v5142 = vmul.f32 %v1216, %v5108
    %v5143 = vmul.f32 %v1216, %v5109
    %v5144 = vmul.f32 %v1216, %v5110
    %v5145 = vmul.f32 %v1216, %v5111
    %v5146 = vmul.f32 %v1216, %v5112
    %v5147 = vmul.f32 %v1216, %v5113
    %5165 = vrot.lane.b32.xlu0 %v5131, 127
    %v5166 = vpop.permute.xlu0 %5165
    %5167 = vrot.lane.b32.xlu0 %v5132, 127
    %v5168 = vpop.permute.xlu0 %5167
    %5169 = vrot.lane.b32.xlu0 %v5133, 127
    %v5170 = vpop.permute.xlu0 %5169
    %5171 = vrot.lane.b32.xlu0 %v5134, 127
    %v5172 = vpop.permute.xlu0 %5171
    %5173 = vrot.lane.b32.xlu0 %v5135, 127
    %v5174 = vpop.permute.xlu0 %5173
    %5175 = vrot.lane.b32.xlu0 %v5136, 127
    %v5176 = vpop.permute.xlu0 %5175
    %5177 = vrot.lane.b32.xlu0 %v5137, 127
    %v5178 = vpop.permute.xlu0 %5177
    %5179 = vrot.lane.b32.xlu0 %v5138, 127
    %v5180 = vpop.permute.xlu0 %5179
    %5181 = vrot.lane.b32.xlu0 %v5139, 127
    %v5182 = vpop.permute.xlu0 %5181
    %5183 = vrot.lane.b32.xlu0 %v5140, 127
    %v5184 = vpop.permute.xlu0 %5183
    %5185 = vrot.lane.b32.xlu0 %v5141, 127
    %v5186 = vpop.permute.xlu0 %5185
    %5187 = vrot.lane.b32.xlu0 %v5142, 127
    %v5188 = vpop.permute.xlu0 %5187
    %5189 = vrot.lane.b32.xlu0 %v5143, 127
    %v5190 = vpop.permute.xlu0 %5189
    %5191 = vrot.lane.b32.xlu0 %v5144, 127
    %v5192 = vpop.permute.xlu0 %5191
    %5193 = vrot.lane.b32.xlu0 %v5145, 127
    %v5194 = vpop.permute.xlu0 %5193
    %5195 = vrot.lane.b32.xlu0 %v5146, 127
    %v5196 = vpop.permute.xlu0 %5195
    %5197 = vrot.lane.b32.xlu0 %v5147, 127
    %v5198 = vpop.permute.xlu0 %5197
    %v5199 = vsel %vm1323, %v5166, %v5168
    %v5200 = vsel %vm1323, %v5168, %v5170
    %v5201 = vsel %vm1323, %v5170, %v5172
    %v5202 = vsel %vm1323, %v5172, %v5174
    %v5203 = vsel %vm1323, %v5174, %v5176
    %v5204 = vsel %vm1323, %v5176, %v5178
    %v5205 = vsel %vm1323, %v5178, %v5180
    %v5206 = vsel %vm1323, %v5180, %v5182
    %v5207 = vsel %vm1323, %v5182, %v5184
    %v5208 = vsel %vm1323, %v5184, %v5186
    %v5209 = vsel %vm1323, %v5186, %v5188
    %v5210 = vsel %vm1323, %v5188, %v5190
    %v5211 = vsel %vm1323, %v5190, %v5192
    %v5212 = vsel %vm1323, %v5192, %v5194
    %v5213 = vsel %vm1323, %v5194, %v5196
    %v5214 = vsel %vm1323, %v5196, %v5198
    %v5232 = vadd.f32 %v5068, %v5199
    %v5233 = vadd.f32 %v5069, %v5200
    %v5234 = vadd.f32 %v5070, %v5201
    %v5235 = vadd.f32 %v5071, %v5202
    %v5236 = vadd.f32 %v5072, %v5203
    %v5237 = vadd.f32 %v5073, %v5204
    %v5238 = vadd.f32 %v5074, %v5205
    %v5239 = vadd.f32 %v5075, %v5206
    %v5240 = vadd.f32 %v5076, %v5207
    %v5241 = vadd.f32 %v5077, %v5208
    %v5242 = vadd.f32 %v5078, %v5209
    %v5243 = vadd.f32 %v5079, %v5210
    %v5244 = vadd.f32 %v5080, %v5211
    %v5245 = vadd.f32 %v5081, %v5212
    %v5246 = vadd.f32 %v5082, %v5213
    %v5247 = vadd.f32 %v5083, %v5214
    %v5248 = vadd.f32 %v5084, %v5198
    %v5249 = vld [vmem:[%s1382] ss:$8 sm:$0xf]
    %v5250 = vld [vmem:[%s1382] ss:$8 sm:$0xf0]
    %v5251 = vor.u32 %v5249, %v5250
    %s5252 = scalar_lea.vmem [#allocation2], 193
    %v5253 = vld [vmem:[%s5252] ss:$8 sm:$0xf]
    %v5254 = vld [vmem:[%s5252] ss:$8 sm:$0xf0]
    %v5255 = vor.u32 %v5253, %v5254
    %s5256 = scalar_lea.vmem [#allocation2], 257
    %v5257 = vld [vmem:[%s5256] ss:$8 sm:$0x1]
    %v5261 = vperm.slane %v5251, 0
    %v5262 = vperm.slane %v5251, 1
    %v5263 = vperm.slane %v5251, 2
    %v5264 = vperm.slane %v5251, 3
    %v5265 = vperm.slane %v5251, 4
    %v5266 = vperm.slane %v5251, 5
    %v5267 = vperm.slane %v5251, 6
    %v5268 = vperm.slane %v5251, 7
    %v5269 = vperm.slane %v5255, 0
    %v5270 = vperm.slane %v5255, 1
    %v5271 = vperm.slane %v5255, 2
    %v5272 = vperm.slane %v5255, 3
    %v5273 = vperm.slane %v5255, 4
    %v5274 = vperm.slane %v5255, 5
    %v5275 = vperm.slane %v5255, 6
    %v5276 = vperm.slane %v5255, 7
    %v5277 = vperm.slane %v5257, 0
    %v5295 = vmul.f32 %v1386, %v5261
    %v5296 = vmul.f32 %v1386, %v5262
    %v5297 = vmul.f32 %v1386, %v5263
    %v5298 = vmul.f32 %v1386, %v5264
    %v5299 = vmul.f32 %v1386, %v5265
    %v5300 = vmul.f32 %v1386, %v5266
    %v5301 = vmul.f32 %v1386, %v5267
    %v5302 = vmul.f32 %v1386, %v5268
    %v5303 = vmul.f32 %v1386, %v5269
    %v5304 = vmul.f32 %v1386, %v5270
    %v5305 = vmul.f32 %v1386, %v5271
    %v5306 = vmul.f32 %v1386, %v5272
    %v5307 = vmul.f32 %v1386, %v5273
    %v5308 = vmul.f32 %v1386, %v5274
    %v5309 = vmul.f32 %v1386, %v5275
    %v5310 = vmul.f32 %v1386, %v5276
    %v5311 = vmul.f32 %v1386, %v5277
    %5329 = vrot.lane.b32.xlu0 %v5295, 127
    %v5330 = vpop.permute.xlu0 %5329
    %5331 = vrot.lane.b32.xlu0 %v5296, 127
    %v5332 = vpop.permute.xlu0 %5331
    %5333 = vrot.lane.b32.xlu0 %v5297, 127
    %v5334 = vpop.permute.xlu0 %5333
    %5335 = vrot.lane.b32.xlu0 %v5298, 127
    %v5336 = vpop.permute.xlu0 %5335
    %5337 = vrot.lane.b32.xlu0 %v5299, 127
    %v5338 = vpop.permute.xlu0 %5337
    %5339 = vrot.lane.b32.xlu0 %v5300, 127
    %v5340 = vpop.permute.xlu0 %5339
    %5341 = vrot.lane.b32.xlu0 %v5301, 127
    %v5342 = vpop.permute.xlu0 %5341
    %5343 = vrot.lane.b32.xlu0 %v5302, 127
    %v5344 = vpop.permute.xlu0 %5343
    %5345 = vrot.lane.b32.xlu0 %v5303, 127
    %v5346 = vpop.permute.xlu0 %5345
    %5347 = vrot.lane.b32.xlu0 %v5304, 127
    %v5348 = vpop.permute.xlu0 %5347
    %5349 = vrot.lane.b32.xlu0 %v5305, 127
    %v5350 = vpop.permute.xlu0 %5349
    %5351 = vrot.lane.b32.xlu0 %v5306, 127
    %v5352 = vpop.permute.xlu0 %5351
    %5353 = vrot.lane.b32.xlu0 %v5307, 127
    %v5354 = vpop.permute.xlu0 %5353
    %5355 = vrot.lane.b32.xlu0 %v5308, 127
    %v5356 = vpop.permute.xlu0 %5355
    %5357 = vrot.lane.b32.xlu0 %v5309, 127
    %v5358 = vpop.permute.xlu0 %5357
    %5359 = vrot.lane.b32.xlu0 %v5310, 127
    %v5360 = vpop.permute.xlu0 %5359
    %5361 = vrot.lane.b32.xlu0 %v5311, 127
    %v5362 = vpop.permute.xlu0 %5361
    %v5363 = vsel %vm1323, %v5330, %v5332
    %v5364 = vsel %vm1323, %v5332, %v5334
    %v5365 = vsel %vm1323, %v5334, %v5336
    %v5366 = vsel %vm1323, %v5336, %v5338
    %v5367 = vsel %vm1323, %v5338, %v5340
    %v5368 = vsel %vm1323, %v5340, %v5342
    %v5369 = vsel %vm1323, %v5342, %v5344
    %v5370 = vsel %vm1323, %v5344, %v5346
    %v5371 = vsel %vm1323, %v5346, %v5348
    %v5372 = vsel %vm1323, %v5348, %v5350
    %v5373 = vsel %vm1323, %v5350, %v5352
    %v5374 = vsel %vm1323, %v5352, %v5354
    %v5375 = vsel %vm1323, %v5354, %v5356
    %v5376 = vsel %vm1323, %v5356, %v5358
    %v5377 = vsel %vm1323, %v5358, %v5360
    %v5378 = vsel %vm1323, %v5360, %v5362
    %v5396 = vadd.f32 %v5232, %v5363
    %v5397 = vadd.f32 %v5233, %v5364
    %v5398 = vadd.f32 %v5234, %v5365
    %v5399 = vadd.f32 %v5235, %v5366
    %v5400 = vadd.f32 %v5236, %v5367
    %v5401 = vadd.f32 %v5237, %v5368
    %v5402 = vadd.f32 %v5238, %v5369
    %v5403 = vadd.f32 %v5239, %v5370
    %v5404 = vadd.f32 %v5240, %v5371
    %v5405 = vadd.f32 %v5241, %v5372
    %v5406 = vadd.f32 %v5242, %v5373
    %v5407 = vadd.f32 %v5243, %v5374
    %v5408 = vadd.f32 %v5244, %v5375
    %v5409 = vadd.f32 %v5245, %v5376
    %v5410 = vadd.f32 %v5246, %v5377
    %v5411 = vadd.f32 %v5247, %v5378
    %v5412 = vadd.f32 %v5248, %v5362
    %v5413 = vld [vmem:[%s1551] ss:$8 sm:$0xf]
    %v5414 = vld [vmem:[%s1551] ss:$8 sm:$0xf0]
    %v5415 = vor.u32 %v5413, %v5414
    %s5416 = scalar_lea.vmem [#allocation2], 194
    %v5417 = vld [vmem:[%s5416] ss:$8 sm:$0xf]
    %v5418 = vld [vmem:[%s5416] ss:$8 sm:$0xf0]
    %v5419 = vor.u32 %v5417, %v5418
    %s5420 = scalar_lea.vmem [#allocation2], 258
    %v5421 = vld [vmem:[%s5420] ss:$8 sm:$0x1]
    %v5425 = vperm.slane %v5415, 0
    %v5426 = vperm.slane %v5415, 1
    %v5427 = vperm.slane %v5415, 2
    %v5428 = vperm.slane %v5415, 3
    %v5429 = vperm.slane %v5415, 4
    %v5430 = vperm.slane %v5415, 5
    %v5431 = vperm.slane %v5415, 6
    %v5432 = vperm.slane %v5415, 7
    %v5433 = vperm.slane %v5419, 0
    %v5434 = vperm.slane %v5419, 1
    %v5435 = vperm.slane %v5419, 2
    %v5436 = vperm.slane %v5419, 3
    %v5437 = vperm.slane %v5419, 4
    %v5438 = vperm.slane %v5419, 5
    %v5439 = vperm.slane %v5419, 6
    %v5440 = vperm.slane %v5419, 7
    %v5441 = vperm.slane %v5421, 0
    %v5459 = vmul.f32 %v1555, %v5425
    %v5460 = vmul.f32 %v1555, %v5426
    %v5461 = vmul.f32 %v1555, %v5427
    %v5462 = vmul.f32 %v1555, %v5428
    %v5463 = vmul.f32 %v1555, %v5429
    %v5464 = vmul.f32 %v1555, %v5430
    %v5465 = vmul.f32 %v1555, %v5431
    %v5466 = vmul.f32 %v1555, %v5432
    %v5467 = vmul.f32 %v1555, %v5433
    %v5468 = vmul.f32 %v1555, %v5434
    %v5469 = vmul.f32 %v1555, %v5435
    %v5470 = vmul.f32 %v1555, %v5436
    %v5471 = vmul.f32 %v1555, %v5437
    %v5472 = vmul.f32 %v1555, %v5438
    %v5473 = vmul.f32 %v1555, %v5439
    %v5474 = vmul.f32 %v1555, %v5440
    %v5475 = vmul.f32 %v1555, %v5441
    %5493 = vrot.lane.b32.xlu0 %v5459, 127
    %v5494 = vpop.permute.xlu0 %5493
    %5495 = vrot.lane.b32.xlu0 %v5460, 127
    %v5496 = vpop.permute.xlu0 %5495
    %5497 = vrot.lane.b32.xlu0 %v5461, 127
    %v5498 = vpop.permute.xlu0 %5497
    %5499 = vrot.lane.b32.xlu0 %v5462, 127
    %v5500 = vpop.permute.xlu0 %5499
    %5501 = vrot.lane.b32.xlu0 %v5463, 127
    %v5502 = vpop.permute.xlu0 %5501
    %5503 = vrot.lane.b32.xlu0 %v5464, 127
    %v5504 = vpop.permute.xlu0 %5503
    %5505 = vrot.lane.b32.xlu0 %v5465, 127
    %v5506 = vpop.permute.xlu0 %5505
    %5507 = vrot.lane.b32.xlu0 %v5466, 127
    %v5508 = vpop.permute.xlu0 %5507
    %5509 = vrot.lane.b32.xlu0 %v5467, 127
    %v5510 = vpop.permute.xlu0 %5509
    %5511 = vrot.lane.b32.xlu0 %v5468, 127
    %v5512 = vpop.permute.xlu0 %5511
    %5513 = vrot.lane.b32.xlu0 %v5469, 127
    %v5514 = vpop.permute.xlu0 %5513
    %5515 = vrot.lane.b32.xlu0 %v5470, 127
    %v5516 = vpop.permute.xlu0 %5515
    %5517 = vrot.lane.b32.xlu0 %v5471, 127
    %v5518 = vpop.permute.xlu0 %5517
    %5519 = vrot.lane.b32.xlu0 %v5472, 127
    %v5520 = vpop.permute.xlu0 %5519
    %5521 = vrot.lane.b32.xlu0 %v5473, 127
    %v5522 = vpop.permute.xlu0 %5521
    %5523 = vrot.lane.b32.xlu0 %v5474, 127
    %v5524 = vpop.permute.xlu0 %5523
    %5525 = vrot.lane.b32.xlu0 %v5475, 127
    %v5526 = vpop.permute.xlu0 %5525
    %v5527 = vsel %vm1323, %v5494, %v5496
    %v5528 = vsel %vm1323, %v5496, %v5498
    %v5529 = vsel %vm1323, %v5498, %v5500
    %v5530 = vsel %vm1323, %v5500, %v5502
    %v5531 = vsel %vm1323, %v5502, %v5504
    %v5532 = vsel %vm1323, %v5504, %v5506
    %v5533 = vsel %vm1323, %v5506, %v5508
    %v5534 = vsel %vm1323, %v5508, %v5510
    %v5535 = vsel %vm1323, %v5510, %v5512
    %v5536 = vsel %vm1323, %v5512, %v5514
    %v5537 = vsel %vm1323, %v5514, %v5516
    %v5538 = vsel %vm1323, %v5516, %v5518
    %v5539 = vsel %vm1323, %v5518, %v5520
    %v5540 = vsel %vm1323, %v5520, %v5522
    %v5541 = vsel %vm1323, %v5522, %v5524
    %v5542 = vsel %vm1323, %v5524, %v5526
    %v5560 = vadd.f32 %v5396, %v5527
    %v5561 = vadd.f32 %v5397, %v5528
    %v5562 = vadd.f32 %v5398, %v5529
    %v5563 = vadd.f32 %v5399, %v5530
    %v5564 = vadd.f32 %v5400, %v5531
    %v5565 = vadd.f32 %v5401, %v5532
    %v5566 = vadd.f32 %v5402, %v5533
    %v5567 = vadd.f32 %v5403, %v5534
    %v5568 = vadd.f32 %v5404, %v5535
    %v5569 = vadd.f32 %v5405, %v5536
    %v5570 = vadd.f32 %v5406, %v5537
    %v5571 = vadd.f32 %v5407, %v5538
    %v5572 = vadd.f32 %v5408, %v5539
    %v5573 = vadd.f32 %v5409, %v5540
    %v5574 = vadd.f32 %v5410, %v5541
    %v5575 = vadd.f32 %v5411, %v5542
    %v5576 = vadd.f32 %v5412, %v5526
    %v5577 = vld [vmem:[%s1719] ss:$8 sm:$0xf]
    %v5578 = vld [vmem:[%s1719] ss:$8 sm:$0xf0]
    %v5579 = vor.u32 %v5577, %v5578
    %s5580 = scalar_lea.vmem [#allocation4], 192
    %v5581 = vld [vmem:[%s5580] ss:$8 sm:$0xf]
    %v5582 = vld [vmem:[%s5580] ss:$8 sm:$0xf0]
    %v5583 = vor.u32 %v5581, %v5582
    %s5584 = scalar_lea.vmem [#allocation4], 256
    %v5585 = vld [vmem:[%s5584] ss:$8 sm:$0x1]
    %v5589 = vperm.slane %v5579, 0
    %v5590 = vperm.slane %v5579, 1
    %v5591 = vperm.slane %v5579, 2
    %v5592 = vperm.slane %v5579, 3
    %v5593 = vperm.slane %v5579, 4
    %v5594 = vperm.slane %v5579, 5
    %v5595 = vperm.slane %v5579, 6
    %v5596 = vperm.slane %v5579, 7
    %v5597 = vperm.slane %v5583, 0
    %v5598 = vperm.slane %v5583, 1
    %v5599 = vperm.slane %v5583, 2
    %v5600 = vperm.slane %v5583, 3
    %v5601 = vperm.slane %v5583, 4
    %v5602 = vperm.slane %v5583, 5
    %v5603 = vperm.slane %v5583, 6
    %v5604 = vperm.slane %v5583, 7
    %v5605 = vperm.slane %v5585, 0
    %v5623 = vmul.f32 %v1723, %v5589
    %v5624 = vmul.f32 %v1723, %v5590
    %v5625 = vmul.f32 %v1723, %v5591
    %v5626 = vmul.f32 %v1723, %v5592
    %v5627 = vmul.f32 %v1723, %v5593
    %v5628 = vmul.f32 %v1723, %v5594
    %v5629 = vmul.f32 %v1723, %v5595
    %v5630 = vmul.f32 %v1723, %v5596
    %v5631 = vmul.f32 %v1723, %v5597
    %v5632 = vmul.f32 %v1723, %v5598
    %v5633 = vmul.f32 %v1723, %v5599
    %v5634 = vmul.f32 %v1723, %v5600
    %v5635 = vmul.f32 %v1723, %v5601
    %v5636 = vmul.f32 %v1723, %v5602
    %v5637 = vmul.f32 %v1723, %v5603
    %v5638 = vmul.f32 %v1723, %v5604
    %v5639 = vmul.f32 %v1723, %v5605
    %5657 = vrot.lane.b32.xlu0 %v5623, 126
    %v5658 = vpop.permute.xlu0 %5657
    %5659 = vrot.lane.b32.xlu0 %v5624, 126
    %v5660 = vpop.permute.xlu0 %5659
    %5661 = vrot.lane.b32.xlu0 %v5625, 126
    %v5662 = vpop.permute.xlu0 %5661
    %5663 = vrot.lane.b32.xlu0 %v5626, 126
    %v5664 = vpop.permute.xlu0 %5663
    %5665 = vrot.lane.b32.xlu0 %v5627, 126
    %v5666 = vpop.permute.xlu0 %5665
    %5667 = vrot.lane.b32.xlu0 %v5628, 126
    %v5668 = vpop.permute.xlu0 %5667
    %5669 = vrot.lane.b32.xlu0 %v5629, 126
    %v5670 = vpop.permute.xlu0 %5669
    %5671 = vrot.lane.b32.xlu0 %v5630, 126
    %v5672 = vpop.permute.xlu0 %5671
    %5673 = vrot.lane.b32.xlu0 %v5631, 126
    %v5674 = vpop.permute.xlu0 %5673
    %5675 = vrot.lane.b32.xlu0 %v5632, 126
    %v5676 = vpop.permute.xlu0 %5675
    %5677 = vrot.lane.b32.xlu0 %v5633, 126
    %v5678 = vpop.permute.xlu0 %5677
    %5679 = vrot.lane.b32.xlu0 %v5634, 126
    %v5680 = vpop.permute.xlu0 %5679
    %5681 = vrot.lane.b32.xlu0 %v5635, 126
    %v5682 = vpop.permute.xlu0 %5681
    %5683 = vrot.lane.b32.xlu0 %v5636, 126
    %v5684 = vpop.permute.xlu0 %5683
    %5685 = vrot.lane.b32.xlu0 %v5637, 126
    %v5686 = vpop.permute.xlu0 %5685
    %5687 = vrot.lane.b32.xlu0 %v5638, 126
    %v5688 = vpop.permute.xlu0 %5687
    %5689 = vrot.lane.b32.xlu0 %v5639, 126
    %v5690 = vpop.permute.xlu0 %5689
    %v5691 = vsel %vm1830, %v5658, %v5660
    %v5692 = vsel %vm1830, %v5660, %v5662
    %v5693 = vsel %vm1830, %v5662, %v5664
    %v5694 = vsel %vm1830, %v5664, %v5666
    %v5695 = vsel %vm1830, %v5666, %v5668
    %v5696 = vsel %vm1830, %v5668, %v5670
    %v5697 = vsel %vm1830, %v5670, %v5672
    %v5698 = vsel %vm1830, %v5672, %v5674
    %v5699 = vsel %vm1830, %v5674, %v5676
    %v5700 = vsel %vm1830, %v5676, %v5678
    %v5701 = vsel %vm1830, %v5678, %v5680
    %v5702 = vsel %vm1830, %v5680, %v5682
    %v5703 = vsel %vm1830, %v5682, %v5684
    %v5704 = vsel %vm1830, %v5684, %v5686
    %v5705 = vsel %vm1830, %v5686, %v5688
    %v5706 = vsel %vm1830, %v5688, %v5690
    %v5724 = vadd.f32 %v5560, %v5691
    %v5725 = vadd.f32 %v5561, %v5692
    %v5726 = vadd.f32 %v5562, %v5693
    %v5727 = vadd.f32 %v5563, %v5694
    %v5728 = vadd.f32 %v5564, %v5695
    %v5729 = vadd.f32 %v5565, %v5696
    %v5730 = vadd.f32 %v5566, %v5697
    %v5731 = vadd.f32 %v5567, %v5698
    %v5732 = vadd.f32 %v5568, %v5699
    %v5733 = vadd.f32 %v5569, %v5700
    %v5734 = vadd.f32 %v5570, %v5701
    %v5735 = vadd.f32 %v5571, %v5702
    %v5736 = vadd.f32 %v5572, %v5703
    %v5737 = vadd.f32 %v5573, %v5704
    %v5738 = vadd.f32 %v5574, %v5705
    %v5739 = vadd.f32 %v5575, %v5706
    %v5740 = vadd.f32 %v5576, %v5690
    %v5741 = vld [vmem:[%s1889] ss:$8 sm:$0xf]
    %v5742 = vld [vmem:[%s1889] ss:$8 sm:$0xf0]
    %v5743 = vor.u32 %v5741, %v5742
    %s5744 = scalar_lea.vmem [#allocation4], 193
    %v5745 = vld [vmem:[%s5744] ss:$8 sm:$0xf]
    %v5746 = vld [vmem:[%s5744] ss:$8 sm:$0xf0]
    %v5747 = vor.u32 %v5745, %v5746
    %s5748 = scalar_lea.vmem [#allocation4], 257
    %v5749 = vld [vmem:[%s5748] ss:$8 sm:$0x1]
    %v5753 = vperm.slane %v5743, 0
    %v5754 = vperm.slane %v5743, 1
    %v5755 = vperm.slane %v5743, 2
    %v5756 = vperm.slane %v5743, 3
    %v5757 = vperm.slane %v5743, 4
    %v5758 = vperm.slane %v5743, 5
    %v5759 = vperm.slane %v5743, 6
    %v5760 = vperm.slane %v5743, 7
    %v5761 = vperm.slane %v5747, 0
    %v5762 = vperm.slane %v5747, 1
    %v5763 = vperm.slane %v5747, 2
    %v5764 = vperm.slane %v5747, 3
    %v5765 = vperm.slane %v5747, 4
    %v5766 = vperm.slane %v5747, 5
    %v5767 = vperm.slane %v5747, 6
    %v5768 = vperm.slane %v5747, 7
    %v5769 = vperm.slane %v5749, 0
    %v5787 = vmul.f32 %v1893, %v5753
    %v5788 = vmul.f32 %v1893, %v5754
    %v5789 = vmul.f32 %v1893, %v5755
    %v5790 = vmul.f32 %v1893, %v5756
    %v5791 = vmul.f32 %v1893, %v5757
    %v5792 = vmul.f32 %v1893, %v5758
    %v5793 = vmul.f32 %v1893, %v5759
    %v5794 = vmul.f32 %v1893, %v5760
    %v5795 = vmul.f32 %v1893, %v5761
    %v5796 = vmul.f32 %v1893, %v5762
    %v5797 = vmul.f32 %v1893, %v5763
    %v5798 = vmul.f32 %v1893, %v5764
    %v5799 = vmul.f32 %v1893, %v5765
    %v5800 = vmul.f32 %v1893, %v5766
    %v5801 = vmul.f32 %v1893, %v5767
    %v5802 = vmul.f32 %v1893, %v5768
    %v5803 = vmul.f32 %v1893, %v5769
    %5821 = vrot.lane.b32.xlu0 %v5787, 126
    %v5822 = vpop.permute.xlu0 %5821
    %5823 = vrot.lane.b32.xlu0 %v5788, 126
    %v5824 = vpop.permute.xlu0 %5823
    %5825 = vrot.lane.b32.xlu0 %v5789, 126
    %v5826 = vpop.permute.xlu0 %5825
    %5827 = vrot.lane.b32.xlu0 %v5790, 126
    %v5828 = vpop.permute.xlu0 %5827
    %5829 = vrot.lane.b32.xlu0 %v5791, 126
    %v5830 = vpop.permute.xlu0 %5829
    %5831 = vrot.lane.b32.xlu0 %v5792, 126
    %v5832 = vpop.permute.xlu0 %5831
    %5833 = vrot.lane.b32.xlu0 %v5793, 126
    %v5834 = vpop.permute.xlu0 %5833
    %5835 = vrot.lane.b32.xlu0 %v5794, 126
    %v5836 = vpop.permute.xlu0 %5835
    %5837 = vrot.lane.b32.xlu0 %v5795, 126
    %v5838 = vpop.permute.xlu0 %5837
    %5839 = vrot.lane.b32.xlu0 %v5796, 126
    %v5840 = vpop.permute.xlu0 %5839
    %5841 = vrot.lane.b32.xlu0 %v5797, 126
    %v5842 = vpop.permute.xlu0 %5841
    %5843 = vrot.lane.b32.xlu0 %v5798, 126
    %v5844 = vpop.permute.xlu0 %5843
    %5845 = vrot.lane.b32.xlu0 %v5799, 126
    %v5846 = vpop.permute.xlu0 %5845
    %5847 = vrot.lane.b32.xlu0 %v5800, 126
    %v5848 = vpop.permute.xlu0 %5847
    %5849 = vrot.lane.b32.xlu0 %v5801, 126
    %v5850 = vpop.permute.xlu0 %5849
    %5851 = vrot.lane.b32.xlu0 %v5802, 126
    %v5852 = vpop.permute.xlu0 %5851
    %5853 = vrot.lane.b32.xlu0 %v5803, 126
    %v5854 = vpop.permute.xlu0 %5853
    %v5855 = vsel %vm1830, %v5822, %v5824
    %v5856 = vsel %vm1830, %v5824, %v5826
    %v5857 = vsel %vm1830, %v5826, %v5828
    %v5858 = vsel %vm1830, %v5828, %v5830
    %v5859 = vsel %vm1830, %v5830, %v5832
    %v5860 = vsel %vm1830, %v5832, %v5834
    %v5861 = vsel %vm1830, %v5834, %v5836
    %v5862 = vsel %vm1830, %v5836, %v5838
    %v5863 = vsel %vm1830, %v5838, %v5840
    %v5864 = vsel %vm1830, %v5840, %v5842
    %v5865 = vsel %vm1830, %v5842, %v5844
    %v5866 = vsel %vm1830, %v5844, %v5846
    %v5867 = vsel %vm1830, %v5846, %v5848
    %v5868 = vsel %vm1830, %v5848, %v5850
    %v5869 = vsel %vm1830, %v5850, %v5852
    %v5870 = vsel %vm1830, %v5852, %v5854
    %v5888 = vadd.f32 %v5724, %v5855
    %v5889 = vadd.f32 %v5725, %v5856
    %v5890 = vadd.f32 %v5726, %v5857
    %v5891 = vadd.f32 %v5727, %v5858
    %v5892 = vadd.f32 %v5728, %v5859
    %v5893 = vadd.f32 %v5729, %v5860
    %v5894 = vadd.f32 %v5730, %v5861
    %v5895 = vadd.f32 %v5731, %v5862
    %v5896 = vadd.f32 %v5732, %v5863
    %v5897 = vadd.f32 %v5733, %v5864
    %v5898 = vadd.f32 %v5734, %v5865
    %v5899 = vadd.f32 %v5735, %v5866
    %v5900 = vadd.f32 %v5736, %v5867
    %v5901 = vadd.f32 %v5737, %v5868
    %v5902 = vadd.f32 %v5738, %v5869
    %v5903 = vadd.f32 %v5739, %v5870
    %v5904 = vadd.f32 %v5740, %v5854
    %v5905 = vld [vmem:[%s2058] ss:$8 sm:$0xf]
    %v5906 = vld [vmem:[%s2058] ss:$8 sm:$0xf0]
    %v5907 = vor.u32 %v5905, %v5906
    %s5908 = scalar_lea.vmem [#allocation4], 194
    %v5909 = vld [vmem:[%s5908] ss:$8 sm:$0xf]
    %v5910 = vld [vmem:[%s5908] ss:$8 sm:$0xf0]
    %v5911 = vor.u32 %v5909, %v5910
    %s5912 = scalar_lea.vmem [#allocation4], 258
    %v5913 = vld [vmem:[%s5912] ss:$8 sm:$0x1]
    %v5917 = vperm.slane %v5907, 0
    %v5918 = vperm.slane %v5907, 1
    %v5919 = vperm.slane %v5907, 2
    %v5920 = vperm.slane %v5907, 3
    %v5921 = vperm.slane %v5907, 4
    %v5922 = vperm.slane %v5907, 5
    %v5923 = vperm.slane %v5907, 6
    %v5924 = vperm.slane %v5907, 7
    %v5925 = vperm.slane %v5911, 0
    %v5926 = vperm.slane %v5911, 1
    %v5927 = vperm.slane %v5911, 2
    %v5928 = vperm.slane %v5911, 3
    %v5929 = vperm.slane %v5911, 4
    %v5930 = vperm.slane %v5911, 5
    %v5931 = vperm.slane %v5911, 6
    %v5932 = vperm.slane %v5911, 7
    %v5933 = vperm.slane %v5913, 0
    %v5951 = vmul.f32 %v2062, %v5917
    %v5952 = vmul.f32 %v2062, %v5918
    %v5953 = vmul.f32 %v2062, %v5919
    %v5954 = vmul.f32 %v2062, %v5920
    %v5955 = vmul.f32 %v2062, %v5921
    %v5956 = vmul.f32 %v2062, %v5922
    %v5957 = vmul.f32 %v2062, %v5923
    %v5958 = vmul.f32 %v2062, %v5924
    %v5959 = vmul.f32 %v2062, %v5925
    %v5960 = vmul.f32 %v2062, %v5926
    %v5961 = vmul.f32 %v2062, %v5927
    %v5962 = vmul.f32 %v2062, %v5928
    %v5963 = vmul.f32 %v2062, %v5929
    %v5964 = vmul.f32 %v2062, %v5930
    %v5965 = vmul.f32 %v2062, %v5931
    %v5966 = vmul.f32 %v2062, %v5932
    %v5967 = vmul.f32 %v2062, %v5933
    %5985 = vrot.lane.b32.xlu0 %v5951, 126
    %v5986 = vpop.permute.xlu0 %5985
    %5987 = vrot.lane.b32.xlu0 %v5952, 126
    %v5988 = vpop.permute.xlu0 %5987
    %5989 = vrot.lane.b32.xlu0 %v5953, 126
    %v5990 = vpop.permute.xlu0 %5989
    %5991 = vrot.lane.b32.xlu0 %v5954, 126
    %v5992 = vpop.permute.xlu0 %5991
    %5993 = vrot.lane.b32.xlu0 %v5955, 126
    %v5994 = vpop.permute.xlu0 %5993
    %5995 = vrot.lane.b32.xlu0 %v5956, 126
    %v5996 = vpop.permute.xlu0 %5995
    %5997 = vrot.lane.b32.xlu0 %v5957, 126
    %v5998 = vpop.permute.xlu0 %5997
    %5999 = vrot.lane.b32.xlu0 %v5958, 126
    %v6000 = vpop.permute.xlu0 %5999
    %6001 = vrot.lane.b32.xlu0 %v5959, 126
    %v6002 = vpop.permute.xlu0 %6001
    %6003 = vrot.lane.b32.xlu0 %v5960, 126
    %v6004 = vpop.permute.xlu0 %6003
    %6005 = vrot.lane.b32.xlu0 %v5961, 126
    %v6006 = vpop.permute.xlu0 %6005
    %6007 = vrot.lane.b32.xlu0 %v5962, 126
    %v6008 = vpop.permute.xlu0 %6007
    %6009 = vrot.lane.b32.xlu0 %v5963, 126
    %v6010 = vpop.permute.xlu0 %6009
    %6011 = vrot.lane.b32.xlu0 %v5964, 126
    %v6012 = vpop.permute.xlu0 %6011
    %6013 = vrot.lane.b32.xlu0 %v5965, 126
    %v6014 = vpop.permute.xlu0 %6013
    %6015 = vrot.lane.b32.xlu0 %v5966, 126
    %v6016 = vpop.permute.xlu0 %6015
    %6017 = vrot.lane.b32.xlu0 %v5967, 126
    %v6018 = vpop.permute.xlu0 %6017
    %v6019 = vsel %vm1830, %v5986, %v5988
    %v6020 = vsel %vm1830, %v5988, %v5990
    %v6021 = vsel %vm1830, %v5990, %v5992
    %v6022 = vsel %vm1830, %v5992, %v5994
    %v6023 = vsel %vm1830, %v5994, %v5996
    %v6024 = vsel %vm1830, %v5996, %v5998
    %v6025 = vsel %vm1830, %v5998, %v6000
    %v6026 = vsel %vm1830, %v6000, %v6002
    %v6027 = vsel %vm1830, %v6002, %v6004
    %v6028 = vsel %vm1830, %v6004, %v6006
    %v6029 = vsel %vm1830, %v6006, %v6008
    %v6030 = vsel %vm1830, %v6008, %v6010
    %v6031 = vsel %vm1830, %v6010, %v6012
    %v6032 = vsel %vm1830, %v6012, %v6014
    %v6033 = vsel %vm1830, %v6014, %v6016
    %v6034 = vsel %vm1830, %v6016, %v6018
    %v6052 = vadd.f32 %v5888, %v6019
    %v6053 = vadd.f32 %v5889, %v6020
    %v6054 = vadd.f32 %v5890, %v6021
    %v6055 = vadd.f32 %v5891, %v6022
    %v6056 = vadd.f32 %v5892, %v6023
    %v6057 = vadd.f32 %v5893, %v6024
    %v6058 = vadd.f32 %v5894, %v6025
    %v6059 = vadd.f32 %v5895, %v6026
    %v6060 = vadd.f32 %v5896, %v6027
    %v6061 = vadd.f32 %v5897, %v6028
    %v6062 = vadd.f32 %v5898, %v6029
    %v6063 = vadd.f32 %v5899, %v6030
    %v6064 = vadd.f32 %v5900, %v6031
    %v6065 = vadd.f32 %v5901, %v6032
    %v6066 = vadd.f32 %v5902, %v6033
    %v6067 = vadd.f32 %v5903, %v6034
    %v6068 = vadd.f32 %v5904, %v6018
    %v6069 = vmul.f32 %v2221, %v4857
    %v6070 = vmul.f32 %v2221, %v4858
    %v6071 = vmul.f32 %v2221, %v4859
    %v6072 = vmul.f32 %v2221, %v4860
    %v6073 = vmul.f32 %v2221, %v4861
    %v6074 = vmul.f32 %v2221, %v4862
    %v6075 = vmul.f32 %v2221, %v4863
    %v6076 = vmul.f32 %v2221, %v4864
    %v6077 = vmul.f32 %v2221, %v4865
    %v6078 = vmul.f32 %v2221, %v4866
    %v6079 = vmul.f32 %v2221, %v4867
    %v6080 = vmul.f32 %v2221, %v4868
    %v6081 = vmul.f32 %v2221, %v4869
    %v6082 = vmul.f32 %v2221, %v4870
    %v6083 = vmul.f32 %v2221, %v4871
    %v6084 = vmul.f32 %v2221, %v4872
    %v6085 = vmul.f32 %v2221, %v4873
    %6103 = vrot.lane.b32.xlu0 %v6069, 64
    %v6104 = vpop.permute.xlu0 %6103
    %6105 = vrot.lane.b32.xlu0 %v6070, 64
    %v6106 = vpop.permute.xlu0 %6105
    %6107 = vrot.lane.b32.xlu0 %v6071, 64
    %v6108 = vpop.permute.xlu0 %6107
    %6109 = vrot.lane.b32.xlu0 %v6072, 64
    %v6110 = vpop.permute.xlu0 %6109
    %6111 = vrot.lane.b32.xlu0 %v6073, 64
    %v6112 = vpop.permute.xlu0 %6111
    %6113 = vrot.lane.b32.xlu0 %v6074, 64
    %v6114 = vpop.permute.xlu0 %6113
    %6115 = vrot.lane.b32.xlu0 %v6075, 64
    %v6116 = vpop.permute.xlu0 %6115
    %6117 = vrot.lane.b32.xlu0 %v6076, 64
    %v6118 = vpop.permute.xlu0 %6117
    %6119 = vrot.lane.b32.xlu0 %v6077, 64
    %v6120 = vpop.permute.xlu0 %6119
    %6121 = vrot.lane.b32.xlu0 %v6078, 64
    %v6122 = vpop.permute.xlu0 %6121
    %6123 = vrot.lane.b32.xlu0 %v6079, 64
    %v6124 = vpop.permute.xlu0 %6123
    %6125 = vrot.lane.b32.xlu0 %v6080, 64
    %v6126 = vpop.permute.xlu0 %6125
    %6127 = vrot.lane.b32.xlu0 %v6081, 64
    %v6128 = vpop.permute.xlu0 %6127
    %6129 = vrot.lane.b32.xlu0 %v6082, 64
    %v6130 = vpop.permute.xlu0 %6129
    %6131 = vrot.lane.b32.xlu0 %v6083, 64
    %v6132 = vpop.permute.xlu0 %6131
    %6133 = vrot.lane.b32.xlu0 %v6084, 64
    %v6134 = vpop.permute.xlu0 %6133
    %6135 = vrot.lane.b32.xlu0 %v6085, 64
    %v6136 = vpop.permute.xlu0 %6135
    %v6137 = vsel %vm2291, %v6104, %v6106
    %v6138 = vsel %vm2291, %v6106, %v6108
    %v6139 = vsel %vm2291, %v6108, %v6110
    %v6140 = vsel %vm2291, %v6110, %v6112
    %v6141 = vsel %vm2291, %v6112, %v6114
    %v6142 = vsel %vm2291, %v6114, %v6116
    %v6143 = vsel %vm2291, %v6116, %v6118
    %v6144 = vsel %vm2291, %v6118, %v6120
    %v6145 = vsel %vm2291, %v6120, %v6122
    %v6146 = vsel %vm2291, %v6122, %v6124
    %v6147 = vsel %vm2291, %v6124, %v6126
    %v6148 = vsel %vm2291, %v6126, %v6128
    %v6149 = vsel %vm2291, %v6128, %v6130
    %v6150 = vsel %vm2291, %v6130, %v6132
    %v6151 = vsel %vm2291, %v6132, %v6134
    %v6152 = vsel %vm2291, %v6134, %v6136
    %v6170 = vadd.f32 %v6052, %v6137
    %v6171 = vadd.f32 %v6053, %v6138
    %v6172 = vadd.f32 %v6054, %v6139
    %v6173 = vadd.f32 %v6055, %v6140
    %v6174 = vadd.f32 %v6056, %v6141
    %v6175 = vadd.f32 %v6057, %v6142
    %v6176 = vadd.f32 %v6058, %v6143
    %v6177 = vadd.f32 %v6059, %v6144
    %v6178 = vadd.f32 %v6060, %v6145
    %v6179 = vadd.f32 %v6061, %v6146
    %v6180 = vadd.f32 %v6062, %v6147
    %v6181 = vadd.f32 %v6063, %v6148
    %v6182 = vadd.f32 %v6064, %v6149
    %v6183 = vadd.f32 %v6065, %v6150
    %v6184 = vadd.f32 %v6066, %v6151
    %v6185 = vadd.f32 %v6067, %v6152
    %v6186 = vadd.f32 %v6068, %v6136
    %v6187 = vmul.f32 %v2344, %v4937
    %v6188 = vmul.f32 %v2344, %v4938
    %v6189 = vmul.f32 %v2344, %v4939
    %v6190 = vmul.f32 %v2344, %v4940
    %v6191 = vmul.f32 %v2344, %v4941
    %v6192 = vmul.f32 %v2344, %v4942
    %v6193 = vmul.f32 %v2344, %v4943
    %v6194 = vmul.f32 %v2344, %v4944
    %v6195 = vmul.f32 %v2344, %v4945
    %v6196 = vmul.f32 %v2344, %v4946
    %v6197 = vmul.f32 %v2344, %v4947
    %v6198 = vmul.f32 %v2344, %v4948
    %v6199 = vmul.f32 %v2344, %v4949
    %v6200 = vmul.f32 %v2344, %v4950
    %v6201 = vmul.f32 %v2344, %v4951
    %v6202 = vmul.f32 %v2344, %v4952
    %v6203 = vmul.f32 %v2344, %v4953
    %6221 = vrot.lane.b32.xlu0 %v6187, 64
    %v6222 = vpop.permute.xlu0 %6221
    %6223 = vrot.lane.b32.xlu0 %v6188, 64
    %v6224 = vpop.permute.xlu0 %6223
    %6225 = vrot.lane.b32.xlu0 %v6189, 64
    %v6226 = vpop.permute.xlu0 %6225
    %6227 = vrot.lane.b32.xlu0 %v6190, 64
    %v6228 = vpop.permute.xlu0 %6227
    %6229 = vrot.lane.b32.xlu0 %v6191, 64
    %v6230 = vpop.permute.xlu0 %6229
    %6231 = vrot.lane.b32.xlu0 %v6192, 64
    %v6232 = vpop.permute.xlu0 %6231
    %6233 = vrot.lane.b32.xlu0 %v6193, 64
    %v6234 = vpop.permute.xlu0 %6233
    %6235 = vrot.lane.b32.xlu0 %v6194, 64
    %v6236 = vpop.permute.xlu0 %6235
    %6237 = vrot.lane.b32.xlu0 %v6195, 64
    %v6238 = vpop.permute.xlu0 %6237
    %6239 = vrot.lane.b32.xlu0 %v6196, 64
    %v6240 = vpop.permute.xlu0 %6239
    %6241 = vrot.lane.b32.xlu0 %v6197, 64
    %v6242 = vpop.permute.xlu0 %6241
    %6243 = vrot.lane.b32.xlu0 %v6198, 64
    %v6244 = vpop.permute.xlu0 %6243
    %6245 = vrot.lane.b32.xlu0 %v6199, 64
    %v6246 = vpop.permute.xlu0 %6245
    %6247 = vrot.lane.b32.xlu0 %v6200, 64
    %v6248 = vpop.permute.xlu0 %6247
    %6249 = vrot.lane.b32.xlu0 %v6201, 64
    %v6250 = vpop.permute.xlu0 %6249
    %6251 = vrot.lane.b32.xlu0 %v6202, 64
    %v6252 = vpop.permute.xlu0 %6251
    %6253 = vrot.lane.b32.xlu0 %v6203, 64
    %v6254 = vpop.permute.xlu0 %6253
    %v6255 = vsel %vm2291, %v6222, %v6224
    %v6256 = vsel %vm2291, %v6224, %v6226
    %v6257 = vsel %vm2291, %v6226, %v6228
    %v6258 = vsel %vm2291, %v6228, %v6230
    %v6259 = vsel %vm2291, %v6230, %v6232
    %v6260 = vsel %vm2291, %v6232, %v6234
    %v6261 = vsel %vm2291, %v6234, %v6236
    %v6262 = vsel %vm2291, %v6236, %v6238
    %v6263 = vsel %vm2291, %v6238, %v6240
    %v6264 = vsel %vm2291, %v6240, %v6242
    %v6265 = vsel %vm2291, %v6242, %v6244
    %v6266 = vsel %vm2291, %v6244, %v6246
    %v6267 = vsel %vm2291, %v6246, %v6248
    %v6268 = vsel %vm2291, %v6248, %v6250
    %v6269 = vsel %vm2291, %v6250, %v6252
    %v6270 = vsel %vm2291, %v6252, %v6254
    %v6288 = vadd.f32 %v6170, %v6255
    %v6289 = vadd.f32 %v6171, %v6256
    %v6290 = vadd.f32 %v6172, %v6257
    %v6291 = vadd.f32 %v6173, %v6258
    %v6292 = vadd.f32 %v6174, %v6259
    %v6293 = vadd.f32 %v6175, %v6260
    %v6294 = vadd.f32 %v6176, %v6261
    %v6295 = vadd.f32 %v6177, %v6262
    %v6296 = vadd.f32 %v6178, %v6263
    %v6297 = vadd.f32 %v6179, %v6264
    %v6298 = vadd.f32 %v6180, %v6265
    %v6299 = vadd.f32 %v6181, %v6266
    %v6300 = vadd.f32 %v6182, %v6267
    %v6301 = vadd.f32 %v6183, %v6268
    %v6302 = vadd.f32 %v6184, %v6269
    %v6303 = vadd.f32 %v6185, %v6270
    %v6304 = vadd.f32 %v6186, %v6254
    %v6305 = vmul.f32 %v2466, %v5017
    %v6306 = vmul.f32 %v2466, %v5018
    %v6307 = vmul.f32 %v2466, %v5019
    %v6308 = vmul.f32 %v2466, %v5020
    %v6309 = vmul.f32 %v2466, %v5021
    %v6310 = vmul.f32 %v2466, %v5022
    %v6311 = vmul.f32 %v2466, %v5023
    %v6312 = vmul.f32 %v2466, %v5024
    %v6313 = vmul.f32 %v2466, %v5025
    %v6314 = vmul.f32 %v2466, %v5026
    %v6315 = vmul.f32 %v2466, %v5027
    %v6316 = vmul.f32 %v2466, %v5028
    %v6317 = vmul.f32 %v2466, %v5029
    %v6318 = vmul.f32 %v2466, %v5030
    %v6319 = vmul.f32 %v2466, %v5031
    %v6320 = vmul.f32 %v2466, %v5032
    %v6321 = vmul.f32 %v2466, %v5033
    %6339 = vrot.lane.b32.xlu0 %v6305, 64
    %v6340 = vpop.permute.xlu0 %6339
    %6341 = vrot.lane.b32.xlu0 %v6306, 64
    %v6342 = vpop.permute.xlu0 %6341
    %6343 = vrot.lane.b32.xlu0 %v6307, 64
    %v6344 = vpop.permute.xlu0 %6343
    %6345 = vrot.lane.b32.xlu0 %v6308, 64
    %v6346 = vpop.permute.xlu0 %6345
    %6347 = vrot.lane.b32.xlu0 %v6309, 64
    %v6348 = vpop.permute.xlu0 %6347
    %6349 = vrot.lane.b32.xlu0 %v6310, 64
    %v6350 = vpop.permute.xlu0 %6349
    %6351 = vrot.lane.b32.xlu0 %v6311, 64
    %v6352 = vpop.permute.xlu0 %6351
    %6353 = vrot.lane.b32.xlu0 %v6312, 64
    %v6354 = vpop.permute.xlu0 %6353
    %6355 = vrot.lane.b32.xlu0 %v6313, 64
    %v6356 = vpop.permute.xlu0 %6355
    %6357 = vrot.lane.b32.xlu0 %v6314, 64
    %v6358 = vpop.permute.xlu0 %6357
    %6359 = vrot.lane.b32.xlu0 %v6315, 64
    %v6360 = vpop.permute.xlu0 %6359
    %6361 = vrot.lane.b32.xlu0 %v6316, 64
    %v6362 = vpop.permute.xlu0 %6361
    %6363 = vrot.lane.b32.xlu0 %v6317, 64
    %v6364 = vpop.permute.xlu0 %6363
    %6365 = vrot.lane.b32.xlu0 %v6318, 64
    %v6366 = vpop.permute.xlu0 %6365
    %6367 = vrot.lane.b32.xlu0 %v6319, 64
    %v6368 = vpop.permute.xlu0 %6367
    %6369 = vrot.lane.b32.xlu0 %v6320, 64
    %v6370 = vpop.permute.xlu0 %6369
    %6371 = vrot.lane.b32.xlu0 %v6321, 64
    %v6372 = vpop.permute.xlu0 %6371
    %v6373 = vsel %vm2291, %v6340, %v6342
    %v6374 = vsel %vm2291, %v6342, %v6344
    %v6375 = vsel %vm2291, %v6344, %v6346
    %v6376 = vsel %vm2291, %v6346, %v6348
    %v6377 = vsel %vm2291, %v6348, %v6350
    %v6378 = vsel %vm2291, %v6350, %v6352
    %v6379 = vsel %vm2291, %v6352, %v6354
    %v6380 = vsel %vm2291, %v6354, %v6356
    %v6381 = vsel %vm2291, %v6356, %v6358
    %v6382 = vsel %vm2291, %v6358, %v6360
    %v6383 = vsel %vm2291, %v6360, %v6362
    %v6384 = vsel %vm2291, %v6362, %v6364
    %v6385 = vsel %vm2291, %v6364, %v6366
    %v6386 = vsel %vm2291, %v6366, %v6368
    %v6387 = vsel %vm2291, %v6368, %v6370
    %v6388 = vsel %vm2291, %v6370, %v6372
    %v6406 = vadd.f32 %v6288, %v6373
    %v6407 = vadd.f32 %v6289, %v6374
    %v6408 = vadd.f32 %v6290, %v6375
    %v6409 = vadd.f32 %v6291, %v6376
    %v6410 = vadd.f32 %v6292, %v6377
    %v6411 = vadd.f32 %v6293, %v6378
    %v6412 = vadd.f32 %v6294, %v6379
    %v6413 = vadd.f32 %v6295, %v6380
    %v6414 = vadd.f32 %v6296, %v6381
    %v6415 = vadd.f32 %v6297, %v6382
    %v6416 = vadd.f32 %v6298, %v6383
    %v6417 = vadd.f32 %v6299, %v6384
    %v6418 = vadd.f32 %v6300, %v6385
    %v6419 = vadd.f32 %v6301, %v6386
    %v6420 = vadd.f32 %v6302, %v6387
    %v6421 = vadd.f32 %v6303, %v6388
    %v6422 = vadd.f32 %v6304, %v6372
    %v6423 = vld [vmem:[%s3833] ss:$8 sm:$0xf]
    %v6424 = vld [vmem:[%s3833] ss:$8 sm:$0xf0]
    %v6425 = vor.u32 %v6423, %v6424
    %s6426 = scalar_lea.vmem [#allocation2], 200
    %v6427 = vld [vmem:[%s6426] ss:$8 sm:$0xf]
    %v6428 = vld [vmem:[%s6426] ss:$8 sm:$0xf0]
    %v6429 = vor.u32 %v6427, %v6428
    %v6432 = vperm.slane %v6425, 0
    %v6433 = vperm.slane %v6425, 1
    %v6434 = vperm.slane %v6425, 2
    %v6435 = vperm.slane %v6425, 3
    %v6436 = vperm.slane %v6425, 4
    %v6437 = vperm.slane %v6425, 5
    %v6438 = vperm.slane %v6425, 6
    %v6439 = vperm.slane %v6425, 7
    %v6440 = vperm.slane %v6429, 0
    %v6441 = vperm.slane %v6429, 1
    %v6442 = vperm.slane %v6429, 2
    %v6443 = vperm.slane %v6429, 3
    %v6444 = vperm.slane %v6429, 4
    %v6445 = vperm.slane %v6429, 5
    %v6446 = vperm.slane %v6429, 6
    %v6447 = vperm.slane %v6429, 7
    %v6464 = vmul.f32 %v2596, %v6432
    %v6465 = vmul.f32 %v2596, %v6433
    %v6466 = vmul.f32 %v2596, %v6434
    %v6467 = vmul.f32 %v2596, %v6435
    %v6468 = vmul.f32 %v2596, %v6436
    %v6469 = vmul.f32 %v2596, %v6437
    %v6470 = vmul.f32 %v2596, %v6438
    %v6471 = vmul.f32 %v2596, %v6439
    %v6472 = vmul.f32 %v2596, %v6440
    %v6473 = vmul.f32 %v2596, %v6441
    %v6474 = vmul.f32 %v2596, %v6442
    %v6475 = vmul.f32 %v2596, %v6443
    %v6476 = vmul.f32 %v2596, %v6444
    %v6477 = vmul.f32 %v2596, %v6445
    %v6478 = vmul.f32 %v2596, %v6446
    %v6479 = vmul.f32 %v2596, %v6447
    %6496 = vrot.lane.b32.xlu0 %v6464, 63
    %v6497 = vpop.permute.xlu0 %6496
    %6498 = vrot.lane.b32.xlu0 %v6465, 63
    %v6499 = vpop.permute.xlu0 %6498
    %6500 = vrot.lane.b32.xlu0 %v6466, 63
    %v6501 = vpop.permute.xlu0 %6500
    %6502 = vrot.lane.b32.xlu0 %v6467, 63
    %v6503 = vpop.permute.xlu0 %6502
    %6504 = vrot.lane.b32.xlu0 %v6468, 63
    %v6505 = vpop.permute.xlu0 %6504
    %6506 = vrot.lane.b32.xlu0 %v6469, 63
    %v6507 = vpop.permute.xlu0 %6506
    %6508 = vrot.lane.b32.xlu0 %v6470, 63
    %v6509 = vpop.permute.xlu0 %6508
    %6510 = vrot.lane.b32.xlu0 %v6471, 63
    %v6511 = vpop.permute.xlu0 %6510
    %6512 = vrot.lane.b32.xlu0 %v6472, 63
    %v6513 = vpop.permute.xlu0 %6512
    %6514 = vrot.lane.b32.xlu0 %v6473, 63
    %v6515 = vpop.permute.xlu0 %6514
    %6516 = vrot.lane.b32.xlu0 %v6474, 63
    %v6517 = vpop.permute.xlu0 %6516
    %6518 = vrot.lane.b32.xlu0 %v6475, 63
    %v6519 = vpop.permute.xlu0 %6518
    %6520 = vrot.lane.b32.xlu0 %v6476, 63
    %v6521 = vpop.permute.xlu0 %6520
    %6522 = vrot.lane.b32.xlu0 %v6477, 63
    %v6523 = vpop.permute.xlu0 %6522
    %6524 = vrot.lane.b32.xlu0 %v6478, 63
    %v6525 = vpop.permute.xlu0 %6524
    %6526 = vrot.lane.b32.xlu0 %v6479, 63
    %v6527 = vpop.permute.xlu0 %6526
    %v6528 = vsel %vm2696, %v6497, %v6499
    %v6529 = vsel %vm2696, %v6499, %v6501
    %v6530 = vsel %vm2696, %v6501, %v6503
    %v6531 = vsel %vm2696, %v6503, %v6505
    %v6532 = vsel %vm2696, %v6505, %v6507
    %v6533 = vsel %vm2696, %v6507, %v6509
    %v6534 = vsel %vm2696, %v6509, %v6511
    %v6535 = vsel %vm2696, %v6511, %v6513
    %v6536 = vsel %vm2696, %v6513, %v6515
    %v6537 = vsel %vm2696, %v6515, %v6517
    %v6538 = vsel %vm2696, %v6517, %v6519
    %v6539 = vsel %vm2696, %v6519, %v6521
    %v6540 = vsel %vm2696, %v6521, %v6523
    %v6541 = vsel %vm2696, %v6523, %v6525
    %v6542 = vsel %vm2696, %v6525, %v6527
    %v6560 = vadd.f32 %v6406, %v6497
    %v6561 = vadd.f32 %v6407, %v6528
    %v6562 = vadd.f32 %v6408, %v6529
    %v6563 = vadd.f32 %v6409, %v6530
    %v6564 = vadd.f32 %v6410, %v6531
    %v6565 = vadd.f32 %v6411, %v6532
    %v6566 = vadd.f32 %v6412, %v6533
    %v6567 = vadd.f32 %v6413, %v6534
    %v6568 = vadd.f32 %v6414, %v6535
    %v6569 = vadd.f32 %v6415, %v6536
    %v6570 = vadd.f32 %v6416, %v6537
    %v6571 = vadd.f32 %v6417, %v6538
    %v6572 = vadd.f32 %v6418, %v6539
    %v6573 = vadd.f32 %v6419, %v6540
    %v6574 = vadd.f32 %v6420, %v6541
    %v6575 = vadd.f32 %v6421, %v6542
    %v6576 = vadd.f32 %v6422, %v6527
    %v6577 = vld [vmem:[%s4000] ss:$8 sm:$0xf]
    %v6578 = vld [vmem:[%s4000] ss:$8 sm:$0xf0]
    %v6579 = vor.u32 %v6577, %v6578
    %s6580 = scalar_lea.vmem [#allocation2], 201
    %v6581 = vld [vmem:[%s6580] ss:$8 sm:$0xf]
    %v6582 = vld [vmem:[%s6580] ss:$8 sm:$0xf0]
    %v6583 = vor.u32 %v6581, %v6582
    %v6586 = vperm.slane %v6579, 0
    %v6587 = vperm.slane %v6579, 1
    %v6588 = vperm.slane %v6579, 2
    %v6589 = vperm.slane %v6579, 3
    %v6590 = vperm.slane %v6579, 4
    %v6591 = vperm.slane %v6579, 5
    %v6592 = vperm.slane %v6579, 6
    %v6593 = vperm.slane %v6579, 7
    %v6594 = vperm.slane %v6583, 0
    %v6595 = vperm.slane %v6583, 1
    %v6596 = vperm.slane %v6583, 2
    %v6597 = vperm.slane %v6583, 3
    %v6598 = vperm.slane %v6583, 4
    %v6599 = vperm.slane %v6583, 5
    %v6600 = vperm.slane %v6583, 6
    %v6601 = vperm.slane %v6583, 7
    %v6618 = vmul.f32 %v2756, %v6586
    %v6619 = vmul.f32 %v2756, %v6587
    %v6620 = vmul.f32 %v2756, %v6588
    %v6621 = vmul.f32 %v2756, %v6589
    %v6622 = vmul.f32 %v2756, %v6590
    %v6623 = vmul.f32 %v2756, %v6591
    %v6624 = vmul.f32 %v2756, %v6592
    %v6625 = vmul.f32 %v2756, %v6593
    %v6626 = vmul.f32 %v2756, %v6594
    %v6627 = vmul.f32 %v2756, %v6595
    %v6628 = vmul.f32 %v2756, %v6596
    %v6629 = vmul.f32 %v2756, %v6597
    %v6630 = vmul.f32 %v2756, %v6598
    %v6631 = vmul.f32 %v2756, %v6599
    %v6632 = vmul.f32 %v2756, %v6600
    %v6633 = vmul.f32 %v2756, %v6601
    %6650 = vrot.lane.b32.xlu0 %v6618, 63
    %v6651 = vpop.permute.xlu0 %6650
    %6652 = vrot.lane.b32.xlu0 %v6619, 63
    %v6653 = vpop.permute.xlu0 %6652
    %6654 = vrot.lane.b32.xlu0 %v6620, 63
    %v6655 = vpop.permute.xlu0 %6654
    %6656 = vrot.lane.b32.xlu0 %v6621, 63
    %v6657 = vpop.permute.xlu0 %6656
    %6658 = vrot.lane.b32.xlu0 %v6622, 63
    %v6659 = vpop.permute.xlu0 %6658
    %6660 = vrot.lane.b32.xlu0 %v6623, 63
    %v6661 = vpop.permute.xlu0 %6660
    %6662 = vrot.lane.b32.xlu0 %v6624, 63
    %v6663 = vpop.permute.xlu0 %6662
    %6664 = vrot.lane.b32.xlu0 %v6625, 63
    %v6665 = vpop.permute.xlu0 %6664
    %6666 = vrot.lane.b32.xlu0 %v6626, 63
    %v6667 = vpop.permute.xlu0 %6666
    %6668 = vrot.lane.b32.xlu0 %v6627, 63
    %v6669 = vpop.permute.xlu0 %6668
    %6670 = vrot.lane.b32.xlu0 %v6628, 63
    %v6671 = vpop.permute.xlu0 %6670
    %6672 = vrot.lane.b32.xlu0 %v6629, 63
    %v6673 = vpop.permute.xlu0 %6672
    %6674 = vrot.lane.b32.xlu0 %v6630, 63
    %v6675 = vpop.permute.xlu0 %6674
    %6676 = vrot.lane.b32.xlu0 %v6631, 63
    %v6677 = vpop.permute.xlu0 %6676
    %6678 = vrot.lane.b32.xlu0 %v6632, 63
    %v6679 = vpop.permute.xlu0 %6678
    %6680 = vrot.lane.b32.xlu0 %v6633, 63
    %v6681 = vpop.permute.xlu0 %6680
    %v6682 = vsel %vm2696, %v6651, %v6653
    %v6683 = vsel %vm2696, %v6653, %v6655
    %v6684 = vsel %vm2696, %v6655, %v6657
    %v6685 = vsel %vm2696, %v6657, %v6659
    %v6686 = vsel %vm2696, %v6659, %v6661
    %v6687 = vsel %vm2696, %v6661, %v6663
    %v6688 = vsel %vm2696, %v6663, %v6665
    %v6689 = vsel %vm2696, %v6665, %v6667
    %v6690 = vsel %vm2696, %v6667, %v6669
    %v6691 = vsel %vm2696, %v6669, %v6671
    %v6692 = vsel %vm2696, %v6671, %v6673
    %v6693 = vsel %vm2696, %v6673, %v6675
    %v6694 = vsel %vm2696, %v6675, %v6677
    %v6695 = vsel %vm2696, %v6677, %v6679
    %v6696 = vsel %vm2696, %v6679, %v6681
    %v6714 = vadd.f32 %v6560, %v6651
    %v6715 = vadd.f32 %v6561, %v6682
    %v6716 = vadd.f32 %v6562, %v6683
    %v6717 = vadd.f32 %v6563, %v6684
    %v6718 = vadd.f32 %v6564, %v6685
    %v6719 = vadd.f32 %v6565, %v6686
    %v6720 = vadd.f32 %v6566, %v6687
    %v6721 = vadd.f32 %v6567, %v6688
    %v6722 = vadd.f32 %v6568, %v6689
    %v6723 = vadd.f32 %v6569, %v6690
    %v6724 = vadd.f32 %v6570, %v6691
    %v6725 = vadd.f32 %v6571, %v6692
    %v6726 = vadd.f32 %v6572, %v6693
    %v6727 = vadd.f32 %v6573, %v6694
    %v6728 = vadd.f32 %v6574, %v6695
    %v6729 = vadd.f32 %v6575, %v6696
    %v6730 = vadd.f32 %v6576, %v6681
    %v6731 = vld [vmem:[%s4167] ss:$8 sm:$0xf]
    %v6732 = vld [vmem:[%s4167] ss:$8 sm:$0xf0]
    %v6733 = vor.u32 %v6731, %v6732
    %s6734 = scalar_lea.vmem [#allocation2], 202
    %v6735 = vld [vmem:[%s6734] ss:$8 sm:$0xf]
    %v6736 = vld [vmem:[%s6734] ss:$8 sm:$0xf0]
    %v6737 = vor.u32 %v6735, %v6736
    %v6740 = vperm.slane %v6733, 0
    %v6741 = vperm.slane %v6733, 1
    %v6742 = vperm.slane %v6733, 2
    %v6743 = vperm.slane %v6733, 3
    %v6744 = vperm.slane %v6733, 4
    %v6745 = vperm.slane %v6733, 5
    %v6746 = vperm.slane %v6733, 6
    %v6747 = vperm.slane %v6733, 7
    %v6748 = vperm.slane %v6737, 0
    %v6749 = vperm.slane %v6737, 1
    %v6750 = vperm.slane %v6737, 2
    %v6751 = vperm.slane %v6737, 3
    %v6752 = vperm.slane %v6737, 4
    %v6753 = vperm.slane %v6737, 5
    %v6754 = vperm.slane %v6737, 6
    %v6755 = vperm.slane %v6737, 7
    %v6772 = vmul.f32 %v2915, %v6740
    %v6773 = vmul.f32 %v2915, %v6741
    %v6774 = vmul.f32 %v2915, %v6742
    %v6775 = vmul.f32 %v2915, %v6743
    %v6776 = vmul.f32 %v2915, %v6744
    %v6777 = vmul.f32 %v2915, %v6745
    %v6778 = vmul.f32 %v2915, %v6746
    %v6779 = vmul.f32 %v2915, %v6747
    %v6780 = vmul.f32 %v2915, %v6748
    %v6781 = vmul.f32 %v2915, %v6749
    %v6782 = vmul.f32 %v2915, %v6750
    %v6783 = vmul.f32 %v2915, %v6751
    %v6784 = vmul.f32 %v2915, %v6752
    %v6785 = vmul.f32 %v2915, %v6753
    %v6786 = vmul.f32 %v2915, %v6754
    %v6787 = vmul.f32 %v2915, %v6755
    %6804 = vrot.lane.b32.xlu0 %v6772, 63
    %v6805 = vpop.permute.xlu0 %6804
    %6806 = vrot.lane.b32.xlu0 %v6773, 63
    %v6807 = vpop.permute.xlu0 %6806
    %6808 = vrot.lane.b32.xlu0 %v6774, 63
    %v6809 = vpop.permute.xlu0 %6808
    %6810 = vrot.lane.b32.xlu0 %v6775, 63
    %v6811 = vpop.permute.xlu0 %6810
    %6812 = vrot.lane.b32.xlu0 %v6776, 63
    %v6813 = vpop.permute.xlu0 %6812
    %6814 = vrot.lane.b32.xlu0 %v6777, 63
    %v6815 = vpop.permute.xlu0 %6814
    %6816 = vrot.lane.b32.xlu0 %v6778, 63
    %v6817 = vpop.permute.xlu0 %6816
    %6818 = vrot.lane.b32.xlu0 %v6779, 63
    %v6819 = vpop.permute.xlu0 %6818
    %6820 = vrot.lane.b32.xlu0 %v6780, 63
    %v6821 = vpop.permute.xlu0 %6820
    %6822 = vrot.lane.b32.xlu0 %v6781, 63
    %v6823 = vpop.permute.xlu0 %6822
    %6824 = vrot.lane.b32.xlu0 %v6782, 63
    %v6825 = vpop.permute.xlu0 %6824
    %6826 = vrot.lane.b32.xlu0 %v6783, 63
    %v6827 = vpop.permute.xlu0 %6826
    %6828 = vrot.lane.b32.xlu0 %v6784, 63
    %v6829 = vpop.permute.xlu0 %6828
    %6830 = vrot.lane.b32.xlu0 %v6785, 63
    %v6831 = vpop.permute.xlu0 %6830
    %6832 = vrot.lane.b32.xlu0 %v6786, 63
    %v6833 = vpop.permute.xlu0 %6832
    %6834 = vrot.lane.b32.xlu0 %v6787, 63
    %v6835 = vpop.permute.xlu0 %6834
    %v6836 = vsel %vm2696, %v6805, %v6807
    %v6837 = vsel %vm2696, %v6807, %v6809
    %v6838 = vsel %vm2696, %v6809, %v6811
    %v6839 = vsel %vm2696, %v6811, %v6813
    %v6840 = vsel %vm2696, %v6813, %v6815
    %v6841 = vsel %vm2696, %v6815, %v6817
    %v6842 = vsel %vm2696, %v6817, %v6819
    %v6843 = vsel %vm2696, %v6819, %v6821
    %v6844 = vsel %vm2696, %v6821, %v6823
    %v6845 = vsel %vm2696, %v6823, %v6825
    %v6846 = vsel %vm2696, %v6825, %v6827
    %v6847 = vsel %vm2696, %v6827, %v6829
    %v6848 = vsel %vm2696, %v6829, %v6831
    %v6849 = vsel %vm2696, %v6831, %v6833
    %v6850 = vsel %vm2696, %v6833, %v6835
    %v6868 = vadd.f32 %v6714, %v6805
    %v6869 = vadd.f32 %v6715, %v6836
    %v6870 = vadd.f32 %v6716, %v6837
    %v6871 = vadd.f32 %v6717, %v6838
    %v6872 = vadd.f32 %v6718, %v6839
    %v6873 = vadd.f32 %v6719, %v6840
    %v6874 = vadd.f32 %v6720, %v6841
    %v6875 = vadd.f32 %v6721, %v6842
    %v6876 = vadd.f32 %v6722, %v6843
    %v6877 = vadd.f32 %v6723, %v6844
    %v6878 = vadd.f32 %v6724, %v6845
    %v6879 = vadd.f32 %v6725, %v6846
    %v6880 = vadd.f32 %v6726, %v6847
    %v6881 = vadd.f32 %v6727, %v6848
    %v6882 = vadd.f32 %v6728, %v6849
    %v6883 = vadd.f32 %v6729, %v6850
    %v6884 = vadd.f32 %v6730, %v6835
    %v6885 = vld [vmem:[%s3072] ss:$8 sm:$0xf]
    %v6886 = vld [vmem:[%s3072] ss:$8 sm:$0xf0]
    %v6887 = vor.u32 %v6885, %v6886
    %s6888 = scalar_lea.vmem [#allocation4], 200
    %v6889 = vld [vmem:[%s6888] ss:$8 sm:$0xf]
    %v6890 = vld [vmem:[%s6888] ss:$8 sm:$0xf0]
    %v6891 = vor.u32 %v6889, %v6890
    %s6892 = scalar_lea.vmem [#allocation4], 264
    %v6893 = vld [vmem:[%s6892] ss:$8 sm:$0x1]
    %v6897 = vperm.slane %v6887, 0
    %v6898 = vperm.slane %v6887, 1
    %v6899 = vperm.slane %v6887, 2
    %v6900 = vperm.slane %v6887, 3
    %v6901 = vperm.slane %v6887, 4
    %v6902 = vperm.slane %v6887, 5
    %v6903 = vperm.slane %v6887, 6
    %v6904 = vperm.slane %v6887, 7
    %v6905 = vperm.slane %v6891, 0
    %v6906 = vperm.slane %v6891, 1
    %v6907 = vperm.slane %v6891, 2
    %v6908 = vperm.slane %v6891, 3
    %v6909 = vperm.slane %v6891, 4
    %v6910 = vperm.slane %v6891, 5
    %v6911 = vperm.slane %v6891, 6
    %v6912 = vperm.slane %v6891, 7
    %v6913 = vperm.slane %v6893, 0
    %v6931 = vmul.f32 %v3076, %v6897
    %v6932 = vmul.f32 %v3076, %v6898
    %v6933 = vmul.f32 %v3076, %v6899
    %v6934 = vmul.f32 %v3076, %v6900
    %v6935 = vmul.f32 %v3076, %v6901
    %v6936 = vmul.f32 %v3076, %v6902
    %v6937 = vmul.f32 %v3076, %v6903
    %v6938 = vmul.f32 %v3076, %v6904
    %v6939 = vmul.f32 %v3076, %v6905
    %v6940 = vmul.f32 %v3076, %v6906
    %v6941 = vmul.f32 %v3076, %v6907
    %v6942 = vmul.f32 %v3076, %v6908
    %v6943 = vmul.f32 %v3076, %v6909
    %v6944 = vmul.f32 %v3076, %v6910
    %v6945 = vmul.f32 %v3076, %v6911
    %v6946 = vmul.f32 %v3076, %v6912
    %v6947 = vmul.f32 %v3076, %v6913
    %6965 = vrot.lane.b32.xlu0 %v6931, 62
    %v6966 = vpop.permute.xlu0 %6965
    %6967 = vrot.lane.b32.xlu0 %v6932, 62
    %v6968 = vpop.permute.xlu0 %6967
    %6969 = vrot.lane.b32.xlu0 %v6933, 62
    %v6970 = vpop.permute.xlu0 %6969
    %6971 = vrot.lane.b32.xlu0 %v6934, 62
    %v6972 = vpop.permute.xlu0 %6971
    %6973 = vrot.lane.b32.xlu0 %v6935, 62
    %v6974 = vpop.permute.xlu0 %6973
    %6975 = vrot.lane.b32.xlu0 %v6936, 62
    %v6976 = vpop.permute.xlu0 %6975
    %6977 = vrot.lane.b32.xlu0 %v6937, 62
    %v6978 = vpop.permute.xlu0 %6977
    %6979 = vrot.lane.b32.xlu0 %v6938, 62
    %v6980 = vpop.permute.xlu0 %6979
    %6981 = vrot.lane.b32.xlu0 %v6939, 62
    %v6982 = vpop.permute.xlu0 %6981
    %6983 = vrot.lane.b32.xlu0 %v6940, 62
    %v6984 = vpop.permute.xlu0 %6983
    %6985 = vrot.lane.b32.xlu0 %v6941, 62
    %v6986 = vpop.permute.xlu0 %6985
    %6987 = vrot.lane.b32.xlu0 %v6942, 62
    %v6988 = vpop.permute.xlu0 %6987
    %6989 = vrot.lane.b32.xlu0 %v6943, 62
    %v6990 = vpop.permute.xlu0 %6989
    %6991 = vrot.lane.b32.xlu0 %v6944, 62
    %v6992 = vpop.permute.xlu0 %6991
    %6993 = vrot.lane.b32.xlu0 %v6945, 62
    %v6994 = vpop.permute.xlu0 %6993
    %6995 = vrot.lane.b32.xlu0 %v6946, 62
    %v6996 = vpop.permute.xlu0 %6995
    %6997 = vrot.lane.b32.xlu0 %v6947, 62
    %v6998 = vpop.permute.xlu0 %6997
    %v6999 = vsel %vm3183, %v6966, %v6968
    %v7000 = vsel %vm3183, %v6968, %v6970
    %v7001 = vsel %vm3183, %v6970, %v6972
    %v7002 = vsel %vm3183, %v6972, %v6974
    %v7003 = vsel %vm3183, %v6974, %v6976
    %v7004 = vsel %vm3183, %v6976, %v6978
    %v7005 = vsel %vm3183, %v6978, %v6980
    %v7006 = vsel %vm3183, %v6980, %v6982
    %v7007 = vsel %vm3183, %v6982, %v6984
    %v7008 = vsel %vm3183, %v6984, %v6986
    %v7009 = vsel %vm3183, %v6986, %v6988
    %v7010 = vsel %vm3183, %v6988, %v6990
    %v7011 = vsel %vm3183, %v6990, %v6992
    %v7012 = vsel %vm3183, %v6992, %v6994
    %v7013 = vsel %vm3183, %v6994, %v6996
    %v7014 = vsel %vm3183, %v6996, %v6998
    %v7032 = vadd.f32 %v6868, %v6966
    %v7033 = vadd.f32 %v6869, %v6999
    %v7034 = vadd.f32 %v6870, %v7000
    %v7035 = vadd.f32 %v6871, %v7001
    %v7036 = vadd.f32 %v6872, %v7002
    %v7037 = vadd.f32 %v6873, %v7003
    %v7038 = vadd.f32 %v6874, %v7004
    %v7039 = vadd.f32 %v6875, %v7005
    %v7040 = vadd.f32 %v6876, %v7006
    %v7041 = vadd.f32 %v6877, %v7007
    %v7042 = vadd.f32 %v6878, %v7008
    %v7043 = vadd.f32 %v6879, %v7009
    %v7044 = vadd.f32 %v6880, %v7010
    %v7045 = vadd.f32 %v6881, %v7011
    %v7046 = vadd.f32 %v6882, %v7012
    %v7047 = vadd.f32 %v6883, %v7013
    %v7048 = vadd.f32 %v6884, %v7014
    %v7049 = vld [vmem:[%s3242] ss:$8 sm:$0xf]
    %v7050 = vld [vmem:[%s3242] ss:$8 sm:$0xf0]
    %v7051 = vor.u32 %v7049, %v7050
    %s7052 = scalar_lea.vmem [#allocation4], 201
    %v7053 = vld [vmem:[%s7052] ss:$8 sm:$0xf]
    %v7054 = vld [vmem:[%s7052] ss:$8 sm:$0xf0]
    %v7055 = vor.u32 %v7053, %v7054
    %s7056 = scalar_lea.vmem [#allocation4], 265
    %v7057 = vld [vmem:[%s7056] ss:$8 sm:$0x1]
    %v7061 = vperm.slane %v7051, 0
    %v7062 = vperm.slane %v7051, 1
    %v7063 = vperm.slane %v7051, 2
    %v7064 = vperm.slane %v7051, 3
    %v7065 = vperm.slane %v7051, 4
    %v7066 = vperm.slane %v7051, 5
    %v7067 = vperm.slane %v7051, 6
    %v7068 = vperm.slane %v7051, 7
    %v7069 = vperm.slane %v7055, 0
    %v7070 = vperm.slane %v7055, 1
    %v7071 = vperm.slane %v7055, 2
    %v7072 = vperm.slane %v7055, 3
    %v7073 = vperm.slane %v7055, 4
    %v7074 = vperm.slane %v7055, 5
    %v7075 = vperm.slane %v7055, 6
    %v7076 = vperm.slane %v7055, 7
    %v7077 = vperm.slane %v7057, 0
    %v7095 = vmul.f32 %v3246, %v7061
    %v7096 = vmul.f32 %v3246, %v7062
    %v7097 = vmul.f32 %v3246, %v7063
    %v7098 = vmul.f32 %v3246, %v7064
    %v7099 = vmul.f32 %v3246, %v7065
    %v7100 = vmul.f32 %v3246, %v7066
    %v7101 = vmul.f32 %v3246, %v7067
    %v7102 = vmul.f32 %v3246, %v7068
    %v7103 = vmul.f32 %v3246, %v7069
    %v7104 = vmul.f32 %v3246, %v7070
    %v7105 = vmul.f32 %v3246, %v7071
    %v7106 = vmul.f32 %v3246, %v7072
    %v7107 = vmul.f32 %v3246, %v7073
    %v7108 = vmul.f32 %v3246, %v7074
    %v7109 = vmul.f32 %v3246, %v7075
    %v7110 = vmul.f32 %v3246, %v7076
    %v7111 = vmul.f32 %v3246, %v7077
    %7129 = vrot.lane.b32.xlu0 %v7095, 62
    %v7130 = vpop.permute.xlu0 %7129
    %7131 = vrot.lane.b32.xlu0 %v7096, 62
    %v7132 = vpop.permute.xlu0 %7131
    %7133 = vrot.lane.b32.xlu0 %v7097, 62
    %v7134 = vpop.permute.xlu0 %7133
    %7135 = vrot.lane.b32.xlu0 %v7098, 62
    %v7136 = vpop.permute.xlu0 %7135
    %7137 = vrot.lane.b32.xlu0 %v7099, 62
    %v7138 = vpop.permute.xlu0 %7137
    %7139 = vrot.lane.b32.xlu0 %v7100, 62
    %v7140 = vpop.permute.xlu0 %7139
    %7141 = vrot.lane.b32.xlu0 %v7101, 62
    %v7142 = vpop.permute.xlu0 %7141
    %7143 = vrot.lane.b32.xlu0 %v7102, 62
    %v7144 = vpop.permute.xlu0 %7143
    %7145 = vrot.lane.b32.xlu0 %v7103, 62
    %v7146 = vpop.permute.xlu0 %7145
    %7147 = vrot.lane.b32.xlu0 %v7104, 62
    %v7148 = vpop.permute.xlu0 %7147
    %7149 = vrot.lane.b32.xlu0 %v7105, 62
    %v7150 = vpop.permute.xlu0 %7149
    %7151 = vrot.lane.b32.xlu0 %v7106, 62
    %v7152 = vpop.permute.xlu0 %7151
    %7153 = vrot.lane.b32.xlu0 %v7107, 62
    %v7154 = vpop.permute.xlu0 %7153
    %7155 = vrot.lane.b32.xlu0 %v7108, 62
    %v7156 = vpop.permute.xlu0 %7155
    %7157 = vrot.lane.b32.xlu0 %v7109, 62
    %v7158 = vpop.permute.xlu0 %7157
    %7159 = vrot.lane.b32.xlu0 %v7110, 62
    %v7160 = vpop.permute.xlu0 %7159
    %7161 = vrot.lane.b32.xlu0 %v7111, 62
    %v7162 = vpop.permute.xlu0 %7161
    %v7163 = vsel %vm3183, %v7130, %v7132
    %v7164 = vsel %vm3183, %v7132, %v7134
    %v7165 = vsel %vm3183, %v7134, %v7136
    %v7166 = vsel %vm3183, %v7136, %v7138
    %v7167 = vsel %vm3183, %v7138, %v7140
    %v7168 = vsel %vm3183, %v7140, %v7142
    %v7169 = vsel %vm3183, %v7142, %v7144
    %v7170 = vsel %vm3183, %v7144, %v7146
    %v7171 = vsel %vm3183, %v7146, %v7148
    %v7172 = vsel %vm3183, %v7148, %v7150
    %v7173 = vsel %vm3183, %v7150, %v7152
    %v7174 = vsel %vm3183, %v7152, %v7154
    %v7175 = vsel %vm3183, %v7154, %v7156
    %v7176 = vsel %vm3183, %v7156, %v7158
    %v7177 = vsel %vm3183, %v7158, %v7160
    %v7178 = vsel %vm3183, %v7160, %v7162
    %v7196 = vadd.f32 %v7032, %v7130
    %v7197 = vadd.f32 %v7033, %v7163
    %v7198 = vadd.f32 %v7034, %v7164
    %v7199 = vadd.f32 %v7035, %v7165
    %v7200 = vadd.f32 %v7036, %v7166
    %v7201 = vadd.f32 %v7037, %v7167
    %v7202 = vadd.f32 %v7038, %v7168
    %v7203 = vadd.f32 %v7039, %v7169
    %v7204 = vadd.f32 %v7040, %v7170
    %v7205 = vadd.f32 %v7041, %v7171
    %v7206 = vadd.f32 %v7042, %v7172
    %v7207 = vadd.f32 %v7043, %v7173
    %v7208 = vadd.f32 %v7044, %v7174
    %v7209 = vadd.f32 %v7045, %v7175
    %v7210 = vadd.f32 %v7046, %v7176
    %v7211 = vadd.f32 %v7047, %v7177
    %v7212 = vadd.f32 %v7048, %v7178
    %v7213 = vld [vmem:[%s3411] ss:$8 sm:$0xf]
    %v7214 = vld [vmem:[%s3411] ss:$8 sm:$0xf0]
    %v7215 = vor.u32 %v7213, %v7214
    %s7216 = scalar_lea.vmem [#allocation4], 202
    %v7217 = vld [vmem:[%s7216] ss:$8 sm:$0xf]
    %v7218 = vld [vmem:[%s7216] ss:$8 sm:$0xf0]
    %v7219 = vor.u32 %v7217, %v7218
    %s7220 = scalar_lea.vmem [#allocation4], 266
    %v7221 = vld [vmem:[%s7220] ss:$8 sm:$0x1]
    %v7225 = vperm.slane %v7215, 0
    %v7226 = vperm.slane %v7215, 1
    %v7227 = vperm.slane %v7215, 2
    %v7228 = vperm.slane %v7215, 3
    %v7229 = vperm.slane %v7215, 4
    %v7230 = vperm.slane %v7215, 5
    %v7231 = vperm.slane %v7215, 6
    %v7232 = vperm.slane %v7215, 7
    %v7233 = vperm.slane %v7219, 0
    %v7234 = vperm.slane %v7219, 1
    %v7235 = vperm.slane %v7219, 2
    %v7236 = vperm.slane %v7219, 3
    %v7237 = vperm.slane %v7219, 4
    %v7238 = vperm.slane %v7219, 5
    %v7239 = vperm.slane %v7219, 6
    %v7240 = vperm.slane %v7219, 7
    %v7241 = vperm.slane %v7221, 0
    %v7259 = vmul.f32 %v3415, %v7225
    %v7260 = vmul.f32 %v3415, %v7226
    %v7261 = vmul.f32 %v3415, %v7227
    %v7262 = vmul.f32 %v3415, %v7228
    %v7263 = vmul.f32 %v3415, %v7229
    %v7264 = vmul.f32 %v3415, %v7230
    %v7265 = vmul.f32 %v3415, %v7231
    %v7266 = vmul.f32 %v3415, %v7232
    %v7267 = vmul.f32 %v3415, %v7233
    %v7268 = vmul.f32 %v3415, %v7234
    %v7269 = vmul.f32 %v3415, %v7235
    %v7270 = vmul.f32 %v3415, %v7236
    %v7271 = vmul.f32 %v3415, %v7237
    %v7272 = vmul.f32 %v3415, %v7238
    %v7273 = vmul.f32 %v3415, %v7239
    %v7274 = vmul.f32 %v3415, %v7240
    %v7275 = vmul.f32 %v3415, %v7241
    %7293 = vrot.lane.b32.xlu0 %v7259, 62
    %v7294 = vpop.permute.xlu0 %7293
    %7295 = vrot.lane.b32.xlu0 %v7260, 62
    %v7296 = vpop.permute.xlu0 %7295
    %7297 = vrot.lane.b32.xlu0 %v7261, 62
    %v7298 = vpop.permute.xlu0 %7297
    %7299 = vrot.lane.b32.xlu0 %v7262, 62
    %v7300 = vpop.permute.xlu0 %7299
    %7301 = vrot.lane.b32.xlu0 %v7263, 62
    %v7302 = vpop.permute.xlu0 %7301
    %7303 = vrot.lane.b32.xlu0 %v7264, 62
    %v7304 = vpop.permute.xlu0 %7303
    %7305 = vrot.lane.b32.xlu0 %v7265, 62
    %v7306 = vpop.permute.xlu0 %7305
    %7307 = vrot.lane.b32.xlu0 %v7266, 62
    %v7308 = vpop.permute.xlu0 %7307
    %7309 = vrot.lane.b32.xlu0 %v7267, 62
    %v7310 = vpop.permute.xlu0 %7309
    %7311 = vrot.lane.b32.xlu0 %v7268, 62
    %v7312 = vpop.permute.xlu0 %7311
    %7313 = vrot.lane.b32.xlu0 %v7269, 62
    %v7314 = vpop.permute.xlu0 %7313
    %7315 = vrot.lane.b32.xlu0 %v7270, 62
    %v7316 = vpop.permute.xlu0 %7315
    %7317 = vrot.lane.b32.xlu0 %v7271, 62
    %v7318 = vpop.permute.xlu0 %7317
    %7319 = vrot.lane.b32.xlu0 %v7272, 62
    %v7320 = vpop.permute.xlu0 %7319
    %7321 = vrot.lane.b32.xlu0 %v7273, 62
    %v7322 = vpop.permute.xlu0 %7321
    %7323 = vrot.lane.b32.xlu0 %v7274, 62
    %v7324 = vpop.permute.xlu0 %7323
    %7325 = vrot.lane.b32.xlu0 %v7275, 62
    %v7326 = vpop.permute.xlu0 %7325
    %v7327 = vsel %vm3183, %v7294, %v7296
    %v7328 = vsel %vm3183, %v7296, %v7298
    %v7329 = vsel %vm3183, %v7298, %v7300
    %v7330 = vsel %vm3183, %v7300, %v7302
    %v7331 = vsel %vm3183, %v7302, %v7304
    %v7332 = vsel %vm3183, %v7304, %v7306
    %v7333 = vsel %vm3183, %v7306, %v7308
    %v7334 = vsel %vm3183, %v7308, %v7310
    %v7335 = vsel %vm3183, %v7310, %v7312
    %v7336 = vsel %vm3183, %v7312, %v7314
    %v7337 = vsel %vm3183, %v7314, %v7316
    %v7338 = vsel %vm3183, %v7316, %v7318
    %v7339 = vsel %vm3183, %v7318, %v7320
    %v7340 = vsel %vm3183, %v7320, %v7322
    %v7341 = vsel %vm3183, %v7322, %v7324
    %v7342 = vsel %vm3183, %v7324, %v7326
    %v7360 = vadd.f32 %v7196, %v7294
    %v7361 = vadd.f32 %v7197, %v7327
    %v7362 = vadd.f32 %v7198, %v7328
    %v7363 = vadd.f32 %v7199, %v7329
    %v7364 = vadd.f32 %v7200, %v7330
    %v7365 = vadd.f32 %v7201, %v7331
    %v7366 = vadd.f32 %v7202, %v7332
    %v7367 = vadd.f32 %v7203, %v7333
    %v7368 = vadd.f32 %v7204, %v7334
    %v7369 = vadd.f32 %v7205, %v7335
    %v7370 = vadd.f32 %v7206, %v7336
    %v7371 = vadd.f32 %v7207, %v7337
    %v7372 = vadd.f32 %v7208, %v7338
    %v7373 = vadd.f32 %v7209, %v7339
    %v7374 = vadd.f32 %v7210, %v7340
    %v7375 = vadd.f32 %v7211, %v7341
    %v7376 = vadd.f32 %v7212, %v7342
    %v7377 = vld [vmem:[%s3580] ss:$8 sm:$0xf]
    %v7378 = vld [vmem:[%s3580] ss:$8 sm:$0xf0]
    %v7379 = vor.u32 %v7377, %v7378
    %s7380 = scalar_lea.vmem [#allocation3], 200
    %v7381 = vld [vmem:[%s7380] ss:$8 sm:$0xf]
    %v7382 = vld [vmem:[%s7380] ss:$8 sm:$0xf0]
    %v7383 = vor.u32 %v7381, %v7382
    %s7384 = scalar_lea.vmem [#allocation3], 264
    %v7385 = vld [vmem:[%s7384] ss:$8 sm:$0x1]
    %v7389 = vperm.slane %v7379, 0
    %v7390 = vperm.slane %v7379, 1
    %v7391 = vperm.slane %v7379, 2
    %v7392 = vperm.slane %v7379, 3
    %v7393 = vperm.slane %v7379, 4
    %v7394 = vperm.slane %v7379, 5
    %v7395 = vperm.slane %v7379, 6
    %v7396 = vperm.slane %v7379, 7
    %v7397 = vperm.slane %v7383, 0
    %v7398 = vperm.slane %v7383, 1
    %v7399 = vperm.slane %v7383, 2
    %v7400 = vperm.slane %v7383, 3
    %v7401 = vperm.slane %v7383, 4
    %v7402 = vperm.slane %v7383, 5
    %v7403 = vperm.slane %v7383, 6
    %v7404 = vperm.slane %v7383, 7
    %v7405 = vperm.slane %v7385, 0
    %v7423 = vmul.f32 %v3584, %v7389
    %v7424 = vmul.f32 %v3584, %v7390
    %v7425 = vmul.f32 %v3584, %v7391
    %v7426 = vmul.f32 %v3584, %v7392
    %v7427 = vmul.f32 %v3584, %v7393
    %v7428 = vmul.f32 %v3584, %v7394
    %v7429 = vmul.f32 %v3584, %v7395
    %v7430 = vmul.f32 %v3584, %v7396
    %v7431 = vmul.f32 %v3584, %v7397
    %v7432 = vmul.f32 %v3584, %v7398
    %v7433 = vmul.f32 %v3584, %v7399
    %v7434 = vmul.f32 %v3584, %v7400
    %v7435 = vmul.f32 %v3584, %v7401
    %v7436 = vmul.f32 %v3584, %v7402
    %v7437 = vmul.f32 %v3584, %v7403
    %v7438 = vmul.f32 %v3584, %v7404
    %v7439 = vmul.f32 %v3584, %v7405
    %v7440 = vadd.f32 %v7360, %v7423
    %v7441 = vadd.f32 %v7361, %v7424
    %v7442 = vadd.f32 %v7362, %v7425
    %v7443 = vadd.f32 %v7363, %v7426
    %v7444 = vadd.f32 %v7364, %v7427
    %v7445 = vadd.f32 %v7365, %v7428
    %v7446 = vadd.f32 %v7366, %v7429
    %v7447 = vadd.f32 %v7367, %v7430
    %v7448 = vadd.f32 %v7368, %v7431
    %v7449 = vadd.f32 %v7369, %v7432
    %v7450 = vadd.f32 %v7370, %v7433
    %v7451 = vadd.f32 %v7371, %v7434
    %v7452 = vadd.f32 %v7372, %v7435
    %v7453 = vadd.f32 %v7373, %v7436
    %v7454 = vadd.f32 %v7374, %v7437
    %v7455 = vadd.f32 %v7375, %v7438
    %v7456 = vadd.f32 %v7376, %v7439
    %v7457 = vld [vmem:[%s3665] ss:$8 sm:$0xf]
    %v7458 = vld [vmem:[%s3665] ss:$8 sm:$0xf0]
    %v7459 = vor.u32 %v7457, %v7458
    %s7460 = scalar_lea.vmem [#allocation3], 201
    %v7461 = vld [vmem:[%s7460] ss:$8 sm:$0xf]
    %v7462 = vld [vmem:[%s7460] ss:$8 sm:$0xf0]
    %v7463 = vor.u32 %v7461, %v7462
    %s7464 = scalar_lea.vmem [#allocation3], 265
    %v7465 = vld [vmem:[%s7464] ss:$8 sm:$0x1]
    %v7469 = vperm.slane %v7459, 0
    %v7470 = vperm.slane %v7459, 1
    %v7471 = vperm.slane %v7459, 2
    %v7472 = vperm.slane %v7459, 3
    %v7473 = vperm.slane %v7459, 4
    %v7474 = vperm.slane %v7459, 5
    %v7475 = vperm.slane %v7459, 6
    %v7476 = vperm.slane %v7459, 7
    %v7477 = vperm.slane %v7463, 0
    %v7478 = vperm.slane %v7463, 1
    %v7479 = vperm.slane %v7463, 2
    %v7480 = vperm.slane %v7463, 3
    %v7481 = vperm.slane %v7463, 4
    %v7482 = vperm.slane %v7463, 5
    %v7483 = vperm.slane %v7463, 6
    %v7484 = vperm.slane %v7463, 7
    %v7485 = vperm.slane %v7465, 0
    %v7503 = vmul.f32 %v3669, %v7469
    %v7504 = vmul.f32 %v3669, %v7470
    %v7505 = vmul.f32 %v3669, %v7471
    %v7506 = vmul.f32 %v3669, %v7472
    %v7507 = vmul.f32 %v3669, %v7473
    %v7508 = vmul.f32 %v3669, %v7474
    %v7509 = vmul.f32 %v3669, %v7475
    %v7510 = vmul.f32 %v3669, %v7476
    %v7511 = vmul.f32 %v3669, %v7477
    %v7512 = vmul.f32 %v3669, %v7478
    %v7513 = vmul.f32 %v3669, %v7479
    %v7514 = vmul.f32 %v3669, %v7480
    %v7515 = vmul.f32 %v3669, %v7481
    %v7516 = vmul.f32 %v3669, %v7482
    %v7517 = vmul.f32 %v3669, %v7483
    %v7518 = vmul.f32 %v3669, %v7484
    %v7519 = vmul.f32 %v3669, %v7485
    %v7520 = vadd.f32 %v7440, %v7503
    %v7521 = vadd.f32 %v7441, %v7504
    %v7522 = vadd.f32 %v7442, %v7505
    %v7523 = vadd.f32 %v7443, %v7506
    %v7524 = vadd.f32 %v7444, %v7507
    %v7525 = vadd.f32 %v7445, %v7508
    %v7526 = vadd.f32 %v7446, %v7509
    %v7527 = vadd.f32 %v7447, %v7510
    %v7528 = vadd.f32 %v7448, %v7511
    %v7529 = vadd.f32 %v7449, %v7512
    %v7530 = vadd.f32 %v7450, %v7513
    %v7531 = vadd.f32 %v7451, %v7514
    %v7532 = vadd.f32 %v7452, %v7515
    %v7533 = vadd.f32 %v7453, %v7516
    %v7534 = vadd.f32 %v7454, %v7517
    %v7535 = vadd.f32 %v7455, %v7518
    %v7536 = vadd.f32 %v7456, %v7519
    %v7537 = vld [vmem:[%s3750] ss:$8 sm:$0xf]
    %v7538 = vld [vmem:[%s3750] ss:$8 sm:$0xf0]
    %v7539 = vor.u32 %v7537, %v7538
    %s7540 = scalar_lea.vmem [#allocation3], 202
    %v7541 = vld [vmem:[%s7540] ss:$8 sm:$0xf]
    %v7542 = vld [vmem:[%s7540] ss:$8 sm:$0xf0]
    %v7543 = vor.u32 %v7541, %v7542
    %s7544 = scalar_lea.vmem [#allocation3], 266
    %v7545 = vld [vmem:[%s7544] ss:$8 sm:$0x1]
    %v7549 = vperm.slane %v7539, 0
    %v7550 = vperm.slane %v7539, 1
    %v7551 = vperm.slane %v7539, 2
    %v7552 = vperm.slane %v7539, 3
    %v7553 = vperm.slane %v7539, 4
    %v7554 = vperm.slane %v7539, 5
    %v7555 = vperm.slane %v7539, 6
    %v7556 = vperm.slane %v7539, 7
    %v7557 = vperm.slane %v7543, 0
    %v7558 = vperm.slane %v7543, 1
    %v7559 = vperm.slane %v7543, 2
    %v7560 = vperm.slane %v7543, 3
    %v7561 = vperm.slane %v7543, 4
    %v7562 = vperm.slane %v7543, 5
    %v7563 = vperm.slane %v7543, 6
    %v7564 = vperm.slane %v7543, 7
    %v7565 = vperm.slane %v7545, 0
    %v7583 = vmul.f32 %v3754, %v7549
    %v7584 = vmul.f32 %v3754, %v7550
    %v7585 = vmul.f32 %v3754, %v7551
    %v7586 = vmul.f32 %v3754, %v7552
    %v7587 = vmul.f32 %v3754, %v7553
    %v7588 = vmul.f32 %v3754, %v7554
    %v7589 = vmul.f32 %v3754, %v7555
    %v7590 = vmul.f32 %v3754, %v7556
    %v7591 = vmul.f32 %v3754, %v7557
    %v7592 = vmul.f32 %v3754, %v7558
    %v7593 = vmul.f32 %v3754, %v7559
    %v7594 = vmul.f32 %v3754, %v7560
    %v7595 = vmul.f32 %v3754, %v7561
    %v7596 = vmul.f32 %v3754, %v7562
    %v7597 = vmul.f32 %v3754, %v7563
    %v7598 = vmul.f32 %v3754, %v7564
    %v7599 = vmul.f32 %v3754, %v7565
    %v7600 = vadd.f32 %v7520, %v7583
    %v7601 = vadd.f32 %v7521, %v7584
    %v7602 = vadd.f32 %v7522, %v7585
    %v7603 = vadd.f32 %v7523, %v7586
    %v7604 = vadd.f32 %v7524, %v7587
    %v7605 = vadd.f32 %v7525, %v7588
    %v7606 = vadd.f32 %v7526, %v7589
    %v7607 = vadd.f32 %v7527, %v7590
    %v7608 = vadd.f32 %v7528, %v7591
    %v7609 = vadd.f32 %v7529, %v7592
    %v7610 = vadd.f32 %v7530, %v7593
    %v7611 = vadd.f32 %v7531, %v7594
    %v7612 = vadd.f32 %v7532, %v7595
    %v7613 = vadd.f32 %v7533, %v7596
    %v7614 = vadd.f32 %v7534, %v7597
    %v7615 = vadd.f32 %v7535, %v7598
    %v7616 = vadd.f32 %v7536, %v7599
    %s7617 = scalar_lea.vmem [#allocation2], 264
    %v7618 = vld [vmem:[%s7617] ss:$8 sm:$0x1]
    %v7620 = vperm.slane %v7618, 0
    %v7622 = vmul.f32 %v3837, %v6432
    %v7623 = vmul.f32 %v3837, %v6433
    %v7624 = vmul.f32 %v3837, %v6434
    %v7625 = vmul.f32 %v3837, %v6435
    %v7626 = vmul.f32 %v3837, %v6436
    %v7627 = vmul.f32 %v3837, %v6437
    %v7628 = vmul.f32 %v3837, %v6438
    %v7629 = vmul.f32 %v3837, %v6439
    %v7630 = vmul.f32 %v3837, %v6440
    %v7631 = vmul.f32 %v3837, %v6441
    %v7632 = vmul.f32 %v3837, %v6442
    %v7633 = vmul.f32 %v3837, %v6443
    %v7634 = vmul.f32 %v3837, %v6444
    %v7635 = vmul.f32 %v3837, %v6445
    %v7636 = vmul.f32 %v3837, %v6446
    %v7637 = vmul.f32 %v3837, %v6447
    %v7638 = vmul.f32 %v3837, %v7620
    %7656 = vrot.lane.b32.xlu0 %v7622, 127
    %v7657 = vpop.permute.xlu0 %7656
    %7658 = vrot.lane.b32.xlu0 %v7623, 127
    %v7659 = vpop.permute.xlu0 %7658
    %7660 = vrot.lane.b32.xlu0 %v7624, 127
    %v7661 = vpop.permute.xlu0 %7660
    %7662 = vrot.lane.b32.xlu0 %v7625, 127
    %v7663 = vpop.permute.xlu0 %7662
    %7664 = vrot.lane.b32.xlu0 %v7626, 127
    %v7665 = vpop.permute.xlu0 %7664
    %7666 = vrot.lane.b32.xlu0 %v7627, 127
    %v7667 = vpop.permute.xlu0 %7666
    %7668 = vrot.lane.b32.xlu0 %v7628, 127
    %v7669 = vpop.permute.xlu0 %7668
    %7670 = vrot.lane.b32.xlu0 %v7629, 127
    %v7671 = vpop.permute.xlu0 %7670
    %7672 = vrot.lane.b32.xlu0 %v7630, 127
    %v7673 = vpop.permute.xlu0 %7672
    %7674 = vrot.lane.b32.xlu0 %v7631, 127
    %v7675 = vpop.permute.xlu0 %7674
    %7676 = vrot.lane.b32.xlu0 %v7632, 127
    %v7677 = vpop.permute.xlu0 %7676
    %7678 = vrot.lane.b32.xlu0 %v7633, 127
    %v7679 = vpop.permute.xlu0 %7678
    %7680 = vrot.lane.b32.xlu0 %v7634, 127
    %v7681 = vpop.permute.xlu0 %7680
    %7682 = vrot.lane.b32.xlu0 %v7635, 127
    %v7683 = vpop.permute.xlu0 %7682
    %7684 = vrot.lane.b32.xlu0 %v7636, 127
    %v7685 = vpop.permute.xlu0 %7684
    %7686 = vrot.lane.b32.xlu0 %v7637, 127
    %v7687 = vpop.permute.xlu0 %7686
    %7688 = vrot.lane.b32.xlu0 %v7638, 127
    %v7689 = vpop.permute.xlu0 %7688
    %v7690 = vsel %vm1323, %v7657, %v7659
    %v7691 = vsel %vm1323, %v7659, %v7661
    %v7692 = vsel %vm1323, %v7661, %v7663
    %v7693 = vsel %vm1323, %v7663, %v7665
    %v7694 = vsel %vm1323, %v7665, %v7667
    %v7695 = vsel %vm1323, %v7667, %v7669
    %v7696 = vsel %vm1323, %v7669, %v7671
    %v7697 = vsel %vm1323, %v7671, %v7673
    %v7698 = vsel %vm1323, %v7673, %v7675
    %v7699 = vsel %vm1323, %v7675, %v7677
    %v7700 = vsel %vm1323, %v7677, %v7679
    %v7701 = vsel %vm1323, %v7679, %v7681
    %v7702 = vsel %vm1323, %v7681, %v7683
    %v7703 = vsel %vm1323, %v7683, %v7685
    %v7704 = vsel %vm1323, %v7685, %v7687
    %v7705 = vsel %vm1323, %v7687, %v7689
    %v7723 = vadd.f32 %v7600, %v7690
    %v7724 = vadd.f32 %v7601, %v7691
    %v7725 = vadd.f32 %v7602, %v7692
    %v7726 = vadd.f32 %v7603, %v7693
    %v7727 = vadd.f32 %v7604, %v7694
    %v7728 = vadd.f32 %v7605, %v7695
    %v7729 = vadd.f32 %v7606, %v7696
    %v7730 = vadd.f32 %v7607, %v7697
    %v7731 = vadd.f32 %v7608, %v7698
    %v7732 = vadd.f32 %v7609, %v7699
    %v7733 = vadd.f32 %v7610, %v7700
    %v7734 = vadd.f32 %v7611, %v7701
    %v7735 = vadd.f32 %v7612, %v7702
    %v7736 = vadd.f32 %v7613, %v7703
    %v7737 = vadd.f32 %v7614, %v7704
    %v7738 = vadd.f32 %v7615, %v7705
    %v7739 = vadd.f32 %v7616, %v7689
    %s7740 = scalar_lea.vmem [#allocation2], 265
    %v7741 = vld [vmem:[%s7740] ss:$8 sm:$0x1]
    %v7743 = vperm.slane %v7741, 0
    %v7745 = vmul.f32 %v4004, %v6586
    %v7746 = vmul.f32 %v4004, %v6587
    %v7747 = vmul.f32 %v4004, %v6588
    %v7748 = vmul.f32 %v4004, %v6589
    %v7749 = vmul.f32 %v4004, %v6590
    %v7750 = vmul.f32 %v4004, %v6591
    %v7751 = vmul.f32 %v4004, %v6592
    %v7752 = vmul.f32 %v4004, %v6593
    %v7753 = vmul.f32 %v4004, %v6594
    %v7754 = vmul.f32 %v4004, %v6595
    %v7755 = vmul.f32 %v4004, %v6596
    %v7756 = vmul.f32 %v4004, %v6597
    %v7757 = vmul.f32 %v4004, %v6598
    %v7758 = vmul.f32 %v4004, %v6599
    %v7759 = vmul.f32 %v4004, %v6600
    %v7760 = vmul.f32 %v4004, %v6601
    %v7761 = vmul.f32 %v4004, %v7743
    %7779 = vrot.lane.b32.xlu0 %v7745, 127
    %v7780 = vpop.permute.xlu0 %7779
    %7781 = vrot.lane.b32.xlu0 %v7746, 127
    %v7782 = vpop.permute.xlu0 %7781
    %7783 = vrot.lane.b32.xlu0 %v7747, 127
    %v7784 = vpop.permute.xlu0 %7783
    %7785 = vrot.lane.b32.xlu0 %v7748, 127
    %v7786 = vpop.permute.xlu0 %7785
    %7787 = vrot.lane.b32.xlu0 %v7749, 127
    %v7788 = vpop.permute.xlu0 %7787
    %7789 = vrot.lane.b32.xlu0 %v7750, 127
    %v7790 = vpop.permute.xlu0 %7789
    %7791 = vrot.lane.b32.xlu0 %v7751, 127
    %v7792 = vpop.permute.xlu0 %7791
    %7793 = vrot.lane.b32.xlu0 %v7752, 127
    %v7794 = vpop.permute.xlu0 %7793
    %7795 = vrot.lane.b32.xlu0 %v7753, 127
    %v7796 = vpop.permute.xlu0 %7795
    %7797 = vrot.lane.b32.xlu0 %v7754, 127
    %v7798 = vpop.permute.xlu0 %7797
    %7799 = vrot.lane.b32.xlu0 %v7755, 127
    %v7800 = vpop.permute.xlu0 %7799
    %7801 = vrot.lane.b32.xlu0 %v7756, 127
    %v7802 = vpop.permute.xlu0 %7801
    %7803 = vrot.lane.b32.xlu0 %v7757, 127
    %v7804 = vpop.permute.xlu0 %7803
    %7805 = vrot.lane.b32.xlu0 %v7758, 127
    %v7806 = vpop.permute.xlu0 %7805
    %7807 = vrot.lane.b32.xlu0 %v7759, 127
    %v7808 = vpop.permute.xlu0 %7807
    %7809 = vrot.lane.b32.xlu0 %v7760, 127
    %v7810 = vpop.permute.xlu0 %7809
    %7811 = vrot.lane.b32.xlu0 %v7761, 127
    %v7812 = vpop.permute.xlu0 %7811
    %v7813 = vsel %vm1323, %v7780, %v7782
    %v7814 = vsel %vm1323, %v7782, %v7784
    %v7815 = vsel %vm1323, %v7784, %v7786
    %v7816 = vsel %vm1323, %v7786, %v7788
    %v7817 = vsel %vm1323, %v7788, %v7790
    %v7818 = vsel %vm1323, %v7790, %v7792
    %v7819 = vsel %vm1323, %v7792, %v7794
    %v7820 = vsel %vm1323, %v7794, %v7796
    %v7821 = vsel %vm1323, %v7796, %v7798
    %v7822 = vsel %vm1323, %v7798, %v7800
    %v7823 = vsel %vm1323, %v7800, %v7802
    %v7824 = vsel %vm1323, %v7802, %v7804
    %v7825 = vsel %vm1323, %v7804, %v7806
    %v7826 = vsel %vm1323, %v7806, %v7808
    %v7827 = vsel %vm1323, %v7808, %v7810
    %v7828 = vsel %vm1323, %v7810, %v7812
    %v7846 = vadd.f32 %v7723, %v7813
    %v7847 = vadd.f32 %v7724, %v7814
    %v7848 = vadd.f32 %v7725, %v7815
    %v7849 = vadd.f32 %v7726, %v7816
    %v7850 = vadd.f32 %v7727, %v7817
    %v7851 = vadd.f32 %v7728, %v7818
    %v7852 = vadd.f32 %v7729, %v7819
    %v7853 = vadd.f32 %v7730, %v7820
    %v7854 = vadd.f32 %v7731, %v7821
    %v7855 = vadd.f32 %v7732, %v7822
    %v7856 = vadd.f32 %v7733, %v7823
    %v7857 = vadd.f32 %v7734, %v7824
    %v7858 = vadd.f32 %v7735, %v7825
    %v7859 = vadd.f32 %v7736, %v7826
    %v7860 = vadd.f32 %v7737, %v7827
    %v7861 = vadd.f32 %v7738, %v7828
    %v7862 = vadd.f32 %v7739, %v7812
    %s7863 = scalar_lea.vmem [#allocation2], 266
    %v7864 = vld [vmem:[%s7863] ss:$8 sm:$0x1]
    %v7866 = vperm.slane %v7864, 0
    %v7868 = vmul.f32 %v4171, %v6740
    %v7869 = vmul.f32 %v4171, %v6741
    %v7870 = vmul.f32 %v4171, %v6742
    %v7871 = vmul.f32 %v4171, %v6743
    %v7872 = vmul.f32 %v4171, %v6744
    %v7873 = vmul.f32 %v4171, %v6745
    %v7874 = vmul.f32 %v4171, %v6746
    %v7875 = vmul.f32 %v4171, %v6747
    %v7876 = vmul.f32 %v4171, %v6748
    %v7877 = vmul.f32 %v4171, %v6749
    %v7878 = vmul.f32 %v4171, %v6750
    %v7879 = vmul.f32 %v4171, %v6751
    %v7880 = vmul.f32 %v4171, %v6752
    %v7881 = vmul.f32 %v4171, %v6753
    %v7882 = vmul.f32 %v4171, %v6754
    %v7883 = vmul.f32 %v4171, %v6755
    %v7884 = vmul.f32 %v4171, %v7866
    %7902 = vrot.lane.b32.xlu0 %v7868, 127
    %v7903 = vpop.permute.xlu0 %7902
    %7904 = vrot.lane.b32.xlu0 %v7869, 127
    %v7905 = vpop.permute.xlu0 %7904
    %7906 = vrot.lane.b32.xlu0 %v7870, 127
    %v7907 = vpop.permute.xlu0 %7906
    %7908 = vrot.lane.b32.xlu0 %v7871, 127
    %v7909 = vpop.permute.xlu0 %7908
    %7910 = vrot.lane.b32.xlu0 %v7872, 127
    %v7911 = vpop.permute.xlu0 %7910
    %7912 = vrot.lane.b32.xlu0 %v7873, 127
    %v7913 = vpop.permute.xlu0 %7912
    %7914 = vrot.lane.b32.xlu0 %v7874, 127
    %v7915 = vpop.permute.xlu0 %7914
    %7916 = vrot.lane.b32.xlu0 %v7875, 127
    %v7917 = vpop.permute.xlu0 %7916
    %7918 = vrot.lane.b32.xlu0 %v7876, 127
    %v7919 = vpop.permute.xlu0 %7918
    %7920 = vrot.lane.b32.xlu0 %v7877, 127
    %v7921 = vpop.permute.xlu0 %7920
    %7922 = vrot.lane.b32.xlu0 %v7878, 127
    %v7923 = vpop.permute.xlu0 %7922
    %7924 = vrot.lane.b32.xlu0 %v7879, 127
    %v7925 = vpop.permute.xlu0 %7924
    %7926 = vrot.lane.b32.xlu0 %v7880, 127
    %v7927 = vpop.permute.xlu0 %7926
    %7928 = vrot.lane.b32.xlu0 %v7881, 127
    %v7929 = vpop.permute.xlu0 %7928
    %7930 = vrot.lane.b32.xlu0 %v7882, 127
    %v7931 = vpop.permute.xlu0 %7930
    %7932 = vrot.lane.b32.xlu0 %v7883, 127
    %v7933 = vpop.permute.xlu0 %7932
    %7934 = vrot.lane.b32.xlu0 %v7884, 127
    %v7935 = vpop.permute.xlu0 %7934
    %v7936 = vsel %vm1323, %v7903, %v7905
    %v7937 = vsel %vm1323, %v7905, %v7907
    %v7938 = vsel %vm1323, %v7907, %v7909
    %v7939 = vsel %vm1323, %v7909, %v7911
    %v7940 = vsel %vm1323, %v7911, %v7913
    %v7941 = vsel %vm1323, %v7913, %v7915
    %v7942 = vsel %vm1323, %v7915, %v7917
    %v7943 = vsel %vm1323, %v7917, %v7919
    %v7944 = vsel %vm1323, %v7919, %v7921
    %v7945 = vsel %vm1323, %v7921, %v7923
    %v7946 = vsel %vm1323, %v7923, %v7925
    %v7947 = vsel %vm1323, %v7925, %v7927
    %v7948 = vsel %vm1323, %v7927, %v7929
    %v7949 = vsel %vm1323, %v7929, %v7931
    %v7950 = vsel %vm1323, %v7931, %v7933
    %v7951 = vsel %vm1323, %v7933, %v7935
    %v7969 = vadd.f32 %v7846, %v7936
    %v7970 = vadd.f32 %v7847, %v7937
    %v7971 = vadd.f32 %v7848, %v7938
    %v7972 = vadd.f32 %v7849, %v7939
    %v7973 = vadd.f32 %v7850, %v7940
    %v7974 = vadd.f32 %v7851, %v7941
    %v7975 = vadd.f32 %v7852, %v7942
    %v7976 = vadd.f32 %v7853, %v7943
    %v7977 = vadd.f32 %v7854, %v7944
    %v7978 = vadd.f32 %v7855, %v7945
    %v7979 = vadd.f32 %v7856, %v7946
    %v7980 = vadd.f32 %v7857, %v7947
    %v7981 = vadd.f32 %v7858, %v7948
    %v7982 = vadd.f32 %v7859, %v7949
    %v7983 = vadd.f32 %v7860, %v7950
    %v7984 = vadd.f32 %v7861, %v7951
    %v7985 = vadd.f32 %v7862, %v7935
    %v7986 = vmul.f32 %v4330, %v6897
    %v7987 = vmul.f32 %v4330, %v6898
    %v7988 = vmul.f32 %v4330, %v6899
    %v7989 = vmul.f32 %v4330, %v6900
    %v7990 = vmul.f32 %v4330, %v6901
    %v7991 = vmul.f32 %v4330, %v6902
    %v7992 = vmul.f32 %v4330, %v6903
    %v7993 = vmul.f32 %v4330, %v6904
    %v7994 = vmul.f32 %v4330, %v6905
    %v7995 = vmul.f32 %v4330, %v6906
    %v7996 = vmul.f32 %v4330, %v6907
    %v7997 = vmul.f32 %v4330, %v6908
    %v7998 = vmul.f32 %v4330, %v6909
    %v7999 = vmul.f32 %v4330, %v6910
    %v8000 = vmul.f32 %v4330, %v6911
    %v8001 = vmul.f32 %v4330, %v6912
    %v8002 = vmul.f32 %v4330, %v6913
    %8020 = vrot.lane.b32.xlu0 %v7986, 126
    %v8021 = vpop.permute.xlu0 %8020
    %8022 = vrot.lane.b32.xlu0 %v7987, 126
    %v8023 = vpop.permute.xlu0 %8022
    %8024 = vrot.lane.b32.xlu0 %v7988, 126
    %v8025 = vpop.permute.xlu0 %8024
    %8026 = vrot.lane.b32.xlu0 %v7989, 126
    %v8027 = vpop.permute.xlu0 %8026
    %8028 = vrot.lane.b32.xlu0 %v7990, 126
    %v8029 = vpop.permute.xlu0 %8028
    %8030 = vrot.lane.b32.xlu0 %v7991, 126
    %v8031 = vpop.permute.xlu0 %8030
    %8032 = vrot.lane.b32.xlu0 %v7992, 126
    %v8033 = vpop.permute.xlu0 %8032
    %8034 = vrot.lane.b32.xlu0 %v7993, 126
    %v8035 = vpop.permute.xlu0 %8034
    %8036 = vrot.lane.b32.xlu0 %v7994, 126
    %v8037 = vpop.permute.xlu0 %8036
    %8038 = vrot.lane.b32.xlu0 %v7995, 126
    %v8039 = vpop.permute.xlu0 %8038
    %8040 = vrot.lane.b32.xlu0 %v7996, 126
    %v8041 = vpop.permute.xlu0 %8040
    %8042 = vrot.lane.b32.xlu0 %v7997, 126
    %v8043 = vpop.permute.xlu0 %8042
    %8044 = vrot.lane.b32.xlu0 %v7998, 126
    %v8045 = vpop.permute.xlu0 %8044
    %8046 = vrot.lane.b32.xlu0 %v7999, 126
    %v8047 = vpop.permute.xlu0 %8046
    %8048 = vrot.lane.b32.xlu0 %v8000, 126
    %v8049 = vpop.permute.xlu0 %8048
    %8050 = vrot.lane.b32.xlu0 %v8001, 126
    %v8051 = vpop.permute.xlu0 %8050
    %8052 = vrot.lane.b32.xlu0 %v8002, 126
    %v8053 = vpop.permute.xlu0 %8052
    %v8054 = vsel %vm1830, %v8021, %v8023
    %v8055 = vsel %vm1830, %v8023, %v8025
    %v8056 = vsel %vm1830, %v8025, %v8027
    %v8057 = vsel %vm1830, %v8027, %v8029
    %v8058 = vsel %vm1830, %v8029, %v8031
    %v8059 = vsel %vm1830, %v8031, %v8033
    %v8060 = vsel %vm1830, %v8033, %v8035
    %v8061 = vsel %vm1830, %v8035, %v8037
    %v8062 = vsel %vm1830, %v8037, %v8039
    %v8063 = vsel %vm1830, %v8039, %v8041
    %v8064 = vsel %vm1830, %v8041, %v8043
    %v8065 = vsel %vm1830, %v8043, %v8045
    %v8066 = vsel %vm1830, %v8045, %v8047
    %v8067 = vsel %vm1830, %v8047, %v8049
    %v8068 = vsel %vm1830, %v8049, %v8051
    %v8069 = vsel %vm1830, %v8051, %v8053
    %v8087 = vadd.f32 %v7969, %v8054
    %v8088 = vadd.f32 %v7970, %v8055
    %v8089 = vadd.f32 %v7971, %v8056
    %v8090 = vadd.f32 %v7972, %v8057
    %v8091 = vadd.f32 %v7973, %v8058
    %v8092 = vadd.f32 %v7974, %v8059
    %v8093 = vadd.f32 %v7975, %v8060
    %v8094 = vadd.f32 %v7976, %v8061
    %v8095 = vadd.f32 %v7977, %v8062
    %v8096 = vadd.f32 %v7978, %v8063
    %v8097 = vadd.f32 %v7979, %v8064
    %v8098 = vadd.f32 %v7980, %v8065
    %v8099 = vadd.f32 %v7981, %v8066
    %v8100 = vadd.f32 %v7982, %v8067
    %v8101 = vadd.f32 %v7983, %v8068
    %v8102 = vadd.f32 %v7984, %v8069
    %v8103 = vadd.f32 %v7985, %v8053
    %v8104 = vmul.f32 %v4452, %v7061
    %v8105 = vmul.f32 %v4452, %v7062
    %v8106 = vmul.f32 %v4452, %v7063
    %v8107 = vmul.f32 %v4452, %v7064
    %v8108 = vmul.f32 %v4452, %v7065
    %v8109 = vmul.f32 %v4452, %v7066
    %v8110 = vmul.f32 %v4452, %v7067
    %v8111 = vmul.f32 %v4452, %v7068
    %v8112 = vmul.f32 %v4452, %v7069
    %v8113 = vmul.f32 %v4452, %v7070
    %v8114 = vmul.f32 %v4452, %v7071
    %v8115 = vmul.f32 %v4452, %v7072
    %v8116 = vmul.f32 %v4452, %v7073
    %v8117 = vmul.f32 %v4452, %v7074
    %v8118 = vmul.f32 %v4452, %v7075
    %v8119 = vmul.f32 %v4452, %v7076
    %v8120 = vmul.f32 %v4452, %v7077
    %8138 = vrot.lane.b32.xlu0 %v8104, 126
    %v8139 = vpop.permute.xlu0 %8138
    %8140 = vrot.lane.b32.xlu0 %v8105, 126
    %v8141 = vpop.permute.xlu0 %8140
    %8142 = vrot.lane.b32.xlu0 %v8106, 126
    %v8143 = vpop.permute.xlu0 %8142
    %8144 = vrot.lane.b32.xlu0 %v8107, 126
    %v8145 = vpop.permute.xlu0 %8144
    %8146 = vrot.lane.b32.xlu0 %v8108, 126
    %v8147 = vpop.permute.xlu0 %8146
    %8148 = vrot.lane.b32.xlu0 %v8109, 126
    %v8149 = vpop.permute.xlu0 %8148
    %8150 = vrot.lane.b32.xlu0 %v8110, 126
    %v8151 = vpop.permute.xlu0 %8150
    %8152 = vrot.lane.b32.xlu0 %v8111, 126
    %v8153 = vpop.permute.xlu0 %8152
    %8154 = vrot.lane.b32.xlu0 %v8112, 126
    %v8155 = vpop.permute.xlu0 %8154
    %8156 = vrot.lane.b32.xlu0 %v8113, 126
    %v8157 = vpop.permute.xlu0 %8156
    %8158 = vrot.lane.b32.xlu0 %v8114, 126
    %v8159 = vpop.permute.xlu0 %8158
    %8160 = vrot.lane.b32.xlu0 %v8115, 126
    %v8161 = vpop.permute.xlu0 %8160
    %8162 = vrot.lane.b32.xlu0 %v8116, 126
    %v8163 = vpop.permute.xlu0 %8162
    %8164 = vrot.lane.b32.xlu0 %v8117, 126
    %v8165 = vpop.permute.xlu0 %8164
    %8166 = vrot.lane.b32.xlu0 %v8118, 126
    %v8167 = vpop.permute.xlu0 %8166
    %8168 = vrot.lane.b32.xlu0 %v8119, 126
    %v8169 = vpop.permute.xlu0 %8168
    %8170 = vrot.lane.b32.xlu0 %v8120, 126
    %v8171 = vpop.permute.xlu0 %8170
    %v8172 = vsel %vm1830, %v8139, %v8141
    %v8173 = vsel %vm1830, %v8141, %v8143
    %v8174 = vsel %vm1830, %v8143, %v8145
    %v8175 = vsel %vm1830, %v8145, %v8147
    %v8176 = vsel %vm1830, %v8147, %v8149
    %v8177 = vsel %vm1830, %v8149, %v8151
    %v8178 = vsel %vm1830, %v8151, %v8153
    %v8179 = vsel %vm1830, %v8153, %v8155
    %v8180 = vsel %vm1830, %v8155, %v8157
    %v8181 = vsel %vm1830, %v8157, %v8159
    %v8182 = vsel %vm1830, %v8159, %v8161
    %v8183 = vsel %vm1830, %v8161, %v8163
    %v8184 = vsel %vm1830, %v8163, %v8165
    %v8185 = vsel %vm1830, %v8165, %v8167
    %v8186 = vsel %vm1830, %v8167, %v8169
    %v8187 = vsel %vm1830, %v8169, %v8171
    %v8205 = vadd.f32 %v8087, %v8172
    %v8206 = vadd.f32 %v8088, %v8173
    %v8207 = vadd.f32 %v8089, %v8174
    %v8208 = vadd.f32 %v8090, %v8175
    %v8209 = vadd.f32 %v8091, %v8176
    %v8210 = vadd.f32 %v8092, %v8177
    %v8211 = vadd.f32 %v8093, %v8178
    %v8212 = vadd.f32 %v8094, %v8179
    %v8213 = vadd.f32 %v8095, %v8180
    %v8214 = vadd.f32 %v8096, %v8181
    %v8215 = vadd.f32 %v8097, %v8182
    %v8216 = vadd.f32 %v8098, %v8183
    %v8217 = vadd.f32 %v8099, %v8184
    %v8218 = vadd.f32 %v8100, %v8185
    %v8219 = vadd.f32 %v8101, %v8186
    %v8220 = vadd.f32 %v8102, %v8187
    %v8221 = vadd.f32 %v8103, %v8171
    %v8222 = vmul.f32 %v4574, %v7225
    %v8223 = vmul.f32 %v4574, %v7226
    %v8224 = vmul.f32 %v4574, %v7227
    %v8225 = vmul.f32 %v4574, %v7228
    %v8226 = vmul.f32 %v4574, %v7229
    %v8227 = vmul.f32 %v4574, %v7230
    %v8228 = vmul.f32 %v4574, %v7231
    %v8229 = vmul.f32 %v4574, %v7232
    %v8230 = vmul.f32 %v4574, %v7233
    %v8231 = vmul.f32 %v4574, %v7234
    %v8232 = vmul.f32 %v4574, %v7235
    %v8233 = vmul.f32 %v4574, %v7236
    %v8234 = vmul.f32 %v4574, %v7237
    %v8235 = vmul.f32 %v4574, %v7238
    %v8236 = vmul.f32 %v4574, %v7239
    %v8237 = vmul.f32 %v4574, %v7240
    %v8238 = vmul.f32 %v4574, %v7241
    %8256 = vrot.lane.b32.xlu0 %v8222, 126
    %v8257 = vpop.permute.xlu0 %8256
    %8258 = vrot.lane.b32.xlu0 %v8223, 126
    %v8259 = vpop.permute.xlu0 %8258
    %8260 = vrot.lane.b32.xlu0 %v8224, 126
    %v8261 = vpop.permute.xlu0 %8260
    %8262 = vrot.lane.b32.xlu0 %v8225, 126
    %v8263 = vpop.permute.xlu0 %8262
    %8264 = vrot.lane.b32.xlu0 %v8226, 126
    %v8265 = vpop.permute.xlu0 %8264
    %8266 = vrot.lane.b32.xlu0 %v8227, 126
    %v8267 = vpop.permute.xlu0 %8266
    %8268 = vrot.lane.b32.xlu0 %v8228, 126
    %v8269 = vpop.permute.xlu0 %8268
    %8270 = vrot.lane.b32.xlu0 %v8229, 126
    %v8271 = vpop.permute.xlu0 %8270
    %8272 = vrot.lane.b32.xlu0 %v8230, 126
    %v8273 = vpop.permute.xlu0 %8272
    %8274 = vrot.lane.b32.xlu0 %v8231, 126
    %v8275 = vpop.permute.xlu0 %8274
    %8276 = vrot.lane.b32.xlu0 %v8232, 126
    %v8277 = vpop.permute.xlu0 %8276
    %8278 = vrot.lane.b32.xlu0 %v8233, 126
    %v8279 = vpop.permute.xlu0 %8278
    %8280 = vrot.lane.b32.xlu0 %v8234, 126
    %v8281 = vpop.permute.xlu0 %8280
    %8282 = vrot.lane.b32.xlu0 %v8235, 126
    %v8283 = vpop.permute.xlu0 %8282
    %8284 = vrot.lane.b32.xlu0 %v8236, 126
    %v8285 = vpop.permute.xlu0 %8284
    %8286 = vrot.lane.b32.xlu0 %v8237, 126
    %v8287 = vpop.permute.xlu0 %8286
    %8288 = vrot.lane.b32.xlu0 %v8238, 126
    %v8289 = vpop.permute.xlu0 %8288
    %v8290 = vsel %vm1830, %v8257, %v8259
    %v8291 = vsel %vm1830, %v8259, %v8261
    %v8292 = vsel %vm1830, %v8261, %v8263
    %v8293 = vsel %vm1830, %v8263, %v8265
    %v8294 = vsel %vm1830, %v8265, %v8267
    %v8295 = vsel %vm1830, %v8267, %v8269
    %v8296 = vsel %vm1830, %v8269, %v8271
    %v8297 = vsel %vm1830, %v8271, %v8273
    %v8298 = vsel %vm1830, %v8273, %v8275
    %v8299 = vsel %vm1830, %v8275, %v8277
    %v8300 = vsel %vm1830, %v8277, %v8279
    %v8301 = vsel %vm1830, %v8279, %v8281
    %v8302 = vsel %vm1830, %v8281, %v8283
    %v8303 = vsel %vm1830, %v8283, %v8285
    %v8304 = vsel %vm1830, %v8285, %v8287
    %v8305 = vsel %vm1830, %v8287, %v8289
    %v8323 = vadd.f32 %v8205, %v8290
    %v8324 = vadd.f32 %v8206, %v8291
    %v8325 = vadd.f32 %v8207, %v8292
    %v8326 = vadd.f32 %v8208, %v8293
    %v8327 = vadd.f32 %v8209, %v8294
    %v8328 = vadd.f32 %v8210, %v8295
    %v8329 = vadd.f32 %v8211, %v8296
    %v8330 = vadd.f32 %v8212, %v8297
    %v8331 = vadd.f32 %v8213, %v8298
    %v8332 = vadd.f32 %v8214, %v8299
    %v8333 = vadd.f32 %v8215, %v8300
    %v8334 = vadd.f32 %v8216, %v8301
    %v8335 = vadd.f32 %v8217, %v8302
    %v8336 = vadd.f32 %v8218, %v8303
    %v8337 = vadd.f32 %v8219, %v8304
    %v8338 = vadd.f32 %v8220, %v8305
    %v8339 = vadd.f32 %v8221, %v8289
    %vm8340 = vcmp.ge.f32.partialorder %v8323, 0.0
    %vm8341 = vcmp.ge.f32.partialorder %v8324, 0.0
    %vm8342 = vcmp.ge.f32.partialorder %v8325, 0.0
    %vm8343 = vcmp.ge.f32.partialorder %v8326, 0.0
    %vm8344 = vcmp.ge.f32.partialorder %v8327, 0.0
    %vm8345 = vcmp.ge.f32.partialorder %v8328, 0.0
    %vm8346 = vcmp.ge.f32.partialorder %v8329, 0.0
    %vm8347 = vcmp.ge.f32.partialorder %v8330, 0.0
    %vm8348 = vcmp.ge.f32.partialorder %v8331, 0.0
    %vm8349 = vcmp.ge.f32.partialorder %v8332, 0.0
    %vm8350 = vcmp.ge.f32.partialorder %v8333, 0.0
    %vm8351 = vcmp.ge.f32.partialorder %v8334, 0.0
    %vm8352 = vcmp.ge.f32.partialorder %v8335, 0.0
    %vm8353 = vcmp.ge.f32.partialorder %v8336, 0.0
    %vm8354 = vcmp.ge.f32.partialorder %v8337, 0.0
    %vm8355 = vcmp.ge.f32.partialorder %v8338, 0.0
    %vm8356 = vcmp.ge.f32.partialorder %v8339, 0.0
    %v8357 = vmul.f32 %v8323, 0.01
    %v8358 = vmul.f32 %v8324, 0.01
    %v8359 = vmul.f32 %v8325, 0.01
    %v8360 = vmul.f32 %v8326, 0.01
    %v8361 = vmul.f32 %v8327, 0.01
    %v8362 = vmul.f32 %v8328, 0.01
    %v8363 = vmul.f32 %v8329, 0.01
    %v8364 = vmul.f32 %v8330, 0.01
    %v8365 = vmul.f32 %v8331, 0.01
    %v8366 = vmul.f32 %v8332, 0.01
    %v8367 = vmul.f32 %v8333, 0.01
    %v8368 = vmul.f32 %v8334, 0.01
    %v8369 = vmul.f32 %v8335, 0.01
    %v8370 = vmul.f32 %v8336, 0.01
    %v8371 = vmul.f32 %v8337, 0.01
    %v8372 = vmul.f32 %v8338, 0.01
    %v8373 = vmul.f32 %v8339, 0.01
    %v8374 = vsel %vm8340, %v8323, %v8357
    %v8375 = vsel %vm8341, %v8324, %v8358
    %v8376 = vsel %vm8342, %v8325, %v8359
    %v8377 = vsel %vm8343, %v8326, %v8360
    %v8378 = vsel %vm8344, %v8327, %v8361
    %v8379 = vsel %vm8345, %v8328, %v8362
    %v8380 = vsel %vm8346, %v8329, %v8363
    %v8381 = vsel %vm8347, %v8330, %v8364
    %v8382 = vsel %vm8348, %v8331, %v8365
    %v8383 = vsel %vm8349, %v8332, %v8366
    %v8384 = vsel %vm8350, %v8333, %v8367
    %v8385 = vsel %vm8351, %v8334, %v8368
    %v8386 = vsel %vm8352, %v8335, %v8369
    %v8387 = vsel %vm8353, %v8336, %v8370
    %v8388 = vsel %vm8354, %v8337, %v8371
    %v8389 = vsel %vm8355, %v8338, %v8372
    %v8390 = vsel %vm8356, %v8339, %v8373
    %8408 = vrot.lane.b32.xlu0 %v8374, 65
    %v8409 = vpop.permute.xlu0 %8408
    %8410 = vrot.lane.b32.xlu0 %v8375, 65
    %v8411 = vpop.permute.xlu0 %8410
    %8412 = vrot.lane.b32.xlu0 %v8376, 65
    %v8413 = vpop.permute.xlu0 %8412
    %8414 = vrot.lane.b32.xlu0 %v8377, 65
    %v8415 = vpop.permute.xlu0 %8414
    %8416 = vrot.lane.b32.xlu0 %v8378, 65
    %v8417 = vpop.permute.xlu0 %8416
    %8418 = vrot.lane.b32.xlu0 %v8379, 65
    %v8419 = vpop.permute.xlu0 %8418
    %8420 = vrot.lane.b32.xlu0 %v8380, 65
    %v8421 = vpop.permute.xlu0 %8420
    %8422 = vrot.lane.b32.xlu0 %v8381, 65
    %v8423 = vpop.permute.xlu0 %8422
    %8424 = vrot.lane.b32.xlu0 %v8382, 65
    %v8425 = vpop.permute.xlu0 %8424
    %8426 = vrot.lane.b32.xlu0 %v8383, 65
    %v8427 = vpop.permute.xlu0 %8426
    %8428 = vrot.lane.b32.xlu0 %v8384, 65
    %v8429 = vpop.permute.xlu0 %8428
    %8430 = vrot.lane.b32.xlu0 %v8385, 65
    %v8431 = vpop.permute.xlu0 %8430
    %8432 = vrot.lane.b32.xlu0 %v8386, 65
    %v8433 = vpop.permute.xlu0 %8432
    %8434 = vrot.lane.b32.xlu0 %v8387, 65
    %v8435 = vpop.permute.xlu0 %8434
    %8436 = vrot.lane.b32.xlu0 %v8388, 65
    %v8437 = vpop.permute.xlu0 %8436
    %8438 = vrot.lane.b32.xlu0 %v8389, 65
    %v8439 = vpop.permute.xlu0 %8438
    %8440 = vrot.lane.b32.xlu0 %v8390, 65
    %v8441 = vpop.permute.xlu0 %8440
    %v8442 = vsel %vm4796, %v8409, %v8411
    %v8443 = vsel %vm4796, %v8411, %v8413
    %v8444 = vsel %vm4796, %v8413, %v8415
    %v8445 = vsel %vm4796, %v8415, %v8417
    %v8446 = vsel %vm4796, %v8417, %v8419
    %v8447 = vsel %vm4796, %v8419, %v8421
    %v8448 = vsel %vm4796, %v8421, %v8423
    %v8449 = vsel %vm4796, %v8423, %v8425
    %v8450 = vsel %vm4796, %v8425, %v8427
    %v8451 = vsel %vm4796, %v8427, %v8429
    %v8452 = vsel %vm4796, %v8429, %v8431
    %v8453 = vsel %vm4796, %v8431, %v8433
    %v8454 = vsel %vm4796, %v8433, %v8435
    %v8455 = vsel %vm4796, %v8435, %v8437
    %v8456 = vsel %vm4796, %v8437, %v8439
    %v8457 = vsel %vm4796, %v8439, %v8441
    %8474 = vst [vmem:[#allocation5 + $0x80] sm:$0xff] %v8442
    %8475 = vst [vmem:[#allocation5 + $0x88] sm:$0xff] %v8443
    %8476 = vst [vmem:[#allocation5 + $0x90] sm:$0xff] %v8444
    %8477 = vst [vmem:[#allocation5 + $0x98] sm:$0xff] %v8445
    %8478 = vst [vmem:[#allocation5 + $0xa0] sm:$0xff] %v8446
    %8479 = vst [vmem:[#allocation5 + $0xa8] sm:$0xff] %v8447
    %8480 = vst [vmem:[#allocation5 + $0xb0] sm:$0xff] %v8448
    %8481 = vst [vmem:[#allocation5 + $0xb8] sm:$0xff] %v8449
    %8482 = vst [vmem:[#allocation5 + $0xc0] sm:$0xff] %v8450
    %8483 = vst [vmem:[#allocation5 + $0xc8] sm:$0xff] %v8451
    %8484 = vst [vmem:[#allocation5 + $0xd0] sm:$0xff] %v8452
    %8485 = vst [vmem:[#allocation5 + $0xd8] sm:$0xff] %v8453
    %8486 = vst [vmem:[#allocation5 + $0xe0] sm:$0xff] %v8454
    %8487 = vst [vmem:[#allocation5 + $0xe8] sm:$0xff] %v8455
    %8488 = vst [vmem:[#allocation5 + $0xf0] sm:$0xff] %v8456
    %8489 = vst [vmem:[#allocation5 + $0xf8] sm:$0xff] %v8457
    // Predicated region
    $region14: #{tpu_custom_call.1} parent=1 // pred_check
      _
    $region15: #{tpu_custom_call.1} parent=1 // pred_check_branch
      %8491 = sbr.rel (0) target = $region17
    $region16: #{tpu_custom_call.1} parent=1 // pred_region
      %8493 = vsyncadd [#allocation6], 0
      %s8495 = sshll.u32 [#allocation5], 4
      %s8496 = int_to_ptr.vmem [resolvable:$true] %s8495
      %s8497 = sshll.u32 %s3, 4
      %s8498 = int_to_ptr.hbm [resolvable:$true] %s8497
      %8500 = dma.vmem_to_hbm [thread:$0]  %s8496, 4096, %s8498, [#allocation6]
    $region17: #{tpu_custom_call.1} parent=1 // pred_fallthru
      _
    // Predicated region
    $region18: #{tpu_custom_call.1} parent=1 // pred_check
      _
    $region19: #{tpu_custom_call.1} parent=1 // pred_check_branch
      %8502 = sbr.rel (0) target = $region21
    $region20: #{tpu_custom_call.1} parent=1 // pred_region
      %8504 = dma.done [#allocation6], 4096
    $region21: #{tpu_custom_call.1} parent=1 // pred_fallthru
      _
    %8505 = vsyncpa [#allocation6], 1

</llo_original>
